<compile_context>
chip_gen: v5e
topology: v5e:2x2
jax: 0.10.0
libtpu: 0.0.40
codegen_flags: <defaults>
</compile_context>

<pallas_src>
import math

import jax
import jax.numpy as jnp
from jax.experimental import pallas as pl
from jax.experimental.pallas import tpu as pltpu


def _cdiv(a, b):
    return -(-a // b)


def _contrastive_bpr_kernel(x_ref, pos_ref, neg_ref, sel_ref, o_ref):
    """One tile of folded rows.

    x/pos/neg : (TMf, W) -- W = G*D lanes hold G original rows of D features.
    sel       : (W, G)   -- sel[j, g] = 1.0 iff j // D == g (segmented-sum matrix).
    o         : (TMf, G) -- softplus((x*neg).sum(-1) - (x*pos).sum(-1)) per row.
    """
    x = x_ref[...].astype(jnp.float32)
    pos = pos_ref[...].astype(jnp.float32)
    neg = neg_ref[...].astype(jnp.float32)

    # (x*neg).sum(-1) - (x*pos).sum(-1) == (x*(neg-pos)).sum(-1)
    p = x * (neg - pos)                                        # (TMf, W)

    # Per-original-row segmented sum over groups of D lanes, done on the MXU
    # (idle here).  HIGHEST precision keeps the f32 sums exact.
    logit = jnp.dot(p, sel_ref[...],
                    preferred_element_type=jnp.float32,
                    precision=jax.lax.Precision.HIGHEST)       # (TMf, G)

    # Numerically stable softplus (beta=1): max(z,0) + log1p(exp(-|z|)).
    sp = jnp.maximum(logit, 0.0) + jnp.log1p(jnp.exp(-jnp.abs(logit)))
    o_ref[...] = sp.astype(o_ref.dtype)


def contrastive_bpr(x, pos, neg):
    """x, pos, neg: [..., D] (f32 or bf16) -> loss: [...] (float32)."""
    assert x.shape == pos.shape == neg.shape
    *lead, D = x.shape
    N = math.prod(lead)

    xf = x.reshape(N, D)
    pf = pos.reshape(N, D)
    nf = neg.reshape(N, D)

    # ---- Fold factor G: pack G rows onto the lane axis of one super row.
    # Capped so the 0/1 selection matrix (W x G f32 = G*G*D*4 bytes) stays small.
    SEL_BUDGET = 4 * 2**20
    G = int(math.isqrt(max(1, SEL_BUDGET // (4 * D))))
    G = max(1, min(128, G))
    if G >= 8:
        G -= G % 8
    W = G * D

    # ---- Row tile (folded rows per grid step): target ~2 MiB per input block.
    BLK_TARGET = 2 * 2**20
    in_bytes = jnp.dtype(x.dtype).itemsize
    Nf = _cdiv(N, G)
    tmf = max(1, BLK_TARGET // (W * in_bytes))
    if Nf >= 32:
        tmf = min(tmf, _cdiv(Nf, 4))       # keep a few grid steps for pipelining/megacore
    if tmf >= Nf:
        TMf = Nf                           # single block along rows (block == array dim)
    elif tmf >= 8:
        TMf = tmf - tmf % 8                # sublane-aligned row tile
    else:
        TMf = tmf                          # extremely wide rows: tiny tile, still correct

    Nf_pad = _cdiv(Nf, TMf) * TMf
    Np = Nf_pad * G
    if Np != N:
        pad = ((0, Np - N), (0, 0))        # zero rows -> softplus(0), sliced off below
        xf = jnp.pad(xf, pad)
        pf = jnp.pad(pf, pad)
        nf = jnp.pad(nf, pad)

    # Free (contiguous) reshape: G consecutive rows per super row.
    xw = xf.reshape(Nf_pad, W)
    pw = pf.reshape(Nf_pad, W)
    nw = nf.reshape(Nf_pad, W)

    # 0/1 selection matrix for the segmented lane sum.
    grp = jax.lax.broadcasted_iota(jnp.int32, (W, G), 0) // D
    col = jax.lax.broadcasted_iota(jnp.int32, (W, G), 1)
    sel = (grp == col).astype(jnp.float32)

    grid = (Nf_pad // TMf,)
    row_spec = pl.BlockSpec((TMf, W), lambda i: (i, 0))
    out = pl.pallas_call(
        _contrastive_bpr_kernel,
        out_shape=jax.ShapeDtypeStruct((Nf_pad, G), jnp.float32),
        grid=grid,
        in_specs=[row_spec, row_spec, row_spec,
                  pl.BlockSpec((W, G), lambda i: (0, 0))],   # constant block: fetched once
        out_specs=pl.BlockSpec((TMf, G), lambda i: (i, 0)),
        compiler_params=pltpu.CompilerParams(
            dimension_semantics=("parallel",),
            vmem_limit_bytes=48 * 2**20,
        ),
    )(xw, pw, nw, sel)

    return out.reshape(Np)[:N].reshape(lead)


def _reference(x, pos, neg):
    x32, p32, n32 = (a.astype(jnp.float32) for a in (x, pos, neg))
    logit = jnp.sum(x32 * n32, axis=-1) - jnp.sum(x32 * p32, axis=-1)
    return jax.nn.softplus(logit)


if __name__ == "__main__":
    key = jax.random.PRNGKey(0)

    # Small shape consistent with the module: batch=2, items=16, hidden=32.
    k1, k2, k3 = jax.random.split(key, 3)
    B, S, D = 2, 16, 32
    x = jax.random.normal(k1, (B, S, D), dtype=jnp.float32)
    pos = jax.random.normal(k2, (B, S, D), dtype=jnp.float32)
    neg = jax.random.normal(k3, (B, S, D), dtype=jnp.float32)

    out = contrastive_bpr(x, pos, neg)
    jax.block_until_ready(out)
    assert out.shape == (B, S)
    assert jnp.allclose(out, _reference(x, pos, neg), atol=1e-5, rtol=1e-5)

    # Second shape: exercises row padding and a multi-step grid.
    k4, k5, k6 = jax.random.split(jax.random.PRNGKey(0), 3)
    B2, S2 = 3, 50
    x2 = jax.random.normal(k4, (B2, S2, D), dtype=jnp.float32)
    pos2 = jax.random.normal(k5, (B2, S2, D), dtype=jnp.float32)
    neg2 = jax.random.normal(k6, (B2, S2, D), dtype=jnp.float32)

    out2 = contrastive_bpr(x2, pos2, neg2)
    jax.block_until_ready(out2)
    assert out2.shape == (B2, S2)
    assert jnp.allclose(out2, _reference(x2, pos2, neg2), atol=1e-5, rtol=1e-5)

    print("KERNEL_OK")
</pallas_src>

<mosaic_0001>
module attributes {stable_mosaic.version = 11 : i64} {
  func.func @_contrastive_bpr_kernel(%arg0: i32, %arg1: memref<1x4096xf32, #tpu.memory_space<vmem>>, %arg2: memref<1x4096xf32, #tpu.memory_space<vmem>>, %arg3: memref<1x4096xf32, #tpu.memory_space<vmem>>, %arg4: memref<4096x128xf32, #tpu.memory_space<vmem>>, %arg5: memref<1x128xf32, #tpu.memory_space<vmem>>) attributes {dimension_semantics = [#tpu.dimension_semantics<parallel>], iteration_bounds = array<i64: 1>, scalar_prefetch = 0 : i64, scratch_operands = 0 : i64, tpu.core_type = #tpu.core_type<tc>, window_params = [{transform_indices = @transform_0, window_bounds = array<i64: 1, 4096>}, {transform_indices = @transform_1, window_bounds = array<i64: 1, 4096>}, {transform_indices = @transform_2, window_bounds = array<i64: 1, 4096>}, {pipeline_mode = #tpu.pipeline_mode<synchronous>, transform_indices = @transform_3, window_bounds = array<i64: 4096, 128>}, {transform_indices = @transform_4, window_bounds = array<i64: 1, 128>}]} {
    %c0 = arith.constant 0 : index
    %c0_0 = arith.constant 0 : index
    %0 = vector.load %arg1[%c0, %c0_0] : memref<1x4096xf32, #tpu.memory_space<vmem>>, vector<1x4096xf32>
    %c0_1 = arith.constant 0 : index
    %c0_2 = arith.constant 0 : index
    %1 = vector.load %arg2[%c0_1, %c0_2] : memref<1x4096xf32, #tpu.memory_space<vmem>>, vector<1x4096xf32>
    %c0_3 = arith.constant 0 : index
    %c0_4 = arith.constant 0 : index
    %2 = vector.load %arg3[%c0_3, %c0_4] : memref<1x4096xf32, #tpu.memory_space<vmem>>, vector<1x4096xf32>
    %3 = arith.subf %2, %1 : vector<1x4096xf32>
    %4 = arith.mulf %0, %3 : vector<1x4096xf32>
    %c0_5 = arith.constant 0 : index
    %c0_6 = arith.constant 0 : index
    %5 = vector.load %arg4[%c0_5, %c0_6] : memref<4096x128xf32, #tpu.memory_space<vmem>>, vector<4096x128xf32>
    %cst = arith.constant dense<0.000000e+00> : vector<1x128xf32>
    %6 = tpu.matmul %4, %5, %cst {dimension_numbers = #tpu.dot_dimension_numbers<[1], [0], [0], [1], [0, 0, 1, 1], [], []>, precision = #tpu.contract_precision<fp32>} : vector<1x4096xf32>, vector<4096x128xf32>, vector<1x128xf32> -> vector<1x128xf32>
    %cst_7 = arith.constant 0.000000e+00 : f32
    %7 = vector.broadcast %cst_7 : f32 to vector<1x128xf32>
    %8 = arith.maximumf %6, %7 : vector<1x128xf32>
    %9 = math.absf %6 : vector<1x128xf32>
    %cst_8 = arith.constant 0.000000e+00 : f32
    %10 = vector.broadcast %cst_8 : f32 to vector<1x128xf32>
    %11 = arith.subf %10, %9 : vector<1x128xf32>
    %12 = math.exp %11 : vector<1x128xf32>
    %13 = math.log1p %12 : vector<1x128xf32>
    %14 = arith.addf %8, %13 : vector<1x128xf32>
    %c0_9 = arith.constant 0 : index
    %c0_10 = arith.constant 0 : index
    %15 = vector.load %arg5[%c0_9, %c0_10] : memref<1x128xf32, #tpu.memory_space<vmem>>, vector<1x128xf32>
    tpu.vector_store %arg5[%c0_9, %c0_10], %14 {strides = array<i32>} : memref<1x128xf32, #tpu.memory_space<vmem>>, vector<1x128xf32>,
    return
  }
  func.func @transform_0(%arg0: i32) -> (i32, i32) {
    %c0_i32 = arith.constant 0 : i32
    %c0_i32_0 = arith.constant 0 : i32
    return %arg0, %c0_i32 : i32, i32
  }
  func.func @transform_1(%arg0: i32) -> (i32, i32) {
    %c0_i32 = arith.constant 0 : i32
    %c0_i32_0 = arith.constant 0 : i32
    return %arg0, %c0_i32 : i32, i32
  }
  func.func @transform_2(%arg0: i32) -> (i32, i32) {
    %c0_i32 = arith.constant 0 : i32
    %c0_i32_0 = arith.constant 0 : i32
    return %arg0, %c0_i32 : i32, i32
  }
  func.func @transform_3(%arg0: i32) -> (i32, i32) {
    %c0_i32 = arith.constant 0 : i32
    %c0_i32_0 = arith.constant 0 : i32
    %c0_i32_1 = arith.constant 0 : i32
    return %c0_i32, %c0_i32_0 : i32, i32
  }
  func.func @transform_4(%arg0: i32) -> (i32, i32) {
    %c0_i32 = arith.constant 0 : i32
    %c0_i32_0 = arith.constant 0 : i32
    return %arg0, %c0_i32 : i32, i32
  }
}

</mosaic_0001>

<llo_original>
// kernel: tpu_custom_call.1
$region0: #{tpu_custom_call.1}
  #allocation0 [shape = 'u32[]', space=smem, size = 0x4, offset = 0x4, fixed_abs, tag = 'smem constant byte address 0x4 - core index']
  #allocation1 [shape = 'u32[72,128]{1,0:T(1,128)}', space=vmem, size = 0x9000, scoped, tag = 'internal scratch']
  %s0 = inlined_call_operand.hbm [shape: f32[1,4096], index: 0, kind: input, shape index: {}]
  %s1 = inlined_call_operand.hbm [shape: f32[1,4096], index: 1, kind: input, shape index: {}]
  %s2 = inlined_call_operand.hbm [shape: f32[1,4096], index: 2, kind: input, shape index: {}]
  %s3 = inlined_call_operand.hbm [shape: f32[4096,128], index: 3, kind: input, shape index: {}]
  %s4 = inlined_call_operand.hbm [shape: f32[1,128], index: 4, kind: output, shape index: {}]
  %s5 = sld [smem:[#allocation0]]
  $region42: #{tpu_custom_call.1} parent=0
    _
  %s7 = ssub.s32 1, %s5
  %s8 = scalar_select 0, %s7, %s5
  $region1: #{tpu_custom_call.1} parent=0
    #allocation2 [shape = 'u8[16384]{0}', space=vmem, size = 0x4000, scoped, tag = 'input window, operand 0, single buffered']
    #allocation3 [shape = 's32[1]{0}', space=sflag, size = 0x4, scoped, tag = 'scoped memory for tpu_custom_call.1']
    #allocation4 [shape = 's32[1]{0}', space=sflag, size = 0x4, scoped, tag = 'scoped memory for tpu_custom_call.1']
    #allocation5 [shape = 'u8[16384]{0}', space=vmem, size = 0x4000, scoped, tag = 'input window, operand 1, single buffered']
    #allocation6 [shape = 's32[1]{0}', space=sflag, size = 0x4, scoped, tag = 'scoped memory for tpu_custom_call.1']
    #allocation7 [shape = 'u8[16384]{0}', space=vmem, size = 0x4000, scoped, tag = 'input window, operand 2, single buffered']
    #allocation8 [shape = 'u8[2097152]{0}', space=vmem, size = 0x200000, scoped, tag = 'input window, operand 3, single buffered']
    #allocation9 [shape = 's32[1]{0}', space=sflag, size = 0x4, scoped, tag = 'scoped memory for tpu_custom_call.1']
    #allocation10 [shape = 'u8[512]{0}', space=vmem, size = 0x400, scoped, tag = 'output window, operand 0, single buffered']
    %9 = vsyncpa [#allocation3], 0
    %10 = vsyncpa [#allocation6], 0
    %11 = vsyncpa [#allocation9], 0
    %12 = vsyncpa [#allocation4], 0
    // Predicated region
    $region2: #{tpu_custom_call.1} parent=1 // pred_check
      _
    $region3: #{tpu_custom_call.1} parent=1 // pred_check_branch
      %14 = sbr.rel (0) target = $region5
    $region4: #{tpu_custom_call.1} parent=1 // pred_region
      %16 = vsyncadd [#allocation3], 0
      %s18 = sshll.u32 %s0, 4
      %s19 = int_to_ptr.hbm [resolvable:$true] %s18
      %s20 = sshll.u32 [#allocation2], 4
      %s21 = int_to_ptr.vmem [resolvable:$true] %s20
      %23 = dma.hbm_to_vmem [thread:$0]  %s19, 512, %s21, [#allocation3]
    $region5: #{tpu_custom_call.1} parent=1 // pred_fallthru
      _
    // Predicated region
    $region6: #{tpu_custom_call.1} parent=1 // pred_check
      _
    $region7: #{tpu_custom_call.1} parent=1 // pred_check_branch
      %25 = sbr.rel (0) target = $region9
    $region8: #{tpu_custom_call.1} parent=1 // pred_region
      %27 = vsyncadd [#allocation6], 0
      %s29 = sshll.u32 %s1, 4
      %s30 = int_to_ptr.hbm [resolvable:$true] %s29
      %s31 = sshll.u32 [#allocation5], 4
      %s32 = int_to_ptr.vmem [resolvable:$true] %s31
      %34 = dma.hbm_to_vmem [thread:$0]  %s30, 512, %s32, [#allocation6]
    $region9: #{tpu_custom_call.1} parent=1 // pred_fallthru
      _
    // Predicated region
    $region10: #{tpu_custom_call.1} parent=1 // pred_check
      _
    $region11: #{tpu_custom_call.1} parent=1 // pred_check_branch
      %36 = sbr.rel (0) target = $region13
    $region12: #{tpu_custom_call.1} parent=1 // pred_region
      %38 = vsyncadd [#allocation6], 0
      %s40 = sshll.u32 %s2, 4
      %s41 = int_to_ptr.hbm [resolvable:$true] %s40
      %s42 = sshll.u32 [#allocation7], 4
      %s43 = int_to_ptr.vmem [resolvable:$true] %s42
      %45 = dma.hbm_to_vmem [thread:$0]  %s41, 512, %s43, [#allocation6]
    $region13: #{tpu_custom_call.1} parent=1 // pred_fallthru
      _
    // Predicated region
    $region14: #{tpu_custom_call.1} parent=1 // pred_check
      _
    $region15: #{tpu_custom_call.1} parent=1 // pred_check_branch
      %47 = sbr.rel (0) target = $region17
    $region16: #{tpu_custom_call.1} parent=1 // pred_region
      %49 = vsyncadd [#allocation9], 0
      %s50 = sshll.u32 %s3, 4
      %s51 = int_to_ptr.hbm [resolvable:$true] %s50
      %s52 = sshll.u32 [#allocation8], 4
      %s53 = int_to_ptr.vmem [resolvable:$true] %s52
      %58 = dma.hbm_to_vmem [thread:$0]  %s51, 65536, %s53, [#allocation9], 128, 128, 8
    $region17: #{tpu_custom_call.1} parent=1 // pred_fallthru
      _
    // Predicated region
    $region18: #{tpu_custom_call.1} parent=1 // pred_check
      _
    $region19: #{tpu_custom_call.1} parent=1 // pred_check_branch
      %60 = sbr.rel (0) target = $region21
    $region20: #{tpu_custom_call.1} parent=1 // pred_region
      %62 = dma.done [#allocation3], 512
    $region21: #{tpu_custom_call.1} parent=1 // pred_fallthru
      _
    // Predicated region
    $region22: #{tpu_custom_call.1} parent=1 // pred_check
      _
    $region23: #{tpu_custom_call.1} parent=1 // pred_check_branch
      %64 = sbr.rel (0) target = $region25
    $region24: #{tpu_custom_call.1} parent=1 // pred_region
      %66 = dma.done [#allocation6], 512
    $region25: #{tpu_custom_call.1} parent=1 // pred_fallthru
      _
    // Predicated region
    $region26: #{tpu_custom_call.1} parent=1 // pred_check
      _
    $region27: #{tpu_custom_call.1} parent=1 // pred_check_branch
      %68 = sbr.rel (0) target = $region29
    $region28: #{tpu_custom_call.1} parent=1 // pred_region
      %70 = dma.done [#allocation6], 512
    $region29: #{tpu_custom_call.1} parent=1 // pred_fallthru
      _
    // Predicated region
    $region30: #{tpu_custom_call.1} parent=1 // pred_check
      _
    $region31: #{tpu_custom_call.1} parent=1 // pred_check_branch
      %72 = sbr.rel (0) target = $region33
    $region32: #{tpu_custom_call.1} parent=1 // pred_region
      %74 = dma.done [#allocation9], 65536
    $region33: #{tpu_custom_call.1} parent=1 // pred_fallthru
      _
    %v75 = vld [vmem:[#allocation2] sm:$0xff]
    %v76 = vld [vmem:[#allocation2 + $0x8] sm:$0xff]
    %v77 = vld [vmem:[#allocation2 + $0x10] sm:$0xff]
    %v78 = vld [vmem:[#allocation2 + $0x18] sm:$0xff]
    %v79 = vld [vmem:[#allocation5] sm:$0xff]
    %v80 = vld [vmem:[#allocation5 + $0x8] sm:$0xff]
    %v81 = vld [vmem:[#allocation5 + $0x10] sm:$0xff]
    %v82 = vld [vmem:[#allocation5 + $0x18] sm:$0xff]
    %v83 = vld [vmem:[#allocation7] sm:$0xff]
    %v84 = vld [vmem:[#allocation7 + $0x8] sm:$0xff]
    %v85 = vld [vmem:[#allocation7 + $0x10] sm:$0xff]
    %v86 = vld [vmem:[#allocation7 + $0x18] sm:$0xff]
    %v87 = vsub.f32 %v83, %v79
    %v88 = vsub.f32 %v84, %v80
    %v89 = vsub.f32 %v85, %v81
    %v90 = vsub.f32 %v86, %v82
    %v91 = vmul.f32 %v75, %v87
    %v92 = vmul.f32 %v76, %v88
    %v93 = vmul.f32 %v77, %v89
    %v94 = vmul.f32 %v78, %v90
    %v95 = vld [vmem:[#allocation8] sm:$0xff]
    %v96 = vld [vmem:[#allocation8 + $0x8] sm:$0xff]
    %v97 = vld [vmem:[#allocation8 + $0x10] sm:$0xff]
    %v98 = vld [vmem:[#allocation8 + $0x18] sm:$0xff]
    %v99 = vld [vmem:[#allocation8 + $0x20] sm:$0xff]
    %v100 = vld [vmem:[#allocation8 + $0x28] sm:$0xff]
    %v101 = vld [vmem:[#allocation8 + $0x30] sm:$0xff]
    %v102 = vld [vmem:[#allocation8 + $0x38] sm:$0xff]
    %v103 = vld [vmem:[#allocation8 + $0x40] sm:$0xff]
    %v104 = vld [vmem:[#allocation8 + $0x48] sm:$0xff]
    %v105 = vld [vmem:[#allocation8 + $0x50] sm:$0xff]
    %v106 = vld [vmem:[#allocation8 + $0x58] sm:$0xff]
    %v107 = vld [vmem:[#allocation8 + $0x60] sm:$0xff]
    %v108 = vld [vmem:[#allocation8 + $0x68] sm:$0xff]
    %v109 = vld [vmem:[#allocation8 + $0x70] sm:$0xff]
    %v110 = vld [vmem:[#allocation8 + $0x78] sm:$0xff]
    %v111 = vld [vmem:[#allocation8 + $0x80] sm:$0xff]
    %v112 = vld [vmem:[#allocation8 + $0x88] sm:$0xff]
    %v113 = vld [vmem:[#allocation8 + $0x90] sm:$0xff]
    %v114 = vld [vmem:[#allocation8 + $0x98] sm:$0xff]
    %v115 = vld [vmem:[#allocation8 + $0xa0] sm:$0xff]
    %v116 = vld [vmem:[#allocation8 + $0xa8] sm:$0xff]
    %v117 = vld [vmem:[#allocation8 + $0xb0] sm:$0xff]
    %v118 = vld [vmem:[#allocation8 + $0xb8] sm:$0xff]
    %v119 = vld [vmem:[#allocation8 + $0xc0] sm:$0xff]
    %v120 = vld [vmem:[#allocation8 + $0xc8] sm:$0xff]
    %v121 = vld [vmem:[#allocation8 + $0xd0] sm:$0xff]
    %v122 = vld [vmem:[#allocation8 + $0xd8] sm:$0xff]
    %v123 = vld [vmem:[#allocation8 + $0xe0] sm:$0xff]
    %v124 = vld [vmem:[#allocation8 + $0xe8] sm:$0xff]
    %v125 = vld [vmem:[#allocation8 + $0xf0] sm:$0xff]
    %v126 = vld [vmem:[#allocation8 + $0xf8] sm:$0xff]
    %v127 = vld [vmem:[#allocation8 + $0x100] sm:$0xff]
    %v128 = vld [vmem:[#allocation8 + $0x108] sm:$0xff]
    %v129 = vld [vmem:[#allocation8 + $0x110] sm:$0xff]
    %v130 = vld [vmem:[#allocation8 + $0x118] sm:$0xff]
    %v131 = vld [vmem:[#allocation8 + $0x120] sm:$0xff]
    %v132 = vld [vmem:[#allocation8 + $0x128] sm:$0xff]
    %v133 = vld [vmem:[#allocation8 + $0x130] sm:$0xff]
    %v134 = vld [vmem:[#allocation8 + $0x138] sm:$0xff]
    %v135 = vld [vmem:[#allocation8 + $0x140] sm:$0xff]
    %v136 = vld [vmem:[#allocation8 + $0x148] sm:$0xff]
    %v137 = vld [vmem:[#allocation8 + $0x150] sm:$0xff]
    %v138 = vld [vmem:[#allocation8 + $0x158] sm:$0xff]
    %v139 = vld [vmem:[#allocation8 + $0x160] sm:$0xff]
    %v140 = vld [vmem:[#allocation8 + $0x168] sm:$0xff]
    %v141 = vld [vmem:[#allocation8 + $0x170] sm:$0xff]
    %v142 = vld [vmem:[#allocation8 + $0x178] sm:$0xff]
    %v143 = vld [vmem:[#allocation8 + $0x180] sm:$0xff]
    %v144 = vld [vmem:[#allocation8 + $0x188] sm:$0xff]
    %v145 = vld [vmem:[#allocation8 + $0x190] sm:$0xff]
    %v146 = vld [vmem:[#allocation8 + $0x198] sm:$0xff]
    %v147 = vld [vmem:[#allocation8 + $0x1a0] sm:$0xff]
    %v148 = vld [vmem:[#allocation8 + $0x1a8] sm:$0xff]
    %v149 = vld [vmem:[#allocation8 + $0x1b0] sm:$0xff]
    %v150 = vld [vmem:[#allocation8 + $0x1b8] sm:$0xff]
    %v151 = vld [vmem:[#allocation8 + $0x1c0] sm:$0xff]
    %v152 = vld [vmem:[#allocation8 + $0x1c8] sm:$0xff]
    %v153 = vld [vmem:[#allocation8 + $0x1d0] sm:$0xff]
    %v154 = vld [vmem:[#allocation8 + $0x1d8] sm:$0xff]
    %v155 = vld [vmem:[#allocation8 + $0x1e0] sm:$0xff]
    %v156 = vld [vmem:[#allocation8 + $0x1e8] sm:$0xff]
    %v157 = vld [vmem:[#allocation8 + $0x1f0] sm:$0xff]
    %v158 = vld [vmem:[#allocation8 + $0x1f8] sm:$0xff]
    %v159 = vld [vmem:[#allocation8 + $0x200] sm:$0xff]
    %v160 = vld [vmem:[#allocation8 + $0x208] sm:$0xff]
    %v161 = vld [vmem:[#allocation8 + $0x210] sm:$0xff]
    %v162 = vld [vmem:[#allocation8 + $0x218] sm:$0xff]
    %v163 = vld [vmem:[#allocation8 + $0x220] sm:$0xff]
    %v164 = vld [vmem:[#allocation8 + $0x228] sm:$0xff]
    %v165 = vld [vmem:[#allocation8 + $0x230] sm:$0xff]
    %v166 = vld [vmem:[#allocation8 + $0x238] sm:$0xff]
    %v167 = vld [vmem:[#allocation8 + $0x240] sm:$0xff]
    %v168 = vld [vmem:[#allocation8 + $0x248] sm:$0xff]
    %v169 = vld [vmem:[#allocation8 + $0x250] sm:$0xff]
    %v170 = vld [vmem:[#allocation8 + $0x258] sm:$0xff]
    %v171 = vld [vmem:[#allocation8 + $0x260] sm:$0xff]
    %v172 = vld [vmem:[#allocation8 + $0x268] sm:$0xff]
    %v173 = vld [vmem:[#allocation8 + $0x270] sm:$0xff]
    %v174 = vld [vmem:[#allocation8 + $0x278] sm:$0xff]
    %v175 = vld [vmem:[#allocation8 + $0x280] sm:$0xff]
    %v176 = vld [vmem:[#allocation8 + $0x288] sm:$0xff]
    %v177 = vld [vmem:[#allocation8 + $0x290] sm:$0xff]
    %v178 = vld [vmem:[#allocation8 + $0x298] sm:$0xff]
    %v179 = vld [vmem:[#allocation8 + $0x2a0] sm:$0xff]
    %v180 = vld [vmem:[#allocation8 + $0x2a8] sm:$0xff]
    %v181 = vld [vmem:[#allocation8 + $0x2b0] sm:$0xff]
    %v182 = vld [vmem:[#allocation8 + $0x2b8] sm:$0xff]
    %v183 = vld [vmem:[#allocation8 + $0x2c0] sm:$0xff]
    %v184 = vld [vmem:[#allocation8 + $0x2c8] sm:$0xff]
    %v185 = vld [vmem:[#allocation8 + $0x2d0] sm:$0xff]
    %v186 = vld [vmem:[#allocation8 + $0x2d8] sm:$0xff]
    %v187 = vld [vmem:[#allocation8 + $0x2e0] sm:$0xff]
    %v188 = vld [vmem:[#allocation8 + $0x2e8] sm:$0xff]
    %v189 = vld [vmem:[#allocation8 + $0x2f0] sm:$0xff]
    %v190 = vld [vmem:[#allocation8 + $0x2f8] sm:$0xff]
    %v191 = vld [vmem:[#allocation8 + $0x300] sm:$0xff]
    %v192 = vld [vmem:[#allocation8 + $0x308] sm:$0xff]
    %v193 = vld [vmem:[#allocation8 + $0x310] sm:$0xff]
    %v194 = vld [vmem:[#allocation8 + $0x318] sm:$0xff]
    %v195 = vld [vmem:[#allocation8 + $0x320] sm:$0xff]
    %v196 = vld [vmem:[#allocation8 + $0x328] sm:$0xff]
    %v197 = vld [vmem:[#allocation8 + $0x330] sm:$0xff]
    %v198 = vld [vmem:[#allocation8 + $0x338] sm:$0xff]
    %v199 = vld [vmem:[#allocation8 + $0x340] sm:$0xff]
    %v200 = vld [vmem:[#allocation8 + $0x348] sm:$0xff]
    %v201 = vld [vmem:[#allocation8 + $0x350] sm:$0xff]
    %v202 = vld [vmem:[#allocation8 + $0x358] sm:$0xff]
    %v203 = vld [vmem:[#allocation8 + $0x360] sm:$0xff]
    %v204 = vld [vmem:[#allocation8 + $0x368] sm:$0xff]
    %v205 = vld [vmem:[#allocation8 + $0x370] sm:$0xff]
    %v206 = vld [vmem:[#allocation8 + $0x378] sm:$0xff]
    %v207 = vld [vmem:[#allocation8 + $0x380] sm:$0xff]
    %v208 = vld [vmem:[#allocation8 + $0x388] sm:$0xff]
    %v209 = vld [vmem:[#allocation8 + $0x390] sm:$0xff]
    %v210 = vld [vmem:[#allocation8 + $0x398] sm:$0xff]
    %v211 = vld [vmem:[#allocation8 + $0x3a0] sm:$0xff]
    %v212 = vld [vmem:[#allocation8 + $0x3a8] sm:$0xff]
    %v213 = vld [vmem:[#allocation8 + $0x3b0] sm:$0xff]
    %v214 = vld [vmem:[#allocation8 + $0x3b8] sm:$0xff]
    %v215 = vld [vmem:[#allocation8 + $0x3c0] sm:$0xff]
    %v216 = vld [vmem:[#allocation8 + $0x3c8] sm:$0xff]
    %v217 = vld [vmem:[#allocation8 + $0x3d0] sm:$0xff]
    %v218 = vld [vmem:[#allocation8 + $0x3d8] sm:$0xff]
    %v219 = vld [vmem:[#allocation8 + $0x3e0] sm:$0xff]
    %v220 = vld [vmem:[#allocation8 + $0x3e8] sm:$0xff]
    %v221 = vld [vmem:[#allocation8 + $0x3f0] sm:$0xff]
    %v222 = vld [vmem:[#allocation8 + $0x3f8] sm:$0xff]
    %v223 = vld [vmem:[#allocation8 + $0x400] sm:$0xff]
    %v224 = vld [vmem:[#allocation8 + $0x408] sm:$0xff]
    %v225 = vld [vmem:[#allocation8 + $0x410] sm:$0xff]
    %v226 = vld [vmem:[#allocation8 + $0x418] sm:$0xff]
    %v227 = vld [vmem:[#allocation8 + $0x420] sm:$0xff]
    %v228 = vld [vmem:[#allocation8 + $0x428] sm:$0xff]
    %v229 = vld [vmem:[#allocation8 + $0x430] sm:$0xff]
    %v230 = vld [vmem:[#allocation8 + $0x438] sm:$0xff]
    %v231 = vld [vmem:[#allocation8 + $0x440] sm:$0xff]
    %v232 = vld [vmem:[#allocation8 + $0x448] sm:$0xff]
    %v233 = vld [vmem:[#allocation8 + $0x450] sm:$0xff]
    %v234 = vld [vmem:[#allocation8 + $0x458] sm:$0xff]
    %v235 = vld [vmem:[#allocation8 + $0x460] sm:$0xff]
    %v236 = vld [vmem:[#allocation8 + $0x468] sm:$0xff]
    %v237 = vld [vmem:[#allocation8 + $0x470] sm:$0xff]
    %v238 = vld [vmem:[#allocation8 + $0x478] sm:$0xff]
    %v239 = vld [vmem:[#allocation8 + $0x480] sm:$0xff]
    %v240 = vld [vmem:[#allocation8 + $0x488] sm:$0xff]
    %v241 = vld [vmem:[#allocation8 + $0x490] sm:$0xff]
    %v242 = vld [vmem:[#allocation8 + $0x498] sm:$0xff]
    %v243 = vld [vmem:[#allocation8 + $0x4a0] sm:$0xff]
    %v244 = vld [vmem:[#allocation8 + $0x4a8] sm:$0xff]
    %v245 = vld [vmem:[#allocation8 + $0x4b0] sm:$0xff]
    %v246 = vld [vmem:[#allocation8 + $0x4b8] sm:$0xff]
    %v247 = vld [vmem:[#allocation8 + $0x4c0] sm:$0xff]
    %v248 = vld [vmem:[#allocation8 + $0x4c8] sm:$0xff]
    %v249 = vld [vmem:[#allocation8 + $0x4d0] sm:$0xff]
    %v250 = vld [vmem:[#allocation8 + $0x4d8] sm:$0xff]
    %v251 = vld [vmem:[#allocation8 + $0x4e0] sm:$0xff]
    %v252 = vld [vmem:[#allocation8 + $0x4e8] sm:$0xff]
    %v253 = vld [vmem:[#allocation8 + $0x4f0] sm:$0xff]
    %v254 = vld [vmem:[#allocation8 + $0x4f8] sm:$0xff]
    %v255 = vld [vmem:[#allocation8 + $0x500] sm:$0xff]
    %v256 = vld [vmem:[#allocation8 + $0x508] sm:$0xff]
    %v257 = vld [vmem:[#allocation8 + $0x510] sm:$0xff]
    %v258 = vld [vmem:[#allocation8 + $0x518] sm:$0xff]
    %v259 = vld [vmem:[#allocation8 + $0x520] sm:$0xff]
    %v260 = vld [vmem:[#allocation8 + $0x528] sm:$0xff]
    %v261 = vld [vmem:[#allocation8 + $0x530] sm:$0xff]
    %v262 = vld [vmem:[#allocation8 + $0x538] sm:$0xff]
    %v263 = vld [vmem:[#allocation8 + $0x540] sm:$0xff]
    %v264 = vld [vmem:[#allocation8 + $0x548] sm:$0xff]
    %v265 = vld [vmem:[#allocation8 + $0x550] sm:$0xff]
    %v266 = vld [vmem:[#allocation8 + $0x558] sm:$0xff]
    %v267 = vld [vmem:[#allocation8 + $0x560] sm:$0xff]
    %v268 = vld [vmem:[#allocation8 + $0x568] sm:$0xff]
    %v269 = vld [vmem:[#allocation8 + $0x570] sm:$0xff]
    %v270 = vld [vmem:[#allocation8 + $0x578] sm:$0xff]
    %v271 = vld [vmem:[#allocation8 + $0x580] sm:$0xff]
    %v272 = vld [vmem:[#allocation8 + $0x588] sm:$0xff]
    %v273 = vld [vmem:[#allocation8 + $0x590] sm:$0xff]
    %v274 = vld [vmem:[#allocation8 + $0x598] sm:$0xff]
    %v275 = vld [vmem:[#allocation8 + $0x5a0] sm:$0xff]
    %v276 = vld [vmem:[#allocation8 + $0x5a8] sm:$0xff]
    %v277 = vld [vmem:[#allocation8 + $0x5b0] sm:$0xff]
    %v278 = vld [vmem:[#allocation8 + $0x5b8] sm:$0xff]
    %v279 = vld [vmem:[#allocation8 + $0x5c0] sm:$0xff]
    %v280 = vld [vmem:[#allocation8 + $0x5c8] sm:$0xff]
    %v281 = vld [vmem:[#allocation8 + $0x5d0] sm:$0xff]
    %v282 = vld [vmem:[#allocation8 + $0x5d8] sm:$0xff]
    %v283 = vld [vmem:[#allocation8 + $0x5e0] sm:$0xff]
    %v284 = vld [vmem:[#allocation8 + $0x5e8] sm:$0xff]
    %v285 = vld [vmem:[#allocation8 + $0x5f0] sm:$0xff]
    %v286 = vld [vmem:[#allocation8 + $0x5f8] sm:$0xff]
    %v287 = vld [vmem:[#allocation8 + $0x600] sm:$0xff]
    %v288 = vld [vmem:[#allocation8 + $0x608] sm:$0xff]
    %v289 = vld [vmem:[#allocation8 + $0x610] sm:$0xff]
    %v290 = vld [vmem:[#allocation8 + $0x618] sm:$0xff]
    %v291 = vld [vmem:[#allocation8 + $0x620] sm:$0xff]
    %v292 = vld [vmem:[#allocation8 + $0x628] sm:$0xff]
    %v293 = vld [vmem:[#allocation8 + $0x630] sm:$0xff]
    %v294 = vld [vmem:[#allocation8 + $0x638] sm:$0xff]
    %v295 = vld [vmem:[#allocation8 + $0x640] sm:$0xff]
    %v296 = vld [vmem:[#allocation8 + $0x648] sm:$0xff]
    %v297 = vld [vmem:[#allocation8 + $0x650] sm:$0xff]
    %v298 = vld [vmem:[#allocation8 + $0x658] sm:$0xff]
    %v299 = vld [vmem:[#allocation8 + $0x660] sm:$0xff]
    %v300 = vld [vmem:[#allocation8 + $0x668] sm:$0xff]
    %v301 = vld [vmem:[#allocation8 + $0x670] sm:$0xff]
    %v302 = vld [vmem:[#allocation8 + $0x678] sm:$0xff]
    %v303 = vld [vmem:[#allocation8 + $0x680] sm:$0xff]
    %v304 = vld [vmem:[#allocation8 + $0x688] sm:$0xff]
    %v305 = vld [vmem:[#allocation8 + $0x690] sm:$0xff]
    %v306 = vld [vmem:[#allocation8 + $0x698] sm:$0xff]
    %v307 = vld [vmem:[#allocation8 + $0x6a0] sm:$0xff]
    %v308 = vld [vmem:[#allocation8 + $0x6a8] sm:$0xff]
    %v309 = vld [vmem:[#allocation8 + $0x6b0] sm:$0xff]
    %v310 = vld [vmem:[#allocation8 + $0x6b8] sm:$0xff]
    %v311 = vld [vmem:[#allocation8 + $0x6c0] sm:$0xff]
    %v312 = vld [vmem:[#allocation8 + $0x6c8] sm:$0xff]
    %v313 = vld [vmem:[#allocation8 + $0x6d0] sm:$0xff]
    %v314 = vld [vmem:[#allocation8 + $0x6d8] sm:$0xff]
    %v315 = vld [vmem:[#allocation8 + $0x6e0] sm:$0xff]
    %v316 = vld [vmem:[#allocation8 + $0x6e8] sm:$0xff]
    %v317 = vld [vmem:[#allocation8 + $0x6f0] sm:$0xff]
    %v318 = vld [vmem:[#allocation8 + $0x6f8] sm:$0xff]
    %v319 = vld [vmem:[#allocation8 + $0x700] sm:$0xff]
    %v320 = vld [vmem:[#allocation8 + $0x708] sm:$0xff]
    %v321 = vld [vmem:[#allocation8 + $0x710] sm:$0xff]
    %v322 = vld [vmem:[#allocation8 + $0x718] sm:$0xff]
    %v323 = vld [vmem:[#allocation8 + $0x720] sm:$0xff]
    %v324 = vld [vmem:[#allocation8 + $0x728] sm:$0xff]
    %v325 = vld [vmem:[#allocation8 + $0x730] sm:$0xff]
    %v326 = vld [vmem:[#allocation8 + $0x738] sm:$0xff]
    %v327 = vld [vmem:[#allocation8 + $0x740] sm:$0xff]
    %v328 = vld [vmem:[#allocation8 + $0x748] sm:$0xff]
    %v329 = vld [vmem:[#allocation8 + $0x750] sm:$0xff]
    %v330 = vld [vmem:[#allocation8 + $0x758] sm:$0xff]
    %v331 = vld [vmem:[#allocation8 + $0x760] sm:$0xff]
    %v332 = vld [vmem:[#allocation8 + $0x768] sm:$0xff]
    %v333 = vld [vmem:[#allocation8 + $0x770] sm:$0xff]
    %v334 = vld [vmem:[#allocation8 + $0x778] sm:$0xff]
    %v335 = vld [vmem:[#allocation8 + $0x780] sm:$0xff]
    %v336 = vld [vmem:[#allocation8 + $0x788] sm:$0xff]
    %v337 = vld [vmem:[#allocation8 + $0x790] sm:$0xff]
    %v338 = vld [vmem:[#allocation8 + $0x798] sm:$0xff]
    %v339 = vld [vmem:[#allocation8 + $0x7a0] sm:$0xff]
    %v340 = vld [vmem:[#allocation8 + $0x7a8] sm:$0xff]
    %v341 = vld [vmem:[#allocation8 + $0x7b0] sm:$0xff]
    %v342 = vld [vmem:[#allocation8 + $0x7b8] sm:$0xff]
    %v343 = vld [vmem:[#allocation8 + $0x7c0] sm:$0xff]
    %v344 = vld [vmem:[#allocation8 + $0x7c8] sm:$0xff]
    %v345 = vld [vmem:[#allocation8 + $0x7d0] sm:$0xff]
    %v346 = vld [vmem:[#allocation8 + $0x7d8] sm:$0xff]
    %v347 = vld [vmem:[#allocation8 + $0x7e0] sm:$0xff]
    %v348 = vld [vmem:[#allocation8 + $0x7e8] sm:$0xff]
    %v349 = vld [vmem:[#allocation8 + $0x7f0] sm:$0xff]
    %v350 = vld [vmem:[#allocation8 + $0x7f8] sm:$0xff]
    %v351 = vld [vmem:[#allocation8 + $0x800] sm:$0xff]
    %v352 = vld [vmem:[#allocation8 + $0x808] sm:$0xff]
    %v353 = vld [vmem:[#allocation8 + $0x810] sm:$0xff]
    %v354 = vld [vmem:[#allocation8 + $0x818] sm:$0xff]
    %v355 = vld [vmem:[#allocation8 + $0x820] sm:$0xff]
    %v356 = vld [vmem:[#allocation8 + $0x828] sm:$0xff]
    %v357 = vld [vmem:[#allocation8 + $0x830] sm:$0xff]
    %v358 = vld [vmem:[#allocation8 + $0x838] sm:$0xff]
    %v359 = vld [vmem:[#allocation8 + $0x840] sm:$0xff]
    %v360 = vld [vmem:[#allocation8 + $0x848] sm:$0xff]
    %v361 = vld [vmem:[#allocation8 + $0x850] sm:$0xff]
    %v362 = vld [vmem:[#allocation8 + $0x858] sm:$0xff]
    %v363 = vld [vmem:[#allocation8 + $0x860] sm:$0xff]
    %v364 = vld [vmem:[#allocation8 + $0x868] sm:$0xff]
    %v365 = vld [vmem:[#allocation8 + $0x870] sm:$0xff]
    %v366 = vld [vmem:[#allocation8 + $0x878] sm:$0xff]
    %v367 = vld [vmem:[#allocation8 + $0x880] sm:$0xff]
    %v368 = vld [vmem:[#allocation8 + $0x888] sm:$0xff]
    %v369 = vld [vmem:[#allocation8 + $0x890] sm:$0xff]
    %v370 = vld [vmem:[#allocation8 + $0x898] sm:$0xff]
    %v371 = vld [vmem:[#allocation8 + $0x8a0] sm:$0xff]
    %v372 = vld [vmem:[#allocation8 + $0x8a8] sm:$0xff]
    %v373 = vld [vmem:[#allocation8 + $0x8b0] sm:$0xff]
    %v374 = vld [vmem:[#allocation8 + $0x8b8] sm:$0xff]
    %v375 = vld [vmem:[#allocation8 + $0x8c0] sm:$0xff]
    %v376 = vld [vmem:[#allocation8 + $0x8c8] sm:$0xff]
    %v377 = vld [vmem:[#allocation8 + $0x8d0] sm:$0xff]
    %v378 = vld [vmem:[#allocation8 + $0x8d8] sm:$0xff]
    %v379 = vld [vmem:[#allocation8 + $0x8e0] sm:$0xff]
    %v380 = vld [vmem:[#allocation8 + $0x8e8] sm:$0xff]
    %v381 = vld [vmem:[#allocation8 + $0x8f0] sm:$0xff]
    %v382 = vld [vmem:[#allocation8 + $0x8f8] sm:$0xff]
    %v383 = vld [vmem:[#allocation8 + $0x900] sm:$0xff]
    %v384 = vld [vmem:[#allocation8 + $0x908] sm:$0xff]
    %v385 = vld [vmem:[#allocation8 + $0x910] sm:$0xff]
    %v386 = vld [vmem:[#allocation8 + $0x918] sm:$0xff]
    %v387 = vld [vmem:[#allocation8 + $0x920] sm:$0xff]
    %v388 = vld [vmem:[#allocation8 + $0x928] sm:$0xff]
    %v389 = vld [vmem:[#allocation8 + $0x930] sm:$0xff]
    %v390 = vld [vmem:[#allocation8 + $0x938] sm:$0xff]
    %v391 = vld [vmem:[#allocation8 + $0x940] sm:$0xff]
    %v392 = vld [vmem:[#allocation8 + $0x948] sm:$0xff]
    %v393 = vld [vmem:[#allocation8 + $0x950] sm:$0xff]
    %v394 = vld [vmem:[#allocation8 + $0x958] sm:$0xff]
    %v395 = vld [vmem:[#allocation8 + $0x960] sm:$0xff]
    %v396 = vld [vmem:[#allocation8 + $0x968] sm:$0xff]
    %v397 = vld [vmem:[#allocation8 + $0x970] sm:$0xff]
    %v398 = vld [vmem:[#allocation8 + $0x978] sm:$0xff]
    %v399 = vld [vmem:[#allocation8 + $0x980] sm:$0xff]
    %v400 = vld [vmem:[#allocation8 + $0x988] sm:$0xff]
    %v401 = vld [vmem:[#allocation8 + $0x990] sm:$0xff]
    %v402 = vld [vmem:[#allocation8 + $0x998] sm:$0xff]
    %v403 = vld [vmem:[#allocation8 + $0x9a0] sm:$0xff]
    %v404 = vld [vmem:[#allocation8 + $0x9a8] sm:$0xff]
    %v405 = vld [vmem:[#allocation8 + $0x9b0] sm:$0xff]
    %v406 = vld [vmem:[#allocation8 + $0x9b8] sm:$0xff]
    %v407 = vld [vmem:[#allocation8 + $0x9c0] sm:$0xff]
    %v408 = vld [vmem:[#allocation8 + $0x9c8] sm:$0xff]
    %v409 = vld [vmem:[#allocation8 + $0x9d0] sm:$0xff]
    %v410 = vld [vmem:[#allocation8 + $0x9d8] sm:$0xff]
    %v411 = vld [vmem:[#allocation8 + $0x9e0] sm:$0xff]
    %v412 = vld [vmem:[#allocation8 + $0x9e8] sm:$0xff]
    %v413 = vld [vmem:[#allocation8 + $0x9f0] sm:$0xff]
    %v414 = vld [vmem:[#allocation8 + $0x9f8] sm:$0xff]
    %v415 = vld [vmem:[#allocation8 + $0xa00] sm:$0xff]
    %v416 = vld [vmem:[#allocation8 + $0xa08] sm:$0xff]
    %v417 = vld [vmem:[#allocation8 + $0xa10] sm:$0xff]
    %v418 = vld [vmem:[#allocation8 + $0xa18] sm:$0xff]
    %v419 = vld [vmem:[#allocation8 + $0xa20] sm:$0xff]
    %v420 = vld [vmem:[#allocation8 + $0xa28] sm:$0xff]
    %v421 = vld [vmem:[#allocation8 + $0xa30] sm:$0xff]
    %v422 = vld [vmem:[#allocation8 + $0xa38] sm:$0xff]
    %v423 = vld [vmem:[#allocation8 + $0xa40] sm:$0xff]
    %v424 = vld [vmem:[#allocation8 + $0xa48] sm:$0xff]
    %v425 = vld [vmem:[#allocation8 + $0xa50] sm:$0xff]
    %v426 = vld [vmem:[#allocation8 + $0xa58] sm:$0xff]
    %v427 = vld [vmem:[#allocation8 + $0xa60] sm:$0xff]
    %v428 = vld [vmem:[#allocation8 + $0xa68] sm:$0xff]
    %v429 = vld [vmem:[#allocation8 + $0xa70] sm:$0xff]
    %v430 = vld [vmem:[#allocation8 + $0xa78] sm:$0xff]
    %v431 = vld [vmem:[#allocation8 + $0xa80] sm:$0xff]
    %v432 = vld [vmem:[#allocation8 + $0xa88] sm:$0xff]
    %v433 = vld [vmem:[#allocation8 + $0xa90] sm:$0xff]
    %v434 = vld [vmem:[#allocation8 + $0xa98] sm:$0xff]
    %v435 = vld [vmem:[#allocation8 + $0xaa0] sm:$0xff]
    %v436 = vld [vmem:[#allocation8 + $0xaa8] sm:$0xff]
    %v437 = vld [vmem:[#allocation8 + $0xab0] sm:$0xff]
    %v438 = vld [vmem:[#allocation8 + $0xab8] sm:$0xff]
    %v439 = vld [vmem:[#allocation8 + $0xac0] sm:$0xff]
    %v440 = vld [vmem:[#allocation8 + $0xac8] sm:$0xff]
    %v441 = vld [vmem:[#allocation8 + $0xad0] sm:$0xff]
    %v442 = vld [vmem:[#allocation8 + $0xad8] sm:$0xff]
    %v443 = vld [vmem:[#allocation8 + $0xae0] sm:$0xff]
    %v444 = vld [vmem:[#allocation8 + $0xae8] sm:$0xff]
    %v445 = vld [vmem:[#allocation8 + $0xaf0] sm:$0xff]
    %v446 = vld [vmem:[#allocation8 + $0xaf8] sm:$0xff]
    %v447 = vld [vmem:[#allocation8 + $0xb00] sm:$0xff]
    %v448 = vld [vmem:[#allocation8 + $0xb08] sm:$0xff]
    %v449 = vld [vmem:[#allocation8 + $0xb10] sm:$0xff]
    %v450 = vld [vmem:[#allocation8 + $0xb18] sm:$0xff]
    %v451 = vld [vmem:[#allocation8 + $0xb20] sm:$0xff]
    %v452 = vld [vmem:[#allocation8 + $0xb28] sm:$0xff]
    %v453 = vld [vmem:[#allocation8 + $0xb30] sm:$0xff]
    %v454 = vld [vmem:[#allocation8 + $0xb38] sm:$0xff]
    %v455 = vld [vmem:[#allocation8 + $0xb40] sm:$0xff]
    %v456 = vld [vmem:[#allocation8 + $0xb48] sm:$0xff]
    %v457 = vld [vmem:[#allocation8 + $0xb50] sm:$0xff]
    %v458 = vld [vmem:[#allocation8 + $0xb58] sm:$0xff]
    %v459 = vld [vmem:[#allocation8 + $0xb60] sm:$0xff]
    %v460 = vld [vmem:[#allocation8 + $0xb68] sm:$0xff]
    %v461 = vld [vmem:[#allocation8 + $0xb70] sm:$0xff]
    %v462 = vld [vmem:[#allocation8 + $0xb78] sm:$0xff]
    %v463 = vld [vmem:[#allocation8 + $0xb80] sm:$0xff]
    %v464 = vld [vmem:[#allocation8 + $0xb88] sm:$0xff]
    %v465 = vld [vmem:[#allocation8 + $0xb90] sm:$0xff]
    %v466 = vld [vmem:[#allocation8 + $0xb98] sm:$0xff]
    %v467 = vld [vmem:[#allocation8 + $0xba0] sm:$0xff]
    %v468 = vld [vmem:[#allocation8 + $0xba8] sm:$0xff]
    %v469 = vld [vmem:[#allocation8 + $0xbb0] sm:$0xff]
    %v470 = vld [vmem:[#allocation8 + $0xbb8] sm:$0xff]
    %v471 = vld [vmem:[#allocation8 + $0xbc0] sm:$0xff]
    %v472 = vld [vmem:[#allocation8 + $0xbc8] sm:$0xff]
    %v473 = vld [vmem:[#allocation8 + $0xbd0] sm:$0xff]
    %v474 = vld [vmem:[#allocation8 + $0xbd8] sm:$0xff]
    %v475 = vld [vmem:[#allocation8 + $0xbe0] sm:$0xff]
    %v476 = vld [vmem:[#allocation8 + $0xbe8] sm:$0xff]
    %v477 = vld [vmem:[#allocation8 + $0xbf0] sm:$0xff]
    %v478 = vld [vmem:[#allocation8 + $0xbf8] sm:$0xff]
    %v479 = vld [vmem:[#allocation8 + $0xc00] sm:$0xff]
    %v480 = vld [vmem:[#allocation8 + $0xc08] sm:$0xff]
    %v481 = vld [vmem:[#allocation8 + $0xc10] sm:$0xff]
    %v482 = vld [vmem:[#allocation8 + $0xc18] sm:$0xff]
    %v483 = vld [vmem:[#allocation8 + $0xc20] sm:$0xff]
    %v484 = vld [vmem:[#allocation8 + $0xc28] sm:$0xff]
    %v485 = vld [vmem:[#allocation8 + $0xc30] sm:$0xff]
    %v486 = vld [vmem:[#allocation8 + $0xc38] sm:$0xff]
    %v487 = vld [vmem:[#allocation8 + $0xc40] sm:$0xff]
    %v488 = vld [vmem:[#allocation8 + $0xc48] sm:$0xff]
    %v489 = vld [vmem:[#allocation8 + $0xc50] sm:$0xff]
    %v490 = vld [vmem:[#allocation8 + $0xc58] sm:$0xff]
    %v491 = vld [vmem:[#allocation8 + $0xc60] sm:$0xff]
    %v492 = vld [vmem:[#allocation8 + $0xc68] sm:$0xff]
    %v493 = vld [vmem:[#allocation8 + $0xc70] sm:$0xff]
    %v494 = vld [vmem:[#allocation8 + $0xc78] sm:$0xff]
    %v495 = vld [vmem:[#allocation8 + $0xc80] sm:$0xff]
    %v496 = vld [vmem:[#allocation8 + $0xc88] sm:$0xff]
    %v497 = vld [vmem:[#allocation8 + $0xc90] sm:$0xff]
    %v498 = vld [vmem:[#allocation8 + $0xc98] sm:$0xff]
    %v499 = vld [vmem:[#allocation8 + $0xca0] sm:$0xff]
    %v500 = vld [vmem:[#allocation8 + $0xca8] sm:$0xff]
    %v501 = vld [vmem:[#allocation8 + $0xcb0] sm:$0xff]
    %v502 = vld [vmem:[#allocation8 + $0xcb8] sm:$0xff]
    %v503 = vld [vmem:[#allocation8 + $0xcc0] sm:$0xff]
    %v504 = vld [vmem:[#allocation8 + $0xcc8] sm:$0xff]
    %v505 = vld [vmem:[#allocation8 + $0xcd0] sm:$0xff]
    %v506 = vld [vmem:[#allocation8 + $0xcd8] sm:$0xff]
    %v507 = vld [vmem:[#allocation8 + $0xce0] sm:$0xff]
    %v508 = vld [vmem:[#allocation8 + $0xce8] sm:$0xff]
    %v509 = vld [vmem:[#allocation8 + $0xcf0] sm:$0xff]
    %v510 = vld [vmem:[#allocation8 + $0xcf8] sm:$0xff]
    %v511 = vld [vmem:[#allocation8 + $0xd00] sm:$0xff]
    %v512 = vld [vmem:[#allocation8 + $0xd08] sm:$0xff]
    %v513 = vld [vmem:[#allocation8 + $0xd10] sm:$0xff]
    %v514 = vld [vmem:[#allocation8 + $0xd18] sm:$0xff]
    %v515 = vld [vmem:[#allocation8 + $0xd20] sm:$0xff]
    %v516 = vld [vmem:[#allocation8 + $0xd28] sm:$0xff]
    %v517 = vld [vmem:[#allocation8 + $0xd30] sm:$0xff]
    %v518 = vld [vmem:[#allocation8 + $0xd38] sm:$0xff]
    %v519 = vld [vmem:[#allocation8 + $0xd40] sm:$0xff]
    %v520 = vld [vmem:[#allocation8 + $0xd48] sm:$0xff]
    %v521 = vld [vmem:[#allocation8 + $0xd50] sm:$0xff]
    %v522 = vld [vmem:[#allocation8 + $0xd58] sm:$0xff]
    %v523 = vld [vmem:[#allocation8 + $0xd60] sm:$0xff]
    %v524 = vld [vmem:[#allocation8 + $0xd68] sm:$0xff]
    %v525 = vld [vmem:[#allocation8 + $0xd70] sm:$0xff]
    %v526 = vld [vmem:[#allocation8 + $0xd78] sm:$0xff]
    %v527 = vld [vmem:[#allocation8 + $0xd80] sm:$0xff]
    %v528 = vld [vmem:[#allocation8 + $0xd88] sm:$0xff]
    %v529 = vld [vmem:[#allocation8 + $0xd90] sm:$0xff]
    %v530 = vld [vmem:[#allocation8 + $0xd98] sm:$0xff]
    %v531 = vld [vmem:[#allocation8 + $0xda0] sm:$0xff]
    %v532 = vld [vmem:[#allocation8 + $0xda8] sm:$0xff]
    %v533 = vld [vmem:[#allocation8 + $0xdb0] sm:$0xff]
    %v534 = vld [vmem:[#allocation8 + $0xdb8] sm:$0xff]
    %v535 = vld [vmem:[#allocation8 + $0xdc0] sm:$0xff]
    %v536 = vld [vmem:[#allocation8 + $0xdc8] sm:$0xff]
    %v537 = vld [vmem:[#allocation8 + $0xdd0] sm:$0xff]
    %v538 = vld [vmem:[#allocation8 + $0xdd8] sm:$0xff]
    %v539 = vld [vmem:[#allocation8 + $0xde0] sm:$0xff]
    %v540 = vld [vmem:[#allocation8 + $0xde8] sm:$0xff]
    %v541 = vld [vmem:[#allocation8 + $0xdf0] sm:$0xff]
    %v542 = vld [vmem:[#allocation8 + $0xdf8] sm:$0xff]
    %v543 = vld [vmem:[#allocation8 + $0xe00] sm:$0xff]
    %v544 = vld [vmem:[#allocation8 + $0xe08] sm:$0xff]
    %v545 = vld [vmem:[#allocation8 + $0xe10] sm:$0xff]
    %v546 = vld [vmem:[#allocation8 + $0xe18] sm:$0xff]
    %v547 = vld [vmem:[#allocation8 + $0xe20] sm:$0xff]
    %v548 = vld [vmem:[#allocation8 + $0xe28] sm:$0xff]
    %v549 = vld [vmem:[#allocation8 + $0xe30] sm:$0xff]
    %v550 = vld [vmem:[#allocation8 + $0xe38] sm:$0xff]
    %v551 = vld [vmem:[#allocation8 + $0xe40] sm:$0xff]
    %v552 = vld [vmem:[#allocation8 + $0xe48] sm:$0xff]
    %v553 = vld [vmem:[#allocation8 + $0xe50] sm:$0xff]
    %v554 = vld [vmem:[#allocation8 + $0xe58] sm:$0xff]
    %v555 = vld [vmem:[#allocation8 + $0xe60] sm:$0xff]
    %v556 = vld [vmem:[#allocation8 + $0xe68] sm:$0xff]
    %v557 = vld [vmem:[#allocation8 + $0xe70] sm:$0xff]
    %v558 = vld [vmem:[#allocation8 + $0xe78] sm:$0xff]
    %v559 = vld [vmem:[#allocation8 + $0xe80] sm:$0xff]
    %v560 = vld [vmem:[#allocation8 + $0xe88] sm:$0xff]
    %v561 = vld [vmem:[#allocation8 + $0xe90] sm:$0xff]
    %v562 = vld [vmem:[#allocation8 + $0xe98] sm:$0xff]
    %v563 = vld [vmem:[#allocation8 + $0xea0] sm:$0xff]
    %v564 = vld [vmem:[#allocation8 + $0xea8] sm:$0xff]
    %v565 = vld [vmem:[#allocation8 + $0xeb0] sm:$0xff]
    %v566 = vld [vmem:[#allocation8 + $0xeb8] sm:$0xff]
    %v567 = vld [vmem:[#allocation8 + $0xec0] sm:$0xff]
    %v568 = vld [vmem:[#allocation8 + $0xec8] sm:$0xff]
    %v569 = vld [vmem:[#allocation8 + $0xed0] sm:$0xff]
    %v570 = vld [vmem:[#allocation8 + $0xed8] sm:$0xff]
    %v571 = vld [vmem:[#allocation8 + $0xee0] sm:$0xff]
    %v572 = vld [vmem:[#allocation8 + $0xee8] sm:$0xff]
    %v573 = vld [vmem:[#allocation8 + $0xef0] sm:$0xff]
    %v574 = vld [vmem:[#allocation8 + $0xef8] sm:$0xff]
    %v575 = vld [vmem:[#allocation8 + $0xf00] sm:$0xff]
    %v576 = vld [vmem:[#allocation8 + $0xf08] sm:$0xff]
    %v577 = vld [vmem:[#allocation8 + $0xf10] sm:$0xff]
    %v578 = vld [vmem:[#allocation8 + $0xf18] sm:$0xff]
    %v579 = vld [vmem:[#allocation8 + $0xf20] sm:$0xff]
    %v580 = vld [vmem:[#allocation8 + $0xf28] sm:$0xff]
    %v581 = vld [vmem:[#allocation8 + $0xf30] sm:$0xff]
    %v582 = vld [vmem:[#allocation8 + $0xf38] sm:$0xff]
    %v583 = vld [vmem:[#allocation8 + $0xf40] sm:$0xff]
    %v584 = vld [vmem:[#allocation8 + $0xf48] sm:$0xff]
    %v585 = vld [vmem:[#allocation8 + $0xf50] sm:$0xff]
    %v586 = vld [vmem:[#allocation8 + $0xf58] sm:$0xff]
    %v587 = vld [vmem:[#allocation8 + $0xf60] sm:$0xff]
    %v588 = vld [vmem:[#allocation8 + $0xf68] sm:$0xff]
    %v589 = vld [vmem:[#allocation8 + $0xf70] sm:$0xff]
    %v590 = vld [vmem:[#allocation8 + $0xf78] sm:$0xff]
    %v591 = vld [vmem:[#allocation8 + $0xf80] sm:$0xff]
    %v592 = vld [vmem:[#allocation8 + $0xf88] sm:$0xff]
    %v593 = vld [vmem:[#allocation8 + $0xf90] sm:$0xff]
    %v594 = vld [vmem:[#allocation8 + $0xf98] sm:$0xff]
    %v595 = vld [vmem:[#allocation8 + $0xfa0] sm:$0xff]
    %v596 = vld [vmem:[#allocation8 + $0xfa8] sm:$0xff]
    %v597 = vld [vmem:[#allocation8 + $0xfb0] sm:$0xff]
    %v598 = vld [vmem:[#allocation8 + $0xfb8] sm:$0xff]
    %v599 = vld [vmem:[#allocation8 + $0xfc0] sm:$0xff]
    %v600 = vld [vmem:[#allocation8 + $0xfc8] sm:$0xff]
    %v601 = vld [vmem:[#allocation8 + $0xfd0] sm:$0xff]
    %v602 = vld [vmem:[#allocation8 + $0xfd8] sm:$0xff]
    %v603 = vld [vmem:[#allocation8 + $0xfe0] sm:$0xff]
    %v604 = vld [vmem:[#allocation8 + $0xfe8] sm:$0xff]
    %v605 = vld [vmem:[#allocation8 + $0xff0] sm:$0xff]
    %v606 = vld [vmem:[#allocation8 + $0xff8] sm:$0xff]
    %v611 = vperm.slane %v91, 0
    %v612 = vperm.slane %v91, 1
    %v613 = vperm.slane %v91, 2
    %v614 = vperm.slane %v91, 3
    %v615 = vperm.slane %v91, 4
    %v616 = vperm.slane %v91, 5
    %v617 = vperm.slane %v91, 6
    %v618 = vperm.slane %v91, 7
    %v619 = vperm.slane %v92, 0
    %v620 = vperm.slane %v92, 1
    %v621 = vperm.slane %v92, 2
    %v622 = vperm.slane %v92, 3
    %v623 = vperm.slane %v92, 4
    %v624 = vperm.slane %v92, 5
    %v625 = vperm.slane %v92, 6
    %v626 = vperm.slane %v92, 7
    %v627 = vperm.slane %v93, 0
    %v628 = vperm.slane %v93, 1
    %v629 = vperm.slane %v93, 2
    %v630 = vperm.slane %v93, 3
    %v631 = vperm.slane %v93, 4
    %v632 = vperm.slane %v93, 5
    %v633 = vperm.slane %v93, 6
    %v634 = vperm.slane %v93, 7
    %v635 = vperm.slane %v94, 0
    %v636 = vperm.slane %v94, 1
    %v637 = vperm.slane %v94, 2
    %v638 = vperm.slane %v94, 3
    %v639 = vperm.slane %v94, 4
    %v640 = vperm.slane %v94, 5
    %v641 = vperm.slane %v94, 6
    %v642 = vperm.slane %v94, 7
    %v675 = vand.u32 %v110, 4294901760
    %676 = vmatpush.msra.mxu0 %v675
    %v677 = vand.u32 %v109, 4294901760
    %678 = vmatpush.msra.mxu0 %v677
    %v679 = vand.u32 %v108, 4294901760
    %680 = vmatpush.msra.mxu0 %v679
    %v681 = vand.u32 %v107, 4294901760
    %682 = vmatpush.msra.mxu0 %v681
    %v683 = vand.u32 %v106, 4294901760
    %684 = vmatpush.msra.mxu0 %v683
    %v685 = vand.u32 %v105, 4294901760
    %686 = vmatpush.msra.mxu0 %v685
    %v687 = vand.u32 %v104, 4294901760
    %688 = vmatpush.msra.mxu0 %v687
    %v689 = vand.u32 %v103, 4294901760
    %690 = vmatpush.msra.mxu0 %v689
    %v691 = vand.u32 %v102, 4294901760
    %692 = vmatpush.msra.mxu0 %v691
    %v693 = vand.u32 %v101, 4294901760
    %694 = vmatpush.msra.mxu0 %v693
    %v695 = vand.u32 %v100, 4294901760
    %696 = vmatpush.msra.mxu0 %v695
    %v697 = vand.u32 %v99, 4294901760
    %698 = vmatpush.msra.mxu0 %v697
    %v699 = vand.u32 %v98, 4294901760
    %700 = vmatpush.msra.mxu0 %v699
    %v701 = vand.u32 %v97, 4294901760
    %702 = vmatpush.msra.mxu0 %v701
    %v703 = vand.u32 %v96, 4294901760
    %704 = vmatpush.msra.mxu0 %v703
    %v705 = vand.u32 %v95, 4294901760
    %706 = vmatpush.msra.mxu0 %v705
    %v707 = vand.u32 %v611, 4294901760
    %v708 = vsub.f32 %v611, %v707
    %v709 = vand.u32 %v708, 4294901760
    %v710 = vsub.f32 %v708, %v709
    %v711 = vand.u32 %v710, 4294901760
    %712 = vmatmul.f32.gmra.mxu0 %v711
    %v713 = vpop.f32.mrf.mxu0
    %v714 = vadd.f32 0.0, %v713
    %715 = vdwg.mxu0
    %v716 = vand.u32 %v110, 4294901760
    %v717 = vsub.f32 %v110, %v716
    %v718 = vand.u32 %v717, 4294901760
    %v719 = vsub.f32 %v717, %v718
    %v720 = vand.u32 %v719, 4294901760
    %721 = vmatpush.msra.mxu0 %v720
    %v722 = vand.u32 %v109, 4294901760
    %v723 = vsub.f32 %v109, %v722
    %v724 = vand.u32 %v723, 4294901760
    %v725 = vsub.f32 %v723, %v724
    %v726 = vand.u32 %v725, 4294901760
    %727 = vmatpush.msra.mxu0 %v726
    %v728 = vand.u32 %v108, 4294901760
    %v729 = vsub.f32 %v108, %v728
    %v730 = vand.u32 %v729, 4294901760
    %v731 = vsub.f32 %v729, %v730
    %v732 = vand.u32 %v731, 4294901760
    %733 = vmatpush.msra.mxu0 %v732
    %v734 = vand.u32 %v107, 4294901760
    %v735 = vsub.f32 %v107, %v734
    %v736 = vand.u32 %v735, 4294901760
    %v737 = vsub.f32 %v735, %v736
    %v738 = vand.u32 %v737, 4294901760
    %739 = vmatpush.msra.mxu0 %v738
    %v740 = vand.u32 %v106, 4294901760
    %v741 = vsub.f32 %v106, %v740
    %v742 = vand.u32 %v741, 4294901760
    %v743 = vsub.f32 %v741, %v742
    %v744 = vand.u32 %v743, 4294901760
    %745 = vmatpush.msra.mxu0 %v744
    %v746 = vand.u32 %v105, 4294901760
    %v747 = vsub.f32 %v105, %v746
    %v748 = vand.u32 %v747, 4294901760
    %v749 = vsub.f32 %v747, %v748
    %v750 = vand.u32 %v749, 4294901760
    %751 = vmatpush.msra.mxu0 %v750
    %v752 = vand.u32 %v104, 4294901760
    %v753 = vsub.f32 %v104, %v752
    %v754 = vand.u32 %v753, 4294901760
    %v755 = vsub.f32 %v753, %v754
    %v756 = vand.u32 %v755, 4294901760
    %757 = vmatpush.msra.mxu0 %v756
    %v758 = vand.u32 %v103, 4294901760
    %v759 = vsub.f32 %v103, %v758
    %v760 = vand.u32 %v759, 4294901760
    %v761 = vsub.f32 %v759, %v760
    %v762 = vand.u32 %v761, 4294901760
    %763 = vmatpush.msra.mxu0 %v762
    %v764 = vand.u32 %v102, 4294901760
    %v765 = vsub.f32 %v102, %v764
    %v766 = vand.u32 %v765, 4294901760
    %v767 = vsub.f32 %v765, %v766
    %v768 = vand.u32 %v767, 4294901760
    %769 = vmatpush.msra.mxu0 %v768
    %v770 = vand.u32 %v101, 4294901760
    %v771 = vsub.f32 %v101, %v770
    %v772 = vand.u32 %v771, 4294901760
    %v773 = vsub.f32 %v771, %v772
    %v774 = vand.u32 %v773, 4294901760
    %775 = vmatpush.msra.mxu0 %v774
    %v776 = vand.u32 %v100, 4294901760
    %v777 = vsub.f32 %v100, %v776
    %v778 = vand.u32 %v777, 4294901760
    %v779 = vsub.f32 %v777, %v778
    %v780 = vand.u32 %v779, 4294901760
    %781 = vmatpush.msra.mxu0 %v780
    %v782 = vand.u32 %v99, 4294901760
    %v783 = vsub.f32 %v99, %v782
    %v784 = vand.u32 %v783, 4294901760
    %v785 = vsub.f32 %v783, %v784
    %v786 = vand.u32 %v785, 4294901760
    %787 = vmatpush.msra.mxu0 %v786
    %v788 = vand.u32 %v98, 4294901760
    %v789 = vsub.f32 %v98, %v788
    %v790 = vand.u32 %v789, 4294901760
    %v791 = vsub.f32 %v789, %v790
    %v792 = vand.u32 %v791, 4294901760
    %793 = vmatpush.msra.mxu0 %v792
    %v794 = vand.u32 %v97, 4294901760
    %v795 = vsub.f32 %v97, %v794
    %v796 = vand.u32 %v795, 4294901760
    %v797 = vsub.f32 %v795, %v796
    %v798 = vand.u32 %v797, 4294901760
    %799 = vmatpush.msra.mxu0 %v798
    %v800 = vand.u32 %v96, 4294901760
    %v801 = vsub.f32 %v96, %v800
    %v802 = vand.u32 %v801, 4294901760
    %v803 = vsub.f32 %v801, %v802
    %v804 = vand.u32 %v803, 4294901760
    %805 = vmatpush.msra.mxu0 %v804
    %v806 = vand.u32 %v95, 4294901760
    %v807 = vsub.f32 %v95, %v806
    %v808 = vand.u32 %v807, 4294901760
    %v809 = vsub.f32 %v807, %v808
    %v810 = vand.u32 %v809, 4294901760
    %811 = vmatpush.msra.mxu0 %v810
    %v812 = vand.u32 %v611, 4294901760
    %813 = vmatmul.f32.gmra.mxu0 %v812
    %v814 = vpop.f32.mrf.mxu0
    %v815 = vadd.f32 %v714, %v814
    %816 = vdwg.mxu0
    %v817 = vand.u32 %v110, 4294901760
    %v818 = vsub.f32 %v110, %v817
    %819 = vmatpush.msra.mxu0 %v818
    %v820 = vand.u32 %v109, 4294901760
    %v821 = vsub.f32 %v109, %v820
    %822 = vmatpush.msra.mxu0 %v821
    %v823 = vand.u32 %v108, 4294901760
    %v824 = vsub.f32 %v108, %v823
    %825 = vmatpush.msra.mxu0 %v824
    %v826 = vand.u32 %v107, 4294901760
    %v827 = vsub.f32 %v107, %v826
    %828 = vmatpush.msra.mxu0 %v827
    %v829 = vand.u32 %v106, 4294901760
    %v830 = vsub.f32 %v106, %v829
    %831 = vmatpush.msra.mxu0 %v830
    %v832 = vand.u32 %v105, 4294901760
    %v833 = vsub.f32 %v105, %v832
    %834 = vmatpush.msra.mxu0 %v833
    %v835 = vand.u32 %v104, 4294901760
    %v836 = vsub.f32 %v104, %v835
    %837 = vmatpush.msra.mxu0 %v836
    %v838 = vand.u32 %v103, 4294901760
    %v839 = vsub.f32 %v103, %v838
    %840 = vmatpush.msra.mxu0 %v839
    %v841 = vand.u32 %v102, 4294901760
    %v842 = vsub.f32 %v102, %v841
    %843 = vmatpush.msra.mxu0 %v842
    %v844 = vand.u32 %v101, 4294901760
    %v845 = vsub.f32 %v101, %v844
    %846 = vmatpush.msra.mxu0 %v845
    %v847 = vand.u32 %v100, 4294901760
    %v848 = vsub.f32 %v100, %v847
    %849 = vmatpush.msra.mxu0 %v848
    %v850 = vand.u32 %v99, 4294901760
    %v851 = vsub.f32 %v99, %v850
    %852 = vmatpush.msra.mxu0 %v851
    %v853 = vand.u32 %v98, 4294901760
    %v854 = vsub.f32 %v98, %v853
    %855 = vmatpush.msra.mxu0 %v854
    %v856 = vand.u32 %v97, 4294901760
    %v857 = vsub.f32 %v97, %v856
    %858 = vmatpush.msra.mxu0 %v857
    %v859 = vand.u32 %v96, 4294901760
    %v860 = vsub.f32 %v96, %v859
    %861 = vmatpush.msra.mxu0 %v860
    %v862 = vand.u32 %v95, 4294901760
    %v863 = vsub.f32 %v95, %v862
    %864 = vmatpush.msra.mxu0 %v863
    %v865 = vand.u32 %v611, 4294901760
    %v866 = vsub.f32 %v611, %v865
    %867 = vmatmul.f32.gmra.mxu0 %v866
    %v868 = vpop.f32.mrf.mxu0
    %v869 = vadd.f32 %v815, %v868
    %870 = vdwg.mxu0
    %v871 = vand.u32 %v110, 4294901760
    %872 = vmatpush.msra.mxu0 %v871
    %v873 = vand.u32 %v109, 4294901760
    %874 = vmatpush.msra.mxu0 %v873
    %v875 = vand.u32 %v108, 4294901760
    %876 = vmatpush.msra.mxu0 %v875
    %v877 = vand.u32 %v107, 4294901760
    %878 = vmatpush.msra.mxu0 %v877
    %v879 = vand.u32 %v106, 4294901760
    %880 = vmatpush.msra.mxu0 %v879
    %v881 = vand.u32 %v105, 4294901760
    %882 = vmatpush.msra.mxu0 %v881
    %v883 = vand.u32 %v104, 4294901760
    %884 = vmatpush.msra.mxu0 %v883
    %v885 = vand.u32 %v103, 4294901760
    %886 = vmatpush.msra.mxu0 %v885
    %v887 = vand.u32 %v102, 4294901760
    %888 = vmatpush.msra.mxu0 %v887
    %v889 = vand.u32 %v101, 4294901760
    %890 = vmatpush.msra.mxu0 %v889
    %v891 = vand.u32 %v100, 4294901760
    %892 = vmatpush.msra.mxu0 %v891
    %v893 = vand.u32 %v99, 4294901760
    %894 = vmatpush.msra.mxu0 %v893
    %v895 = vand.u32 %v98, 4294901760
    %896 = vmatpush.msra.mxu0 %v895
    %v897 = vand.u32 %v97, 4294901760
    %898 = vmatpush.msra.mxu0 %v897
    %v899 = vand.u32 %v96, 4294901760
    %900 = vmatpush.msra.mxu0 %v899
    %v901 = vand.u32 %v95, 4294901760
    %902 = vmatpush.msra.mxu0 %v901
    %v903 = vand.u32 %v611, 4294901760
    %v904 = vsub.f32 %v611, %v903
    %v905 = vand.u32 %v904, 4294901760
    %906 = vmatmul.f32.gmra.mxu0 %v905
    %v907 = vpop.f32.mrf.mxu0
    %v908 = vadd.f32 %v869, %v907
    %909 = vdwg.mxu0
    %v910 = vand.u32 %v110, 4294901760
    %v911 = vsub.f32 %v110, %v910
    %v912 = vand.u32 %v911, 4294901760
    %913 = vmatpush.msra.mxu0 %v912
    %v914 = vand.u32 %v109, 4294901760
    %v915 = vsub.f32 %v109, %v914
    %v916 = vand.u32 %v915, 4294901760
    %917 = vmatpush.msra.mxu0 %v916
    %v918 = vand.u32 %v108, 4294901760
    %v919 = vsub.f32 %v108, %v918
    %v920 = vand.u32 %v919, 4294901760
    %921 = vmatpush.msra.mxu0 %v920
    %v922 = vand.u32 %v107, 4294901760
    %v923 = vsub.f32 %v107, %v922
    %v924 = vand.u32 %v923, 4294901760
    %925 = vmatpush.msra.mxu0 %v924
    %v926 = vand.u32 %v106, 4294901760
    %v927 = vsub.f32 %v106, %v926
    %v928 = vand.u32 %v927, 4294901760
    %929 = vmatpush.msra.mxu0 %v928
    %v930 = vand.u32 %v105, 4294901760
    %v931 = vsub.f32 %v105, %v930
    %v932 = vand.u32 %v931, 4294901760
    %933 = vmatpush.msra.mxu0 %v932
    %v934 = vand.u32 %v104, 4294901760
    %v935 = vsub.f32 %v104, %v934
    %v936 = vand.u32 %v935, 4294901760
    %937 = vmatpush.msra.mxu0 %v936
    %v938 = vand.u32 %v103, 4294901760
    %v939 = vsub.f32 %v103, %v938
    %v940 = vand.u32 %v939, 4294901760
    %941 = vmatpush.msra.mxu0 %v940
    %v942 = vand.u32 %v102, 4294901760
    %v943 = vsub.f32 %v102, %v942
    %v944 = vand.u32 %v943, 4294901760
    %945 = vmatpush.msra.mxu0 %v944
    %v946 = vand.u32 %v101, 4294901760
    %v947 = vsub.f32 %v101, %v946
    %v948 = vand.u32 %v947, 4294901760
    %949 = vmatpush.msra.mxu0 %v948
    %v950 = vand.u32 %v100, 4294901760
    %v951 = vsub.f32 %v100, %v950
    %v952 = vand.u32 %v951, 4294901760
    %953 = vmatpush.msra.mxu0 %v952
    %v954 = vand.u32 %v99, 4294901760
    %v955 = vsub.f32 %v99, %v954
    %v956 = vand.u32 %v955, 4294901760
    %957 = vmatpush.msra.mxu0 %v956
    %v958 = vand.u32 %v98, 4294901760
    %v959 = vsub.f32 %v98, %v958
    %v960 = vand.u32 %v959, 4294901760
    %961 = vmatpush.msra.mxu0 %v960
    %v962 = vand.u32 %v97, 4294901760
    %v963 = vsub.f32 %v97, %v962
    %v964 = vand.u32 %v963, 4294901760
    %965 = vmatpush.msra.mxu0 %v964
    %v966 = vand.u32 %v96, 4294901760
    %v967 = vsub.f32 %v96, %v966
    %v968 = vand.u32 %v967, 4294901760
    %969 = vmatpush.msra.mxu0 %v968
    %v970 = vand.u32 %v95, 4294901760
    %v971 = vsub.f32 %v95, %v970
    %v972 = vand.u32 %v971, 4294901760
    %973 = vmatpush.msra.mxu0 %v972
    %v974 = vand.u32 %v611, 4294901760
    %975 = vmatmul.f32.gmra.mxu0 %v974
    %v976 = vpop.f32.mrf.mxu0
    %v977 = vadd.f32 %v908, %v976
    %978 = vdwg.mxu0
    %v979 = vand.u32 %v110, 4294901760
    %980 = vmatpush.msra.mxu0 %v979
    %v981 = vand.u32 %v109, 4294901760
    %982 = vmatpush.msra.mxu0 %v981
    %v983 = vand.u32 %v108, 4294901760
    %984 = vmatpush.msra.mxu0 %v983
    %v985 = vand.u32 %v107, 4294901760
    %986 = vmatpush.msra.mxu0 %v985
    %v987 = vand.u32 %v106, 4294901760
    %988 = vmatpush.msra.mxu0 %v987
    %v989 = vand.u32 %v105, 4294901760
    %990 = vmatpush.msra.mxu0 %v989
    %v991 = vand.u32 %v104, 4294901760
    %992 = vmatpush.msra.mxu0 %v991
    %v993 = vand.u32 %v103, 4294901760
    %994 = vmatpush.msra.mxu0 %v993
    %v995 = vand.u32 %v102, 4294901760
    %996 = vmatpush.msra.mxu0 %v995
    %v997 = vand.u32 %v101, 4294901760
    %998 = vmatpush.msra.mxu0 %v997
    %v999 = vand.u32 %v100, 4294901760
    %1000 = vmatpush.msra.mxu0 %v999
    %v1001 = vand.u32 %v99, 4294901760
    %1002 = vmatpush.msra.mxu0 %v1001
    %v1003 = vand.u32 %v98, 4294901760
    %1004 = vmatpush.msra.mxu0 %v1003
    %v1005 = vand.u32 %v97, 4294901760
    %1006 = vmatpush.msra.mxu0 %v1005
    %v1007 = vand.u32 %v96, 4294901760
    %1008 = vmatpush.msra.mxu0 %v1007
    %v1009 = vand.u32 %v95, 4294901760
    %1010 = vmatpush.msra.mxu0 %v1009
    %v1011 = vand.u32 %v611, 4294901760
    %1012 = vmatmul.f32.gmra.mxu0 %v1011
    %v1013 = vpop.f32.mrf.mxu0
    %v1014 = vadd.f32 %v977, %v1013
    %1015 = vdwg.mxu0
    %v1016 = vand.u32 %v126, 4294901760
    %1017 = vmatpush.msra.mxu0 %v1016
    %v1018 = vand.u32 %v125, 4294901760
    %1019 = vmatpush.msra.mxu0 %v1018
    %v1020 = vand.u32 %v124, 4294901760
    %1021 = vmatpush.msra.mxu0 %v1020
    %v1022 = vand.u32 %v123, 4294901760
    %1023 = vmatpush.msra.mxu0 %v1022
    %v1024 = vand.u32 %v122, 4294901760
    %1025 = vmatpush.msra.mxu0 %v1024
    %v1026 = vand.u32 %v121, 4294901760
    %1027 = vmatpush.msra.mxu0 %v1026
    %v1028 = vand.u32 %v120, 4294901760
    %1029 = vmatpush.msra.mxu0 %v1028
    %v1030 = vand.u32 %v119, 4294901760
    %1031 = vmatpush.msra.mxu0 %v1030
    %v1032 = vand.u32 %v118, 4294901760
    %1033 = vmatpush.msra.mxu0 %v1032
    %v1034 = vand.u32 %v117, 4294901760
    %1035 = vmatpush.msra.mxu0 %v1034
    %v1036 = vand.u32 %v116, 4294901760
    %1037 = vmatpush.msra.mxu0 %v1036
    %v1038 = vand.u32 %v115, 4294901760
    %1039 = vmatpush.msra.mxu0 %v1038
    %v1040 = vand.u32 %v114, 4294901760
    %1041 = vmatpush.msra.mxu0 %v1040
    %v1042 = vand.u32 %v113, 4294901760
    %1043 = vmatpush.msra.mxu0 %v1042
    %v1044 = vand.u32 %v112, 4294901760
    %1045 = vmatpush.msra.mxu0 %v1044
    %v1046 = vand.u32 %v111, 4294901760
    %1047 = vmatpush.msra.mxu0 %v1046
    %v1048 = vand.u32 %v612, 4294901760
    %v1049 = vsub.f32 %v612, %v1048
    %v1050 = vand.u32 %v1049, 4294901760
    %v1051 = vsub.f32 %v1049, %v1050
    %v1052 = vand.u32 %v1051, 4294901760
    %1053 = vmatmul.f32.gmra.mxu0 %v1052
    %v1054 = vpop.f32.mrf.mxu0
    %v1055 = vadd.f32 %v1014, %v1054
    %1056 = vdwg.mxu0
    %v1057 = vand.u32 %v126, 4294901760
    %v1058 = vsub.f32 %v126, %v1057
    %v1059 = vand.u32 %v1058, 4294901760
    %v1060 = vsub.f32 %v1058, %v1059
    %v1061 = vand.u32 %v1060, 4294901760
    %1062 = vmatpush.msra.mxu0 %v1061
    %v1063 = vand.u32 %v125, 4294901760
    %v1064 = vsub.f32 %v125, %v1063
    %v1065 = vand.u32 %v1064, 4294901760
    %v1066 = vsub.f32 %v1064, %v1065
    %v1067 = vand.u32 %v1066, 4294901760
    %1068 = vmatpush.msra.mxu0 %v1067
    %v1069 = vand.u32 %v124, 4294901760
    %v1070 = vsub.f32 %v124, %v1069
    %v1071 = vand.u32 %v1070, 4294901760
    %v1072 = vsub.f32 %v1070, %v1071
    %v1073 = vand.u32 %v1072, 4294901760
    %1074 = vmatpush.msra.mxu0 %v1073
    %v1075 = vand.u32 %v123, 4294901760
    %v1076 = vsub.f32 %v123, %v1075
    %v1077 = vand.u32 %v1076, 4294901760
    %v1078 = vsub.f32 %v1076, %v1077
    %v1079 = vand.u32 %v1078, 4294901760
    %1080 = vmatpush.msra.mxu0 %v1079
    %v1081 = vand.u32 %v122, 4294901760
    %v1082 = vsub.f32 %v122, %v1081
    %v1083 = vand.u32 %v1082, 4294901760
    %v1084 = vsub.f32 %v1082, %v1083
    %v1085 = vand.u32 %v1084, 4294901760
    %1086 = vmatpush.msra.mxu0 %v1085
    %v1087 = vand.u32 %v121, 4294901760
    %v1088 = vsub.f32 %v121, %v1087
    %v1089 = vand.u32 %v1088, 4294901760
    %v1090 = vsub.f32 %v1088, %v1089
    %v1091 = vand.u32 %v1090, 4294901760
    %1092 = vmatpush.msra.mxu0 %v1091
    %v1093 = vand.u32 %v120, 4294901760
    %v1094 = vsub.f32 %v120, %v1093
    %v1095 = vand.u32 %v1094, 4294901760
    %v1096 = vsub.f32 %v1094, %v1095
    %v1097 = vand.u32 %v1096, 4294901760
    %1098 = vmatpush.msra.mxu0 %v1097
    %v1099 = vand.u32 %v119, 4294901760
    %v1100 = vsub.f32 %v119, %v1099
    %v1101 = vand.u32 %v1100, 4294901760
    %v1102 = vsub.f32 %v1100, %v1101
    %v1103 = vand.u32 %v1102, 4294901760
    %1104 = vmatpush.msra.mxu0 %v1103
    %v1105 = vand.u32 %v118, 4294901760
    %v1106 = vsub.f32 %v118, %v1105
    %v1107 = vand.u32 %v1106, 4294901760
    %v1108 = vsub.f32 %v1106, %v1107
    %v1109 = vand.u32 %v1108, 4294901760
    %1110 = vmatpush.msra.mxu0 %v1109
    %v1111 = vand.u32 %v117, 4294901760
    %v1112 = vsub.f32 %v117, %v1111
    %v1113 = vand.u32 %v1112, 4294901760
    %v1114 = vsub.f32 %v1112, %v1113
    %v1115 = vand.u32 %v1114, 4294901760
    %1116 = vmatpush.msra.mxu0 %v1115
    %v1117 = vand.u32 %v116, 4294901760
    %v1118 = vsub.f32 %v116, %v1117
    %v1119 = vand.u32 %v1118, 4294901760
    %v1120 = vsub.f32 %v1118, %v1119
    %v1121 = vand.u32 %v1120, 4294901760
    %1122 = vmatpush.msra.mxu0 %v1121
    %v1123 = vand.u32 %v115, 4294901760
    %v1124 = vsub.f32 %v115, %v1123
    %v1125 = vand.u32 %v1124, 4294901760
    %v1126 = vsub.f32 %v1124, %v1125
    %v1127 = vand.u32 %v1126, 4294901760
    %1128 = vmatpush.msra.mxu0 %v1127
    %v1129 = vand.u32 %v114, 4294901760
    %v1130 = vsub.f32 %v114, %v1129
    %v1131 = vand.u32 %v1130, 4294901760
    %v1132 = vsub.f32 %v1130, %v1131
    %v1133 = vand.u32 %v1132, 4294901760
    %1134 = vmatpush.msra.mxu0 %v1133
    %v1135 = vand.u32 %v113, 4294901760
    %v1136 = vsub.f32 %v113, %v1135
    %v1137 = vand.u32 %v1136, 4294901760
    %v1138 = vsub.f32 %v1136, %v1137
    %v1139 = vand.u32 %v1138, 4294901760
    %1140 = vmatpush.msra.mxu0 %v1139
    %v1141 = vand.u32 %v112, 4294901760
    %v1142 = vsub.f32 %v112, %v1141
    %v1143 = vand.u32 %v1142, 4294901760
    %v1144 = vsub.f32 %v1142, %v1143
    %v1145 = vand.u32 %v1144, 4294901760
    %1146 = vmatpush.msra.mxu0 %v1145
    %v1147 = vand.u32 %v111, 4294901760
    %v1148 = vsub.f32 %v111, %v1147
    %v1149 = vand.u32 %v1148, 4294901760
    %v1150 = vsub.f32 %v1148, %v1149
    %v1151 = vand.u32 %v1150, 4294901760
    %1152 = vmatpush.msra.mxu0 %v1151
    %v1153 = vand.u32 %v612, 4294901760
    %1154 = vmatmul.f32.gmra.mxu0 %v1153
    %v1155 = vpop.f32.mrf.mxu0
    %v1156 = vadd.f32 %v1055, %v1155
    %1157 = vdwg.mxu0
    %v1158 = vand.u32 %v126, 4294901760
    %v1159 = vsub.f32 %v126, %v1158
    %1160 = vmatpush.msra.mxu0 %v1159
    %v1161 = vand.u32 %v125, 4294901760
    %v1162 = vsub.f32 %v125, %v1161
    %1163 = vmatpush.msra.mxu0 %v1162
    %v1164 = vand.u32 %v124, 4294901760
    %v1165 = vsub.f32 %v124, %v1164
    %1166 = vmatpush.msra.mxu0 %v1165
    %v1167 = vand.u32 %v123, 4294901760
    %v1168 = vsub.f32 %v123, %v1167
    %1169 = vmatpush.msra.mxu0 %v1168
    %v1170 = vand.u32 %v122, 4294901760
    %v1171 = vsub.f32 %v122, %v1170
    %1172 = vmatpush.msra.mxu0 %v1171
    %v1173 = vand.u32 %v121, 4294901760
    %v1174 = vsub.f32 %v121, %v1173
    %1175 = vmatpush.msra.mxu0 %v1174
    %v1176 = vand.u32 %v120, 4294901760
    %v1177 = vsub.f32 %v120, %v1176
    %1178 = vmatpush.msra.mxu0 %v1177
    %v1179 = vand.u32 %v119, 4294901760
    %v1180 = vsub.f32 %v119, %v1179
    %1181 = vmatpush.msra.mxu0 %v1180
    %v1182 = vand.u32 %v118, 4294901760
    %v1183 = vsub.f32 %v118, %v1182
    %1184 = vmatpush.msra.mxu0 %v1183
    %v1185 = vand.u32 %v117, 4294901760
    %v1186 = vsub.f32 %v117, %v1185
    %1187 = vmatpush.msra.mxu0 %v1186
    %v1188 = vand.u32 %v116, 4294901760
    %v1189 = vsub.f32 %v116, %v1188
    %1190 = vmatpush.msra.mxu0 %v1189
    %v1191 = vand.u32 %v115, 4294901760
    %v1192 = vsub.f32 %v115, %v1191
    %1193 = vmatpush.msra.mxu0 %v1192
    %v1194 = vand.u32 %v114, 4294901760
    %v1195 = vsub.f32 %v114, %v1194
    %1196 = vmatpush.msra.mxu0 %v1195
    %v1197 = vand.u32 %v113, 4294901760
    %v1198 = vsub.f32 %v113, %v1197
    %1199 = vmatpush.msra.mxu0 %v1198
    %v1200 = vand.u32 %v112, 4294901760
    %v1201 = vsub.f32 %v112, %v1200
    %1202 = vmatpush.msra.mxu0 %v1201
    %v1203 = vand.u32 %v111, 4294901760
    %v1204 = vsub.f32 %v111, %v1203
    %1205 = vmatpush.msra.mxu0 %v1204
    %v1206 = vand.u32 %v612, 4294901760
    %v1207 = vsub.f32 %v612, %v1206
    %1208 = vmatmul.f32.gmra.mxu0 %v1207
    %v1209 = vpop.f32.mrf.mxu0
    %v1210 = vadd.f32 %v1156, %v1209
    %1211 = vdwg.mxu0
    %v1212 = vand.u32 %v126, 4294901760
    %1213 = vmatpush.msra.mxu0 %v1212
    %v1214 = vand.u32 %v125, 4294901760
    %1215 = vmatpush.msra.mxu0 %v1214
    %v1216 = vand.u32 %v124, 4294901760
    %1217 = vmatpush.msra.mxu0 %v1216
    %v1218 = vand.u32 %v123, 4294901760
    %1219 = vmatpush.msra.mxu0 %v1218
    %v1220 = vand.u32 %v122, 4294901760
    %1221 = vmatpush.msra.mxu0 %v1220
    %v1222 = vand.u32 %v121, 4294901760
    %1223 = vmatpush.msra.mxu0 %v1222
    %v1224 = vand.u32 %v120, 4294901760
    %1225 = vmatpush.msra.mxu0 %v1224
    %v1226 = vand.u32 %v119, 4294901760
    %1227 = vmatpush.msra.mxu0 %v1226
    %v1228 = vand.u32 %v118, 4294901760
    %1229 = vmatpush.msra.mxu0 %v1228
    %v1230 = vand.u32 %v117, 4294901760
    %1231 = vmatpush.msra.mxu0 %v1230
    %v1232 = vand.u32 %v116, 4294901760
    %1233 = vmatpush.msra.mxu0 %v1232
    %v1234 = vand.u32 %v115, 4294901760
    %1235 = vmatpush.msra.mxu0 %v1234
    %v1236 = vand.u32 %v114, 4294901760
    %1237 = vmatpush.msra.mxu0 %v1236
    %v1238 = vand.u32 %v113, 4294901760
    %1239 = vmatpush.msra.mxu0 %v1238
    %v1240 = vand.u32 %v112, 4294901760
    %1241 = vmatpush.msra.mxu0 %v1240
    %v1242 = vand.u32 %v111, 4294901760
    %1243 = vmatpush.msra.mxu0 %v1242
    %v1244 = vand.u32 %v612, 4294901760
    %v1245 = vsub.f32 %v612, %v1244
    %v1246 = vand.u32 %v1245, 4294901760
    %1247 = vmatmul.f32.gmra.mxu0 %v1246
    %v1248 = vpop.f32.mrf.mxu0
    %v1249 = vadd.f32 %v1210, %v1248
    %1250 = vdwg.mxu0
    %v1251 = vand.u32 %v126, 4294901760
    %v1252 = vsub.f32 %v126, %v1251
    %v1253 = vand.u32 %v1252, 4294901760
    %1254 = vmatpush.msra.mxu0 %v1253
    %v1255 = vand.u32 %v125, 4294901760
    %v1256 = vsub.f32 %v125, %v1255
    %v1257 = vand.u32 %v1256, 4294901760
    %1258 = vmatpush.msra.mxu0 %v1257
    %v1259 = vand.u32 %v124, 4294901760
    %v1260 = vsub.f32 %v124, %v1259
    %v1261 = vand.u32 %v1260, 4294901760
    %1262 = vmatpush.msra.mxu0 %v1261
    %v1263 = vand.u32 %v123, 4294901760
    %v1264 = vsub.f32 %v123, %v1263
    %v1265 = vand.u32 %v1264, 4294901760
    %1266 = vmatpush.msra.mxu0 %v1265
    %v1267 = vand.u32 %v122, 4294901760
    %v1268 = vsub.f32 %v122, %v1267
    %v1269 = vand.u32 %v1268, 4294901760
    %1270 = vmatpush.msra.mxu0 %v1269
    %v1271 = vand.u32 %v121, 4294901760
    %v1272 = vsub.f32 %v121, %v1271
    %v1273 = vand.u32 %v1272, 4294901760
    %1274 = vmatpush.msra.mxu0 %v1273
    %v1275 = vand.u32 %v120, 4294901760
    %v1276 = vsub.f32 %v120, %v1275
    %v1277 = vand.u32 %v1276, 4294901760
    %1278 = vmatpush.msra.mxu0 %v1277
    %v1279 = vand.u32 %v119, 4294901760
    %v1280 = vsub.f32 %v119, %v1279
    %v1281 = vand.u32 %v1280, 4294901760
    %1282 = vmatpush.msra.mxu0 %v1281
    %v1283 = vand.u32 %v118, 4294901760
    %v1284 = vsub.f32 %v118, %v1283
    %v1285 = vand.u32 %v1284, 4294901760
    %1286 = vmatpush.msra.mxu0 %v1285
    %v1287 = vand.u32 %v117, 4294901760
    %v1288 = vsub.f32 %v117, %v1287
    %v1289 = vand.u32 %v1288, 4294901760
    %1290 = vmatpush.msra.mxu0 %v1289
    %v1291 = vand.u32 %v116, 4294901760
    %v1292 = vsub.f32 %v116, %v1291
    %v1293 = vand.u32 %v1292, 4294901760
    %1294 = vmatpush.msra.mxu0 %v1293
    %v1295 = vand.u32 %v115, 4294901760
    %v1296 = vsub.f32 %v115, %v1295
    %v1297 = vand.u32 %v1296, 4294901760
    %1298 = vmatpush.msra.mxu0 %v1297
    %v1299 = vand.u32 %v114, 4294901760
    %v1300 = vsub.f32 %v114, %v1299
    %v1301 = vand.u32 %v1300, 4294901760
    %1302 = vmatpush.msra.mxu0 %v1301
    %v1303 = vand.u32 %v113, 4294901760
    %v1304 = vsub.f32 %v113, %v1303
    %v1305 = vand.u32 %v1304, 4294901760
    %1306 = vmatpush.msra.mxu0 %v1305
    %v1307 = vand.u32 %v112, 4294901760
    %v1308 = vsub.f32 %v112, %v1307
    %v1309 = vand.u32 %v1308, 4294901760
    %1310 = vmatpush.msra.mxu0 %v1309
    %v1311 = vand.u32 %v111, 4294901760
    %v1312 = vsub.f32 %v111, %v1311
    %v1313 = vand.u32 %v1312, 4294901760
    %1314 = vmatpush.msra.mxu0 %v1313
    %v1315 = vand.u32 %v612, 4294901760
    %1316 = vmatmul.f32.gmra.mxu0 %v1315
    %v1317 = vpop.f32.mrf.mxu0
    %v1318 = vadd.f32 %v1249, %v1317
    %1319 = vdwg.mxu0
    %v1320 = vand.u32 %v126, 4294901760
    %1321 = vmatpush.msra.mxu0 %v1320
    %v1322 = vand.u32 %v125, 4294901760
    %1323 = vmatpush.msra.mxu0 %v1322
    %v1324 = vand.u32 %v124, 4294901760
    %1325 = vmatpush.msra.mxu0 %v1324
    %v1326 = vand.u32 %v123, 4294901760
    %1327 = vmatpush.msra.mxu0 %v1326
    %v1328 = vand.u32 %v122, 4294901760
    %1329 = vmatpush.msra.mxu0 %v1328
    %v1330 = vand.u32 %v121, 4294901760
    %1331 = vmatpush.msra.mxu0 %v1330
    %v1332 = vand.u32 %v120, 4294901760
    %1333 = vmatpush.msra.mxu0 %v1332
    %v1334 = vand.u32 %v119, 4294901760
    %1335 = vmatpush.msra.mxu0 %v1334
    %v1336 = vand.u32 %v118, 4294901760
    %1337 = vmatpush.msra.mxu0 %v1336
    %v1338 = vand.u32 %v117, 4294901760
    %1339 = vmatpush.msra.mxu0 %v1338
    %v1340 = vand.u32 %v116, 4294901760
    %1341 = vmatpush.msra.mxu0 %v1340
    %v1342 = vand.u32 %v115, 4294901760
    %1343 = vmatpush.msra.mxu0 %v1342
    %v1344 = vand.u32 %v114, 4294901760
    %1345 = vmatpush.msra.mxu0 %v1344
    %v1346 = vand.u32 %v113, 4294901760
    %1347 = vmatpush.msra.mxu0 %v1346
    %v1348 = vand.u32 %v112, 4294901760
    %1349 = vmatpush.msra.mxu0 %v1348
    %v1350 = vand.u32 %v111, 4294901760
    %1351 = vmatpush.msra.mxu0 %v1350
    %v1352 = vand.u32 %v612, 4294901760
    %1353 = vmatmul.f32.gmra.mxu0 %v1352
    %v1354 = vpop.f32.mrf.mxu0
    %v1355 = vadd.f32 %v1318, %v1354
    %1356 = vdwg.mxu0
    %v1357 = vand.u32 %v142, 4294901760
    %1358 = vmatpush.msra.mxu0 %v1357
    %v1359 = vand.u32 %v141, 4294901760
    %1360 = vmatpush.msra.mxu0 %v1359
    %v1361 = vand.u32 %v140, 4294901760
    %1362 = vmatpush.msra.mxu0 %v1361
    %v1363 = vand.u32 %v139, 4294901760
    %1364 = vmatpush.msra.mxu0 %v1363
    %v1365 = vand.u32 %v138, 4294901760
    %1366 = vmatpush.msra.mxu0 %v1365
    %v1367 = vand.u32 %v137, 4294901760
    %1368 = vmatpush.msra.mxu0 %v1367
    %v1369 = vand.u32 %v136, 4294901760
    %1370 = vmatpush.msra.mxu0 %v1369
    %v1371 = vand.u32 %v135, 4294901760
    %1372 = vmatpush.msra.mxu0 %v1371
    %v1373 = vand.u32 %v134, 4294901760
    %1374 = vmatpush.msra.mxu0 %v1373
    %v1375 = vand.u32 %v133, 4294901760
    %1376 = vmatpush.msra.mxu0 %v1375
    %v1377 = vand.u32 %v132, 4294901760
    %1378 = vmatpush.msra.mxu0 %v1377
    %v1379 = vand.u32 %v131, 4294901760
    %1380 = vmatpush.msra.mxu0 %v1379
    %v1381 = vand.u32 %v130, 4294901760
    %1382 = vmatpush.msra.mxu0 %v1381
    %v1383 = vand.u32 %v129, 4294901760
    %1384 = vmatpush.msra.mxu0 %v1383
    %v1385 = vand.u32 %v128, 4294901760
    %1386 = vmatpush.msra.mxu0 %v1385
    %v1387 = vand.u32 %v127, 4294901760
    %1388 = vmatpush.msra.mxu0 %v1387
    %v1389 = vand.u32 %v613, 4294901760
    %v1390 = vsub.f32 %v613, %v1389
    %v1391 = vand.u32 %v1390, 4294901760
    %v1392 = vsub.f32 %v1390, %v1391
    %v1393 = vand.u32 %v1392, 4294901760
    %1394 = vmatmul.f32.gmra.mxu0 %v1393
    %v1395 = vpop.f32.mrf.mxu0
    %v1396 = vadd.f32 %v1355, %v1395
    %1397 = vdwg.mxu0
    %v1398 = vand.u32 %v142, 4294901760
    %v1399 = vsub.f32 %v142, %v1398
    %v1400 = vand.u32 %v1399, 4294901760
    %v1401 = vsub.f32 %v1399, %v1400
    %v1402 = vand.u32 %v1401, 4294901760
    %1403 = vmatpush.msra.mxu0 %v1402
    %v1404 = vand.u32 %v141, 4294901760
    %v1405 = vsub.f32 %v141, %v1404
    %v1406 = vand.u32 %v1405, 4294901760
    %v1407 = vsub.f32 %v1405, %v1406
    %v1408 = vand.u32 %v1407, 4294901760
    %1409 = vmatpush.msra.mxu0 %v1408
    %v1410 = vand.u32 %v140, 4294901760
    %v1411 = vsub.f32 %v140, %v1410
    %v1412 = vand.u32 %v1411, 4294901760
    %v1413 = vsub.f32 %v1411, %v1412
    %v1414 = vand.u32 %v1413, 4294901760
    %1415 = vmatpush.msra.mxu0 %v1414
    %v1416 = vand.u32 %v139, 4294901760
    %v1417 = vsub.f32 %v139, %v1416
    %v1418 = vand.u32 %v1417, 4294901760
    %v1419 = vsub.f32 %v1417, %v1418
    %v1420 = vand.u32 %v1419, 4294901760
    %1421 = vmatpush.msra.mxu0 %v1420
    %v1422 = vand.u32 %v138, 4294901760
    %v1423 = vsub.f32 %v138, %v1422
    %v1424 = vand.u32 %v1423, 4294901760
    %v1425 = vsub.f32 %v1423, %v1424
    %v1426 = vand.u32 %v1425, 4294901760
    %1427 = vmatpush.msra.mxu0 %v1426
    %v1428 = vand.u32 %v137, 4294901760
    %v1429 = vsub.f32 %v137, %v1428
    %v1430 = vand.u32 %v1429, 4294901760
    %v1431 = vsub.f32 %v1429, %v1430
    %v1432 = vand.u32 %v1431, 4294901760
    %1433 = vmatpush.msra.mxu0 %v1432
    %v1434 = vand.u32 %v136, 4294901760
    %v1435 = vsub.f32 %v136, %v1434
    %v1436 = vand.u32 %v1435, 4294901760
    %v1437 = vsub.f32 %v1435, %v1436
    %v1438 = vand.u32 %v1437, 4294901760
    %1439 = vmatpush.msra.mxu0 %v1438
    %v1440 = vand.u32 %v135, 4294901760
    %v1441 = vsub.f32 %v135, %v1440
    %v1442 = vand.u32 %v1441, 4294901760
    %v1443 = vsub.f32 %v1441, %v1442
    %v1444 = vand.u32 %v1443, 4294901760
    %1445 = vmatpush.msra.mxu0 %v1444
    %v1446 = vand.u32 %v134, 4294901760
    %v1447 = vsub.f32 %v134, %v1446
    %v1448 = vand.u32 %v1447, 4294901760
    %v1449 = vsub.f32 %v1447, %v1448
    %v1450 = vand.u32 %v1449, 4294901760
    %1451 = vmatpush.msra.mxu0 %v1450
    %v1452 = vand.u32 %v133, 4294901760
    %v1453 = vsub.f32 %v133, %v1452
    %v1454 = vand.u32 %v1453, 4294901760
    %v1455 = vsub.f32 %v1453, %v1454
    %v1456 = vand.u32 %v1455, 4294901760
    %1457 = vmatpush.msra.mxu0 %v1456
    %v1458 = vand.u32 %v132, 4294901760
    %v1459 = vsub.f32 %v132, %v1458
    %v1460 = vand.u32 %v1459, 4294901760
    %v1461 = vsub.f32 %v1459, %v1460
    %v1462 = vand.u32 %v1461, 4294901760
    %1463 = vmatpush.msra.mxu0 %v1462
    %v1464 = vand.u32 %v131, 4294901760
    %v1465 = vsub.f32 %v131, %v1464
    %v1466 = vand.u32 %v1465, 4294901760
    %v1467 = vsub.f32 %v1465, %v1466
    %v1468 = vand.u32 %v1467, 4294901760
    %1469 = vmatpush.msra.mxu0 %v1468
    %v1470 = vand.u32 %v130, 4294901760
    %v1471 = vsub.f32 %v130, %v1470
    %v1472 = vand.u32 %v1471, 4294901760
    %v1473 = vsub.f32 %v1471, %v1472
    %v1474 = vand.u32 %v1473, 4294901760
    %1475 = vmatpush.msra.mxu0 %v1474
    %v1476 = vand.u32 %v129, 4294901760
    %v1477 = vsub.f32 %v129, %v1476
    %v1478 = vand.u32 %v1477, 4294901760
    %v1479 = vsub.f32 %v1477, %v1478
    %v1480 = vand.u32 %v1479, 4294901760
    %1481 = vmatpush.msra.mxu0 %v1480
    %v1482 = vand.u32 %v128, 4294901760
    %v1483 = vsub.f32 %v128, %v1482
    %v1484 = vand.u32 %v1483, 4294901760
    %v1485 = vsub.f32 %v1483, %v1484
    %v1486 = vand.u32 %v1485, 4294901760
    %1487 = vmatpush.msra.mxu0 %v1486
    %v1488 = vand.u32 %v127, 4294901760
    %v1489 = vsub.f32 %v127, %v1488
    %v1490 = vand.u32 %v1489, 4294901760
    %v1491 = vsub.f32 %v1489, %v1490
    %v1492 = vand.u32 %v1491, 4294901760
    %1493 = vmatpush.msra.mxu0 %v1492
    %v1494 = vand.u32 %v613, 4294901760
    %1495 = vmatmul.f32.gmra.mxu0 %v1494
    %v1496 = vpop.f32.mrf.mxu0
    %v1497 = vadd.f32 %v1396, %v1496
    %1498 = vdwg.mxu0
    %v1499 = vand.u32 %v142, 4294901760
    %v1500 = vsub.f32 %v142, %v1499
    %1501 = vmatpush.msra.mxu0 %v1500
    %v1502 = vand.u32 %v141, 4294901760
    %v1503 = vsub.f32 %v141, %v1502
    %1504 = vmatpush.msra.mxu0 %v1503
    %v1505 = vand.u32 %v140, 4294901760
    %v1506 = vsub.f32 %v140, %v1505
    %1507 = vmatpush.msra.mxu0 %v1506
    %v1508 = vand.u32 %v139, 4294901760
    %v1509 = vsub.f32 %v139, %v1508
    %1510 = vmatpush.msra.mxu0 %v1509
    %v1511 = vand.u32 %v138, 4294901760
    %v1512 = vsub.f32 %v138, %v1511
    %1513 = vmatpush.msra.mxu0 %v1512
    %v1514 = vand.u32 %v137, 4294901760
    %v1515 = vsub.f32 %v137, %v1514
    %1516 = vmatpush.msra.mxu0 %v1515
    %v1517 = vand.u32 %v136, 4294901760
    %v1518 = vsub.f32 %v136, %v1517
    %1519 = vmatpush.msra.mxu0 %v1518
    %v1520 = vand.u32 %v135, 4294901760
    %v1521 = vsub.f32 %v135, %v1520
    %1522 = vmatpush.msra.mxu0 %v1521
    %v1523 = vand.u32 %v134, 4294901760
    %v1524 = vsub.f32 %v134, %v1523
    %1525 = vmatpush.msra.mxu0 %v1524
    %v1526 = vand.u32 %v133, 4294901760
    %v1527 = vsub.f32 %v133, %v1526
    %1528 = vmatpush.msra.mxu0 %v1527
    %v1529 = vand.u32 %v132, 4294901760
    %v1530 = vsub.f32 %v132, %v1529
    %1531 = vmatpush.msra.mxu0 %v1530
    %v1532 = vand.u32 %v131, 4294901760
    %v1533 = vsub.f32 %v131, %v1532
    %1534 = vmatpush.msra.mxu0 %v1533
    %v1535 = vand.u32 %v130, 4294901760
    %v1536 = vsub.f32 %v130, %v1535
    %1537 = vmatpush.msra.mxu0 %v1536
    %v1538 = vand.u32 %v129, 4294901760
    %v1539 = vsub.f32 %v129, %v1538
    %1540 = vmatpush.msra.mxu0 %v1539
    %v1541 = vand.u32 %v128, 4294901760
    %v1542 = vsub.f32 %v128, %v1541
    %1543 = vmatpush.msra.mxu0 %v1542
    %v1544 = vand.u32 %v127, 4294901760
    %v1545 = vsub.f32 %v127, %v1544
    %1546 = vmatpush.msra.mxu0 %v1545
    %v1547 = vand.u32 %v613, 4294901760
    %v1548 = vsub.f32 %v613, %v1547
    %1549 = vmatmul.f32.gmra.mxu0 %v1548
    %v1550 = vpop.f32.mrf.mxu0
    %v1551 = vadd.f32 %v1497, %v1550
    %1552 = vdwg.mxu0
    %v1553 = vand.u32 %v142, 4294901760
    %1554 = vmatpush.msra.mxu0 %v1553
    %v1555 = vand.u32 %v141, 4294901760
    %1556 = vmatpush.msra.mxu0 %v1555
    %v1557 = vand.u32 %v140, 4294901760
    %1558 = vmatpush.msra.mxu0 %v1557
    %v1559 = vand.u32 %v139, 4294901760
    %1560 = vmatpush.msra.mxu0 %v1559
    %v1561 = vand.u32 %v138, 4294901760
    %1562 = vmatpush.msra.mxu0 %v1561
    %v1563 = vand.u32 %v137, 4294901760
    %1564 = vmatpush.msra.mxu0 %v1563
    %v1565 = vand.u32 %v136, 4294901760
    %1566 = vmatpush.msra.mxu0 %v1565
    %v1567 = vand.u32 %v135, 4294901760
    %1568 = vmatpush.msra.mxu0 %v1567
    %v1569 = vand.u32 %v134, 4294901760
    %1570 = vmatpush.msra.mxu0 %v1569
    %v1571 = vand.u32 %v133, 4294901760
    %1572 = vmatpush.msra.mxu0 %v1571
    %v1573 = vand.u32 %v132, 4294901760
    %1574 = vmatpush.msra.mxu0 %v1573
    %v1575 = vand.u32 %v131, 4294901760
    %1576 = vmatpush.msra.mxu0 %v1575
    %v1577 = vand.u32 %v130, 4294901760
    %1578 = vmatpush.msra.mxu0 %v1577
    %v1579 = vand.u32 %v129, 4294901760
    %1580 = vmatpush.msra.mxu0 %v1579
    %v1581 = vand.u32 %v128, 4294901760
    %1582 = vmatpush.msra.mxu0 %v1581
    %v1583 = vand.u32 %v127, 4294901760
    %1584 = vmatpush.msra.mxu0 %v1583
    %v1585 = vand.u32 %v613, 4294901760
    %v1586 = vsub.f32 %v613, %v1585
    %v1587 = vand.u32 %v1586, 4294901760
    %1588 = vmatmul.f32.gmra.mxu0 %v1587
    %v1589 = vpop.f32.mrf.mxu0
    %v1590 = vadd.f32 %v1551, %v1589
    %1591 = vdwg.mxu0
    %v1592 = vand.u32 %v142, 4294901760
    %v1593 = vsub.f32 %v142, %v1592
    %v1594 = vand.u32 %v1593, 4294901760
    %1595 = vmatpush.msra.mxu0 %v1594
    %v1596 = vand.u32 %v141, 4294901760
    %v1597 = vsub.f32 %v141, %v1596
    %v1598 = vand.u32 %v1597, 4294901760
    %1599 = vmatpush.msra.mxu0 %v1598
    %v1600 = vand.u32 %v140, 4294901760
    %v1601 = vsub.f32 %v140, %v1600
    %v1602 = vand.u32 %v1601, 4294901760
    %1603 = vmatpush.msra.mxu0 %v1602
    %v1604 = vand.u32 %v139, 4294901760
    %v1605 = vsub.f32 %v139, %v1604
    %v1606 = vand.u32 %v1605, 4294901760
    %1607 = vmatpush.msra.mxu0 %v1606
    %v1608 = vand.u32 %v138, 4294901760
    %v1609 = vsub.f32 %v138, %v1608
    %v1610 = vand.u32 %v1609, 4294901760
    %1611 = vmatpush.msra.mxu0 %v1610
    %v1612 = vand.u32 %v137, 4294901760
    %v1613 = vsub.f32 %v137, %v1612
    %v1614 = vand.u32 %v1613, 4294901760
    %1615 = vmatpush.msra.mxu0 %v1614
    %v1616 = vand.u32 %v136, 4294901760
    %v1617 = vsub.f32 %v136, %v1616
    %v1618 = vand.u32 %v1617, 4294901760
    %1619 = vmatpush.msra.mxu0 %v1618
    %v1620 = vand.u32 %v135, 4294901760
    %v1621 = vsub.f32 %v135, %v1620
    %v1622 = vand.u32 %v1621, 4294901760
    %1623 = vmatpush.msra.mxu0 %v1622
    %v1624 = vand.u32 %v134, 4294901760
    %v1625 = vsub.f32 %v134, %v1624
    %v1626 = vand.u32 %v1625, 4294901760
    %1627 = vmatpush.msra.mxu0 %v1626
    %v1628 = vand.u32 %v133, 4294901760
    %v1629 = vsub.f32 %v133, %v1628
    %v1630 = vand.u32 %v1629, 4294901760
    %1631 = vmatpush.msra.mxu0 %v1630
    %v1632 = vand.u32 %v132, 4294901760
    %v1633 = vsub.f32 %v132, %v1632
    %v1634 = vand.u32 %v1633, 4294901760
    %1635 = vmatpush.msra.mxu0 %v1634
    %v1636 = vand.u32 %v131, 4294901760
    %v1637 = vsub.f32 %v131, %v1636
    %v1638 = vand.u32 %v1637, 4294901760
    %1639 = vmatpush.msra.mxu0 %v1638
    %v1640 = vand.u32 %v130, 4294901760
    %v1641 = vsub.f32 %v130, %v1640
    %v1642 = vand.u32 %v1641, 4294901760
    %1643 = vmatpush.msra.mxu0 %v1642
    %v1644 = vand.u32 %v129, 4294901760
    %v1645 = vsub.f32 %v129, %v1644
    %v1646 = vand.u32 %v1645, 4294901760
    %1647 = vmatpush.msra.mxu0 %v1646
    %v1648 = vand.u32 %v128, 4294901760
    %v1649 = vsub.f32 %v128, %v1648
    %v1650 = vand.u32 %v1649, 4294901760
    %1651 = vmatpush.msra.mxu0 %v1650
    %v1652 = vand.u32 %v127, 4294901760
    %v1653 = vsub.f32 %v127, %v1652
    %v1654 = vand.u32 %v1653, 4294901760
    %1655 = vmatpush.msra.mxu0 %v1654
    %v1656 = vand.u32 %v613, 4294901760
    %1657 = vmatmul.f32.gmra.mxu0 %v1656
    %v1658 = vpop.f32.mrf.mxu0
    %v1659 = vadd.f32 %v1590, %v1658
    %1660 = vdwg.mxu0
    %v1661 = vand.u32 %v142, 4294901760
    %1662 = vmatpush.msra.mxu0 %v1661
    %v1663 = vand.u32 %v141, 4294901760
    %1664 = vmatpush.msra.mxu0 %v1663
    %v1665 = vand.u32 %v140, 4294901760
    %1666 = vmatpush.msra.mxu0 %v1665
    %v1667 = vand.u32 %v139, 4294901760
    %1668 = vmatpush.msra.mxu0 %v1667
    %v1669 = vand.u32 %v138, 4294901760
    %1670 = vmatpush.msra.mxu0 %v1669
    %v1671 = vand.u32 %v137, 4294901760
    %1672 = vmatpush.msra.mxu0 %v1671
    %v1673 = vand.u32 %v136, 4294901760
    %1674 = vmatpush.msra.mxu0 %v1673
    %v1675 = vand.u32 %v135, 4294901760
    %1676 = vmatpush.msra.mxu0 %v1675
    %v1677 = vand.u32 %v134, 4294901760
    %1678 = vmatpush.msra.mxu0 %v1677
    %v1679 = vand.u32 %v133, 4294901760
    %1680 = vmatpush.msra.mxu0 %v1679
    %v1681 = vand.u32 %v132, 4294901760
    %1682 = vmatpush.msra.mxu0 %v1681
    %v1683 = vand.u32 %v131, 4294901760
    %1684 = vmatpush.msra.mxu0 %v1683
    %v1685 = vand.u32 %v130, 4294901760
    %1686 = vmatpush.msra.mxu0 %v1685
    %v1687 = vand.u32 %v129, 4294901760
    %1688 = vmatpush.msra.mxu0 %v1687
    %v1689 = vand.u32 %v128, 4294901760
    %1690 = vmatpush.msra.mxu0 %v1689
    %v1691 = vand.u32 %v127, 4294901760
    %1692 = vmatpush.msra.mxu0 %v1691
    %v1693 = vand.u32 %v613, 4294901760
    %1694 = vmatmul.f32.gmra.mxu0 %v1693
    %v1695 = vpop.f32.mrf.mxu0
    %v1696 = vadd.f32 %v1659, %v1695
    %1697 = vdwg.mxu0
    %v1698 = vand.u32 %v158, 4294901760
    %1699 = vmatpush.msra.mxu0 %v1698
    %v1700 = vand.u32 %v157, 4294901760
    %1701 = vmatpush.msra.mxu0 %v1700
    %v1702 = vand.u32 %v156, 4294901760
    %1703 = vmatpush.msra.mxu0 %v1702
    %v1704 = vand.u32 %v155, 4294901760
    %1705 = vmatpush.msra.mxu0 %v1704
    %v1706 = vand.u32 %v154, 4294901760
    %1707 = vmatpush.msra.mxu0 %v1706
    %v1708 = vand.u32 %v153, 4294901760
    %1709 = vmatpush.msra.mxu0 %v1708
    %v1710 = vand.u32 %v152, 4294901760
    %1711 = vmatpush.msra.mxu0 %v1710
    %v1712 = vand.u32 %v151, 4294901760
    %1713 = vmatpush.msra.mxu0 %v1712
    %v1714 = vand.u32 %v150, 4294901760
    %1715 = vmatpush.msra.mxu0 %v1714
    %v1716 = vand.u32 %v149, 4294901760
    %1717 = vmatpush.msra.mxu0 %v1716
    %v1718 = vand.u32 %v148, 4294901760
    %1719 = vmatpush.msra.mxu0 %v1718
    %v1720 = vand.u32 %v147, 4294901760
    %1721 = vmatpush.msra.mxu0 %v1720
    %v1722 = vand.u32 %v146, 4294901760
    %1723 = vmatpush.msra.mxu0 %v1722
    %v1724 = vand.u32 %v145, 4294901760
    %1725 = vmatpush.msra.mxu0 %v1724
    %v1726 = vand.u32 %v144, 4294901760
    %1727 = vmatpush.msra.mxu0 %v1726
    %v1728 = vand.u32 %v143, 4294901760
    %1729 = vmatpush.msra.mxu0 %v1728
    %v1730 = vand.u32 %v614, 4294901760
    %v1731 = vsub.f32 %v614, %v1730
    %v1732 = vand.u32 %v1731, 4294901760
    %v1733 = vsub.f32 %v1731, %v1732
    %v1734 = vand.u32 %v1733, 4294901760
    %1735 = vmatmul.f32.gmra.mxu0 %v1734
    %v1736 = vpop.f32.mrf.mxu0
    %v1737 = vadd.f32 %v1696, %v1736
    %1738 = vdwg.mxu0
    %v1739 = vand.u32 %v158, 4294901760
    %v1740 = vsub.f32 %v158, %v1739
    %v1741 = vand.u32 %v1740, 4294901760
    %v1742 = vsub.f32 %v1740, %v1741
    %v1743 = vand.u32 %v1742, 4294901760
    %1744 = vmatpush.msra.mxu0 %v1743
    %v1745 = vand.u32 %v157, 4294901760
    %v1746 = vsub.f32 %v157, %v1745
    %v1747 = vand.u32 %v1746, 4294901760
    %v1748 = vsub.f32 %v1746, %v1747
    %v1749 = vand.u32 %v1748, 4294901760
    %1750 = vmatpush.msra.mxu0 %v1749
    %v1751 = vand.u32 %v156, 4294901760
    %v1752 = vsub.f32 %v156, %v1751
    %v1753 = vand.u32 %v1752, 4294901760
    %v1754 = vsub.f32 %v1752, %v1753
    %v1755 = vand.u32 %v1754, 4294901760
    %1756 = vmatpush.msra.mxu0 %v1755
    %v1757 = vand.u32 %v155, 4294901760
    %v1758 = vsub.f32 %v155, %v1757
    %v1759 = vand.u32 %v1758, 4294901760
    %v1760 = vsub.f32 %v1758, %v1759
    %v1761 = vand.u32 %v1760, 4294901760
    %1762 = vmatpush.msra.mxu0 %v1761
    %v1763 = vand.u32 %v154, 4294901760
    %v1764 = vsub.f32 %v154, %v1763
    %v1765 = vand.u32 %v1764, 4294901760
    %v1766 = vsub.f32 %v1764, %v1765
    %v1767 = vand.u32 %v1766, 4294901760
    %1768 = vmatpush.msra.mxu0 %v1767
    %v1769 = vand.u32 %v153, 4294901760
    %v1770 = vsub.f32 %v153, %v1769
    %v1771 = vand.u32 %v1770, 4294901760
    %v1772 = vsub.f32 %v1770, %v1771
    %v1773 = vand.u32 %v1772, 4294901760
    %1774 = vmatpush.msra.mxu0 %v1773
    %v1775 = vand.u32 %v152, 4294901760
    %v1776 = vsub.f32 %v152, %v1775
    %v1777 = vand.u32 %v1776, 4294901760
    %v1778 = vsub.f32 %v1776, %v1777
    %v1779 = vand.u32 %v1778, 4294901760
    %1780 = vmatpush.msra.mxu0 %v1779
    %v1781 = vand.u32 %v151, 4294901760
    %v1782 = vsub.f32 %v151, %v1781
    %v1783 = vand.u32 %v1782, 4294901760
    %v1784 = vsub.f32 %v1782, %v1783
    %v1785 = vand.u32 %v1784, 4294901760
    %1786 = vmatpush.msra.mxu0 %v1785
    %v1787 = vand.u32 %v150, 4294901760
    %v1788 = vsub.f32 %v150, %v1787
    %v1789 = vand.u32 %v1788, 4294901760
    %v1790 = vsub.f32 %v1788, %v1789
    %v1791 = vand.u32 %v1790, 4294901760
    %1792 = vmatpush.msra.mxu0 %v1791
    %v1793 = vand.u32 %v149, 4294901760
    %v1794 = vsub.f32 %v149, %v1793
    %v1795 = vand.u32 %v1794, 4294901760
    %v1796 = vsub.f32 %v1794, %v1795
    %v1797 = vand.u32 %v1796, 4294901760
    %1798 = vmatpush.msra.mxu0 %v1797
    %v1799 = vand.u32 %v148, 4294901760
    %v1800 = vsub.f32 %v148, %v1799
    %v1801 = vand.u32 %v1800, 4294901760
    %v1802 = vsub.f32 %v1800, %v1801
    %v1803 = vand.u32 %v1802, 4294901760
    %1804 = vmatpush.msra.mxu0 %v1803
    %v1805 = vand.u32 %v147, 4294901760
    %v1806 = vsub.f32 %v147, %v1805
    %v1807 = vand.u32 %v1806, 4294901760
    %v1808 = vsub.f32 %v1806, %v1807
    %v1809 = vand.u32 %v1808, 4294901760
    %1810 = vmatpush.msra.mxu0 %v1809
    %v1811 = vand.u32 %v146, 4294901760
    %v1812 = vsub.f32 %v146, %v1811
    %v1813 = vand.u32 %v1812, 4294901760
    %v1814 = vsub.f32 %v1812, %v1813
    %v1815 = vand.u32 %v1814, 4294901760
    %1816 = vmatpush.msra.mxu0 %v1815
    %v1817 = vand.u32 %v145, 4294901760
    %v1818 = vsub.f32 %v145, %v1817
    %v1819 = vand.u32 %v1818, 4294901760
    %v1820 = vsub.f32 %v1818, %v1819
    %v1821 = vand.u32 %v1820, 4294901760
    %1822 = vmatpush.msra.mxu0 %v1821
    %v1823 = vand.u32 %v144, 4294901760
    %v1824 = vsub.f32 %v144, %v1823
    %v1825 = vand.u32 %v1824, 4294901760
    %v1826 = vsub.f32 %v1824, %v1825
    %v1827 = vand.u32 %v1826, 4294901760
    %1828 = vmatpush.msra.mxu0 %v1827
    %v1829 = vand.u32 %v143, 4294901760
    %v1830 = vsub.f32 %v143, %v1829
    %v1831 = vand.u32 %v1830, 4294901760
    %v1832 = vsub.f32 %v1830, %v1831
    %v1833 = vand.u32 %v1832, 4294901760
    %1834 = vmatpush.msra.mxu0 %v1833
    %v1835 = vand.u32 %v614, 4294901760
    %1836 = vmatmul.f32.gmra.mxu0 %v1835
    %v1837 = vpop.f32.mrf.mxu0
    %v1838 = vadd.f32 %v1737, %v1837
    %1839 = vdwg.mxu0
    %v1840 = vand.u32 %v158, 4294901760
    %v1841 = vsub.f32 %v158, %v1840
    %1842 = vmatpush.msra.mxu0 %v1841
    %v1843 = vand.u32 %v157, 4294901760
    %v1844 = vsub.f32 %v157, %v1843
    %1845 = vmatpush.msra.mxu0 %v1844
    %v1846 = vand.u32 %v156, 4294901760
    %v1847 = vsub.f32 %v156, %v1846
    %1848 = vmatpush.msra.mxu0 %v1847
    %v1849 = vand.u32 %v155, 4294901760
    %v1850 = vsub.f32 %v155, %v1849
    %1851 = vmatpush.msra.mxu0 %v1850
    %v1852 = vand.u32 %v154, 4294901760
    %v1853 = vsub.f32 %v154, %v1852
    %1854 = vmatpush.msra.mxu0 %v1853
    %v1855 = vand.u32 %v153, 4294901760
    %v1856 = vsub.f32 %v153, %v1855
    %1857 = vmatpush.msra.mxu0 %v1856
    %v1858 = vand.u32 %v152, 4294901760
    %v1859 = vsub.f32 %v152, %v1858
    %1860 = vmatpush.msra.mxu0 %v1859
    %v1861 = vand.u32 %v151, 4294901760
    %v1862 = vsub.f32 %v151, %v1861
    %1863 = vmatpush.msra.mxu0 %v1862
    %v1864 = vand.u32 %v150, 4294901760
    %v1865 = vsub.f32 %v150, %v1864
    %1866 = vmatpush.msra.mxu0 %v1865
    %v1867 = vand.u32 %v149, 4294901760
    %v1868 = vsub.f32 %v149, %v1867
    %1869 = vmatpush.msra.mxu0 %v1868
    %v1870 = vand.u32 %v148, 4294901760
    %v1871 = vsub.f32 %v148, %v1870
    %1872 = vmatpush.msra.mxu0 %v1871
    %v1873 = vand.u32 %v147, 4294901760
    %v1874 = vsub.f32 %v147, %v1873
    %1875 = vmatpush.msra.mxu0 %v1874
    %v1876 = vand.u32 %v146, 4294901760
    %v1877 = vsub.f32 %v146, %v1876
    %1878 = vmatpush.msra.mxu0 %v1877
    %v1879 = vand.u32 %v145, 4294901760
    %v1880 = vsub.f32 %v145, %v1879
    %1881 = vmatpush.msra.mxu0 %v1880
    %v1882 = vand.u32 %v144, 4294901760
    %v1883 = vsub.f32 %v144, %v1882
    %1884 = vmatpush.msra.mxu0 %v1883
    %v1885 = vand.u32 %v143, 4294901760
    %v1886 = vsub.f32 %v143, %v1885
    %1887 = vmatpush.msra.mxu0 %v1886
    %v1888 = vand.u32 %v614, 4294901760
    %v1889 = vsub.f32 %v614, %v1888
    %1890 = vmatmul.f32.gmra.mxu0 %v1889
    %v1891 = vpop.f32.mrf.mxu0
    %v1892 = vadd.f32 %v1838, %v1891
    %1893 = vdwg.mxu0
    %v1894 = vand.u32 %v158, 4294901760
    %1895 = vmatpush.msra.mxu0 %v1894
    %v1896 = vand.u32 %v157, 4294901760
    %1897 = vmatpush.msra.mxu0 %v1896
    %v1898 = vand.u32 %v156, 4294901760
    %1899 = vmatpush.msra.mxu0 %v1898
    %v1900 = vand.u32 %v155, 4294901760
    %1901 = vmatpush.msra.mxu0 %v1900
    %v1902 = vand.u32 %v154, 4294901760
    %1903 = vmatpush.msra.mxu0 %v1902
    %v1904 = vand.u32 %v153, 4294901760
    %1905 = vmatpush.msra.mxu0 %v1904
    %v1906 = vand.u32 %v152, 4294901760
    %1907 = vmatpush.msra.mxu0 %v1906
    %v1908 = vand.u32 %v151, 4294901760
    %1909 = vmatpush.msra.mxu0 %v1908
    %v1910 = vand.u32 %v150, 4294901760
    %1911 = vmatpush.msra.mxu0 %v1910
    %v1912 = vand.u32 %v149, 4294901760
    %1913 = vmatpush.msra.mxu0 %v1912
    %v1914 = vand.u32 %v148, 4294901760
    %1915 = vmatpush.msra.mxu0 %v1914
    %v1916 = vand.u32 %v147, 4294901760
    %1917 = vmatpush.msra.mxu0 %v1916
    %v1918 = vand.u32 %v146, 4294901760
    %1919 = vmatpush.msra.mxu0 %v1918
    %v1920 = vand.u32 %v145, 4294901760
    %1921 = vmatpush.msra.mxu0 %v1920
    %v1922 = vand.u32 %v144, 4294901760
    %1923 = vmatpush.msra.mxu0 %v1922
    %v1924 = vand.u32 %v143, 4294901760
    %1925 = vmatpush.msra.mxu0 %v1924
    %v1926 = vand.u32 %v614, 4294901760
    %v1927 = vsub.f32 %v614, %v1926
    %v1928 = vand.u32 %v1927, 4294901760
    %1929 = vmatmul.f32.gmra.mxu0 %v1928
    %v1930 = vpop.f32.mrf.mxu0
    %v1931 = vadd.f32 %v1892, %v1930
    %1932 = vdwg.mxu0
    %v1933 = vand.u32 %v158, 4294901760
    %v1934 = vsub.f32 %v158, %v1933
    %v1935 = vand.u32 %v1934, 4294901760
    %1936 = vmatpush.msra.mxu0 %v1935
    %v1937 = vand.u32 %v157, 4294901760
    %v1938 = vsub.f32 %v157, %v1937
    %v1939 = vand.u32 %v1938, 4294901760
    %1940 = vmatpush.msra.mxu0 %v1939
    %v1941 = vand.u32 %v156, 4294901760
    %v1942 = vsub.f32 %v156, %v1941
    %v1943 = vand.u32 %v1942, 4294901760
    %1944 = vmatpush.msra.mxu0 %v1943
    %v1945 = vand.u32 %v155, 4294901760
    %v1946 = vsub.f32 %v155, %v1945
    %v1947 = vand.u32 %v1946, 4294901760
    %1948 = vmatpush.msra.mxu0 %v1947
    %v1949 = vand.u32 %v154, 4294901760
    %v1950 = vsub.f32 %v154, %v1949
    %v1951 = vand.u32 %v1950, 4294901760
    %1952 = vmatpush.msra.mxu0 %v1951
    %v1953 = vand.u32 %v153, 4294901760
    %v1954 = vsub.f32 %v153, %v1953
    %v1955 = vand.u32 %v1954, 4294901760
    %1956 = vmatpush.msra.mxu0 %v1955
    %v1957 = vand.u32 %v152, 4294901760
    %v1958 = vsub.f32 %v152, %v1957
    %v1959 = vand.u32 %v1958, 4294901760
    %1960 = vmatpush.msra.mxu0 %v1959
    %v1961 = vand.u32 %v151, 4294901760
    %v1962 = vsub.f32 %v151, %v1961
    %v1963 = vand.u32 %v1962, 4294901760
    %1964 = vmatpush.msra.mxu0 %v1963
    %v1965 = vand.u32 %v150, 4294901760
    %v1966 = vsub.f32 %v150, %v1965
    %v1967 = vand.u32 %v1966, 4294901760
    %1968 = vmatpush.msra.mxu0 %v1967
    %v1969 = vand.u32 %v149, 4294901760
    %v1970 = vsub.f32 %v149, %v1969
    %v1971 = vand.u32 %v1970, 4294901760
    %1972 = vmatpush.msra.mxu0 %v1971
    %v1973 = vand.u32 %v148, 4294901760
    %v1974 = vsub.f32 %v148, %v1973
    %v1975 = vand.u32 %v1974, 4294901760
    %1976 = vmatpush.msra.mxu0 %v1975
    %v1977 = vand.u32 %v147, 4294901760
    %v1978 = vsub.f32 %v147, %v1977
    %v1979 = vand.u32 %v1978, 4294901760
    %1980 = vmatpush.msra.mxu0 %v1979
    %v1981 = vand.u32 %v146, 4294901760
    %v1982 = vsub.f32 %v146, %v1981
    %v1983 = vand.u32 %v1982, 4294901760
    %1984 = vmatpush.msra.mxu0 %v1983
    %v1985 = vand.u32 %v145, 4294901760
    %v1986 = vsub.f32 %v145, %v1985
    %v1987 = vand.u32 %v1986, 4294901760
    %1988 = vmatpush.msra.mxu0 %v1987
    %v1989 = vand.u32 %v144, 4294901760
    %v1990 = vsub.f32 %v144, %v1989
    %v1991 = vand.u32 %v1990, 4294901760
    %1992 = vmatpush.msra.mxu0 %v1991
    %v1993 = vand.u32 %v143, 4294901760
    %v1994 = vsub.f32 %v143, %v1993
    %v1995 = vand.u32 %v1994, 4294901760
    %1996 = vmatpush.msra.mxu0 %v1995
    %v1997 = vand.u32 %v614, 4294901760
    %1998 = vmatmul.f32.gmra.mxu0 %v1997
    %v1999 = vpop.f32.mrf.mxu0
    %v2000 = vadd.f32 %v1931, %v1999
    %2001 = vdwg.mxu0
    %v2002 = vand.u32 %v158, 4294901760
    %2003 = vmatpush.msra.mxu0 %v2002
    %v2004 = vand.u32 %v157, 4294901760
    %2005 = vmatpush.msra.mxu0 %v2004
    %v2006 = vand.u32 %v156, 4294901760
    %2007 = vmatpush.msra.mxu0 %v2006
    %v2008 = vand.u32 %v155, 4294901760
    %2009 = vmatpush.msra.mxu0 %v2008
    %v2010 = vand.u32 %v154, 4294901760
    %2011 = vmatpush.msra.mxu0 %v2010
    %v2012 = vand.u32 %v153, 4294901760
    %2013 = vmatpush.msra.mxu0 %v2012
    %v2014 = vand.u32 %v152, 4294901760
    %2015 = vmatpush.msra.mxu0 %v2014
    %v2016 = vand.u32 %v151, 4294901760
    %2017 = vmatpush.msra.mxu0 %v2016
    %v2018 = vand.u32 %v150, 4294901760
    %2019 = vmatpush.msra.mxu0 %v2018
    %v2020 = vand.u32 %v149, 4294901760
    %2021 = vmatpush.msra.mxu0 %v2020
    %v2022 = vand.u32 %v148, 4294901760
    %2023 = vmatpush.msra.mxu0 %v2022
    %v2024 = vand.u32 %v147, 4294901760
    %2025 = vmatpush.msra.mxu0 %v2024
    %v2026 = vand.u32 %v146, 4294901760
    %2027 = vmatpush.msra.mxu0 %v2026
    %v2028 = vand.u32 %v145, 4294901760
    %2029 = vmatpush.msra.mxu0 %v2028
    %v2030 = vand.u32 %v144, 4294901760
    %2031 = vmatpush.msra.mxu0 %v2030
    %v2032 = vand.u32 %v143, 4294901760
    %2033 = vmatpush.msra.mxu0 %v2032
    %v2034 = vand.u32 %v614, 4294901760
    %2035 = vmatmul.f32.gmra.mxu0 %v2034
    %v2036 = vpop.f32.mrf.mxu0
    %v2037 = vadd.f32 %v2000, %v2036
    %2038 = vdwg.mxu0
    %v2039 = vand.u32 %v174, 4294901760
    %2040 = vmatpush.msra.mxu0 %v2039
    %v2041 = vand.u32 %v173, 4294901760
    %2042 = vmatpush.msra.mxu0 %v2041
    %v2043 = vand.u32 %v172, 4294901760
    %2044 = vmatpush.msra.mxu0 %v2043
    %v2045 = vand.u32 %v171, 4294901760
    %2046 = vmatpush.msra.mxu0 %v2045
    %v2047 = vand.u32 %v170, 4294901760
    %2048 = vmatpush.msra.mxu0 %v2047
    %v2049 = vand.u32 %v169, 4294901760
    %2050 = vmatpush.msra.mxu0 %v2049
    %v2051 = vand.u32 %v168, 4294901760
    %2052 = vmatpush.msra.mxu0 %v2051
    %v2053 = vand.u32 %v167, 4294901760
    %2054 = vmatpush.msra.mxu0 %v2053
    %v2055 = vand.u32 %v166, 4294901760
    %2056 = vmatpush.msra.mxu0 %v2055
    %v2057 = vand.u32 %v165, 4294901760
    %2058 = vmatpush.msra.mxu0 %v2057
    %v2059 = vand.u32 %v164, 4294901760
    %2060 = vmatpush.msra.mxu0 %v2059
    %v2061 = vand.u32 %v163, 4294901760
    %2062 = vmatpush.msra.mxu0 %v2061
    %v2063 = vand.u32 %v162, 4294901760
    %2064 = vmatpush.msra.mxu0 %v2063
    %v2065 = vand.u32 %v161, 4294901760
    %2066 = vmatpush.msra.mxu0 %v2065
    %v2067 = vand.u32 %v160, 4294901760
    %2068 = vmatpush.msra.mxu0 %v2067
    %v2069 = vand.u32 %v159, 4294901760
    %2070 = vmatpush.msra.mxu0 %v2069
    %v2071 = vand.u32 %v615, 4294901760
    %v2072 = vsub.f32 %v615, %v2071
    %v2073 = vand.u32 %v2072, 4294901760
    %v2074 = vsub.f32 %v2072, %v2073
    %v2075 = vand.u32 %v2074, 4294901760
    %2076 = vmatmul.f32.gmra.mxu0 %v2075
    %v2077 = vpop.f32.mrf.mxu0
    %v2078 = vadd.f32 %v2037, %v2077
    %2079 = vdwg.mxu0
    %v2080 = vand.u32 %v174, 4294901760
    %v2081 = vsub.f32 %v174, %v2080
    %v2082 = vand.u32 %v2081, 4294901760
    %v2083 = vsub.f32 %v2081, %v2082
    %v2084 = vand.u32 %v2083, 4294901760
    %2085 = vmatpush.msra.mxu0 %v2084
    %v2086 = vand.u32 %v173, 4294901760
    %v2087 = vsub.f32 %v173, %v2086
    %v2088 = vand.u32 %v2087, 4294901760
    %v2089 = vsub.f32 %v2087, %v2088
    %v2090 = vand.u32 %v2089, 4294901760
    %2091 = vmatpush.msra.mxu0 %v2090
    %v2092 = vand.u32 %v172, 4294901760
    %v2093 = vsub.f32 %v172, %v2092
    %v2094 = vand.u32 %v2093, 4294901760
    %v2095 = vsub.f32 %v2093, %v2094
    %v2096 = vand.u32 %v2095, 4294901760
    %2097 = vmatpush.msra.mxu0 %v2096
    %v2098 = vand.u32 %v171, 4294901760
    %v2099 = vsub.f32 %v171, %v2098
    %v2100 = vand.u32 %v2099, 4294901760
    %v2101 = vsub.f32 %v2099, %v2100
    %v2102 = vand.u32 %v2101, 4294901760
    %2103 = vmatpush.msra.mxu0 %v2102
    %v2104 = vand.u32 %v170, 4294901760
    %v2105 = vsub.f32 %v170, %v2104
    %v2106 = vand.u32 %v2105, 4294901760
    %v2107 = vsub.f32 %v2105, %v2106
    %v2108 = vand.u32 %v2107, 4294901760
    %2109 = vmatpush.msra.mxu0 %v2108
    %v2110 = vand.u32 %v169, 4294901760
    %v2111 = vsub.f32 %v169, %v2110
    %v2112 = vand.u32 %v2111, 4294901760
    %v2113 = vsub.f32 %v2111, %v2112
    %v2114 = vand.u32 %v2113, 4294901760
    %2115 = vmatpush.msra.mxu0 %v2114
    %v2116 = vand.u32 %v168, 4294901760
    %v2117 = vsub.f32 %v168, %v2116
    %v2118 = vand.u32 %v2117, 4294901760
    %v2119 = vsub.f32 %v2117, %v2118
    %v2120 = vand.u32 %v2119, 4294901760
    %2121 = vmatpush.msra.mxu0 %v2120
    %v2122 = vand.u32 %v167, 4294901760
    %v2123 = vsub.f32 %v167, %v2122
    %v2124 = vand.u32 %v2123, 4294901760
    %v2125 = vsub.f32 %v2123, %v2124
    %v2126 = vand.u32 %v2125, 4294901760
    %2127 = vmatpush.msra.mxu0 %v2126
    %v2128 = vand.u32 %v166, 4294901760
    %v2129 = vsub.f32 %v166, %v2128
    %v2130 = vand.u32 %v2129, 4294901760
    %v2131 = vsub.f32 %v2129, %v2130
    %v2132 = vand.u32 %v2131, 4294901760
    %2133 = vmatpush.msra.mxu0 %v2132
    %v2134 = vand.u32 %v165, 4294901760
    %v2135 = vsub.f32 %v165, %v2134
    %v2136 = vand.u32 %v2135, 4294901760
    %v2137 = vsub.f32 %v2135, %v2136
    %v2138 = vand.u32 %v2137, 4294901760
    %2139 = vmatpush.msra.mxu0 %v2138
    %v2140 = vand.u32 %v164, 4294901760
    %v2141 = vsub.f32 %v164, %v2140
    %v2142 = vand.u32 %v2141, 4294901760
    %v2143 = vsub.f32 %v2141, %v2142
    %v2144 = vand.u32 %v2143, 4294901760
    %2145 = vmatpush.msra.mxu0 %v2144
    %v2146 = vand.u32 %v163, 4294901760
    %v2147 = vsub.f32 %v163, %v2146
    %v2148 = vand.u32 %v2147, 4294901760
    %v2149 = vsub.f32 %v2147, %v2148
    %v2150 = vand.u32 %v2149, 4294901760
    %2151 = vmatpush.msra.mxu0 %v2150
    %v2152 = vand.u32 %v162, 4294901760
    %v2153 = vsub.f32 %v162, %v2152
    %v2154 = vand.u32 %v2153, 4294901760
    %v2155 = vsub.f32 %v2153, %v2154
    %v2156 = vand.u32 %v2155, 4294901760
    %2157 = vmatpush.msra.mxu0 %v2156
    %v2158 = vand.u32 %v161, 4294901760
    %v2159 = vsub.f32 %v161, %v2158
    %v2160 = vand.u32 %v2159, 4294901760
    %v2161 = vsub.f32 %v2159, %v2160
    %v2162 = vand.u32 %v2161, 4294901760
    %2163 = vmatpush.msra.mxu0 %v2162
    %v2164 = vand.u32 %v160, 4294901760
    %v2165 = vsub.f32 %v160, %v2164
    %v2166 = vand.u32 %v2165, 4294901760
    %v2167 = vsub.f32 %v2165, %v2166
    %v2168 = vand.u32 %v2167, 4294901760
    %2169 = vmatpush.msra.mxu0 %v2168
    %v2170 = vand.u32 %v159, 4294901760
    %v2171 = vsub.f32 %v159, %v2170
    %v2172 = vand.u32 %v2171, 4294901760
    %v2173 = vsub.f32 %v2171, %v2172
    %v2174 = vand.u32 %v2173, 4294901760
    %2175 = vmatpush.msra.mxu0 %v2174
    %v2176 = vand.u32 %v615, 4294901760
    %2177 = vmatmul.f32.gmra.mxu0 %v2176
    %v2178 = vpop.f32.mrf.mxu0
    %v2179 = vadd.f32 %v2078, %v2178
    %2180 = vdwg.mxu0
    %v2181 = vand.u32 %v174, 4294901760
    %v2182 = vsub.f32 %v174, %v2181
    %2183 = vmatpush.msra.mxu0 %v2182
    %v2184 = vand.u32 %v173, 4294901760
    %v2185 = vsub.f32 %v173, %v2184
    %2186 = vmatpush.msra.mxu0 %v2185
    %v2187 = vand.u32 %v172, 4294901760
    %v2188 = vsub.f32 %v172, %v2187
    %2189 = vmatpush.msra.mxu0 %v2188
    %v2190 = vand.u32 %v171, 4294901760
    %v2191 = vsub.f32 %v171, %v2190
    %2192 = vmatpush.msra.mxu0 %v2191
    %v2193 = vand.u32 %v170, 4294901760
    %v2194 = vsub.f32 %v170, %v2193
    %2195 = vmatpush.msra.mxu0 %v2194
    %v2196 = vand.u32 %v169, 4294901760
    %v2197 = vsub.f32 %v169, %v2196
    %2198 = vmatpush.msra.mxu0 %v2197
    %v2199 = vand.u32 %v168, 4294901760
    %v2200 = vsub.f32 %v168, %v2199
    %2201 = vmatpush.msra.mxu0 %v2200
    %v2202 = vand.u32 %v167, 4294901760
    %v2203 = vsub.f32 %v167, %v2202
    %2204 = vmatpush.msra.mxu0 %v2203
    %v2205 = vand.u32 %v166, 4294901760
    %v2206 = vsub.f32 %v166, %v2205
    %2207 = vmatpush.msra.mxu0 %v2206
    %v2208 = vand.u32 %v165, 4294901760
    %v2209 = vsub.f32 %v165, %v2208
    %2210 = vmatpush.msra.mxu0 %v2209
    %v2211 = vand.u32 %v164, 4294901760
    %v2212 = vsub.f32 %v164, %v2211
    %2213 = vmatpush.msra.mxu0 %v2212
    %v2214 = vand.u32 %v163, 4294901760
    %v2215 = vsub.f32 %v163, %v2214
    %2216 = vmatpush.msra.mxu0 %v2215
    %v2217 = vand.u32 %v162, 4294901760
    %v2218 = vsub.f32 %v162, %v2217
    %2219 = vmatpush.msra.mxu0 %v2218
    %v2220 = vand.u32 %v161, 4294901760
    %v2221 = vsub.f32 %v161, %v2220
    %2222 = vmatpush.msra.mxu0 %v2221
    %v2223 = vand.u32 %v160, 4294901760
    %v2224 = vsub.f32 %v160, %v2223
    %2225 = vmatpush.msra.mxu0 %v2224
    %v2226 = vand.u32 %v159, 4294901760
    %v2227 = vsub.f32 %v159, %v2226
    %2228 = vmatpush.msra.mxu0 %v2227
    %v2229 = vand.u32 %v615, 4294901760
    %v2230 = vsub.f32 %v615, %v2229
    %2231 = vmatmul.f32.gmra.mxu0 %v2230
    %v2232 = vpop.f32.mrf.mxu0
    %v2233 = vadd.f32 %v2179, %v2232
    %2234 = vdwg.mxu0
    %v2235 = vand.u32 %v174, 4294901760
    %2236 = vmatpush.msra.mxu0 %v2235
    %v2237 = vand.u32 %v173, 4294901760
    %2238 = vmatpush.msra.mxu0 %v2237
    %v2239 = vand.u32 %v172, 4294901760
    %2240 = vmatpush.msra.mxu0 %v2239
    %v2241 = vand.u32 %v171, 4294901760
    %2242 = vmatpush.msra.mxu0 %v2241
    %v2243 = vand.u32 %v170, 4294901760
    %2244 = vmatpush.msra.mxu0 %v2243
    %v2245 = vand.u32 %v169, 4294901760
    %2246 = vmatpush.msra.mxu0 %v2245
    %v2247 = vand.u32 %v168, 4294901760
    %2248 = vmatpush.msra.mxu0 %v2247
    %v2249 = vand.u32 %v167, 4294901760
    %2250 = vmatpush.msra.mxu0 %v2249
    %v2251 = vand.u32 %v166, 4294901760
    %2252 = vmatpush.msra.mxu0 %v2251
    %v2253 = vand.u32 %v165, 4294901760
    %2254 = vmatpush.msra.mxu0 %v2253
    %v2255 = vand.u32 %v164, 4294901760
    %2256 = vmatpush.msra.mxu0 %v2255
    %v2257 = vand.u32 %v163, 4294901760
    %2258 = vmatpush.msra.mxu0 %v2257
    %v2259 = vand.u32 %v162, 4294901760
    %2260 = vmatpush.msra.mxu0 %v2259
    %v2261 = vand.u32 %v161, 4294901760
    %2262 = vmatpush.msra.mxu0 %v2261
    %v2263 = vand.u32 %v160, 4294901760
    %2264 = vmatpush.msra.mxu0 %v2263
    %v2265 = vand.u32 %v159, 4294901760
    %2266 = vmatpush.msra.mxu0 %v2265
    %v2267 = vand.u32 %v615, 4294901760
    %v2268 = vsub.f32 %v615, %v2267
    %v2269 = vand.u32 %v2268, 4294901760
    %2270 = vmatmul.f32.gmra.mxu0 %v2269
    %v2271 = vpop.f32.mrf.mxu0
    %v2272 = vadd.f32 %v2233, %v2271
    %2273 = vdwg.mxu0
    %v2274 = vand.u32 %v174, 4294901760
    %v2275 = vsub.f32 %v174, %v2274
    %v2276 = vand.u32 %v2275, 4294901760
    %2277 = vmatpush.msra.mxu0 %v2276
    %v2278 = vand.u32 %v173, 4294901760
    %v2279 = vsub.f32 %v173, %v2278
    %v2280 = vand.u32 %v2279, 4294901760
    %2281 = vmatpush.msra.mxu0 %v2280
    %v2282 = vand.u32 %v172, 4294901760
    %v2283 = vsub.f32 %v172, %v2282
    %v2284 = vand.u32 %v2283, 4294901760
    %2285 = vmatpush.msra.mxu0 %v2284
    %v2286 = vand.u32 %v171, 4294901760
    %v2287 = vsub.f32 %v171, %v2286
    %v2288 = vand.u32 %v2287, 4294901760
    %2289 = vmatpush.msra.mxu0 %v2288
    %v2290 = vand.u32 %v170, 4294901760
    %v2291 = vsub.f32 %v170, %v2290
    %v2292 = vand.u32 %v2291, 4294901760
    %2293 = vmatpush.msra.mxu0 %v2292
    %v2294 = vand.u32 %v169, 4294901760
    %v2295 = vsub.f32 %v169, %v2294
    %v2296 = vand.u32 %v2295, 4294901760
    %2297 = vmatpush.msra.mxu0 %v2296
    %v2298 = vand.u32 %v168, 4294901760
    %v2299 = vsub.f32 %v168, %v2298
    %v2300 = vand.u32 %v2299, 4294901760
    %2301 = vmatpush.msra.mxu0 %v2300
    %v2302 = vand.u32 %v167, 4294901760
    %v2303 = vsub.f32 %v167, %v2302
    %v2304 = vand.u32 %v2303, 4294901760
    %2305 = vmatpush.msra.mxu0 %v2304
    %v2306 = vand.u32 %v166, 4294901760
    %v2307 = vsub.f32 %v166, %v2306
    %v2308 = vand.u32 %v2307, 4294901760
    %2309 = vmatpush.msra.mxu0 %v2308
    %v2310 = vand.u32 %v165, 4294901760
    %v2311 = vsub.f32 %v165, %v2310
    %v2312 = vand.u32 %v2311, 4294901760
    %2313 = vmatpush.msra.mxu0 %v2312
    %v2314 = vand.u32 %v164, 4294901760
    %v2315 = vsub.f32 %v164, %v2314
    %v2316 = vand.u32 %v2315, 4294901760
    %2317 = vmatpush.msra.mxu0 %v2316
    %v2318 = vand.u32 %v163, 4294901760
    %v2319 = vsub.f32 %v163, %v2318
    %v2320 = vand.u32 %v2319, 4294901760
    %2321 = vmatpush.msra.mxu0 %v2320
    %v2322 = vand.u32 %v162, 4294901760
    %v2323 = vsub.f32 %v162, %v2322
    %v2324 = vand.u32 %v2323, 4294901760
    %2325 = vmatpush.msra.mxu0 %v2324
    %v2326 = vand.u32 %v161, 4294901760
    %v2327 = vsub.f32 %v161, %v2326
    %v2328 = vand.u32 %v2327, 4294901760
    %2329 = vmatpush.msra.mxu0 %v2328
    %v2330 = vand.u32 %v160, 4294901760
    %v2331 = vsub.f32 %v160, %v2330
    %v2332 = vand.u32 %v2331, 4294901760
    %2333 = vmatpush.msra.mxu0 %v2332
    %v2334 = vand.u32 %v159, 4294901760
    %v2335 = vsub.f32 %v159, %v2334
    %v2336 = vand.u32 %v2335, 4294901760
    %2337 = vmatpush.msra.mxu0 %v2336
    %v2338 = vand.u32 %v615, 4294901760
    %2339 = vmatmul.f32.gmra.mxu0 %v2338
    %v2340 = vpop.f32.mrf.mxu0
    %v2341 = vadd.f32 %v2272, %v2340
    %2342 = vdwg.mxu0
    %v2343 = vand.u32 %v174, 4294901760
    %2344 = vmatpush.msra.mxu0 %v2343
    %v2345 = vand.u32 %v173, 4294901760
    %2346 = vmatpush.msra.mxu0 %v2345
    %v2347 = vand.u32 %v172, 4294901760
    %2348 = vmatpush.msra.mxu0 %v2347
    %v2349 = vand.u32 %v171, 4294901760
    %2350 = vmatpush.msra.mxu0 %v2349
    %v2351 = vand.u32 %v170, 4294901760
    %2352 = vmatpush.msra.mxu0 %v2351
    %v2353 = vand.u32 %v169, 4294901760
    %2354 = vmatpush.msra.mxu0 %v2353
    %v2355 = vand.u32 %v168, 4294901760
    %2356 = vmatpush.msra.mxu0 %v2355
    %v2357 = vand.u32 %v167, 4294901760
    %2358 = vmatpush.msra.mxu0 %v2357
    %v2359 = vand.u32 %v166, 4294901760
    %2360 = vmatpush.msra.mxu0 %v2359
    %v2361 = vand.u32 %v165, 4294901760
    %2362 = vmatpush.msra.mxu0 %v2361
    %v2363 = vand.u32 %v164, 4294901760
    %2364 = vmatpush.msra.mxu0 %v2363
    %v2365 = vand.u32 %v163, 4294901760
    %2366 = vmatpush.msra.mxu0 %v2365
    %v2367 = vand.u32 %v162, 4294901760
    %2368 = vmatpush.msra.mxu0 %v2367
    %v2369 = vand.u32 %v161, 4294901760
    %2370 = vmatpush.msra.mxu0 %v2369
    %v2371 = vand.u32 %v160, 4294901760
    %2372 = vmatpush.msra.mxu0 %v2371
    %v2373 = vand.u32 %v159, 4294901760
    %2374 = vmatpush.msra.mxu0 %v2373
    %v2375 = vand.u32 %v615, 4294901760
    %2376 = vmatmul.f32.gmra.mxu0 %v2375
    %v2377 = vpop.f32.mrf.mxu0
    %v2378 = vadd.f32 %v2341, %v2377
    %2379 = vdwg.mxu0
    %v2380 = vand.u32 %v190, 4294901760
    %2381 = vmatpush.msra.mxu0 %v2380
    %v2382 = vand.u32 %v189, 4294901760
    %2383 = vmatpush.msra.mxu0 %v2382
    %v2384 = vand.u32 %v188, 4294901760
    %2385 = vmatpush.msra.mxu0 %v2384
    %v2386 = vand.u32 %v187, 4294901760
    %2387 = vmatpush.msra.mxu0 %v2386
    %v2388 = vand.u32 %v186, 4294901760
    %2389 = vmatpush.msra.mxu0 %v2388
    %v2390 = vand.u32 %v185, 4294901760
    %2391 = vmatpush.msra.mxu0 %v2390
    %v2392 = vand.u32 %v184, 4294901760
    %2393 = vmatpush.msra.mxu0 %v2392
    %v2394 = vand.u32 %v183, 4294901760
    %2395 = vmatpush.msra.mxu0 %v2394
    %v2396 = vand.u32 %v182, 4294901760
    %2397 = vmatpush.msra.mxu0 %v2396
    %v2398 = vand.u32 %v181, 4294901760
    %2399 = vmatpush.msra.mxu0 %v2398
    %v2400 = vand.u32 %v180, 4294901760
    %2401 = vmatpush.msra.mxu0 %v2400
    %v2402 = vand.u32 %v179, 4294901760
    %2403 = vmatpush.msra.mxu0 %v2402
    %v2404 = vand.u32 %v178, 4294901760
    %2405 = vmatpush.msra.mxu0 %v2404
    %v2406 = vand.u32 %v177, 4294901760
    %2407 = vmatpush.msra.mxu0 %v2406
    %v2408 = vand.u32 %v176, 4294901760
    %2409 = vmatpush.msra.mxu0 %v2408
    %v2410 = vand.u32 %v175, 4294901760
    %2411 = vmatpush.msra.mxu0 %v2410
    %v2412 = vand.u32 %v616, 4294901760
    %v2413 = vsub.f32 %v616, %v2412
    %v2414 = vand.u32 %v2413, 4294901760
    %v2415 = vsub.f32 %v2413, %v2414
    %v2416 = vand.u32 %v2415, 4294901760
    %2417 = vmatmul.f32.gmra.mxu0 %v2416
    %v2418 = vpop.f32.mrf.mxu0
    %v2419 = vadd.f32 %v2378, %v2418
    %2420 = vdwg.mxu0
    %v2421 = vand.u32 %v190, 4294901760
    %v2422 = vsub.f32 %v190, %v2421
    %v2423 = vand.u32 %v2422, 4294901760
    %v2424 = vsub.f32 %v2422, %v2423
    %v2425 = vand.u32 %v2424, 4294901760
    %2426 = vmatpush.msra.mxu0 %v2425
    %v2427 = vand.u32 %v189, 4294901760
    %v2428 = vsub.f32 %v189, %v2427
    %v2429 = vand.u32 %v2428, 4294901760
    %v2430 = vsub.f32 %v2428, %v2429
    %v2431 = vand.u32 %v2430, 4294901760
    %2432 = vmatpush.msra.mxu0 %v2431
    %v2433 = vand.u32 %v188, 4294901760
    %v2434 = vsub.f32 %v188, %v2433
    %v2435 = vand.u32 %v2434, 4294901760
    %v2436 = vsub.f32 %v2434, %v2435
    %v2437 = vand.u32 %v2436, 4294901760
    %2438 = vmatpush.msra.mxu0 %v2437
    %v2439 = vand.u32 %v187, 4294901760
    %v2440 = vsub.f32 %v187, %v2439
    %v2441 = vand.u32 %v2440, 4294901760
    %v2442 = vsub.f32 %v2440, %v2441
    %v2443 = vand.u32 %v2442, 4294901760
    %2444 = vmatpush.msra.mxu0 %v2443
    %v2445 = vand.u32 %v186, 4294901760
    %v2446 = vsub.f32 %v186, %v2445
    %v2447 = vand.u32 %v2446, 4294901760
    %v2448 = vsub.f32 %v2446, %v2447
    %v2449 = vand.u32 %v2448, 4294901760
    %2450 = vmatpush.msra.mxu0 %v2449
    %v2451 = vand.u32 %v185, 4294901760
    %v2452 = vsub.f32 %v185, %v2451
    %v2453 = vand.u32 %v2452, 4294901760
    %v2454 = vsub.f32 %v2452, %v2453
    %v2455 = vand.u32 %v2454, 4294901760
    %2456 = vmatpush.msra.mxu0 %v2455
    %v2457 = vand.u32 %v184, 4294901760
    %v2458 = vsub.f32 %v184, %v2457
    %v2459 = vand.u32 %v2458, 4294901760
    %v2460 = vsub.f32 %v2458, %v2459
    %v2461 = vand.u32 %v2460, 4294901760
    %2462 = vmatpush.msra.mxu0 %v2461
    %v2463 = vand.u32 %v183, 4294901760
    %v2464 = vsub.f32 %v183, %v2463
    %v2465 = vand.u32 %v2464, 4294901760
    %v2466 = vsub.f32 %v2464, %v2465
    %v2467 = vand.u32 %v2466, 4294901760
    %2468 = vmatpush.msra.mxu0 %v2467
    %v2469 = vand.u32 %v182, 4294901760
    %v2470 = vsub.f32 %v182, %v2469
    %v2471 = vand.u32 %v2470, 4294901760
    %v2472 = vsub.f32 %v2470, %v2471
    %v2473 = vand.u32 %v2472, 4294901760
    %2474 = vmatpush.msra.mxu0 %v2473
    %v2475 = vand.u32 %v181, 4294901760
    %v2476 = vsub.f32 %v181, %v2475
    %v2477 = vand.u32 %v2476, 4294901760
    %v2478 = vsub.f32 %v2476, %v2477
    %v2479 = vand.u32 %v2478, 4294901760
    %2480 = vmatpush.msra.mxu0 %v2479
    %v2481 = vand.u32 %v180, 4294901760
    %v2482 = vsub.f32 %v180, %v2481
    %v2483 = vand.u32 %v2482, 4294901760
    %v2484 = vsub.f32 %v2482, %v2483
    %v2485 = vand.u32 %v2484, 4294901760
    %2486 = vmatpush.msra.mxu0 %v2485
    %v2487 = vand.u32 %v179, 4294901760
    %v2488 = vsub.f32 %v179, %v2487
    %v2489 = vand.u32 %v2488, 4294901760
    %v2490 = vsub.f32 %v2488, %v2489
    %v2491 = vand.u32 %v2490, 4294901760
    %2492 = vmatpush.msra.mxu0 %v2491
    %v2493 = vand.u32 %v178, 4294901760
    %v2494 = vsub.f32 %v178, %v2493
    %v2495 = vand.u32 %v2494, 4294901760
    %v2496 = vsub.f32 %v2494, %v2495
    %v2497 = vand.u32 %v2496, 4294901760
    %2498 = vmatpush.msra.mxu0 %v2497
    %v2499 = vand.u32 %v177, 4294901760
    %v2500 = vsub.f32 %v177, %v2499
    %v2501 = vand.u32 %v2500, 4294901760
    %v2502 = vsub.f32 %v2500, %v2501
    %v2503 = vand.u32 %v2502, 4294901760
    %2504 = vmatpush.msra.mxu0 %v2503
    %v2505 = vand.u32 %v176, 4294901760
    %v2506 = vsub.f32 %v176, %v2505
    %v2507 = vand.u32 %v2506, 4294901760
    %v2508 = vsub.f32 %v2506, %v2507
    %v2509 = vand.u32 %v2508, 4294901760
    %2510 = vmatpush.msra.mxu0 %v2509
    %v2511 = vand.u32 %v175, 4294901760
    %v2512 = vsub.f32 %v175, %v2511
    %v2513 = vand.u32 %v2512, 4294901760
    %v2514 = vsub.f32 %v2512, %v2513
    %v2515 = vand.u32 %v2514, 4294901760
    %2516 = vmatpush.msra.mxu0 %v2515
    %v2517 = vand.u32 %v616, 4294901760
    %2518 = vmatmul.f32.gmra.mxu0 %v2517
    %v2519 = vpop.f32.mrf.mxu0
    %v2520 = vadd.f32 %v2419, %v2519
    %2521 = vdwg.mxu0
    %v2522 = vand.u32 %v190, 4294901760
    %v2523 = vsub.f32 %v190, %v2522
    %2524 = vmatpush.msra.mxu0 %v2523
    %v2525 = vand.u32 %v189, 4294901760
    %v2526 = vsub.f32 %v189, %v2525
    %2527 = vmatpush.msra.mxu0 %v2526
    %v2528 = vand.u32 %v188, 4294901760
    %v2529 = vsub.f32 %v188, %v2528
    %2530 = vmatpush.msra.mxu0 %v2529
    %v2531 = vand.u32 %v187, 4294901760
    %v2532 = vsub.f32 %v187, %v2531
    %2533 = vmatpush.msra.mxu0 %v2532
    %v2534 = vand.u32 %v186, 4294901760
    %v2535 = vsub.f32 %v186, %v2534
    %2536 = vmatpush.msra.mxu0 %v2535
    %v2537 = vand.u32 %v185, 4294901760
    %v2538 = vsub.f32 %v185, %v2537
    %2539 = vmatpush.msra.mxu0 %v2538
    %v2540 = vand.u32 %v184, 4294901760
    %v2541 = vsub.f32 %v184, %v2540
    %2542 = vmatpush.msra.mxu0 %v2541
    %v2543 = vand.u32 %v183, 4294901760
    %v2544 = vsub.f32 %v183, %v2543
    %2545 = vmatpush.msra.mxu0 %v2544
    %v2546 = vand.u32 %v182, 4294901760
    %v2547 = vsub.f32 %v182, %v2546
    %2548 = vmatpush.msra.mxu0 %v2547
    %v2549 = vand.u32 %v181, 4294901760
    %v2550 = vsub.f32 %v181, %v2549
    %2551 = vmatpush.msra.mxu0 %v2550
    %v2552 = vand.u32 %v180, 4294901760
    %v2553 = vsub.f32 %v180, %v2552
    %2554 = vmatpush.msra.mxu0 %v2553
    %v2555 = vand.u32 %v179, 4294901760
    %v2556 = vsub.f32 %v179, %v2555
    %2557 = vmatpush.msra.mxu0 %v2556
    %v2558 = vand.u32 %v178, 4294901760
    %v2559 = vsub.f32 %v178, %v2558
    %2560 = vmatpush.msra.mxu0 %v2559
    %v2561 = vand.u32 %v177, 4294901760
    %v2562 = vsub.f32 %v177, %v2561
    %2563 = vmatpush.msra.mxu0 %v2562
    %v2564 = vand.u32 %v176, 4294901760
    %v2565 = vsub.f32 %v176, %v2564
    %2566 = vmatpush.msra.mxu0 %v2565
    %v2567 = vand.u32 %v175, 4294901760
    %v2568 = vsub.f32 %v175, %v2567
    %2569 = vmatpush.msra.mxu0 %v2568
    %v2570 = vand.u32 %v616, 4294901760
    %v2571 = vsub.f32 %v616, %v2570
    %2572 = vmatmul.f32.gmra.mxu0 %v2571
    %v2573 = vpop.f32.mrf.mxu0
    %v2574 = vadd.f32 %v2520, %v2573
    %2575 = vdwg.mxu0
    %v2576 = vand.u32 %v190, 4294901760
    %2577 = vmatpush.msra.mxu0 %v2576
    %v2578 = vand.u32 %v189, 4294901760
    %2579 = vmatpush.msra.mxu0 %v2578
    %v2580 = vand.u32 %v188, 4294901760
    %2581 = vmatpush.msra.mxu0 %v2580
    %v2582 = vand.u32 %v187, 4294901760
    %2583 = vmatpush.msra.mxu0 %v2582
    %v2584 = vand.u32 %v186, 4294901760
    %2585 = vmatpush.msra.mxu0 %v2584
    %v2586 = vand.u32 %v185, 4294901760
    %2587 = vmatpush.msra.mxu0 %v2586
    %v2588 = vand.u32 %v184, 4294901760
    %2589 = vmatpush.msra.mxu0 %v2588
    %v2590 = vand.u32 %v183, 4294901760
    %2591 = vmatpush.msra.mxu0 %v2590
    %v2592 = vand.u32 %v182, 4294901760
    %2593 = vmatpush.msra.mxu0 %v2592
    %v2594 = vand.u32 %v181, 4294901760
    %2595 = vmatpush.msra.mxu0 %v2594
    %v2596 = vand.u32 %v180, 4294901760
    %2597 = vmatpush.msra.mxu0 %v2596
    %v2598 = vand.u32 %v179, 4294901760
    %2599 = vmatpush.msra.mxu0 %v2598
    %v2600 = vand.u32 %v178, 4294901760
    %2601 = vmatpush.msra.mxu0 %v2600
    %v2602 = vand.u32 %v177, 4294901760
    %2603 = vmatpush.msra.mxu0 %v2602
    %v2604 = vand.u32 %v176, 4294901760
    %2605 = vmatpush.msra.mxu0 %v2604
    %v2606 = vand.u32 %v175, 4294901760
    %2607 = vmatpush.msra.mxu0 %v2606
    %v2608 = vand.u32 %v616, 4294901760
    %v2609 = vsub.f32 %v616, %v2608
    %v2610 = vand.u32 %v2609, 4294901760
    %2611 = vmatmul.f32.gmra.mxu0 %v2610
    %v2612 = vpop.f32.mrf.mxu0
    %v2613 = vadd.f32 %v2574, %v2612
    %2614 = vdwg.mxu0
    %v2615 = vand.u32 %v190, 4294901760
    %v2616 = vsub.f32 %v190, %v2615
    %v2617 = vand.u32 %v2616, 4294901760
    %2618 = vmatpush.msra.mxu0 %v2617
    %v2619 = vand.u32 %v189, 4294901760
    %v2620 = vsub.f32 %v189, %v2619
    %v2621 = vand.u32 %v2620, 4294901760
    %2622 = vmatpush.msra.mxu0 %v2621
    %v2623 = vand.u32 %v188, 4294901760
    %v2624 = vsub.f32 %v188, %v2623
    %v2625 = vand.u32 %v2624, 4294901760
    %2626 = vmatpush.msra.mxu0 %v2625
    %v2627 = vand.u32 %v187, 4294901760
    %v2628 = vsub.f32 %v187, %v2627
    %v2629 = vand.u32 %v2628, 4294901760
    %2630 = vmatpush.msra.mxu0 %v2629
    %v2631 = vand.u32 %v186, 4294901760
    %v2632 = vsub.f32 %v186, %v2631
    %v2633 = vand.u32 %v2632, 4294901760
    %2634 = vmatpush.msra.mxu0 %v2633
    %v2635 = vand.u32 %v185, 4294901760
    %v2636 = vsub.f32 %v185, %v2635
    %v2637 = vand.u32 %v2636, 4294901760
    %2638 = vmatpush.msra.mxu0 %v2637
    %v2639 = vand.u32 %v184, 4294901760
    %v2640 = vsub.f32 %v184, %v2639
    %v2641 = vand.u32 %v2640, 4294901760
    %2642 = vmatpush.msra.mxu0 %v2641
    %v2643 = vand.u32 %v183, 4294901760
    %v2644 = vsub.f32 %v183, %v2643
    %v2645 = vand.u32 %v2644, 4294901760
    %2646 = vmatpush.msra.mxu0 %v2645
    %v2647 = vand.u32 %v182, 4294901760
    %v2648 = vsub.f32 %v182, %v2647
    %v2649 = vand.u32 %v2648, 4294901760
    %2650 = vmatpush.msra.mxu0 %v2649
    %v2651 = vand.u32 %v181, 4294901760
    %v2652 = vsub.f32 %v181, %v2651
    %v2653 = vand.u32 %v2652, 4294901760
    %2654 = vmatpush.msra.mxu0 %v2653
    %v2655 = vand.u32 %v180, 4294901760
    %v2656 = vsub.f32 %v180, %v2655
    %v2657 = vand.u32 %v2656, 4294901760
    %2658 = vmatpush.msra.mxu0 %v2657
    %v2659 = vand.u32 %v179, 4294901760
    %v2660 = vsub.f32 %v179, %v2659
    %v2661 = vand.u32 %v2660, 4294901760
    %2662 = vmatpush.msra.mxu0 %v2661
    %v2663 = vand.u32 %v178, 4294901760
    %v2664 = vsub.f32 %v178, %v2663
    %v2665 = vand.u32 %v2664, 4294901760
    %2666 = vmatpush.msra.mxu0 %v2665
    %v2667 = vand.u32 %v177, 4294901760
    %v2668 = vsub.f32 %v177, %v2667
    %v2669 = vand.u32 %v2668, 4294901760
    %2670 = vmatpush.msra.mxu0 %v2669
    %v2671 = vand.u32 %v176, 4294901760
    %v2672 = vsub.f32 %v176, %v2671
    %v2673 = vand.u32 %v2672, 4294901760
    %2674 = vmatpush.msra.mxu0 %v2673
    %v2675 = vand.u32 %v175, 4294901760
    %v2676 = vsub.f32 %v175, %v2675
    %v2677 = vand.u32 %v2676, 4294901760
    %2678 = vmatpush.msra.mxu0 %v2677
    %v2679 = vand.u32 %v616, 4294901760
    %2680 = vmatmul.f32.gmra.mxu0 %v2679
    %v2681 = vpop.f32.mrf.mxu0
    %v2682 = vadd.f32 %v2613, %v2681
    %2683 = vdwg.mxu0
    %v2684 = vand.u32 %v190, 4294901760
    %2685 = vmatpush.msra.mxu0 %v2684
    %v2686 = vand.u32 %v189, 4294901760
    %2687 = vmatpush.msra.mxu0 %v2686
    %v2688 = vand.u32 %v188, 4294901760
    %2689 = vmatpush.msra.mxu0 %v2688
    %v2690 = vand.u32 %v187, 4294901760
    %2691 = vmatpush.msra.mxu0 %v2690
    %v2692 = vand.u32 %v186, 4294901760
    %2693 = vmatpush.msra.mxu0 %v2692
    %v2694 = vand.u32 %v185, 4294901760
    %2695 = vmatpush.msra.mxu0 %v2694
    %v2696 = vand.u32 %v184, 4294901760
    %2697 = vmatpush.msra.mxu0 %v2696
    %v2698 = vand.u32 %v183, 4294901760
    %2699 = vmatpush.msra.mxu0 %v2698
    %v2700 = vand.u32 %v182, 4294901760
    %2701 = vmatpush.msra.mxu0 %v2700
    %v2702 = vand.u32 %v181, 4294901760
    %2703 = vmatpush.msra.mxu0 %v2702
    %v2704 = vand.u32 %v180, 4294901760
    %2705 = vmatpush.msra.mxu0 %v2704
    %v2706 = vand.u32 %v179, 4294901760
    %2707 = vmatpush.msra.mxu0 %v2706
    %v2708 = vand.u32 %v178, 4294901760
    %2709 = vmatpush.msra.mxu0 %v2708
    %v2710 = vand.u32 %v177, 4294901760
    %2711 = vmatpush.msra.mxu0 %v2710
    %v2712 = vand.u32 %v176, 4294901760
    %2713 = vmatpush.msra.mxu0 %v2712
    %v2714 = vand.u32 %v175, 4294901760
    %2715 = vmatpush.msra.mxu0 %v2714
    %v2716 = vand.u32 %v616, 4294901760
    %2717 = vmatmul.f32.gmra.mxu0 %v2716
    %v2718 = vpop.f32.mrf.mxu0
    %v2719 = vadd.f32 %v2682, %v2718
    %2720 = vdwg.mxu0
    %v2721 = vand.u32 %v206, 4294901760
    %2722 = vmatpush.msra.mxu0 %v2721
    %v2723 = vand.u32 %v205, 4294901760
    %2724 = vmatpush.msra.mxu0 %v2723
    %v2725 = vand.u32 %v204, 4294901760
    %2726 = vmatpush.msra.mxu0 %v2725
    %v2727 = vand.u32 %v203, 4294901760
    %2728 = vmatpush.msra.mxu0 %v2727
    %v2729 = vand.u32 %v202, 4294901760
    %2730 = vmatpush.msra.mxu0 %v2729
    %v2731 = vand.u32 %v201, 4294901760
    %2732 = vmatpush.msra.mxu0 %v2731
    %v2733 = vand.u32 %v200, 4294901760
    %2734 = vmatpush.msra.mxu0 %v2733
    %v2735 = vand.u32 %v199, 4294901760
    %2736 = vmatpush.msra.mxu0 %v2735
    %v2737 = vand.u32 %v198, 4294901760
    %2738 = vmatpush.msra.mxu0 %v2737
    %v2739 = vand.u32 %v197, 4294901760
    %2740 = vmatpush.msra.mxu0 %v2739
    %v2741 = vand.u32 %v196, 4294901760
    %2742 = vmatpush.msra.mxu0 %v2741
    %v2743 = vand.u32 %v195, 4294901760
    %2744 = vmatpush.msra.mxu0 %v2743
    %v2745 = vand.u32 %v194, 4294901760
    %2746 = vmatpush.msra.mxu0 %v2745
    %v2747 = vand.u32 %v193, 4294901760
    %2748 = vmatpush.msra.mxu0 %v2747
    %v2749 = vand.u32 %v192, 4294901760
    %2750 = vmatpush.msra.mxu0 %v2749
    %v2751 = vand.u32 %v191, 4294901760
    %2752 = vmatpush.msra.mxu0 %v2751
    %v2753 = vand.u32 %v617, 4294901760
    %v2754 = vsub.f32 %v617, %v2753
    %v2755 = vand.u32 %v2754, 4294901760
    %v2756 = vsub.f32 %v2754, %v2755
    %v2757 = vand.u32 %v2756, 4294901760
    %2758 = vmatmul.f32.gmra.mxu0 %v2757
    %v2759 = vpop.f32.mrf.mxu0
    %v2760 = vadd.f32 %v2719, %v2759
    %2761 = vdwg.mxu0
    %v2762 = vand.u32 %v206, 4294901760
    %v2763 = vsub.f32 %v206, %v2762
    %v2764 = vand.u32 %v2763, 4294901760
    %v2765 = vsub.f32 %v2763, %v2764
    %v2766 = vand.u32 %v2765, 4294901760
    %2767 = vmatpush.msra.mxu0 %v2766
    %v2768 = vand.u32 %v205, 4294901760
    %v2769 = vsub.f32 %v205, %v2768
    %v2770 = vand.u32 %v2769, 4294901760
    %v2771 = vsub.f32 %v2769, %v2770
    %v2772 = vand.u32 %v2771, 4294901760
    %2773 = vmatpush.msra.mxu0 %v2772
    %v2774 = vand.u32 %v204, 4294901760
    %v2775 = vsub.f32 %v204, %v2774
    %v2776 = vand.u32 %v2775, 4294901760
    %v2777 = vsub.f32 %v2775, %v2776
    %v2778 = vand.u32 %v2777, 4294901760
    %2779 = vmatpush.msra.mxu0 %v2778
    %v2780 = vand.u32 %v203, 4294901760
    %v2781 = vsub.f32 %v203, %v2780
    %v2782 = vand.u32 %v2781, 4294901760
    %v2783 = vsub.f32 %v2781, %v2782
    %v2784 = vand.u32 %v2783, 4294901760
    %2785 = vmatpush.msra.mxu0 %v2784
    %v2786 = vand.u32 %v202, 4294901760
    %v2787 = vsub.f32 %v202, %v2786
    %v2788 = vand.u32 %v2787, 4294901760
    %v2789 = vsub.f32 %v2787, %v2788
    %v2790 = vand.u32 %v2789, 4294901760
    %2791 = vmatpush.msra.mxu0 %v2790
    %v2792 = vand.u32 %v201, 4294901760
    %v2793 = vsub.f32 %v201, %v2792
    %v2794 = vand.u32 %v2793, 4294901760
    %v2795 = vsub.f32 %v2793, %v2794
    %v2796 = vand.u32 %v2795, 4294901760
    %2797 = vmatpush.msra.mxu0 %v2796
    %v2798 = vand.u32 %v200, 4294901760
    %v2799 = vsub.f32 %v200, %v2798
    %v2800 = vand.u32 %v2799, 4294901760
    %v2801 = vsub.f32 %v2799, %v2800
    %v2802 = vand.u32 %v2801, 4294901760
    %2803 = vmatpush.msra.mxu0 %v2802
    %v2804 = vand.u32 %v199, 4294901760
    %v2805 = vsub.f32 %v199, %v2804
    %v2806 = vand.u32 %v2805, 4294901760
    %v2807 = vsub.f32 %v2805, %v2806
    %v2808 = vand.u32 %v2807, 4294901760
    %2809 = vmatpush.msra.mxu0 %v2808
    %v2810 = vand.u32 %v198, 4294901760
    %v2811 = vsub.f32 %v198, %v2810
    %v2812 = vand.u32 %v2811, 4294901760
    %v2813 = vsub.f32 %v2811, %v2812
    %v2814 = vand.u32 %v2813, 4294901760
    %2815 = vmatpush.msra.mxu0 %v2814
    %v2816 = vand.u32 %v197, 4294901760
    %v2817 = vsub.f32 %v197, %v2816
    %v2818 = vand.u32 %v2817, 4294901760
    %v2819 = vsub.f32 %v2817, %v2818
    %v2820 = vand.u32 %v2819, 4294901760
    %2821 = vmatpush.msra.mxu0 %v2820
    %v2822 = vand.u32 %v196, 4294901760
    %v2823 = vsub.f32 %v196, %v2822
    %v2824 = vand.u32 %v2823, 4294901760
    %v2825 = vsub.f32 %v2823, %v2824
    %v2826 = vand.u32 %v2825, 4294901760
    %2827 = vmatpush.msra.mxu0 %v2826
    %v2828 = vand.u32 %v195, 4294901760
    %v2829 = vsub.f32 %v195, %v2828
    %v2830 = vand.u32 %v2829, 4294901760
    %v2831 = vsub.f32 %v2829, %v2830
    %v2832 = vand.u32 %v2831, 4294901760
    %2833 = vmatpush.msra.mxu0 %v2832
    %v2834 = vand.u32 %v194, 4294901760
    %v2835 = vsub.f32 %v194, %v2834
    %v2836 = vand.u32 %v2835, 4294901760
    %v2837 = vsub.f32 %v2835, %v2836
    %v2838 = vand.u32 %v2837, 4294901760
    %2839 = vmatpush.msra.mxu0 %v2838
    %v2840 = vand.u32 %v193, 4294901760
    %v2841 = vsub.f32 %v193, %v2840
    %v2842 = vand.u32 %v2841, 4294901760
    %v2843 = vsub.f32 %v2841, %v2842
    %v2844 = vand.u32 %v2843, 4294901760
    %2845 = vmatpush.msra.mxu0 %v2844
    %v2846 = vand.u32 %v192, 4294901760
    %v2847 = vsub.f32 %v192, %v2846
    %v2848 = vand.u32 %v2847, 4294901760
    %v2849 = vsub.f32 %v2847, %v2848
    %v2850 = vand.u32 %v2849, 4294901760
    %2851 = vmatpush.msra.mxu0 %v2850
    %v2852 = vand.u32 %v191, 4294901760
    %v2853 = vsub.f32 %v191, %v2852
    %v2854 = vand.u32 %v2853, 4294901760
    %v2855 = vsub.f32 %v2853, %v2854
    %v2856 = vand.u32 %v2855, 4294901760
    %2857 = vmatpush.msra.mxu0 %v2856
    %v2858 = vand.u32 %v617, 4294901760
    %2859 = vmatmul.f32.gmra.mxu0 %v2858
    %v2860 = vpop.f32.mrf.mxu0
    %v2861 = vadd.f32 %v2760, %v2860
    %2862 = vdwg.mxu0
    %v2863 = vand.u32 %v206, 4294901760
    %v2864 = vsub.f32 %v206, %v2863
    %2865 = vmatpush.msra.mxu0 %v2864
    %v2866 = vand.u32 %v205, 4294901760
    %v2867 = vsub.f32 %v205, %v2866
    %2868 = vmatpush.msra.mxu0 %v2867
    %v2869 = vand.u32 %v204, 4294901760
    %v2870 = vsub.f32 %v204, %v2869
    %2871 = vmatpush.msra.mxu0 %v2870
    %v2872 = vand.u32 %v203, 4294901760
    %v2873 = vsub.f32 %v203, %v2872
    %2874 = vmatpush.msra.mxu0 %v2873
    %v2875 = vand.u32 %v202, 4294901760
    %v2876 = vsub.f32 %v202, %v2875
    %2877 = vmatpush.msra.mxu0 %v2876
    %v2878 = vand.u32 %v201, 4294901760
    %v2879 = vsub.f32 %v201, %v2878
    %2880 = vmatpush.msra.mxu0 %v2879
    %v2881 = vand.u32 %v200, 4294901760
    %v2882 = vsub.f32 %v200, %v2881
    %2883 = vmatpush.msra.mxu0 %v2882
    %v2884 = vand.u32 %v199, 4294901760
    %v2885 = vsub.f32 %v199, %v2884
    %2886 = vmatpush.msra.mxu0 %v2885
    %v2887 = vand.u32 %v198, 4294901760
    %v2888 = vsub.f32 %v198, %v2887
    %2889 = vmatpush.msra.mxu0 %v2888
    %v2890 = vand.u32 %v197, 4294901760
    %v2891 = vsub.f32 %v197, %v2890
    %2892 = vmatpush.msra.mxu0 %v2891
    %v2893 = vand.u32 %v196, 4294901760
    %v2894 = vsub.f32 %v196, %v2893
    %2895 = vmatpush.msra.mxu0 %v2894
    %v2896 = vand.u32 %v195, 4294901760
    %v2897 = vsub.f32 %v195, %v2896
    %2898 = vmatpush.msra.mxu0 %v2897
    %v2899 = vand.u32 %v194, 4294901760
    %v2900 = vsub.f32 %v194, %v2899
    %2901 = vmatpush.msra.mxu0 %v2900
    %v2902 = vand.u32 %v193, 4294901760
    %v2903 = vsub.f32 %v193, %v2902
    %2904 = vmatpush.msra.mxu0 %v2903
    %v2905 = vand.u32 %v192, 4294901760
    %v2906 = vsub.f32 %v192, %v2905
    %2907 = vmatpush.msra.mxu0 %v2906
    %v2908 = vand.u32 %v191, 4294901760
    %v2909 = vsub.f32 %v191, %v2908
    %2910 = vmatpush.msra.mxu0 %v2909
    %v2911 = vand.u32 %v617, 4294901760
    %v2912 = vsub.f32 %v617, %v2911
    %2913 = vmatmul.f32.gmra.mxu0 %v2912
    %v2914 = vpop.f32.mrf.mxu0
    %v2915 = vadd.f32 %v2861, %v2914
    %2916 = vdwg.mxu0
    %v2917 = vand.u32 %v206, 4294901760
    %2918 = vmatpush.msra.mxu0 %v2917
    %v2919 = vand.u32 %v205, 4294901760
    %2920 = vmatpush.msra.mxu0 %v2919
    %v2921 = vand.u32 %v204, 4294901760
    %2922 = vmatpush.msra.mxu0 %v2921
    %v2923 = vand.u32 %v203, 4294901760
    %2924 = vmatpush.msra.mxu0 %v2923
    %v2925 = vand.u32 %v202, 4294901760
    %2926 = vmatpush.msra.mxu0 %v2925
    %v2927 = vand.u32 %v201, 4294901760
    %2928 = vmatpush.msra.mxu0 %v2927
    %v2929 = vand.u32 %v200, 4294901760
    %2930 = vmatpush.msra.mxu0 %v2929
    %v2931 = vand.u32 %v199, 4294901760
    %2932 = vmatpush.msra.mxu0 %v2931
    %v2933 = vand.u32 %v198, 4294901760
    %2934 = vmatpush.msra.mxu0 %v2933
    %v2935 = vand.u32 %v197, 4294901760
    %2936 = vmatpush.msra.mxu0 %v2935
    %v2937 = vand.u32 %v196, 4294901760
    %2938 = vmatpush.msra.mxu0 %v2937
    %v2939 = vand.u32 %v195, 4294901760
    %2940 = vmatpush.msra.mxu0 %v2939
    %v2941 = vand.u32 %v194, 4294901760
    %2942 = vmatpush.msra.mxu0 %v2941
    %v2943 = vand.u32 %v193, 4294901760
    %2944 = vmatpush.msra.mxu0 %v2943
    %v2945 = vand.u32 %v192, 4294901760
    %2946 = vmatpush.msra.mxu0 %v2945
    %v2947 = vand.u32 %v191, 4294901760
    %2948 = vmatpush.msra.mxu0 %v2947
    %v2949 = vand.u32 %v617, 4294901760
    %v2950 = vsub.f32 %v617, %v2949
    %v2951 = vand.u32 %v2950, 4294901760
    %2952 = vmatmul.f32.gmra.mxu0 %v2951
    %v2953 = vpop.f32.mrf.mxu0
    %v2954 = vadd.f32 %v2915, %v2953
    %2955 = vdwg.mxu0
    %v2956 = vand.u32 %v206, 4294901760
    %v2957 = vsub.f32 %v206, %v2956
    %v2958 = vand.u32 %v2957, 4294901760
    %2959 = vmatpush.msra.mxu0 %v2958
    %v2960 = vand.u32 %v205, 4294901760
    %v2961 = vsub.f32 %v205, %v2960
    %v2962 = vand.u32 %v2961, 4294901760
    %2963 = vmatpush.msra.mxu0 %v2962
    %v2964 = vand.u32 %v204, 4294901760
    %v2965 = vsub.f32 %v204, %v2964
    %v2966 = vand.u32 %v2965, 4294901760
    %2967 = vmatpush.msra.mxu0 %v2966
    %v2968 = vand.u32 %v203, 4294901760
    %v2969 = vsub.f32 %v203, %v2968
    %v2970 = vand.u32 %v2969, 4294901760
    %2971 = vmatpush.msra.mxu0 %v2970
    %v2972 = vand.u32 %v202, 4294901760
    %v2973 = vsub.f32 %v202, %v2972
    %v2974 = vand.u32 %v2973, 4294901760
    %2975 = vmatpush.msra.mxu0 %v2974
    %v2976 = vand.u32 %v201, 4294901760
    %v2977 = vsub.f32 %v201, %v2976
    %v2978 = vand.u32 %v2977, 4294901760
    %2979 = vmatpush.msra.mxu0 %v2978
    %v2980 = vand.u32 %v200, 4294901760
    %v2981 = vsub.f32 %v200, %v2980
    %v2982 = vand.u32 %v2981, 4294901760
    %2983 = vmatpush.msra.mxu0 %v2982
    %v2984 = vand.u32 %v199, 4294901760
    %v2985 = vsub.f32 %v199, %v2984
    %v2986 = vand.u32 %v2985, 4294901760
    %2987 = vmatpush.msra.mxu0 %v2986
    %v2988 = vand.u32 %v198, 4294901760
    %v2989 = vsub.f32 %v198, %v2988
    %v2990 = vand.u32 %v2989, 4294901760
    %2991 = vmatpush.msra.mxu0 %v2990
    %v2992 = vand.u32 %v197, 4294901760
    %v2993 = vsub.f32 %v197, %v2992
    %v2994 = vand.u32 %v2993, 4294901760
    %2995 = vmatpush.msra.mxu0 %v2994
    %v2996 = vand.u32 %v196, 4294901760
    %v2997 = vsub.f32 %v196, %v2996
    %v2998 = vand.u32 %v2997, 4294901760
    %2999 = vmatpush.msra.mxu0 %v2998
    %v3000 = vand.u32 %v195, 4294901760
    %v3001 = vsub.f32 %v195, %v3000
    %v3002 = vand.u32 %v3001, 4294901760
    %3003 = vmatpush.msra.mxu0 %v3002
    %v3004 = vand.u32 %v194, 4294901760
    %v3005 = vsub.f32 %v194, %v3004
    %v3006 = vand.u32 %v3005, 4294901760
    %3007 = vmatpush.msra.mxu0 %v3006
    %v3008 = vand.u32 %v193, 4294901760
    %v3009 = vsub.f32 %v193, %v3008
    %v3010 = vand.u32 %v3009, 4294901760
    %3011 = vmatpush.msra.mxu0 %v3010
    %v3012 = vand.u32 %v192, 4294901760
    %v3013 = vsub.f32 %v192, %v3012
    %v3014 = vand.u32 %v3013, 4294901760
    %3015 = vmatpush.msra.mxu0 %v3014
    %v3016 = vand.u32 %v191, 4294901760
    %v3017 = vsub.f32 %v191, %v3016
    %v3018 = vand.u32 %v3017, 4294901760
    %3019 = vmatpush.msra.mxu0 %v3018
    %v3020 = vand.u32 %v617, 4294901760
    %3021 = vmatmul.f32.gmra.mxu0 %v3020
    %v3022 = vpop.f32.mrf.mxu0
    %v3023 = vadd.f32 %v2954, %v3022
    %3024 = vdwg.mxu0
    %v3025 = vand.u32 %v206, 4294901760
    %3026 = vmatpush.msra.mxu0 %v3025
    %v3027 = vand.u32 %v205, 4294901760
    %3028 = vmatpush.msra.mxu0 %v3027
    %v3029 = vand.u32 %v204, 4294901760
    %3030 = vmatpush.msra.mxu0 %v3029
    %v3031 = vand.u32 %v203, 4294901760
    %3032 = vmatpush.msra.mxu0 %v3031
    %v3033 = vand.u32 %v202, 4294901760
    %3034 = vmatpush.msra.mxu0 %v3033
    %v3035 = vand.u32 %v201, 4294901760
    %3036 = vmatpush.msra.mxu0 %v3035
    %v3037 = vand.u32 %v200, 4294901760
    %3038 = vmatpush.msra.mxu0 %v3037
    %v3039 = vand.u32 %v199, 4294901760
    %3040 = vmatpush.msra.mxu0 %v3039
    %v3041 = vand.u32 %v198, 4294901760
    %3042 = vmatpush.msra.mxu0 %v3041
    %v3043 = vand.u32 %v197, 4294901760
    %3044 = vmatpush.msra.mxu0 %v3043
    %v3045 = vand.u32 %v196, 4294901760
    %3046 = vmatpush.msra.mxu0 %v3045
    %v3047 = vand.u32 %v195, 4294901760
    %3048 = vmatpush.msra.mxu0 %v3047
    %v3049 = vand.u32 %v194, 4294901760
    %3050 = vmatpush.msra.mxu0 %v3049
    %v3051 = vand.u32 %v193, 4294901760
    %3052 = vmatpush.msra.mxu0 %v3051
    %v3053 = vand.u32 %v192, 4294901760
    %3054 = vmatpush.msra.mxu0 %v3053
    %v3055 = vand.u32 %v191, 4294901760
    %3056 = vmatpush.msra.mxu0 %v3055
    %v3057 = vand.u32 %v617, 4294901760
    %3058 = vmatmul.f32.gmra.mxu0 %v3057
    %v3059 = vpop.f32.mrf.mxu0
    %v3060 = vadd.f32 %v3023, %v3059
    %3061 = vdwg.mxu0
    %v3062 = vand.u32 %v222, 4294901760
    %3063 = vmatpush.msra.mxu0 %v3062
    %v3064 = vand.u32 %v221, 4294901760
    %3065 = vmatpush.msra.mxu0 %v3064
    %v3066 = vand.u32 %v220, 4294901760
    %3067 = vmatpush.msra.mxu0 %v3066
    %v3068 = vand.u32 %v219, 4294901760
    %3069 = vmatpush.msra.mxu0 %v3068
    %v3070 = vand.u32 %v218, 4294901760
    %3071 = vmatpush.msra.mxu0 %v3070
    %v3072 = vand.u32 %v217, 4294901760
    %3073 = vmatpush.msra.mxu0 %v3072
    %v3074 = vand.u32 %v216, 4294901760
    %3075 = vmatpush.msra.mxu0 %v3074
    %v3076 = vand.u32 %v215, 4294901760
    %3077 = vmatpush.msra.mxu0 %v3076
    %v3078 = vand.u32 %v214, 4294901760
    %3079 = vmatpush.msra.mxu0 %v3078
    %v3080 = vand.u32 %v213, 4294901760
    %3081 = vmatpush.msra.mxu0 %v3080
    %v3082 = vand.u32 %v212, 4294901760
    %3083 = vmatpush.msra.mxu0 %v3082
    %v3084 = vand.u32 %v211, 4294901760
    %3085 = vmatpush.msra.mxu0 %v3084
    %v3086 = vand.u32 %v210, 4294901760
    %3087 = vmatpush.msra.mxu0 %v3086
    %v3088 = vand.u32 %v209, 4294901760
    %3089 = vmatpush.msra.mxu0 %v3088
    %v3090 = vand.u32 %v208, 4294901760
    %3091 = vmatpush.msra.mxu0 %v3090
    %v3092 = vand.u32 %v207, 4294901760
    %3093 = vmatpush.msra.mxu0 %v3092
    %v3094 = vand.u32 %v618, 4294901760
    %v3095 = vsub.f32 %v618, %v3094
    %v3096 = vand.u32 %v3095, 4294901760
    %v3097 = vsub.f32 %v3095, %v3096
    %v3098 = vand.u32 %v3097, 4294901760
    %3099 = vmatmul.f32.gmra.mxu0 %v3098
    %v3100 = vpop.f32.mrf.mxu0
    %v3101 = vadd.f32 %v3060, %v3100
    %3102 = vdwg.mxu0
    %v3103 = vand.u32 %v222, 4294901760
    %v3104 = vsub.f32 %v222, %v3103
    %v3105 = vand.u32 %v3104, 4294901760
    %v3106 = vsub.f32 %v3104, %v3105
    %v3107 = vand.u32 %v3106, 4294901760
    %3108 = vmatpush.msra.mxu0 %v3107
    %v3109 = vand.u32 %v221, 4294901760
    %v3110 = vsub.f32 %v221, %v3109
    %v3111 = vand.u32 %v3110, 4294901760
    %v3112 = vsub.f32 %v3110, %v3111
    %v3113 = vand.u32 %v3112, 4294901760
    %3114 = vmatpush.msra.mxu0 %v3113
    %v3115 = vand.u32 %v220, 4294901760
    %v3116 = vsub.f32 %v220, %v3115
    %v3117 = vand.u32 %v3116, 4294901760
    %v3118 = vsub.f32 %v3116, %v3117
    %v3119 = vand.u32 %v3118, 4294901760
    %3120 = vmatpush.msra.mxu0 %v3119
    %v3121 = vand.u32 %v219, 4294901760
    %v3122 = vsub.f32 %v219, %v3121
    %v3123 = vand.u32 %v3122, 4294901760
    %v3124 = vsub.f32 %v3122, %v3123
    %v3125 = vand.u32 %v3124, 4294901760
    %3126 = vmatpush.msra.mxu0 %v3125
    %v3127 = vand.u32 %v218, 4294901760
    %v3128 = vsub.f32 %v218, %v3127
    %v3129 = vand.u32 %v3128, 4294901760
    %v3130 = vsub.f32 %v3128, %v3129
    %v3131 = vand.u32 %v3130, 4294901760
    %3132 = vmatpush.msra.mxu0 %v3131
    %v3133 = vand.u32 %v217, 4294901760
    %v3134 = vsub.f32 %v217, %v3133
    %v3135 = vand.u32 %v3134, 4294901760
    %v3136 = vsub.f32 %v3134, %v3135
    %v3137 = vand.u32 %v3136, 4294901760
    %3138 = vmatpush.msra.mxu0 %v3137
    %v3139 = vand.u32 %v216, 4294901760
    %v3140 = vsub.f32 %v216, %v3139
    %v3141 = vand.u32 %v3140, 4294901760
    %v3142 = vsub.f32 %v3140, %v3141
    %v3143 = vand.u32 %v3142, 4294901760
    %3144 = vmatpush.msra.mxu0 %v3143
    %v3145 = vand.u32 %v215, 4294901760
    %v3146 = vsub.f32 %v215, %v3145
    %v3147 = vand.u32 %v3146, 4294901760
    %v3148 = vsub.f32 %v3146, %v3147
    %v3149 = vand.u32 %v3148, 4294901760
    %3150 = vmatpush.msra.mxu0 %v3149
    %v3151 = vand.u32 %v214, 4294901760
    %v3152 = vsub.f32 %v214, %v3151
    %v3153 = vand.u32 %v3152, 4294901760
    %v3154 = vsub.f32 %v3152, %v3153
    %v3155 = vand.u32 %v3154, 4294901760
    %3156 = vmatpush.msra.mxu0 %v3155
    %v3157 = vand.u32 %v213, 4294901760
    %v3158 = vsub.f32 %v213, %v3157
    %v3159 = vand.u32 %v3158, 4294901760
    %v3160 = vsub.f32 %v3158, %v3159
    %v3161 = vand.u32 %v3160, 4294901760
    %3162 = vmatpush.msra.mxu0 %v3161
    %v3163 = vand.u32 %v212, 4294901760
    %v3164 = vsub.f32 %v212, %v3163
    %v3165 = vand.u32 %v3164, 4294901760
    %v3166 = vsub.f32 %v3164, %v3165
    %v3167 = vand.u32 %v3166, 4294901760
    %3168 = vmatpush.msra.mxu0 %v3167
    %v3169 = vand.u32 %v211, 4294901760
    %v3170 = vsub.f32 %v211, %v3169
    %v3171 = vand.u32 %v3170, 4294901760
    %v3172 = vsub.f32 %v3170, %v3171
    %v3173 = vand.u32 %v3172, 4294901760
    %3174 = vmatpush.msra.mxu0 %v3173
    %v3175 = vand.u32 %v210, 4294901760
    %v3176 = vsub.f32 %v210, %v3175
    %v3177 = vand.u32 %v3176, 4294901760
    %v3178 = vsub.f32 %v3176, %v3177
    %v3179 = vand.u32 %v3178, 4294901760
    %3180 = vmatpush.msra.mxu0 %v3179
    %v3181 = vand.u32 %v209, 4294901760
    %v3182 = vsub.f32 %v209, %v3181
    %v3183 = vand.u32 %v3182, 4294901760
    %v3184 = vsub.f32 %v3182, %v3183
    %v3185 = vand.u32 %v3184, 4294901760
    %3186 = vmatpush.msra.mxu0 %v3185
    %v3187 = vand.u32 %v208, 4294901760
    %v3188 = vsub.f32 %v208, %v3187
    %v3189 = vand.u32 %v3188, 4294901760
    %v3190 = vsub.f32 %v3188, %v3189
    %v3191 = vand.u32 %v3190, 4294901760
    %3192 = vmatpush.msra.mxu0 %v3191
    %v3193 = vand.u32 %v207, 4294901760
    %v3194 = vsub.f32 %v207, %v3193
    %v3195 = vand.u32 %v3194, 4294901760
    %v3196 = vsub.f32 %v3194, %v3195
    %v3197 = vand.u32 %v3196, 4294901760
    %3198 = vmatpush.msra.mxu0 %v3197
    %v3199 = vand.u32 %v618, 4294901760
    %3200 = vmatmul.f32.gmra.mxu0 %v3199
    %v3201 = vpop.f32.mrf.mxu0
    %v3202 = vadd.f32 %v3101, %v3201
    %3203 = vdwg.mxu0
    %v3204 = vand.u32 %v222, 4294901760
    %v3205 = vsub.f32 %v222, %v3204
    %3206 = vmatpush.msra.mxu0 %v3205
    %v3207 = vand.u32 %v221, 4294901760
    %v3208 = vsub.f32 %v221, %v3207
    %3209 = vmatpush.msra.mxu0 %v3208
    %v3210 = vand.u32 %v220, 4294901760
    %v3211 = vsub.f32 %v220, %v3210
    %3212 = vmatpush.msra.mxu0 %v3211
    %v3213 = vand.u32 %v219, 4294901760
    %v3214 = vsub.f32 %v219, %v3213
    %3215 = vmatpush.msra.mxu0 %v3214
    %v3216 = vand.u32 %v218, 4294901760
    %v3217 = vsub.f32 %v218, %v3216
    %3218 = vmatpush.msra.mxu0 %v3217
    %v3219 = vand.u32 %v217, 4294901760
    %v3220 = vsub.f32 %v217, %v3219
    %3221 = vmatpush.msra.mxu0 %v3220
    %v3222 = vand.u32 %v216, 4294901760
    %v3223 = vsub.f32 %v216, %v3222
    %3224 = vmatpush.msra.mxu0 %v3223
    %v3225 = vand.u32 %v215, 4294901760
    %v3226 = vsub.f32 %v215, %v3225
    %3227 = vmatpush.msra.mxu0 %v3226
    %v3228 = vand.u32 %v214, 4294901760
    %v3229 = vsub.f32 %v214, %v3228
    %3230 = vmatpush.msra.mxu0 %v3229
    %v3231 = vand.u32 %v213, 4294901760
    %v3232 = vsub.f32 %v213, %v3231
    %3233 = vmatpush.msra.mxu0 %v3232
    %v3234 = vand.u32 %v212, 4294901760
    %v3235 = vsub.f32 %v212, %v3234
    %3236 = vmatpush.msra.mxu0 %v3235
    %v3237 = vand.u32 %v211, 4294901760
    %v3238 = vsub.f32 %v211, %v3237
    %3239 = vmatpush.msra.mxu0 %v3238
    %v3240 = vand.u32 %v210, 4294901760
    %v3241 = vsub.f32 %v210, %v3240
    %3242 = vmatpush.msra.mxu0 %v3241
    %v3243 = vand.u32 %v209, 4294901760
    %v3244 = vsub.f32 %v209, %v3243
    %3245 = vmatpush.msra.mxu0 %v3244
    %v3246 = vand.u32 %v208, 4294901760
    %v3247 = vsub.f32 %v208, %v3246
    %3248 = vmatpush.msra.mxu0 %v3247
    %v3249 = vand.u32 %v207, 4294901760
    %v3250 = vsub.f32 %v207, %v3249
    %3251 = vmatpush.msra.mxu0 %v3250
    %v3252 = vand.u32 %v618, 4294901760
    %v3253 = vsub.f32 %v618, %v3252
    %3254 = vmatmul.f32.gmra.mxu0 %v3253
    %v3255 = vpop.f32.mrf.mxu0
    %v3256 = vadd.f32 %v3202, %v3255
    %3257 = vdwg.mxu0
    %v3258 = vand.u32 %v222, 4294901760
    %3259 = vmatpush.msra.mxu0 %v3258
    %v3260 = vand.u32 %v221, 4294901760
    %3261 = vmatpush.msra.mxu0 %v3260
    %v3262 = vand.u32 %v220, 4294901760
    %3263 = vmatpush.msra.mxu0 %v3262
    %v3264 = vand.u32 %v219, 4294901760
    %3265 = vmatpush.msra.mxu0 %v3264
    %v3266 = vand.u32 %v218, 4294901760
    %3267 = vmatpush.msra.mxu0 %v3266
    %v3268 = vand.u32 %v217, 4294901760
    %3269 = vmatpush.msra.mxu0 %v3268
    %v3270 = vand.u32 %v216, 4294901760
    %3271 = vmatpush.msra.mxu0 %v3270
    %v3272 = vand.u32 %v215, 4294901760
    %3273 = vmatpush.msra.mxu0 %v3272
    %v3274 = vand.u32 %v214, 4294901760
    %3275 = vmatpush.msra.mxu0 %v3274
    %v3276 = vand.u32 %v213, 4294901760
    %3277 = vmatpush.msra.mxu0 %v3276
    %v3278 = vand.u32 %v212, 4294901760
    %3279 = vmatpush.msra.mxu0 %v3278
    %v3280 = vand.u32 %v211, 4294901760
    %3281 = vmatpush.msra.mxu0 %v3280
    %v3282 = vand.u32 %v210, 4294901760
    %3283 = vmatpush.msra.mxu0 %v3282
    %v3284 = vand.u32 %v209, 4294901760
    %3285 = vmatpush.msra.mxu0 %v3284
    %v3286 = vand.u32 %v208, 4294901760
    %3287 = vmatpush.msra.mxu0 %v3286
    %v3288 = vand.u32 %v207, 4294901760
    %3289 = vmatpush.msra.mxu0 %v3288
    %v3290 = vand.u32 %v618, 4294901760
    %v3291 = vsub.f32 %v618, %v3290
    %v3292 = vand.u32 %v3291, 4294901760
    %3293 = vmatmul.f32.gmra.mxu0 %v3292
    %v3294 = vpop.f32.mrf.mxu0
    %v3295 = vadd.f32 %v3256, %v3294
    %3296 = vdwg.mxu0
    %v3297 = vand.u32 %v222, 4294901760
    %v3298 = vsub.f32 %v222, %v3297
    %v3299 = vand.u32 %v3298, 4294901760
    %3300 = vmatpush.msra.mxu0 %v3299
    %v3301 = vand.u32 %v221, 4294901760
    %v3302 = vsub.f32 %v221, %v3301
    %v3303 = vand.u32 %v3302, 4294901760
    %3304 = vmatpush.msra.mxu0 %v3303
    %v3305 = vand.u32 %v220, 4294901760
    %v3306 = vsub.f32 %v220, %v3305
    %v3307 = vand.u32 %v3306, 4294901760
    %3308 = vmatpush.msra.mxu0 %v3307
    %v3309 = vand.u32 %v219, 4294901760
    %v3310 = vsub.f32 %v219, %v3309
    %v3311 = vand.u32 %v3310, 4294901760
    %3312 = vmatpush.msra.mxu0 %v3311
    %v3313 = vand.u32 %v218, 4294901760
    %v3314 = vsub.f32 %v218, %v3313
    %v3315 = vand.u32 %v3314, 4294901760
    %3316 = vmatpush.msra.mxu0 %v3315
    %v3317 = vand.u32 %v217, 4294901760
    %v3318 = vsub.f32 %v217, %v3317
    %v3319 = vand.u32 %v3318, 4294901760
    %3320 = vmatpush.msra.mxu0 %v3319
    %v3321 = vand.u32 %v216, 4294901760
    %v3322 = vsub.f32 %v216, %v3321
    %v3323 = vand.u32 %v3322, 4294901760
    %3324 = vmatpush.msra.mxu0 %v3323
    %v3325 = vand.u32 %v215, 4294901760
    %v3326 = vsub.f32 %v215, %v3325
    %v3327 = vand.u32 %v3326, 4294901760
    %3328 = vmatpush.msra.mxu0 %v3327
    %v3329 = vand.u32 %v214, 4294901760
    %v3330 = vsub.f32 %v214, %v3329
    %v3331 = vand.u32 %v3330, 4294901760
    %3332 = vmatpush.msra.mxu0 %v3331
    %v3333 = vand.u32 %v213, 4294901760
    %v3334 = vsub.f32 %v213, %v3333
    %v3335 = vand.u32 %v3334, 4294901760
    %3336 = vmatpush.msra.mxu0 %v3335
    %v3337 = vand.u32 %v212, 4294901760
    %v3338 = vsub.f32 %v212, %v3337
    %v3339 = vand.u32 %v3338, 4294901760
    %3340 = vmatpush.msra.mxu0 %v3339
    %v3341 = vand.u32 %v211, 4294901760
    %v3342 = vsub.f32 %v211, %v3341
    %v3343 = vand.u32 %v3342, 4294901760
    %3344 = vmatpush.msra.mxu0 %v3343
    %v3345 = vand.u32 %v210, 4294901760
    %v3346 = vsub.f32 %v210, %v3345
    %v3347 = vand.u32 %v3346, 4294901760
    %3348 = vmatpush.msra.mxu0 %v3347
    %v3349 = vand.u32 %v209, 4294901760
    %v3350 = vsub.f32 %v209, %v3349
    %v3351 = vand.u32 %v3350, 4294901760
    %3352 = vmatpush.msra.mxu0 %v3351
    %v3353 = vand.u32 %v208, 4294901760
    %v3354 = vsub.f32 %v208, %v3353
    %v3355 = vand.u32 %v3354, 4294901760
    %3356 = vmatpush.msra.mxu0 %v3355
    %v3357 = vand.u32 %v207, 4294901760
    %v3358 = vsub.f32 %v207, %v3357
    %v3359 = vand.u32 %v3358, 4294901760
    %3360 = vmatpush.msra.mxu0 %v3359
    %v3361 = vand.u32 %v618, 4294901760
    %3362 = vmatmul.f32.gmra.mxu0 %v3361
    %v3363 = vpop.f32.mrf.mxu0
    %v3364 = vadd.f32 %v3295, %v3363
    %3365 = vdwg.mxu0
    %v3366 = vand.u32 %v222, 4294901760
    %3367 = vmatpush.msra.mxu0 %v3366
    %v3368 = vand.u32 %v221, 4294901760
    %3369 = vmatpush.msra.mxu0 %v3368
    %v3370 = vand.u32 %v220, 4294901760
    %3371 = vmatpush.msra.mxu0 %v3370
    %v3372 = vand.u32 %v219, 4294901760
    %3373 = vmatpush.msra.mxu0 %v3372
    %v3374 = vand.u32 %v218, 4294901760
    %3375 = vmatpush.msra.mxu0 %v3374
    %v3376 = vand.u32 %v217, 4294901760
    %3377 = vmatpush.msra.mxu0 %v3376
    %v3378 = vand.u32 %v216, 4294901760
    %3379 = vmatpush.msra.mxu0 %v3378
    %v3380 = vand.u32 %v215, 4294901760
    %3381 = vmatpush.msra.mxu0 %v3380
    %v3382 = vand.u32 %v214, 4294901760
    %3383 = vmatpush.msra.mxu0 %v3382
    %v3384 = vand.u32 %v213, 4294901760
    %3385 = vmatpush.msra.mxu0 %v3384
    %v3386 = vand.u32 %v212, 4294901760
    %3387 = vmatpush.msra.mxu0 %v3386
    %v3388 = vand.u32 %v211, 4294901760
    %3389 = vmatpush.msra.mxu0 %v3388
    %v3390 = vand.u32 %v210, 4294901760
    %3391 = vmatpush.msra.mxu0 %v3390
    %v3392 = vand.u32 %v209, 4294901760
    %3393 = vmatpush.msra.mxu0 %v3392
    %v3394 = vand.u32 %v208, 4294901760
    %3395 = vmatpush.msra.mxu0 %v3394
    %v3396 = vand.u32 %v207, 4294901760
    %3397 = vmatpush.msra.mxu0 %v3396
    %v3398 = vand.u32 %v618, 4294901760
    %3399 = vmatmul.f32.gmra.mxu0 %v3398
    %v3400 = vpop.f32.mrf.mxu0
    %v3401 = vadd.f32 %v3364, %v3400
    %3402 = vdwg.mxu0
    %v3403 = vand.u32 %v238, 4294901760
    %3404 = vmatpush.msra.mxu0 %v3403
    %v3405 = vand.u32 %v237, 4294901760
    %3406 = vmatpush.msra.mxu0 %v3405
    %v3407 = vand.u32 %v236, 4294901760
    %3408 = vmatpush.msra.mxu0 %v3407
    %v3409 = vand.u32 %v235, 4294901760
    %3410 = vmatpush.msra.mxu0 %v3409
    %v3411 = vand.u32 %v234, 4294901760
    %3412 = vmatpush.msra.mxu0 %v3411
    %v3413 = vand.u32 %v233, 4294901760
    %3414 = vmatpush.msra.mxu0 %v3413
    %v3415 = vand.u32 %v232, 4294901760
    %3416 = vmatpush.msra.mxu0 %v3415
    %v3417 = vand.u32 %v231, 4294901760
    %3418 = vmatpush.msra.mxu0 %v3417
    %v3419 = vand.u32 %v230, 4294901760
    %3420 = vmatpush.msra.mxu0 %v3419
    %v3421 = vand.u32 %v229, 4294901760
    %3422 = vmatpush.msra.mxu0 %v3421
    %v3423 = vand.u32 %v228, 4294901760
    %3424 = vmatpush.msra.mxu0 %v3423
    %v3425 = vand.u32 %v227, 4294901760
    %3426 = vmatpush.msra.mxu0 %v3425
    %v3427 = vand.u32 %v226, 4294901760
    %3428 = vmatpush.msra.mxu0 %v3427
    %v3429 = vand.u32 %v225, 4294901760
    %3430 = vmatpush.msra.mxu0 %v3429
    %v3431 = vand.u32 %v224, 4294901760
    %3432 = vmatpush.msra.mxu0 %v3431
    %v3433 = vand.u32 %v223, 4294901760
    %3434 = vmatpush.msra.mxu0 %v3433
    %v3435 = vand.u32 %v619, 4294901760
    %v3436 = vsub.f32 %v619, %v3435
    %v3437 = vand.u32 %v3436, 4294901760
    %v3438 = vsub.f32 %v3436, %v3437
    %v3439 = vand.u32 %v3438, 4294901760
    %3440 = vmatmul.f32.gmra.mxu0 %v3439
    %v3441 = vpop.f32.mrf.mxu0
    %v3442 = vadd.f32 %v3401, %v3441
    %3443 = vdwg.mxu0
    %v3444 = vand.u32 %v238, 4294901760
    %v3445 = vsub.f32 %v238, %v3444
    %v3446 = vand.u32 %v3445, 4294901760
    %v3447 = vsub.f32 %v3445, %v3446
    %v3448 = vand.u32 %v3447, 4294901760
    %3449 = vmatpush.msra.mxu0 %v3448
    %v3450 = vand.u32 %v237, 4294901760
    %v3451 = vsub.f32 %v237, %v3450
    %v3452 = vand.u32 %v3451, 4294901760
    %v3453 = vsub.f32 %v3451, %v3452
    %v3454 = vand.u32 %v3453, 4294901760
    %3455 = vmatpush.msra.mxu0 %v3454
    %v3456 = vand.u32 %v236, 4294901760
    %v3457 = vsub.f32 %v236, %v3456
    %v3458 = vand.u32 %v3457, 4294901760
    %v3459 = vsub.f32 %v3457, %v3458
    %v3460 = vand.u32 %v3459, 4294901760
    %3461 = vmatpush.msra.mxu0 %v3460
    %v3462 = vand.u32 %v235, 4294901760
    %v3463 = vsub.f32 %v235, %v3462
    %v3464 = vand.u32 %v3463, 4294901760
    %v3465 = vsub.f32 %v3463, %v3464
    %v3466 = vand.u32 %v3465, 4294901760
    %3467 = vmatpush.msra.mxu0 %v3466
    %v3468 = vand.u32 %v234, 4294901760
    %v3469 = vsub.f32 %v234, %v3468
    %v3470 = vand.u32 %v3469, 4294901760
    %v3471 = vsub.f32 %v3469, %v3470
    %v3472 = vand.u32 %v3471, 4294901760
    %3473 = vmatpush.msra.mxu0 %v3472
    %v3474 = vand.u32 %v233, 4294901760
    %v3475 = vsub.f32 %v233, %v3474
    %v3476 = vand.u32 %v3475, 4294901760
    %v3477 = vsub.f32 %v3475, %v3476
    %v3478 = vand.u32 %v3477, 4294901760
    %3479 = vmatpush.msra.mxu0 %v3478
    %v3480 = vand.u32 %v232, 4294901760
    %v3481 = vsub.f32 %v232, %v3480
    %v3482 = vand.u32 %v3481, 4294901760
    %v3483 = vsub.f32 %v3481, %v3482
    %v3484 = vand.u32 %v3483, 4294901760
    %3485 = vmatpush.msra.mxu0 %v3484
    %v3486 = vand.u32 %v231, 4294901760
    %v3487 = vsub.f32 %v231, %v3486
    %v3488 = vand.u32 %v3487, 4294901760
    %v3489 = vsub.f32 %v3487, %v3488
    %v3490 = vand.u32 %v3489, 4294901760
    %3491 = vmatpush.msra.mxu0 %v3490
    %v3492 = vand.u32 %v230, 4294901760
    %v3493 = vsub.f32 %v230, %v3492
    %v3494 = vand.u32 %v3493, 4294901760
    %v3495 = vsub.f32 %v3493, %v3494
    %v3496 = vand.u32 %v3495, 4294901760
    %3497 = vmatpush.msra.mxu0 %v3496
    %v3498 = vand.u32 %v229, 4294901760
    %v3499 = vsub.f32 %v229, %v3498
    %v3500 = vand.u32 %v3499, 4294901760
    %v3501 = vsub.f32 %v3499, %v3500
    %v3502 = vand.u32 %v3501, 4294901760
    %3503 = vmatpush.msra.mxu0 %v3502
    %v3504 = vand.u32 %v228, 4294901760
    %v3505 = vsub.f32 %v228, %v3504
    %v3506 = vand.u32 %v3505, 4294901760
    %v3507 = vsub.f32 %v3505, %v3506
    %v3508 = vand.u32 %v3507, 4294901760
    %3509 = vmatpush.msra.mxu0 %v3508
    %v3510 = vand.u32 %v227, 4294901760
    %v3511 = vsub.f32 %v227, %v3510
    %v3512 = vand.u32 %v3511, 4294901760
    %v3513 = vsub.f32 %v3511, %v3512
    %v3514 = vand.u32 %v3513, 4294901760
    %3515 = vmatpush.msra.mxu0 %v3514
    %v3516 = vand.u32 %v226, 4294901760
    %v3517 = vsub.f32 %v226, %v3516
    %v3518 = vand.u32 %v3517, 4294901760
    %v3519 = vsub.f32 %v3517, %v3518
    %v3520 = vand.u32 %v3519, 4294901760
    %3521 = vmatpush.msra.mxu0 %v3520
    %v3522 = vand.u32 %v225, 4294901760
    %v3523 = vsub.f32 %v225, %v3522
    %v3524 = vand.u32 %v3523, 4294901760
    %v3525 = vsub.f32 %v3523, %v3524
    %v3526 = vand.u32 %v3525, 4294901760
    %3527 = vmatpush.msra.mxu0 %v3526
    %v3528 = vand.u32 %v224, 4294901760
    %v3529 = vsub.f32 %v224, %v3528
    %v3530 = vand.u32 %v3529, 4294901760
    %v3531 = vsub.f32 %v3529, %v3530
    %v3532 = vand.u32 %v3531, 4294901760
    %3533 = vmatpush.msra.mxu0 %v3532
    %v3534 = vand.u32 %v223, 4294901760
    %v3535 = vsub.f32 %v223, %v3534
    %v3536 = vand.u32 %v3535, 4294901760
    %v3537 = vsub.f32 %v3535, %v3536
    %v3538 = vand.u32 %v3537, 4294901760
    %3539 = vmatpush.msra.mxu0 %v3538
    %v3540 = vand.u32 %v619, 4294901760
    %3541 = vmatmul.f32.gmra.mxu0 %v3540
    %v3542 = vpop.f32.mrf.mxu0
    %v3543 = vadd.f32 %v3442, %v3542
    %3544 = vdwg.mxu0
    %v3545 = vand.u32 %v238, 4294901760
    %v3546 = vsub.f32 %v238, %v3545
    %3547 = vmatpush.msra.mxu0 %v3546
    %v3548 = vand.u32 %v237, 4294901760
    %v3549 = vsub.f32 %v237, %v3548
    %3550 = vmatpush.msra.mxu0 %v3549
    %v3551 = vand.u32 %v236, 4294901760
    %v3552 = vsub.f32 %v236, %v3551
    %3553 = vmatpush.msra.mxu0 %v3552
    %v3554 = vand.u32 %v235, 4294901760
    %v3555 = vsub.f32 %v235, %v3554
    %3556 = vmatpush.msra.mxu0 %v3555
    %v3557 = vand.u32 %v234, 4294901760
    %v3558 = vsub.f32 %v234, %v3557
    %3559 = vmatpush.msra.mxu0 %v3558
    %v3560 = vand.u32 %v233, 4294901760
    %v3561 = vsub.f32 %v233, %v3560
    %3562 = vmatpush.msra.mxu0 %v3561
    %v3563 = vand.u32 %v232, 4294901760
    %v3564 = vsub.f32 %v232, %v3563
    %3565 = vmatpush.msra.mxu0 %v3564
    %v3566 = vand.u32 %v231, 4294901760
    %v3567 = vsub.f32 %v231, %v3566
    %3568 = vmatpush.msra.mxu0 %v3567
    %v3569 = vand.u32 %v230, 4294901760
    %v3570 = vsub.f32 %v230, %v3569
    %3571 = vmatpush.msra.mxu0 %v3570
    %v3572 = vand.u32 %v229, 4294901760
    %v3573 = vsub.f32 %v229, %v3572
    %3574 = vmatpush.msra.mxu0 %v3573
    %v3575 = vand.u32 %v228, 4294901760
    %v3576 = vsub.f32 %v228, %v3575
    %3577 = vmatpush.msra.mxu0 %v3576
    %v3578 = vand.u32 %v227, 4294901760
    %v3579 = vsub.f32 %v227, %v3578
    %3580 = vmatpush.msra.mxu0 %v3579
    %v3581 = vand.u32 %v226, 4294901760
    %v3582 = vsub.f32 %v226, %v3581
    %3583 = vmatpush.msra.mxu0 %v3582
    %v3584 = vand.u32 %v225, 4294901760
    %v3585 = vsub.f32 %v225, %v3584
    %3586 = vmatpush.msra.mxu0 %v3585
    %v3587 = vand.u32 %v224, 4294901760
    %v3588 = vsub.f32 %v224, %v3587
    %3589 = vmatpush.msra.mxu0 %v3588
    %v3590 = vand.u32 %v223, 4294901760
    %v3591 = vsub.f32 %v223, %v3590
    %3592 = vmatpush.msra.mxu0 %v3591
    %v3593 = vand.u32 %v619, 4294901760
    %v3594 = vsub.f32 %v619, %v3593
    %3595 = vmatmul.f32.gmra.mxu0 %v3594
    %v3596 = vpop.f32.mrf.mxu0
    %v3597 = vadd.f32 %v3543, %v3596
    %3598 = vdwg.mxu0
    %v3599 = vand.u32 %v238, 4294901760
    %3600 = vmatpush.msra.mxu0 %v3599
    %v3601 = vand.u32 %v237, 4294901760
    %3602 = vmatpush.msra.mxu0 %v3601
    %v3603 = vand.u32 %v236, 4294901760
    %3604 = vmatpush.msra.mxu0 %v3603
    %v3605 = vand.u32 %v235, 4294901760
    %3606 = vmatpush.msra.mxu0 %v3605
    %v3607 = vand.u32 %v234, 4294901760
    %3608 = vmatpush.msra.mxu0 %v3607
    %v3609 = vand.u32 %v233, 4294901760
    %3610 = vmatpush.msra.mxu0 %v3609
    %v3611 = vand.u32 %v232, 4294901760
    %3612 = vmatpush.msra.mxu0 %v3611
    %v3613 = vand.u32 %v231, 4294901760
    %3614 = vmatpush.msra.mxu0 %v3613
    %v3615 = vand.u32 %v230, 4294901760
    %3616 = vmatpush.msra.mxu0 %v3615
    %v3617 = vand.u32 %v229, 4294901760
    %3618 = vmatpush.msra.mxu0 %v3617
    %v3619 = vand.u32 %v228, 4294901760
    %3620 = vmatpush.msra.mxu0 %v3619
    %v3621 = vand.u32 %v227, 4294901760
    %3622 = vmatpush.msra.mxu0 %v3621
    %v3623 = vand.u32 %v226, 4294901760
    %3624 = vmatpush.msra.mxu0 %v3623
    %v3625 = vand.u32 %v225, 4294901760
    %3626 = vmatpush.msra.mxu0 %v3625
    %v3627 = vand.u32 %v224, 4294901760
    %3628 = vmatpush.msra.mxu0 %v3627
    %v3629 = vand.u32 %v223, 4294901760
    %3630 = vmatpush.msra.mxu0 %v3629
    %v3631 = vand.u32 %v619, 4294901760
    %v3632 = vsub.f32 %v619, %v3631
    %v3633 = vand.u32 %v3632, 4294901760
    %3634 = vmatmul.f32.gmra.mxu0 %v3633
    %v3635 = vpop.f32.mrf.mxu0
    %v3636 = vadd.f32 %v3597, %v3635
    %3637 = vdwg.mxu0
    %v3638 = vand.u32 %v238, 4294901760
    %v3639 = vsub.f32 %v238, %v3638
    %v3640 = vand.u32 %v3639, 4294901760
    %3641 = vmatpush.msra.mxu0 %v3640
    %v3642 = vand.u32 %v237, 4294901760
    %v3643 = vsub.f32 %v237, %v3642
    %v3644 = vand.u32 %v3643, 4294901760
    %3645 = vmatpush.msra.mxu0 %v3644
    %v3646 = vand.u32 %v236, 4294901760
    %v3647 = vsub.f32 %v236, %v3646
    %v3648 = vand.u32 %v3647, 4294901760
    %3649 = vmatpush.msra.mxu0 %v3648
    %v3650 = vand.u32 %v235, 4294901760
    %v3651 = vsub.f32 %v235, %v3650
    %v3652 = vand.u32 %v3651, 4294901760
    %3653 = vmatpush.msra.mxu0 %v3652
    %v3654 = vand.u32 %v234, 4294901760
    %v3655 = vsub.f32 %v234, %v3654
    %v3656 = vand.u32 %v3655, 4294901760
    %3657 = vmatpush.msra.mxu0 %v3656
    %v3658 = vand.u32 %v233, 4294901760
    %v3659 = vsub.f32 %v233, %v3658
    %v3660 = vand.u32 %v3659, 4294901760
    %3661 = vmatpush.msra.mxu0 %v3660
    %v3662 = vand.u32 %v232, 4294901760
    %v3663 = vsub.f32 %v232, %v3662
    %v3664 = vand.u32 %v3663, 4294901760
    %3665 = vmatpush.msra.mxu0 %v3664
    %v3666 = vand.u32 %v231, 4294901760
    %v3667 = vsub.f32 %v231, %v3666
    %v3668 = vand.u32 %v3667, 4294901760
    %3669 = vmatpush.msra.mxu0 %v3668
    %v3670 = vand.u32 %v230, 4294901760
    %v3671 = vsub.f32 %v230, %v3670
    %v3672 = vand.u32 %v3671, 4294901760
    %3673 = vmatpush.msra.mxu0 %v3672
    %v3674 = vand.u32 %v229, 4294901760
    %v3675 = vsub.f32 %v229, %v3674
    %v3676 = vand.u32 %v3675, 4294901760
    %3677 = vmatpush.msra.mxu0 %v3676
    %v3678 = vand.u32 %v228, 4294901760
    %v3679 = vsub.f32 %v228, %v3678
    %v3680 = vand.u32 %v3679, 4294901760
    %3681 = vmatpush.msra.mxu0 %v3680
    %v3682 = vand.u32 %v227, 4294901760
    %v3683 = vsub.f32 %v227, %v3682
    %v3684 = vand.u32 %v3683, 4294901760
    %3685 = vmatpush.msra.mxu0 %v3684
    %v3686 = vand.u32 %v226, 4294901760
    %v3687 = vsub.f32 %v226, %v3686
    %v3688 = vand.u32 %v3687, 4294901760
    %3689 = vmatpush.msra.mxu0 %v3688
    %v3690 = vand.u32 %v225, 4294901760
    %v3691 = vsub.f32 %v225, %v3690
    %v3692 = vand.u32 %v3691, 4294901760
    %3693 = vmatpush.msra.mxu0 %v3692
    %v3694 = vand.u32 %v224, 4294901760
    %v3695 = vsub.f32 %v224, %v3694
    %v3696 = vand.u32 %v3695, 4294901760
    %3697 = vmatpush.msra.mxu0 %v3696
    %v3698 = vand.u32 %v223, 4294901760
    %v3699 = vsub.f32 %v223, %v3698
    %v3700 = vand.u32 %v3699, 4294901760
    %3701 = vmatpush.msra.mxu0 %v3700
    %v3702 = vand.u32 %v619, 4294901760
    %3703 = vmatmul.f32.gmra.mxu0 %v3702
    %v3704 = vpop.f32.mrf.mxu0
    %v3705 = vadd.f32 %v3636, %v3704
    %3706 = vdwg.mxu0
    %v3707 = vand.u32 %v238, 4294901760
    %3708 = vmatpush.msra.mxu0 %v3707
    %v3709 = vand.u32 %v237, 4294901760
    %3710 = vmatpush.msra.mxu0 %v3709
    %v3711 = vand.u32 %v236, 4294901760
    %3712 = vmatpush.msra.mxu0 %v3711
    %v3713 = vand.u32 %v235, 4294901760
    %3714 = vmatpush.msra.mxu0 %v3713
    %v3715 = vand.u32 %v234, 4294901760
    %3716 = vmatpush.msra.mxu0 %v3715
    %v3717 = vand.u32 %v233, 4294901760
    %3718 = vmatpush.msra.mxu0 %v3717
    %v3719 = vand.u32 %v232, 4294901760
    %3720 = vmatpush.msra.mxu0 %v3719
    %v3721 = vand.u32 %v231, 4294901760
    %3722 = vmatpush.msra.mxu0 %v3721
    %v3723 = vand.u32 %v230, 4294901760
    %3724 = vmatpush.msra.mxu0 %v3723
    %v3725 = vand.u32 %v229, 4294901760
    %3726 = vmatpush.msra.mxu0 %v3725
    %v3727 = vand.u32 %v228, 4294901760
    %3728 = vmatpush.msra.mxu0 %v3727
    %v3729 = vand.u32 %v227, 4294901760
    %3730 = vmatpush.msra.mxu0 %v3729
    %v3731 = vand.u32 %v226, 4294901760
    %3732 = vmatpush.msra.mxu0 %v3731
    %v3733 = vand.u32 %v225, 4294901760
    %3734 = vmatpush.msra.mxu0 %v3733
    %v3735 = vand.u32 %v224, 4294901760
    %3736 = vmatpush.msra.mxu0 %v3735
    %v3737 = vand.u32 %v223, 4294901760
    %3738 = vmatpush.msra.mxu0 %v3737
    %v3739 = vand.u32 %v619, 4294901760
    %3740 = vmatmul.f32.gmra.mxu0 %v3739
    %v3741 = vpop.f32.mrf.mxu0
    %v3742 = vadd.f32 %v3705, %v3741
    %3743 = vdwg.mxu0
    %v3744 = vand.u32 %v254, 4294901760
    %3745 = vmatpush.msra.mxu0 %v3744
    %v3746 = vand.u32 %v253, 4294901760
    %3747 = vmatpush.msra.mxu0 %v3746
    %v3748 = vand.u32 %v252, 4294901760
    %3749 = vmatpush.msra.mxu0 %v3748
    %v3750 = vand.u32 %v251, 4294901760
    %3751 = vmatpush.msra.mxu0 %v3750
    %v3752 = vand.u32 %v250, 4294901760
    %3753 = vmatpush.msra.mxu0 %v3752
    %v3754 = vand.u32 %v249, 4294901760
    %3755 = vmatpush.msra.mxu0 %v3754
    %v3756 = vand.u32 %v248, 4294901760
    %3757 = vmatpush.msra.mxu0 %v3756
    %v3758 = vand.u32 %v247, 4294901760
    %3759 = vmatpush.msra.mxu0 %v3758
    %v3760 = vand.u32 %v246, 4294901760
    %3761 = vmatpush.msra.mxu0 %v3760
    %v3762 = vand.u32 %v245, 4294901760
    %3763 = vmatpush.msra.mxu0 %v3762
    %v3764 = vand.u32 %v244, 4294901760
    %3765 = vmatpush.msra.mxu0 %v3764
    %v3766 = vand.u32 %v243, 4294901760
    %3767 = vmatpush.msra.mxu0 %v3766
    %v3768 = vand.u32 %v242, 4294901760
    %3769 = vmatpush.msra.mxu0 %v3768
    %v3770 = vand.u32 %v241, 4294901760
    %3771 = vmatpush.msra.mxu0 %v3770
    %v3772 = vand.u32 %v240, 4294901760
    %3773 = vmatpush.msra.mxu0 %v3772
    %v3774 = vand.u32 %v239, 4294901760
    %3775 = vmatpush.msra.mxu0 %v3774
    %v3776 = vand.u32 %v620, 4294901760
    %v3777 = vsub.f32 %v620, %v3776
    %v3778 = vand.u32 %v3777, 4294901760
    %v3779 = vsub.f32 %v3777, %v3778
    %v3780 = vand.u32 %v3779, 4294901760
    %3781 = vmatmul.f32.gmra.mxu0 %v3780
    %v3782 = vpop.f32.mrf.mxu0
    %v3783 = vadd.f32 %v3742, %v3782
    %3784 = vdwg.mxu0
    %v3785 = vand.u32 %v254, 4294901760
    %v3786 = vsub.f32 %v254, %v3785
    %v3787 = vand.u32 %v3786, 4294901760
    %v3788 = vsub.f32 %v3786, %v3787
    %v3789 = vand.u32 %v3788, 4294901760
    %3790 = vmatpush.msra.mxu0 %v3789
    %v3791 = vand.u32 %v253, 4294901760
    %v3792 = vsub.f32 %v253, %v3791
    %v3793 = vand.u32 %v3792, 4294901760
    %v3794 = vsub.f32 %v3792, %v3793
    %v3795 = vand.u32 %v3794, 4294901760
    %3796 = vmatpush.msra.mxu0 %v3795
    %v3797 = vand.u32 %v252, 4294901760
    %v3798 = vsub.f32 %v252, %v3797
    %v3799 = vand.u32 %v3798, 4294901760
    %v3800 = vsub.f32 %v3798, %v3799
    %v3801 = vand.u32 %v3800, 4294901760
    %3802 = vmatpush.msra.mxu0 %v3801
    %v3803 = vand.u32 %v251, 4294901760
    %v3804 = vsub.f32 %v251, %v3803
    %v3805 = vand.u32 %v3804, 4294901760
    %v3806 = vsub.f32 %v3804, %v3805
    %v3807 = vand.u32 %v3806, 4294901760
    %3808 = vmatpush.msra.mxu0 %v3807
    %v3809 = vand.u32 %v250, 4294901760
    %v3810 = vsub.f32 %v250, %v3809
    %v3811 = vand.u32 %v3810, 4294901760
    %v3812 = vsub.f32 %v3810, %v3811
    %v3813 = vand.u32 %v3812, 4294901760
    %3814 = vmatpush.msra.mxu0 %v3813
    %v3815 = vand.u32 %v249, 4294901760
    %v3816 = vsub.f32 %v249, %v3815
    %v3817 = vand.u32 %v3816, 4294901760
    %v3818 = vsub.f32 %v3816, %v3817
    %v3819 = vand.u32 %v3818, 4294901760
    %3820 = vmatpush.msra.mxu0 %v3819
    %v3821 = vand.u32 %v248, 4294901760
    %v3822 = vsub.f32 %v248, %v3821
    %v3823 = vand.u32 %v3822, 4294901760
    %v3824 = vsub.f32 %v3822, %v3823
    %v3825 = vand.u32 %v3824, 4294901760
    %3826 = vmatpush.msra.mxu0 %v3825
    %v3827 = vand.u32 %v247, 4294901760
    %v3828 = vsub.f32 %v247, %v3827
    %v3829 = vand.u32 %v3828, 4294901760
    %v3830 = vsub.f32 %v3828, %v3829
    %v3831 = vand.u32 %v3830, 4294901760
    %3832 = vmatpush.msra.mxu0 %v3831
    %v3833 = vand.u32 %v246, 4294901760
    %v3834 = vsub.f32 %v246, %v3833
    %v3835 = vand.u32 %v3834, 4294901760
    %v3836 = vsub.f32 %v3834, %v3835
    %v3837 = vand.u32 %v3836, 4294901760
    %3838 = vmatpush.msra.mxu0 %v3837
    %v3839 = vand.u32 %v245, 4294901760
    %v3840 = vsub.f32 %v245, %v3839
    %v3841 = vand.u32 %v3840, 4294901760
    %v3842 = vsub.f32 %v3840, %v3841
    %v3843 = vand.u32 %v3842, 4294901760
    %3844 = vmatpush.msra.mxu0 %v3843
    %v3845 = vand.u32 %v244, 4294901760
    %v3846 = vsub.f32 %v244, %v3845
    %v3847 = vand.u32 %v3846, 4294901760
    %v3848 = vsub.f32 %v3846, %v3847
    %v3849 = vand.u32 %v3848, 4294901760
    %3850 = vmatpush.msra.mxu0 %v3849
    %v3851 = vand.u32 %v243, 4294901760
    %v3852 = vsub.f32 %v243, %v3851
    %v3853 = vand.u32 %v3852, 4294901760
    %v3854 = vsub.f32 %v3852, %v3853
    %v3855 = vand.u32 %v3854, 4294901760
    %3856 = vmatpush.msra.mxu0 %v3855
    %v3857 = vand.u32 %v242, 4294901760
    %v3858 = vsub.f32 %v242, %v3857
    %v3859 = vand.u32 %v3858, 4294901760
    %v3860 = vsub.f32 %v3858, %v3859
    %v3861 = vand.u32 %v3860, 4294901760
    %3862 = vmatpush.msra.mxu0 %v3861
    %v3863 = vand.u32 %v241, 4294901760
    %v3864 = vsub.f32 %v241, %v3863
    %v3865 = vand.u32 %v3864, 4294901760
    %v3866 = vsub.f32 %v3864, %v3865
    %v3867 = vand.u32 %v3866, 4294901760
    %3868 = vmatpush.msra.mxu0 %v3867
    %v3869 = vand.u32 %v240, 4294901760
    %v3870 = vsub.f32 %v240, %v3869
    %v3871 = vand.u32 %v3870, 4294901760
    %v3872 = vsub.f32 %v3870, %v3871
    %v3873 = vand.u32 %v3872, 4294901760
    %3874 = vmatpush.msra.mxu0 %v3873
    %v3875 = vand.u32 %v239, 4294901760
    %v3876 = vsub.f32 %v239, %v3875
    %v3877 = vand.u32 %v3876, 4294901760
    %v3878 = vsub.f32 %v3876, %v3877
    %v3879 = vand.u32 %v3878, 4294901760
    %3880 = vmatpush.msra.mxu0 %v3879
    %v3881 = vand.u32 %v620, 4294901760
    %3882 = vmatmul.f32.gmra.mxu0 %v3881
    %v3883 = vpop.f32.mrf.mxu0
    %v3884 = vadd.f32 %v3783, %v3883
    %3885 = vdwg.mxu0
    %v3886 = vand.u32 %v254, 4294901760
    %v3887 = vsub.f32 %v254, %v3886
    %3888 = vmatpush.msra.mxu0 %v3887
    %v3889 = vand.u32 %v253, 4294901760
    %v3890 = vsub.f32 %v253, %v3889
    %3891 = vmatpush.msra.mxu0 %v3890
    %v3892 = vand.u32 %v252, 4294901760
    %v3893 = vsub.f32 %v252, %v3892
    %3894 = vmatpush.msra.mxu0 %v3893
    %v3895 = vand.u32 %v251, 4294901760
    %v3896 = vsub.f32 %v251, %v3895
    %3897 = vmatpush.msra.mxu0 %v3896
    %v3898 = vand.u32 %v250, 4294901760
    %v3899 = vsub.f32 %v250, %v3898
    %3900 = vmatpush.msra.mxu0 %v3899
    %v3901 = vand.u32 %v249, 4294901760
    %v3902 = vsub.f32 %v249, %v3901
    %3903 = vmatpush.msra.mxu0 %v3902
    %v3904 = vand.u32 %v248, 4294901760
    %v3905 = vsub.f32 %v248, %v3904
    %3906 = vmatpush.msra.mxu0 %v3905
    %v3907 = vand.u32 %v247, 4294901760
    %v3908 = vsub.f32 %v247, %v3907
    %3909 = vmatpush.msra.mxu0 %v3908
    %v3910 = vand.u32 %v246, 4294901760
    %v3911 = vsub.f32 %v246, %v3910
    %3912 = vmatpush.msra.mxu0 %v3911
    %v3913 = vand.u32 %v245, 4294901760
    %v3914 = vsub.f32 %v245, %v3913
    %3915 = vmatpush.msra.mxu0 %v3914
    %v3916 = vand.u32 %v244, 4294901760
    %v3917 = vsub.f32 %v244, %v3916
    %3918 = vmatpush.msra.mxu0 %v3917
    %v3919 = vand.u32 %v243, 4294901760
    %v3920 = vsub.f32 %v243, %v3919
    %3921 = vmatpush.msra.mxu0 %v3920
    %v3922 = vand.u32 %v242, 4294901760
    %v3923 = vsub.f32 %v242, %v3922
    %3924 = vmatpush.msra.mxu0 %v3923
    %v3925 = vand.u32 %v241, 4294901760
    %v3926 = vsub.f32 %v241, %v3925
    %3927 = vmatpush.msra.mxu0 %v3926
    %v3928 = vand.u32 %v240, 4294901760
    %v3929 = vsub.f32 %v240, %v3928
    %3930 = vmatpush.msra.mxu0 %v3929
    %v3931 = vand.u32 %v239, 4294901760
    %v3932 = vsub.f32 %v239, %v3931
    %3933 = vmatpush.msra.mxu0 %v3932
    %v3934 = vand.u32 %v620, 4294901760
    %v3935 = vsub.f32 %v620, %v3934
    %3936 = vmatmul.f32.gmra.mxu0 %v3935
    %v3937 = vpop.f32.mrf.mxu0
    %v3938 = vadd.f32 %v3884, %v3937
    %3939 = vdwg.mxu0
    %v3940 = vand.u32 %v254, 4294901760
    %3941 = vmatpush.msra.mxu0 %v3940
    %v3942 = vand.u32 %v253, 4294901760
    %3943 = vmatpush.msra.mxu0 %v3942
    %v3944 = vand.u32 %v252, 4294901760
    %3945 = vmatpush.msra.mxu0 %v3944
    %v3946 = vand.u32 %v251, 4294901760
    %3947 = vmatpush.msra.mxu0 %v3946
    %v3948 = vand.u32 %v250, 4294901760
    %3949 = vmatpush.msra.mxu0 %v3948
    %v3950 = vand.u32 %v249, 4294901760
    %3951 = vmatpush.msra.mxu0 %v3950
    %v3952 = vand.u32 %v248, 4294901760
    %3953 = vmatpush.msra.mxu0 %v3952
    %v3954 = vand.u32 %v247, 4294901760
    %3955 = vmatpush.msra.mxu0 %v3954
    %v3956 = vand.u32 %v246, 4294901760
    %3957 = vmatpush.msra.mxu0 %v3956
    %v3958 = vand.u32 %v245, 4294901760
    %3959 = vmatpush.msra.mxu0 %v3958
    %v3960 = vand.u32 %v244, 4294901760
    %3961 = vmatpush.msra.mxu0 %v3960
    %v3962 = vand.u32 %v243, 4294901760
    %3963 = vmatpush.msra.mxu0 %v3962
    %v3964 = vand.u32 %v242, 4294901760
    %3965 = vmatpush.msra.mxu0 %v3964
    %v3966 = vand.u32 %v241, 4294901760
    %3967 = vmatpush.msra.mxu0 %v3966
    %v3968 = vand.u32 %v240, 4294901760
    %3969 = vmatpush.msra.mxu0 %v3968
    %v3970 = vand.u32 %v239, 4294901760
    %3971 = vmatpush.msra.mxu0 %v3970
    %v3972 = vand.u32 %v620, 4294901760
    %v3973 = vsub.f32 %v620, %v3972
    %v3974 = vand.u32 %v3973, 4294901760
    %3975 = vmatmul.f32.gmra.mxu0 %v3974
    %v3976 = vpop.f32.mrf.mxu0
    %v3977 = vadd.f32 %v3938, %v3976
    %3978 = vdwg.mxu0
    %v3979 = vand.u32 %v254, 4294901760
    %v3980 = vsub.f32 %v254, %v3979
    %v3981 = vand.u32 %v3980, 4294901760
    %3982 = vmatpush.msra.mxu0 %v3981
    %v3983 = vand.u32 %v253, 4294901760
    %v3984 = vsub.f32 %v253, %v3983
    %v3985 = vand.u32 %v3984, 4294901760
    %3986 = vmatpush.msra.mxu0 %v3985
    %v3987 = vand.u32 %v252, 4294901760
    %v3988 = vsub.f32 %v252, %v3987
    %v3989 = vand.u32 %v3988, 4294901760
    %3990 = vmatpush.msra.mxu0 %v3989
    %v3991 = vand.u32 %v251, 4294901760
    %v3992 = vsub.f32 %v251, %v3991
    %v3993 = vand.u32 %v3992, 4294901760
    %3994 = vmatpush.msra.mxu0 %v3993
    %v3995 = vand.u32 %v250, 4294901760
    %v3996 = vsub.f32 %v250, %v3995
    %v3997 = vand.u32 %v3996, 4294901760
    %3998 = vmatpush.msra.mxu0 %v3997
    %v3999 = vand.u32 %v249, 4294901760
    %v4000 = vsub.f32 %v249, %v3999
    %v4001 = vand.u32 %v4000, 4294901760
    %4002 = vmatpush.msra.mxu0 %v4001
    %v4003 = vand.u32 %v248, 4294901760
    %v4004 = vsub.f32 %v248, %v4003
    %v4005 = vand.u32 %v4004, 4294901760
    %4006 = vmatpush.msra.mxu0 %v4005
    %v4007 = vand.u32 %v247, 4294901760
    %v4008 = vsub.f32 %v247, %v4007
    %v4009 = vand.u32 %v4008, 4294901760
    %4010 = vmatpush.msra.mxu0 %v4009
    %v4011 = vand.u32 %v246, 4294901760
    %v4012 = vsub.f32 %v246, %v4011
    %v4013 = vand.u32 %v4012, 4294901760
    %4014 = vmatpush.msra.mxu0 %v4013
    %v4015 = vand.u32 %v245, 4294901760
    %v4016 = vsub.f32 %v245, %v4015
    %v4017 = vand.u32 %v4016, 4294901760
    %4018 = vmatpush.msra.mxu0 %v4017
    %v4019 = vand.u32 %v244, 4294901760
    %v4020 = vsub.f32 %v244, %v4019
    %v4021 = vand.u32 %v4020, 4294901760
    %4022 = vmatpush.msra.mxu0 %v4021
    %v4023 = vand.u32 %v243, 4294901760
    %v4024 = vsub.f32 %v243, %v4023
    %v4025 = vand.u32 %v4024, 4294901760
    %4026 = vmatpush.msra.mxu0 %v4025
    %v4027 = vand.u32 %v242, 4294901760
    %v4028 = vsub.f32 %v242, %v4027
    %v4029 = vand.u32 %v4028, 4294901760
    %4030 = vmatpush.msra.mxu0 %v4029
    %v4031 = vand.u32 %v241, 4294901760
    %v4032 = vsub.f32 %v241, %v4031
    %v4033 = vand.u32 %v4032, 4294901760
    %4034 = vmatpush.msra.mxu0 %v4033
    %v4035 = vand.u32 %v240, 4294901760
    %v4036 = vsub.f32 %v240, %v4035
    %v4037 = vand.u32 %v4036, 4294901760
    %4038 = vmatpush.msra.mxu0 %v4037
    %v4039 = vand.u32 %v239, 4294901760
    %v4040 = vsub.f32 %v239, %v4039
    %v4041 = vand.u32 %v4040, 4294901760
    %4042 = vmatpush.msra.mxu0 %v4041
    %v4043 = vand.u32 %v620, 4294901760
    %4044 = vmatmul.f32.gmra.mxu0 %v4043
    %v4045 = vpop.f32.mrf.mxu0
    %v4046 = vadd.f32 %v3977, %v4045
    %4047 = vdwg.mxu0
    %v4048 = vand.u32 %v254, 4294901760
    %4049 = vmatpush.msra.mxu0 %v4048
    %v4050 = vand.u32 %v253, 4294901760
    %4051 = vmatpush.msra.mxu0 %v4050
    %v4052 = vand.u32 %v252, 4294901760
    %4053 = vmatpush.msra.mxu0 %v4052
    %v4054 = vand.u32 %v251, 4294901760
    %4055 = vmatpush.msra.mxu0 %v4054
    %v4056 = vand.u32 %v250, 4294901760
    %4057 = vmatpush.msra.mxu0 %v4056
    %v4058 = vand.u32 %v249, 4294901760
    %4059 = vmatpush.msra.mxu0 %v4058
    %v4060 = vand.u32 %v248, 4294901760
    %4061 = vmatpush.msra.mxu0 %v4060
    %v4062 = vand.u32 %v247, 4294901760
    %4063 = vmatpush.msra.mxu0 %v4062
    %v4064 = vand.u32 %v246, 4294901760
    %4065 = vmatpush.msra.mxu0 %v4064
    %v4066 = vand.u32 %v245, 4294901760
    %4067 = vmatpush.msra.mxu0 %v4066
    %v4068 = vand.u32 %v244, 4294901760
    %4069 = vmatpush.msra.mxu0 %v4068
    %v4070 = vand.u32 %v243, 4294901760
    %4071 = vmatpush.msra.mxu0 %v4070
    %v4072 = vand.u32 %v242, 4294901760
    %4073 = vmatpush.msra.mxu0 %v4072
    %v4074 = vand.u32 %v241, 4294901760
    %4075 = vmatpush.msra.mxu0 %v4074
    %v4076 = vand.u32 %v240, 4294901760
    %4077 = vmatpush.msra.mxu0 %v4076
    %v4078 = vand.u32 %v239, 4294901760
    %4079 = vmatpush.msra.mxu0 %v4078
    %v4080 = vand.u32 %v620, 4294901760
    %4081 = vmatmul.f32.gmra.mxu0 %v4080
    %v4082 = vpop.f32.mrf.mxu0
    %v4083 = vadd.f32 %v4046, %v4082
    %4084 = vdwg.mxu0
    %v4085 = vand.u32 %v270, 4294901760
    %4086 = vmatpush.msra.mxu0 %v4085
    %v4087 = vand.u32 %v269, 4294901760
    %4088 = vmatpush.msra.mxu0 %v4087
    %v4089 = vand.u32 %v268, 4294901760
    %4090 = vmatpush.msra.mxu0 %v4089
    %v4091 = vand.u32 %v267, 4294901760
    %4092 = vmatpush.msra.mxu0 %v4091
    %v4093 = vand.u32 %v266, 4294901760
    %4094 = vmatpush.msra.mxu0 %v4093
    %v4095 = vand.u32 %v265, 4294901760
    %4096 = vmatpush.msra.mxu0 %v4095
    %v4097 = vand.u32 %v264, 4294901760
    %4098 = vmatpush.msra.mxu0 %v4097
    %v4099 = vand.u32 %v263, 4294901760
    %4100 = vmatpush.msra.mxu0 %v4099
    %v4101 = vand.u32 %v262, 4294901760
    %4102 = vmatpush.msra.mxu0 %v4101
    %v4103 = vand.u32 %v261, 4294901760
    %4104 = vmatpush.msra.mxu0 %v4103
    %v4105 = vand.u32 %v260, 4294901760
    %4106 = vmatpush.msra.mxu0 %v4105
    %v4107 = vand.u32 %v259, 4294901760
    %4108 = vmatpush.msra.mxu0 %v4107
    %v4109 = vand.u32 %v258, 4294901760
    %4110 = vmatpush.msra.mxu0 %v4109
    %v4111 = vand.u32 %v257, 4294901760
    %4112 = vmatpush.msra.mxu0 %v4111
    %v4113 = vand.u32 %v256, 4294901760
    %4114 = vmatpush.msra.mxu0 %v4113
    %v4115 = vand.u32 %v255, 4294901760
    %4116 = vmatpush.msra.mxu0 %v4115
    %v4117 = vand.u32 %v621, 4294901760
    %v4118 = vsub.f32 %v621, %v4117
    %v4119 = vand.u32 %v4118, 4294901760
    %v4120 = vsub.f32 %v4118, %v4119
    %v4121 = vand.u32 %v4120, 4294901760
    %4122 = vmatmul.f32.gmra.mxu0 %v4121
    %v4123 = vpop.f32.mrf.mxu0
    %v4124 = vadd.f32 %v4083, %v4123
    %4125 = vdwg.mxu0
    %v4126 = vand.u32 %v270, 4294901760
    %v4127 = vsub.f32 %v270, %v4126
    %v4128 = vand.u32 %v4127, 4294901760
    %v4129 = vsub.f32 %v4127, %v4128
    %v4130 = vand.u32 %v4129, 4294901760
    %4131 = vmatpush.msra.mxu0 %v4130
    %v4132 = vand.u32 %v269, 4294901760
    %v4133 = vsub.f32 %v269, %v4132
    %v4134 = vand.u32 %v4133, 4294901760
    %v4135 = vsub.f32 %v4133, %v4134
    %v4136 = vand.u32 %v4135, 4294901760
    %4137 = vmatpush.msra.mxu0 %v4136
    %v4138 = vand.u32 %v268, 4294901760
    %v4139 = vsub.f32 %v268, %v4138
    %v4140 = vand.u32 %v4139, 4294901760
    %v4141 = vsub.f32 %v4139, %v4140
    %v4142 = vand.u32 %v4141, 4294901760
    %4143 = vmatpush.msra.mxu0 %v4142
    %v4144 = vand.u32 %v267, 4294901760
    %v4145 = vsub.f32 %v267, %v4144
    %v4146 = vand.u32 %v4145, 4294901760
    %v4147 = vsub.f32 %v4145, %v4146
    %v4148 = vand.u32 %v4147, 4294901760
    %4149 = vmatpush.msra.mxu0 %v4148
    %v4150 = vand.u32 %v266, 4294901760
    %v4151 = vsub.f32 %v266, %v4150
    %v4152 = vand.u32 %v4151, 4294901760
    %v4153 = vsub.f32 %v4151, %v4152
    %v4154 = vand.u32 %v4153, 4294901760
    %4155 = vmatpush.msra.mxu0 %v4154
    %v4156 = vand.u32 %v265, 4294901760
    %v4157 = vsub.f32 %v265, %v4156
    %v4158 = vand.u32 %v4157, 4294901760
    %v4159 = vsub.f32 %v4157, %v4158
    %v4160 = vand.u32 %v4159, 4294901760
    %4161 = vmatpush.msra.mxu0 %v4160
    %v4162 = vand.u32 %v264, 4294901760
    %v4163 = vsub.f32 %v264, %v4162
    %v4164 = vand.u32 %v4163, 4294901760
    %v4165 = vsub.f32 %v4163, %v4164
    %v4166 = vand.u32 %v4165, 4294901760
    %4167 = vmatpush.msra.mxu0 %v4166
    %v4168 = vand.u32 %v263, 4294901760
    %v4169 = vsub.f32 %v263, %v4168
    %v4170 = vand.u32 %v4169, 4294901760
    %v4171 = vsub.f32 %v4169, %v4170
    %v4172 = vand.u32 %v4171, 4294901760
    %4173 = vmatpush.msra.mxu0 %v4172
    %v4174 = vand.u32 %v262, 4294901760
    %v4175 = vsub.f32 %v262, %v4174
    %v4176 = vand.u32 %v4175, 4294901760
    %v4177 = vsub.f32 %v4175, %v4176
    %v4178 = vand.u32 %v4177, 4294901760
    %4179 = vmatpush.msra.mxu0 %v4178
    %v4180 = vand.u32 %v261, 4294901760
    %v4181 = vsub.f32 %v261, %v4180
    %v4182 = vand.u32 %v4181, 4294901760
    %v4183 = vsub.f32 %v4181, %v4182
    %v4184 = vand.u32 %v4183, 4294901760
    %4185 = vmatpush.msra.mxu0 %v4184
    %v4186 = vand.u32 %v260, 4294901760
    %v4187 = vsub.f32 %v260, %v4186
    %v4188 = vand.u32 %v4187, 4294901760
    %v4189 = vsub.f32 %v4187, %v4188
    %v4190 = vand.u32 %v4189, 4294901760
    %4191 = vmatpush.msra.mxu0 %v4190
    %v4192 = vand.u32 %v259, 4294901760
    %v4193 = vsub.f32 %v259, %v4192
    %v4194 = vand.u32 %v4193, 4294901760
    %v4195 = vsub.f32 %v4193, %v4194
    %v4196 = vand.u32 %v4195, 4294901760
    %4197 = vmatpush.msra.mxu0 %v4196
    %v4198 = vand.u32 %v258, 4294901760
    %v4199 = vsub.f32 %v258, %v4198
    %v4200 = vand.u32 %v4199, 4294901760
    %v4201 = vsub.f32 %v4199, %v4200
    %v4202 = vand.u32 %v4201, 4294901760
    %4203 = vmatpush.msra.mxu0 %v4202
    %v4204 = vand.u32 %v257, 4294901760
    %v4205 = vsub.f32 %v257, %v4204
    %v4206 = vand.u32 %v4205, 4294901760
    %v4207 = vsub.f32 %v4205, %v4206
    %v4208 = vand.u32 %v4207, 4294901760
    %4209 = vmatpush.msra.mxu0 %v4208
    %v4210 = vand.u32 %v256, 4294901760
    %v4211 = vsub.f32 %v256, %v4210
    %v4212 = vand.u32 %v4211, 4294901760
    %v4213 = vsub.f32 %v4211, %v4212
    %v4214 = vand.u32 %v4213, 4294901760
    %4215 = vmatpush.msra.mxu0 %v4214
    %v4216 = vand.u32 %v255, 4294901760
    %v4217 = vsub.f32 %v255, %v4216
    %v4218 = vand.u32 %v4217, 4294901760
    %v4219 = vsub.f32 %v4217, %v4218
    %v4220 = vand.u32 %v4219, 4294901760
    %4221 = vmatpush.msra.mxu0 %v4220
    %v4222 = vand.u32 %v621, 4294901760
    %4223 = vmatmul.f32.gmra.mxu0 %v4222
    %v4224 = vpop.f32.mrf.mxu0
    %v4225 = vadd.f32 %v4124, %v4224
    %4226 = vdwg.mxu0
    %v4227 = vand.u32 %v270, 4294901760
    %v4228 = vsub.f32 %v270, %v4227
    %4229 = vmatpush.msra.mxu0 %v4228
    %v4230 = vand.u32 %v269, 4294901760
    %v4231 = vsub.f32 %v269, %v4230
    %4232 = vmatpush.msra.mxu0 %v4231
    %v4233 = vand.u32 %v268, 4294901760
    %v4234 = vsub.f32 %v268, %v4233
    %4235 = vmatpush.msra.mxu0 %v4234
    %v4236 = vand.u32 %v267, 4294901760
    %v4237 = vsub.f32 %v267, %v4236
    %4238 = vmatpush.msra.mxu0 %v4237
    %v4239 = vand.u32 %v266, 4294901760
    %v4240 = vsub.f32 %v266, %v4239
    %4241 = vmatpush.msra.mxu0 %v4240
    %v4242 = vand.u32 %v265, 4294901760
    %v4243 = vsub.f32 %v265, %v4242
    %4244 = vmatpush.msra.mxu0 %v4243
    %v4245 = vand.u32 %v264, 4294901760
    %v4246 = vsub.f32 %v264, %v4245
    %4247 = vmatpush.msra.mxu0 %v4246
    %v4248 = vand.u32 %v263, 4294901760
    %v4249 = vsub.f32 %v263, %v4248
    %4250 = vmatpush.msra.mxu0 %v4249
    %v4251 = vand.u32 %v262, 4294901760
    %v4252 = vsub.f32 %v262, %v4251
    %4253 = vmatpush.msra.mxu0 %v4252
    %v4254 = vand.u32 %v261, 4294901760
    %v4255 = vsub.f32 %v261, %v4254
    %4256 = vmatpush.msra.mxu0 %v4255
    %v4257 = vand.u32 %v260, 4294901760
    %v4258 = vsub.f32 %v260, %v4257
    %4259 = vmatpush.msra.mxu0 %v4258
    %v4260 = vand.u32 %v259, 4294901760
    %v4261 = vsub.f32 %v259, %v4260
    %4262 = vmatpush.msra.mxu0 %v4261
    %v4263 = vand.u32 %v258, 4294901760
    %v4264 = vsub.f32 %v258, %v4263
    %4265 = vmatpush.msra.mxu0 %v4264
    %v4266 = vand.u32 %v257, 4294901760
    %v4267 = vsub.f32 %v257, %v4266
    %4268 = vmatpush.msra.mxu0 %v4267
    %v4269 = vand.u32 %v256, 4294901760
    %v4270 = vsub.f32 %v256, %v4269
    %4271 = vmatpush.msra.mxu0 %v4270
    %v4272 = vand.u32 %v255, 4294901760
    %v4273 = vsub.f32 %v255, %v4272
    %4274 = vmatpush.msra.mxu0 %v4273
    %v4275 = vand.u32 %v621, 4294901760
    %v4276 = vsub.f32 %v621, %v4275
    %4277 = vmatmul.f32.gmra.mxu0 %v4276
    %v4278 = vpop.f32.mrf.mxu0
    %v4279 = vadd.f32 %v4225, %v4278
    %4280 = vdwg.mxu0
    %v4281 = vand.u32 %v270, 4294901760
    %4282 = vmatpush.msra.mxu0 %v4281
    %v4283 = vand.u32 %v269, 4294901760
    %4284 = vmatpush.msra.mxu0 %v4283
    %v4285 = vand.u32 %v268, 4294901760
    %4286 = vmatpush.msra.mxu0 %v4285
    %v4287 = vand.u32 %v267, 4294901760
    %4288 = vmatpush.msra.mxu0 %v4287
    %v4289 = vand.u32 %v266, 4294901760
    %4290 = vmatpush.msra.mxu0 %v4289
    %v4291 = vand.u32 %v265, 4294901760
    %4292 = vmatpush.msra.mxu0 %v4291
    %v4293 = vand.u32 %v264, 4294901760
    %4294 = vmatpush.msra.mxu0 %v4293
    %v4295 = vand.u32 %v263, 4294901760
    %4296 = vmatpush.msra.mxu0 %v4295
    %v4297 = vand.u32 %v262, 4294901760
    %4298 = vmatpush.msra.mxu0 %v4297
    %v4299 = vand.u32 %v261, 4294901760
    %4300 = vmatpush.msra.mxu0 %v4299
    %v4301 = vand.u32 %v260, 4294901760
    %4302 = vmatpush.msra.mxu0 %v4301
    %v4303 = vand.u32 %v259, 4294901760
    %4304 = vmatpush.msra.mxu0 %v4303
    %v4305 = vand.u32 %v258, 4294901760
    %4306 = vmatpush.msra.mxu0 %v4305
    %v4307 = vand.u32 %v257, 4294901760
    %4308 = vmatpush.msra.mxu0 %v4307
    %v4309 = vand.u32 %v256, 4294901760
    %4310 = vmatpush.msra.mxu0 %v4309
    %v4311 = vand.u32 %v255, 4294901760
    %4312 = vmatpush.msra.mxu0 %v4311
    %v4313 = vand.u32 %v621, 4294901760
    %v4314 = vsub.f32 %v621, %v4313
    %v4315 = vand.u32 %v4314, 4294901760
    %4316 = vmatmul.f32.gmra.mxu0 %v4315
    %v4317 = vpop.f32.mrf.mxu0
    %v4318 = vadd.f32 %v4279, %v4317
    %4319 = vdwg.mxu0
    %v4320 = vand.u32 %v270, 4294901760
    %v4321 = vsub.f32 %v270, %v4320
    %v4322 = vand.u32 %v4321, 4294901760
    %4323 = vmatpush.msra.mxu0 %v4322
    %v4324 = vand.u32 %v269, 4294901760
    %v4325 = vsub.f32 %v269, %v4324
    %v4326 = vand.u32 %v4325, 4294901760
    %4327 = vmatpush.msra.mxu0 %v4326
    %v4328 = vand.u32 %v268, 4294901760
    %v4329 = vsub.f32 %v268, %v4328
    %v4330 = vand.u32 %v4329, 4294901760
    %4331 = vmatpush.msra.mxu0 %v4330
    %v4332 = vand.u32 %v267, 4294901760
    %v4333 = vsub.f32 %v267, %v4332
    %v4334 = vand.u32 %v4333, 4294901760
    %4335 = vmatpush.msra.mxu0 %v4334
    %v4336 = vand.u32 %v266, 4294901760
    %v4337 = vsub.f32 %v266, %v4336
    %v4338 = vand.u32 %v4337, 4294901760
    %4339 = vmatpush.msra.mxu0 %v4338
    %v4340 = vand.u32 %v265, 4294901760
    %v4341 = vsub.f32 %v265, %v4340
    %v4342 = vand.u32 %v4341, 4294901760
    %4343 = vmatpush.msra.mxu0 %v4342
    %v4344 = vand.u32 %v264, 4294901760
    %v4345 = vsub.f32 %v264, %v4344
    %v4346 = vand.u32 %v4345, 4294901760
    %4347 = vmatpush.msra.mxu0 %v4346
    %v4348 = vand.u32 %v263, 4294901760
    %v4349 = vsub.f32 %v263, %v4348
    %v4350 = vand.u32 %v4349, 4294901760
    %4351 = vmatpush.msra.mxu0 %v4350
    %v4352 = vand.u32 %v262, 4294901760
    %v4353 = vsub.f32 %v262, %v4352
    %v4354 = vand.u32 %v4353, 4294901760
    %4355 = vmatpush.msra.mxu0 %v4354
    %v4356 = vand.u32 %v261, 4294901760
    %v4357 = vsub.f32 %v261, %v4356
    %v4358 = vand.u32 %v4357, 4294901760
    %4359 = vmatpush.msra.mxu0 %v4358
    %v4360 = vand.u32 %v260, 4294901760
    %v4361 = vsub.f32 %v260, %v4360
    %v4362 = vand.u32 %v4361, 4294901760
    %4363 = vmatpush.msra.mxu0 %v4362
    %v4364 = vand.u32 %v259, 4294901760
    %v4365 = vsub.f32 %v259, %v4364
    %v4366 = vand.u32 %v4365, 4294901760
    %4367 = vmatpush.msra.mxu0 %v4366
    %v4368 = vand.u32 %v258, 4294901760
    %v4369 = vsub.f32 %v258, %v4368
    %v4370 = vand.u32 %v4369, 4294901760
    %4371 = vmatpush.msra.mxu0 %v4370
    %v4372 = vand.u32 %v257, 4294901760
    %v4373 = vsub.f32 %v257, %v4372
    %v4374 = vand.u32 %v4373, 4294901760
    %4375 = vmatpush.msra.mxu0 %v4374
    %v4376 = vand.u32 %v256, 4294901760
    %v4377 = vsub.f32 %v256, %v4376
    %v4378 = vand.u32 %v4377, 4294901760
    %4379 = vmatpush.msra.mxu0 %v4378
    %v4380 = vand.u32 %v255, 4294901760
    %v4381 = vsub.f32 %v255, %v4380
    %v4382 = vand.u32 %v4381, 4294901760
    %4383 = vmatpush.msra.mxu0 %v4382
    %v4384 = vand.u32 %v621, 4294901760
    %4385 = vmatmul.f32.gmra.mxu0 %v4384
    %v4386 = vpop.f32.mrf.mxu0
    %v4387 = vadd.f32 %v4318, %v4386
    %4388 = vdwg.mxu0
    %v4389 = vand.u32 %v270, 4294901760
    %4390 = vmatpush.msra.mxu0 %v4389
    %v4391 = vand.u32 %v269, 4294901760
    %4392 = vmatpush.msra.mxu0 %v4391
    %v4393 = vand.u32 %v268, 4294901760
    %4394 = vmatpush.msra.mxu0 %v4393
    %v4395 = vand.u32 %v267, 4294901760
    %4396 = vmatpush.msra.mxu0 %v4395
    %v4397 = vand.u32 %v266, 4294901760
    %4398 = vmatpush.msra.mxu0 %v4397
    %v4399 = vand.u32 %v265, 4294901760
    %4400 = vmatpush.msra.mxu0 %v4399
    %v4401 = vand.u32 %v264, 4294901760
    %4402 = vmatpush.msra.mxu0 %v4401
    %v4403 = vand.u32 %v263, 4294901760
    %4404 = vmatpush.msra.mxu0 %v4403
    %v4405 = vand.u32 %v262, 4294901760
    %4406 = vmatpush.msra.mxu0 %v4405
    %v4407 = vand.u32 %v261, 4294901760
    %4408 = vmatpush.msra.mxu0 %v4407
    %v4409 = vand.u32 %v260, 4294901760
    %4410 = vmatpush.msra.mxu0 %v4409
    %v4411 = vand.u32 %v259, 4294901760
    %4412 = vmatpush.msra.mxu0 %v4411
    %v4413 = vand.u32 %v258, 4294901760
    %4414 = vmatpush.msra.mxu0 %v4413
    %v4415 = vand.u32 %v257, 4294901760
    %4416 = vmatpush.msra.mxu0 %v4415
    %v4417 = vand.u32 %v256, 4294901760
    %4418 = vmatpush.msra.mxu0 %v4417
    %v4419 = vand.u32 %v255, 4294901760
    %4420 = vmatpush.msra.mxu0 %v4419
    %v4421 = vand.u32 %v621, 4294901760
    %4422 = vmatmul.f32.gmra.mxu0 %v4421
    %v4423 = vpop.f32.mrf.mxu0
    %v4424 = vadd.f32 %v4387, %v4423
    %4425 = vdwg.mxu0
    %v4426 = vand.u32 %v286, 4294901760
    %4427 = vmatpush.msra.mxu0 %v4426
    %v4428 = vand.u32 %v285, 4294901760
    %4429 = vmatpush.msra.mxu0 %v4428
    %v4430 = vand.u32 %v284, 4294901760
    %4431 = vmatpush.msra.mxu0 %v4430
    %v4432 = vand.u32 %v283, 4294901760
    %4433 = vmatpush.msra.mxu0 %v4432
    %v4434 = vand.u32 %v282, 4294901760
    %4435 = vmatpush.msra.mxu0 %v4434
    %v4436 = vand.u32 %v281, 4294901760
    %4437 = vmatpush.msra.mxu0 %v4436
    %v4438 = vand.u32 %v280, 4294901760
    %4439 = vmatpush.msra.mxu0 %v4438
    %v4440 = vand.u32 %v279, 4294901760
    %4441 = vmatpush.msra.mxu0 %v4440
    %v4442 = vand.u32 %v278, 4294901760
    %4443 = vmatpush.msra.mxu0 %v4442
    %v4444 = vand.u32 %v277, 4294901760
    %4445 = vmatpush.msra.mxu0 %v4444
    %v4446 = vand.u32 %v276, 4294901760
    %4447 = vmatpush.msra.mxu0 %v4446
    %v4448 = vand.u32 %v275, 4294901760
    %4449 = vmatpush.msra.mxu0 %v4448
    %v4450 = vand.u32 %v274, 4294901760
    %4451 = vmatpush.msra.mxu0 %v4450
    %v4452 = vand.u32 %v273, 4294901760
    %4453 = vmatpush.msra.mxu0 %v4452
    %v4454 = vand.u32 %v272, 4294901760
    %4455 = vmatpush.msra.mxu0 %v4454
    %v4456 = vand.u32 %v271, 4294901760
    %4457 = vmatpush.msra.mxu0 %v4456
    %v4458 = vand.u32 %v622, 4294901760
    %v4459 = vsub.f32 %v622, %v4458
    %v4460 = vand.u32 %v4459, 4294901760
    %v4461 = vsub.f32 %v4459, %v4460
    %v4462 = vand.u32 %v4461, 4294901760
    %4463 = vmatmul.f32.gmra.mxu0 %v4462
    %v4464 = vpop.f32.mrf.mxu0
    %v4465 = vadd.f32 %v4424, %v4464
    %4466 = vdwg.mxu0
    %v4467 = vand.u32 %v286, 4294901760
    %v4468 = vsub.f32 %v286, %v4467
    %v4469 = vand.u32 %v4468, 4294901760
    %v4470 = vsub.f32 %v4468, %v4469
    %v4471 = vand.u32 %v4470, 4294901760
    %4472 = vmatpush.msra.mxu0 %v4471
    %v4473 = vand.u32 %v285, 4294901760
    %v4474 = vsub.f32 %v285, %v4473
    %v4475 = vand.u32 %v4474, 4294901760
    %v4476 = vsub.f32 %v4474, %v4475
    %v4477 = vand.u32 %v4476, 4294901760
    %4478 = vmatpush.msra.mxu0 %v4477
    %v4479 = vand.u32 %v284, 4294901760
    %v4480 = vsub.f32 %v284, %v4479
    %v4481 = vand.u32 %v4480, 4294901760
    %v4482 = vsub.f32 %v4480, %v4481
    %v4483 = vand.u32 %v4482, 4294901760
    %4484 = vmatpush.msra.mxu0 %v4483
    %v4485 = vand.u32 %v283, 4294901760
    %v4486 = vsub.f32 %v283, %v4485
    %v4487 = vand.u32 %v4486, 4294901760
    %v4488 = vsub.f32 %v4486, %v4487
    %v4489 = vand.u32 %v4488, 4294901760
    %4490 = vmatpush.msra.mxu0 %v4489
    %v4491 = vand.u32 %v282, 4294901760
    %v4492 = vsub.f32 %v282, %v4491
    %v4493 = vand.u32 %v4492, 4294901760
    %v4494 = vsub.f32 %v4492, %v4493
    %v4495 = vand.u32 %v4494, 4294901760
    %4496 = vmatpush.msra.mxu0 %v4495
    %v4497 = vand.u32 %v281, 4294901760
    %v4498 = vsub.f32 %v281, %v4497
    %v4499 = vand.u32 %v4498, 4294901760
    %v4500 = vsub.f32 %v4498, %v4499
    %v4501 = vand.u32 %v4500, 4294901760
    %4502 = vmatpush.msra.mxu0 %v4501
    %v4503 = vand.u32 %v280, 4294901760
    %v4504 = vsub.f32 %v280, %v4503
    %v4505 = vand.u32 %v4504, 4294901760
    %v4506 = vsub.f32 %v4504, %v4505
    %v4507 = vand.u32 %v4506, 4294901760
    %4508 = vmatpush.msra.mxu0 %v4507
    %v4509 = vand.u32 %v279, 4294901760
    %v4510 = vsub.f32 %v279, %v4509
    %v4511 = vand.u32 %v4510, 4294901760
    %v4512 = vsub.f32 %v4510, %v4511
    %v4513 = vand.u32 %v4512, 4294901760
    %4514 = vmatpush.msra.mxu0 %v4513
    %v4515 = vand.u32 %v278, 4294901760
    %v4516 = vsub.f32 %v278, %v4515
    %v4517 = vand.u32 %v4516, 4294901760
    %v4518 = vsub.f32 %v4516, %v4517
    %v4519 = vand.u32 %v4518, 4294901760
    %4520 = vmatpush.msra.mxu0 %v4519
    %v4521 = vand.u32 %v277, 4294901760
    %v4522 = vsub.f32 %v277, %v4521
    %v4523 = vand.u32 %v4522, 4294901760
    %v4524 = vsub.f32 %v4522, %v4523
    %v4525 = vand.u32 %v4524, 4294901760
    %4526 = vmatpush.msra.mxu0 %v4525
    %v4527 = vand.u32 %v276, 4294901760
    %v4528 = vsub.f32 %v276, %v4527
    %v4529 = vand.u32 %v4528, 4294901760
    %v4530 = vsub.f32 %v4528, %v4529
    %v4531 = vand.u32 %v4530, 4294901760
    %4532 = vmatpush.msra.mxu0 %v4531
    %v4533 = vand.u32 %v275, 4294901760
    %v4534 = vsub.f32 %v275, %v4533
    %v4535 = vand.u32 %v4534, 4294901760
    %v4536 = vsub.f32 %v4534, %v4535
    %v4537 = vand.u32 %v4536, 4294901760
    %4538 = vmatpush.msra.mxu0 %v4537
    %v4539 = vand.u32 %v274, 4294901760
    %v4540 = vsub.f32 %v274, %v4539
    %v4541 = vand.u32 %v4540, 4294901760
    %v4542 = vsub.f32 %v4540, %v4541
    %v4543 = vand.u32 %v4542, 4294901760
    %4544 = vmatpush.msra.mxu0 %v4543
    %v4545 = vand.u32 %v273, 4294901760
    %v4546 = vsub.f32 %v273, %v4545
    %v4547 = vand.u32 %v4546, 4294901760
    %v4548 = vsub.f32 %v4546, %v4547
    %v4549 = vand.u32 %v4548, 4294901760
    %4550 = vmatpush.msra.mxu0 %v4549
    %v4551 = vand.u32 %v272, 4294901760
    %v4552 = vsub.f32 %v272, %v4551
    %v4553 = vand.u32 %v4552, 4294901760
    %v4554 = vsub.f32 %v4552, %v4553
    %v4555 = vand.u32 %v4554, 4294901760
    %4556 = vmatpush.msra.mxu0 %v4555
    %v4557 = vand.u32 %v271, 4294901760
    %v4558 = vsub.f32 %v271, %v4557
    %v4559 = vand.u32 %v4558, 4294901760
    %v4560 = vsub.f32 %v4558, %v4559
    %v4561 = vand.u32 %v4560, 4294901760
    %4562 = vmatpush.msra.mxu0 %v4561
    %v4563 = vand.u32 %v622, 4294901760
    %4564 = vmatmul.f32.gmra.mxu0 %v4563
    %v4565 = vpop.f32.mrf.mxu0
    %v4566 = vadd.f32 %v4465, %v4565
    %4567 = vdwg.mxu0
    %v4568 = vand.u32 %v286, 4294901760
    %v4569 = vsub.f32 %v286, %v4568
    %4570 = vmatpush.msra.mxu0 %v4569
    %v4571 = vand.u32 %v285, 4294901760
    %v4572 = vsub.f32 %v285, %v4571
    %4573 = vmatpush.msra.mxu0 %v4572
    %v4574 = vand.u32 %v284, 4294901760
    %v4575 = vsub.f32 %v284, %v4574
    %4576 = vmatpush.msra.mxu0 %v4575
    %v4577 = vand.u32 %v283, 4294901760
    %v4578 = vsub.f32 %v283, %v4577
    %4579 = vmatpush.msra.mxu0 %v4578
    %v4580 = vand.u32 %v282, 4294901760
    %v4581 = vsub.f32 %v282, %v4580
    %4582 = vmatpush.msra.mxu0 %v4581
    %v4583 = vand.u32 %v281, 4294901760
    %v4584 = vsub.f32 %v281, %v4583
    %4585 = vmatpush.msra.mxu0 %v4584
    %v4586 = vand.u32 %v280, 4294901760
    %v4587 = vsub.f32 %v280, %v4586
    %4588 = vmatpush.msra.mxu0 %v4587
    %v4589 = vand.u32 %v279, 4294901760
    %v4590 = vsub.f32 %v279, %v4589
    %4591 = vmatpush.msra.mxu0 %v4590
    %v4592 = vand.u32 %v278, 4294901760
    %v4593 = vsub.f32 %v278, %v4592
    %4594 = vmatpush.msra.mxu0 %v4593
    %v4595 = vand.u32 %v277, 4294901760
    %v4596 = vsub.f32 %v277, %v4595
    %4597 = vmatpush.msra.mxu0 %v4596
    %v4598 = vand.u32 %v276, 4294901760
    %v4599 = vsub.f32 %v276, %v4598
    %4600 = vmatpush.msra.mxu0 %v4599
    %v4601 = vand.u32 %v275, 4294901760
    %v4602 = vsub.f32 %v275, %v4601
    %4603 = vmatpush.msra.mxu0 %v4602
    %v4604 = vand.u32 %v274, 4294901760
    %v4605 = vsub.f32 %v274, %v4604
    %4606 = vmatpush.msra.mxu0 %v4605
    %v4607 = vand.u32 %v273, 4294901760
    %v4608 = vsub.f32 %v273, %v4607
    %4609 = vmatpush.msra.mxu0 %v4608
    %v4610 = vand.u32 %v272, 4294901760
    %v4611 = vsub.f32 %v272, %v4610
    %4612 = vmatpush.msra.mxu0 %v4611
    %v4613 = vand.u32 %v271, 4294901760
    %v4614 = vsub.f32 %v271, %v4613
    %4615 = vmatpush.msra.mxu0 %v4614
    %v4616 = vand.u32 %v622, 4294901760
    %v4617 = vsub.f32 %v622, %v4616
    %4618 = vmatmul.f32.gmra.mxu0 %v4617
    %v4619 = vpop.f32.mrf.mxu0
    %v4620 = vadd.f32 %v4566, %v4619
    %4621 = vdwg.mxu0
    %v4622 = vand.u32 %v286, 4294901760
    %4623 = vmatpush.msra.mxu0 %v4622
    %v4624 = vand.u32 %v285, 4294901760
    %4625 = vmatpush.msra.mxu0 %v4624
    %v4626 = vand.u32 %v284, 4294901760
    %4627 = vmatpush.msra.mxu0 %v4626
    %v4628 = vand.u32 %v283, 4294901760
    %4629 = vmatpush.msra.mxu0 %v4628
    %v4630 = vand.u32 %v282, 4294901760
    %4631 = vmatpush.msra.mxu0 %v4630
    %v4632 = vand.u32 %v281, 4294901760
    %4633 = vmatpush.msra.mxu0 %v4632
    %v4634 = vand.u32 %v280, 4294901760
    %4635 = vmatpush.msra.mxu0 %v4634
    %v4636 = vand.u32 %v279, 4294901760
    %4637 = vmatpush.msra.mxu0 %v4636
    %v4638 = vand.u32 %v278, 4294901760
    %4639 = vmatpush.msra.mxu0 %v4638
    %v4640 = vand.u32 %v277, 4294901760
    %4641 = vmatpush.msra.mxu0 %v4640
    %v4642 = vand.u32 %v276, 4294901760
    %4643 = vmatpush.msra.mxu0 %v4642
    %v4644 = vand.u32 %v275, 4294901760
    %4645 = vmatpush.msra.mxu0 %v4644
    %v4646 = vand.u32 %v274, 4294901760
    %4647 = vmatpush.msra.mxu0 %v4646
    %v4648 = vand.u32 %v273, 4294901760
    %4649 = vmatpush.msra.mxu0 %v4648
    %v4650 = vand.u32 %v272, 4294901760
    %4651 = vmatpush.msra.mxu0 %v4650
    %v4652 = vand.u32 %v271, 4294901760
    %4653 = vmatpush.msra.mxu0 %v4652
    %v4654 = vand.u32 %v622, 4294901760
    %v4655 = vsub.f32 %v622, %v4654
    %v4656 = vand.u32 %v4655, 4294901760
    %4657 = vmatmul.f32.gmra.mxu0 %v4656
    %v4658 = vpop.f32.mrf.mxu0
    %v4659 = vadd.f32 %v4620, %v4658
    %4660 = vdwg.mxu0
    %v4661 = vand.u32 %v286, 4294901760
    %v4662 = vsub.f32 %v286, %v4661
    %v4663 = vand.u32 %v4662, 4294901760
    %4664 = vmatpush.msra.mxu0 %v4663
    %v4665 = vand.u32 %v285, 4294901760
    %v4666 = vsub.f32 %v285, %v4665
    %v4667 = vand.u32 %v4666, 4294901760
    %4668 = vmatpush.msra.mxu0 %v4667
    %v4669 = vand.u32 %v284, 4294901760
    %v4670 = vsub.f32 %v284, %v4669
    %v4671 = vand.u32 %v4670, 4294901760
    %4672 = vmatpush.msra.mxu0 %v4671
    %v4673 = vand.u32 %v283, 4294901760
    %v4674 = vsub.f32 %v283, %v4673
    %v4675 = vand.u32 %v4674, 4294901760
    %4676 = vmatpush.msra.mxu0 %v4675
    %v4677 = vand.u32 %v282, 4294901760
    %v4678 = vsub.f32 %v282, %v4677
    %v4679 = vand.u32 %v4678, 4294901760
    %4680 = vmatpush.msra.mxu0 %v4679
    %v4681 = vand.u32 %v281, 4294901760
    %v4682 = vsub.f32 %v281, %v4681
    %v4683 = vand.u32 %v4682, 4294901760
    %4684 = vmatpush.msra.mxu0 %v4683
    %v4685 = vand.u32 %v280, 4294901760
    %v4686 = vsub.f32 %v280, %v4685
    %v4687 = vand.u32 %v4686, 4294901760
    %4688 = vmatpush.msra.mxu0 %v4687
    %v4689 = vand.u32 %v279, 4294901760
    %v4690 = vsub.f32 %v279, %v4689
    %v4691 = vand.u32 %v4690, 4294901760
    %4692 = vmatpush.msra.mxu0 %v4691
    %v4693 = vand.u32 %v278, 4294901760
    %v4694 = vsub.f32 %v278, %v4693
    %v4695 = vand.u32 %v4694, 4294901760
    %4696 = vmatpush.msra.mxu0 %v4695
    %v4697 = vand.u32 %v277, 4294901760
    %v4698 = vsub.f32 %v277, %v4697
    %v4699 = vand.u32 %v4698, 4294901760
    %4700 = vmatpush.msra.mxu0 %v4699
    %v4701 = vand.u32 %v276, 4294901760
    %v4702 = vsub.f32 %v276, %v4701
    %v4703 = vand.u32 %v4702, 4294901760
    %4704 = vmatpush.msra.mxu0 %v4703
    %v4705 = vand.u32 %v275, 4294901760
    %v4706 = vsub.f32 %v275, %v4705
    %v4707 = vand.u32 %v4706, 4294901760
    %4708 = vmatpush.msra.mxu0 %v4707
    %v4709 = vand.u32 %v274, 4294901760
    %v4710 = vsub.f32 %v274, %v4709
    %v4711 = vand.u32 %v4710, 4294901760
    %4712 = vmatpush.msra.mxu0 %v4711
    %v4713 = vand.u32 %v273, 4294901760
    %v4714 = vsub.f32 %v273, %v4713
    %v4715 = vand.u32 %v4714, 4294901760
    %4716 = vmatpush.msra.mxu0 %v4715
    %v4717 = vand.u32 %v272, 4294901760
    %v4718 = vsub.f32 %v272, %v4717
    %v4719 = vand.u32 %v4718, 4294901760
    %4720 = vmatpush.msra.mxu0 %v4719
    %v4721 = vand.u32 %v271, 4294901760
    %v4722 = vsub.f32 %v271, %v4721
    %v4723 = vand.u32 %v4722, 4294901760
    %4724 = vmatpush.msra.mxu0 %v4723
    %v4725 = vand.u32 %v622, 4294901760
    %4726 = vmatmul.f32.gmra.mxu0 %v4725
    %v4727 = vpop.f32.mrf.mxu0
    %v4728 = vadd.f32 %v4659, %v4727
    %4729 = vdwg.mxu0
    %v4730 = vand.u32 %v286, 4294901760
    %4731 = vmatpush.msra.mxu0 %v4730
    %v4732 = vand.u32 %v285, 4294901760
    %4733 = vmatpush.msra.mxu0 %v4732
    %v4734 = vand.u32 %v284, 4294901760
    %4735 = vmatpush.msra.mxu0 %v4734
    %v4736 = vand.u32 %v283, 4294901760
    %4737 = vmatpush.msra.mxu0 %v4736
    %v4738 = vand.u32 %v282, 4294901760
    %4739 = vmatpush.msra.mxu0 %v4738
    %v4740 = vand.u32 %v281, 4294901760
    %4741 = vmatpush.msra.mxu0 %v4740
    %v4742 = vand.u32 %v280, 4294901760
    %4743 = vmatpush.msra.mxu0 %v4742
    %v4744 = vand.u32 %v279, 4294901760
    %4745 = vmatpush.msra.mxu0 %v4744
    %v4746 = vand.u32 %v278, 4294901760
    %4747 = vmatpush.msra.mxu0 %v4746
    %v4748 = vand.u32 %v277, 4294901760
    %4749 = vmatpush.msra.mxu0 %v4748
    %v4750 = vand.u32 %v276, 4294901760
    %4751 = vmatpush.msra.mxu0 %v4750
    %v4752 = vand.u32 %v275, 4294901760
    %4753 = vmatpush.msra.mxu0 %v4752
    %v4754 = vand.u32 %v274, 4294901760
    %4755 = vmatpush.msra.mxu0 %v4754
    %v4756 = vand.u32 %v273, 4294901760
    %4757 = vmatpush.msra.mxu0 %v4756
    %v4758 = vand.u32 %v272, 4294901760
    %4759 = vmatpush.msra.mxu0 %v4758
    %v4760 = vand.u32 %v271, 4294901760
    %4761 = vmatpush.msra.mxu0 %v4760
    %v4762 = vand.u32 %v622, 4294901760
    %4763 = vmatmul.f32.gmra.mxu0 %v4762
    %v4764 = vpop.f32.mrf.mxu0
    %v4765 = vadd.f32 %v4728, %v4764
    %4766 = vdwg.mxu0
    %v4767 = vand.u32 %v302, 4294901760
    %4768 = vmatpush.msra.mxu0 %v4767
    %v4769 = vand.u32 %v301, 4294901760
    %4770 = vmatpush.msra.mxu0 %v4769
    %v4771 = vand.u32 %v300, 4294901760
    %4772 = vmatpush.msra.mxu0 %v4771
    %v4773 = vand.u32 %v299, 4294901760
    %4774 = vmatpush.msra.mxu0 %v4773
    %v4775 = vand.u32 %v298, 4294901760
    %4776 = vmatpush.msra.mxu0 %v4775
    %v4777 = vand.u32 %v297, 4294901760
    %4778 = vmatpush.msra.mxu0 %v4777
    %v4779 = vand.u32 %v296, 4294901760
    %4780 = vmatpush.msra.mxu0 %v4779
    %v4781 = vand.u32 %v295, 4294901760
    %4782 = vmatpush.msra.mxu0 %v4781
    %v4783 = vand.u32 %v294, 4294901760
    %4784 = vmatpush.msra.mxu0 %v4783
    %v4785 = vand.u32 %v293, 4294901760
    %4786 = vmatpush.msra.mxu0 %v4785
    %v4787 = vand.u32 %v292, 4294901760
    %4788 = vmatpush.msra.mxu0 %v4787
    %v4789 = vand.u32 %v291, 4294901760
    %4790 = vmatpush.msra.mxu0 %v4789
    %v4791 = vand.u32 %v290, 4294901760
    %4792 = vmatpush.msra.mxu0 %v4791
    %v4793 = vand.u32 %v289, 4294901760
    %4794 = vmatpush.msra.mxu0 %v4793
    %v4795 = vand.u32 %v288, 4294901760
    %4796 = vmatpush.msra.mxu0 %v4795
    %v4797 = vand.u32 %v287, 4294901760
    %4798 = vmatpush.msra.mxu0 %v4797
    %v4799 = vand.u32 %v623, 4294901760
    %v4800 = vsub.f32 %v623, %v4799
    %v4801 = vand.u32 %v4800, 4294901760
    %v4802 = vsub.f32 %v4800, %v4801
    %v4803 = vand.u32 %v4802, 4294901760
    %4804 = vmatmul.f32.gmra.mxu0 %v4803
    %v4805 = vpop.f32.mrf.mxu0
    %v4806 = vadd.f32 %v4765, %v4805
    %4807 = vdwg.mxu0
    %v4808 = vand.u32 %v302, 4294901760
    %v4809 = vsub.f32 %v302, %v4808
    %v4810 = vand.u32 %v4809, 4294901760
    %v4811 = vsub.f32 %v4809, %v4810
    %v4812 = vand.u32 %v4811, 4294901760
    %4813 = vmatpush.msra.mxu0 %v4812
    %v4814 = vand.u32 %v301, 4294901760
    %v4815 = vsub.f32 %v301, %v4814
    %v4816 = vand.u32 %v4815, 4294901760
    %v4817 = vsub.f32 %v4815, %v4816
    %v4818 = vand.u32 %v4817, 4294901760
    %4819 = vmatpush.msra.mxu0 %v4818
    %v4820 = vand.u32 %v300, 4294901760
    %v4821 = vsub.f32 %v300, %v4820
    %v4822 = vand.u32 %v4821, 4294901760
    %v4823 = vsub.f32 %v4821, %v4822
    %v4824 = vand.u32 %v4823, 4294901760
    %4825 = vmatpush.msra.mxu0 %v4824
    %v4826 = vand.u32 %v299, 4294901760
    %v4827 = vsub.f32 %v299, %v4826
    %v4828 = vand.u32 %v4827, 4294901760
    %v4829 = vsub.f32 %v4827, %v4828
    %v4830 = vand.u32 %v4829, 4294901760
    %4831 = vmatpush.msra.mxu0 %v4830
    %v4832 = vand.u32 %v298, 4294901760
    %v4833 = vsub.f32 %v298, %v4832
    %v4834 = vand.u32 %v4833, 4294901760
    %v4835 = vsub.f32 %v4833, %v4834
    %v4836 = vand.u32 %v4835, 4294901760
    %4837 = vmatpush.msra.mxu0 %v4836
    %v4838 = vand.u32 %v297, 4294901760
    %v4839 = vsub.f32 %v297, %v4838
    %v4840 = vand.u32 %v4839, 4294901760
    %v4841 = vsub.f32 %v4839, %v4840
    %v4842 = vand.u32 %v4841, 4294901760
    %4843 = vmatpush.msra.mxu0 %v4842
    %v4844 = vand.u32 %v296, 4294901760
    %v4845 = vsub.f32 %v296, %v4844
    %v4846 = vand.u32 %v4845, 4294901760
    %v4847 = vsub.f32 %v4845, %v4846
    %v4848 = vand.u32 %v4847, 4294901760
    %4849 = vmatpush.msra.mxu0 %v4848
    %v4850 = vand.u32 %v295, 4294901760
    %v4851 = vsub.f32 %v295, %v4850
    %v4852 = vand.u32 %v4851, 4294901760
    %v4853 = vsub.f32 %v4851, %v4852
    %v4854 = vand.u32 %v4853, 4294901760
    %4855 = vmatpush.msra.mxu0 %v4854
    %v4856 = vand.u32 %v294, 4294901760
    %v4857 = vsub.f32 %v294, %v4856
    %v4858 = vand.u32 %v4857, 4294901760
    %v4859 = vsub.f32 %v4857, %v4858
    %v4860 = vand.u32 %v4859, 4294901760
    %4861 = vmatpush.msra.mxu0 %v4860
    %v4862 = vand.u32 %v293, 4294901760
    %v4863 = vsub.f32 %v293, %v4862
    %v4864 = vand.u32 %v4863, 4294901760
    %v4865 = vsub.f32 %v4863, %v4864
    %v4866 = vand.u32 %v4865, 4294901760
    %4867 = vmatpush.msra.mxu0 %v4866
    %v4868 = vand.u32 %v292, 4294901760
    %v4869 = vsub.f32 %v292, %v4868
    %v4870 = vand.u32 %v4869, 4294901760
    %v4871 = vsub.f32 %v4869, %v4870
    %v4872 = vand.u32 %v4871, 4294901760
    %4873 = vmatpush.msra.mxu0 %v4872
    %v4874 = vand.u32 %v291, 4294901760
    %v4875 = vsub.f32 %v291, %v4874
    %v4876 = vand.u32 %v4875, 4294901760
    %v4877 = vsub.f32 %v4875, %v4876
    %v4878 = vand.u32 %v4877, 4294901760
    %4879 = vmatpush.msra.mxu0 %v4878
    %v4880 = vand.u32 %v290, 4294901760
    %v4881 = vsub.f32 %v290, %v4880
    %v4882 = vand.u32 %v4881, 4294901760
    %v4883 = vsub.f32 %v4881, %v4882
    %v4884 = vand.u32 %v4883, 4294901760
    %4885 = vmatpush.msra.mxu0 %v4884
    %v4886 = vand.u32 %v289, 4294901760
    %v4887 = vsub.f32 %v289, %v4886
    %v4888 = vand.u32 %v4887, 4294901760
    %v4889 = vsub.f32 %v4887, %v4888
    %v4890 = vand.u32 %v4889, 4294901760
    %4891 = vmatpush.msra.mxu0 %v4890
    %v4892 = vand.u32 %v288, 4294901760
    %v4893 = vsub.f32 %v288, %v4892
    %v4894 = vand.u32 %v4893, 4294901760
    %v4895 = vsub.f32 %v4893, %v4894
    %v4896 = vand.u32 %v4895, 4294901760
    %4897 = vmatpush.msra.mxu0 %v4896
    %v4898 = vand.u32 %v287, 4294901760
    %v4899 = vsub.f32 %v287, %v4898
    %v4900 = vand.u32 %v4899, 4294901760
    %v4901 = vsub.f32 %v4899, %v4900
    %v4902 = vand.u32 %v4901, 4294901760
    %4903 = vmatpush.msra.mxu0 %v4902
    %v4904 = vand.u32 %v623, 4294901760
    %4905 = vmatmul.f32.gmra.mxu0 %v4904
    %v4906 = vpop.f32.mrf.mxu0
    %v4907 = vadd.f32 %v4806, %v4906
    %4908 = vdwg.mxu0
    %v4909 = vand.u32 %v302, 4294901760
    %v4910 = vsub.f32 %v302, %v4909
    %4911 = vmatpush.msra.mxu0 %v4910
    %v4912 = vand.u32 %v301, 4294901760
    %v4913 = vsub.f32 %v301, %v4912
    %4914 = vmatpush.msra.mxu0 %v4913
    %v4915 = vand.u32 %v300, 4294901760
    %v4916 = vsub.f32 %v300, %v4915
    %4917 = vmatpush.msra.mxu0 %v4916
    %v4918 = vand.u32 %v299, 4294901760
    %v4919 = vsub.f32 %v299, %v4918
    %4920 = vmatpush.msra.mxu0 %v4919
    %v4921 = vand.u32 %v298, 4294901760
    %v4922 = vsub.f32 %v298, %v4921
    %4923 = vmatpush.msra.mxu0 %v4922
    %v4924 = vand.u32 %v297, 4294901760
    %v4925 = vsub.f32 %v297, %v4924
    %4926 = vmatpush.msra.mxu0 %v4925
    %v4927 = vand.u32 %v296, 4294901760
    %v4928 = vsub.f32 %v296, %v4927
    %4929 = vmatpush.msra.mxu0 %v4928
    %v4930 = vand.u32 %v295, 4294901760
    %v4931 = vsub.f32 %v295, %v4930
    %4932 = vmatpush.msra.mxu0 %v4931
    %v4933 = vand.u32 %v294, 4294901760
    %v4934 = vsub.f32 %v294, %v4933
    %4935 = vmatpush.msra.mxu0 %v4934
    %v4936 = vand.u32 %v293, 4294901760
    %v4937 = vsub.f32 %v293, %v4936
    %4938 = vmatpush.msra.mxu0 %v4937
    %v4939 = vand.u32 %v292, 4294901760
    %v4940 = vsub.f32 %v292, %v4939
    %4941 = vmatpush.msra.mxu0 %v4940
    %v4942 = vand.u32 %v291, 4294901760
    %v4943 = vsub.f32 %v291, %v4942
    %4944 = vmatpush.msra.mxu0 %v4943
    %v4945 = vand.u32 %v290, 4294901760
    %v4946 = vsub.f32 %v290, %v4945
    %4947 = vmatpush.msra.mxu0 %v4946
    %v4948 = vand.u32 %v289, 4294901760
    %v4949 = vsub.f32 %v289, %v4948
    %4950 = vmatpush.msra.mxu0 %v4949
    %v4951 = vand.u32 %v288, 4294901760
    %v4952 = vsub.f32 %v288, %v4951
    %4953 = vmatpush.msra.mxu0 %v4952
    %v4954 = vand.u32 %v287, 4294901760
    %v4955 = vsub.f32 %v287, %v4954
    %4956 = vmatpush.msra.mxu0 %v4955
    %v4957 = vand.u32 %v623, 4294901760
    %v4958 = vsub.f32 %v623, %v4957
    %4959 = vmatmul.f32.gmra.mxu0 %v4958
    %v4960 = vpop.f32.mrf.mxu0
    %v4961 = vadd.f32 %v4907, %v4960
    %4962 = vdwg.mxu0
    %v4963 = vand.u32 %v302, 4294901760
    %4964 = vmatpush.msra.mxu0 %v4963
    %v4965 = vand.u32 %v301, 4294901760
    %4966 = vmatpush.msra.mxu0 %v4965
    %v4967 = vand.u32 %v300, 4294901760
    %4968 = vmatpush.msra.mxu0 %v4967
    %v4969 = vand.u32 %v299, 4294901760
    %4970 = vmatpush.msra.mxu0 %v4969
    %v4971 = vand.u32 %v298, 4294901760
    %4972 = vmatpush.msra.mxu0 %v4971
    %v4973 = vand.u32 %v297, 4294901760
    %4974 = vmatpush.msra.mxu0 %v4973
    %v4975 = vand.u32 %v296, 4294901760
    %4976 = vmatpush.msra.mxu0 %v4975
    %v4977 = vand.u32 %v295, 4294901760
    %4978 = vmatpush.msra.mxu0 %v4977
    %v4979 = vand.u32 %v294, 4294901760
    %4980 = vmatpush.msra.mxu0 %v4979
    %v4981 = vand.u32 %v293, 4294901760
    %4982 = vmatpush.msra.mxu0 %v4981
    %v4983 = vand.u32 %v292, 4294901760
    %4984 = vmatpush.msra.mxu0 %v4983
    %v4985 = vand.u32 %v291, 4294901760
    %4986 = vmatpush.msra.mxu0 %v4985
    %v4987 = vand.u32 %v290, 4294901760
    %4988 = vmatpush.msra.mxu0 %v4987
    %v4989 = vand.u32 %v289, 4294901760
    %4990 = vmatpush.msra.mxu0 %v4989
    %v4991 = vand.u32 %v288, 4294901760
    %4992 = vmatpush.msra.mxu0 %v4991
    %v4993 = vand.u32 %v287, 4294901760
    %4994 = vmatpush.msra.mxu0 %v4993
    %v4995 = vand.u32 %v623, 4294901760
    %v4996 = vsub.f32 %v623, %v4995
    %v4997 = vand.u32 %v4996, 4294901760
    %4998 = vmatmul.f32.gmra.mxu0 %v4997
    %v4999 = vpop.f32.mrf.mxu0
    %v5000 = vadd.f32 %v4961, %v4999
    %5001 = vdwg.mxu0
    %v5002 = vand.u32 %v302, 4294901760
    %v5003 = vsub.f32 %v302, %v5002
    %v5004 = vand.u32 %v5003, 4294901760
    %5005 = vmatpush.msra.mxu0 %v5004
    %v5006 = vand.u32 %v301, 4294901760
    %v5007 = vsub.f32 %v301, %v5006
    %v5008 = vand.u32 %v5007, 4294901760
    %5009 = vmatpush.msra.mxu0 %v5008
    %v5010 = vand.u32 %v300, 4294901760
    %v5011 = vsub.f32 %v300, %v5010
    %v5012 = vand.u32 %v5011, 4294901760
    %5013 = vmatpush.msra.mxu0 %v5012
    %v5014 = vand.u32 %v299, 4294901760
    %v5015 = vsub.f32 %v299, %v5014
    %v5016 = vand.u32 %v5015, 4294901760
    %5017 = vmatpush.msra.mxu0 %v5016
    %v5018 = vand.u32 %v298, 4294901760
    %v5019 = vsub.f32 %v298, %v5018
    %v5020 = vand.u32 %v5019, 4294901760
    %5021 = vmatpush.msra.mxu0 %v5020
    %v5022 = vand.u32 %v297, 4294901760
    %v5023 = vsub.f32 %v297, %v5022
    %v5024 = vand.u32 %v5023, 4294901760
    %5025 = vmatpush.msra.mxu0 %v5024
    %v5026 = vand.u32 %v296, 4294901760
    %v5027 = vsub.f32 %v296, %v5026
    %v5028 = vand.u32 %v5027, 4294901760
    %5029 = vmatpush.msra.mxu0 %v5028
    %v5030 = vand.u32 %v295, 4294901760
    %v5031 = vsub.f32 %v295, %v5030
    %v5032 = vand.u32 %v5031, 4294901760
    %5033 = vmatpush.msra.mxu0 %v5032
    %v5034 = vand.u32 %v294, 4294901760
    %v5035 = vsub.f32 %v294, %v5034
    %v5036 = vand.u32 %v5035, 4294901760
    %5037 = vmatpush.msra.mxu0 %v5036
    %v5038 = vand.u32 %v293, 4294901760
    %v5039 = vsub.f32 %v293, %v5038
    %v5040 = vand.u32 %v5039, 4294901760
    %5041 = vmatpush.msra.mxu0 %v5040
    %v5042 = vand.u32 %v292, 4294901760
    %v5043 = vsub.f32 %v292, %v5042
    %v5044 = vand.u32 %v5043, 4294901760
    %5045 = vmatpush.msra.mxu0 %v5044
    %v5046 = vand.u32 %v291, 4294901760
    %v5047 = vsub.f32 %v291, %v5046
    %v5048 = vand.u32 %v5047, 4294901760
    %5049 = vmatpush.msra.mxu0 %v5048
    %v5050 = vand.u32 %v290, 4294901760
    %v5051 = vsub.f32 %v290, %v5050
    %v5052 = vand.u32 %v5051, 4294901760
    %5053 = vmatpush.msra.mxu0 %v5052
    %v5054 = vand.u32 %v289, 4294901760
    %v5055 = vsub.f32 %v289, %v5054
    %v5056 = vand.u32 %v5055, 4294901760
    %5057 = vmatpush.msra.mxu0 %v5056
    %v5058 = vand.u32 %v288, 4294901760
    %v5059 = vsub.f32 %v288, %v5058
    %v5060 = vand.u32 %v5059, 4294901760
    %5061 = vmatpush.msra.mxu0 %v5060
    %v5062 = vand.u32 %v287, 4294901760
    %v5063 = vsub.f32 %v287, %v5062
    %v5064 = vand.u32 %v5063, 4294901760
    %5065 = vmatpush.msra.mxu0 %v5064
    %v5066 = vand.u32 %v623, 4294901760
    %5067 = vmatmul.f32.gmra.mxu0 %v5066
    %v5068 = vpop.f32.mrf.mxu0
    %v5069 = vadd.f32 %v5000, %v5068
    %5070 = vdwg.mxu0
    %v5071 = vand.u32 %v302, 4294901760
    %5072 = vmatpush.msra.mxu0 %v5071
    %v5073 = vand.u32 %v301, 4294901760
    %5074 = vmatpush.msra.mxu0 %v5073
    %v5075 = vand.u32 %v300, 4294901760
    %5076 = vmatpush.msra.mxu0 %v5075
    %v5077 = vand.u32 %v299, 4294901760
    %5078 = vmatpush.msra.mxu0 %v5077
    %v5079 = vand.u32 %v298, 4294901760
    %5080 = vmatpush.msra.mxu0 %v5079
    %v5081 = vand.u32 %v297, 4294901760
    %5082 = vmatpush.msra.mxu0 %v5081
    %v5083 = vand.u32 %v296, 4294901760
    %5084 = vmatpush.msra.mxu0 %v5083
    %v5085 = vand.u32 %v295, 4294901760
    %5086 = vmatpush.msra.mxu0 %v5085
    %v5087 = vand.u32 %v294, 4294901760
    %5088 = vmatpush.msra.mxu0 %v5087
    %v5089 = vand.u32 %v293, 4294901760
    %5090 = vmatpush.msra.mxu0 %v5089
    %v5091 = vand.u32 %v292, 4294901760
    %5092 = vmatpush.msra.mxu0 %v5091
    %v5093 = vand.u32 %v291, 4294901760
    %5094 = vmatpush.msra.mxu0 %v5093
    %v5095 = vand.u32 %v290, 4294901760
    %5096 = vmatpush.msra.mxu0 %v5095
    %v5097 = vand.u32 %v289, 4294901760
    %5098 = vmatpush.msra.mxu0 %v5097
    %v5099 = vand.u32 %v288, 4294901760
    %5100 = vmatpush.msra.mxu0 %v5099
    %v5101 = vand.u32 %v287, 4294901760
    %5102 = vmatpush.msra.mxu0 %v5101
    %v5103 = vand.u32 %v623, 4294901760
    %5104 = vmatmul.f32.gmra.mxu0 %v5103
    %v5105 = vpop.f32.mrf.mxu0
    %v5106 = vadd.f32 %v5069, %v5105
    %5107 = vdwg.mxu0
    %v5108 = vand.u32 %v318, 4294901760
    %5109 = vmatpush.msra.mxu0 %v5108
    %v5110 = vand.u32 %v317, 4294901760
    %5111 = vmatpush.msra.mxu0 %v5110
    %v5112 = vand.u32 %v316, 4294901760
    %5113 = vmatpush.msra.mxu0 %v5112
    %v5114 = vand.u32 %v315, 4294901760
    %5115 = vmatpush.msra.mxu0 %v5114
    %v5116 = vand.u32 %v314, 4294901760
    %5117 = vmatpush.msra.mxu0 %v5116
    %v5118 = vand.u32 %v313, 4294901760
    %5119 = vmatpush.msra.mxu0 %v5118
    %v5120 = vand.u32 %v312, 4294901760
    %5121 = vmatpush.msra.mxu0 %v5120
    %v5122 = vand.u32 %v311, 4294901760
    %5123 = vmatpush.msra.mxu0 %v5122
    %v5124 = vand.u32 %v310, 4294901760
    %5125 = vmatpush.msra.mxu0 %v5124
    %v5126 = vand.u32 %v309, 4294901760
    %5127 = vmatpush.msra.mxu0 %v5126
    %v5128 = vand.u32 %v308, 4294901760
    %5129 = vmatpush.msra.mxu0 %v5128
    %v5130 = vand.u32 %v307, 4294901760
    %5131 = vmatpush.msra.mxu0 %v5130
    %v5132 = vand.u32 %v306, 4294901760
    %5133 = vmatpush.msra.mxu0 %v5132
    %v5134 = vand.u32 %v305, 4294901760
    %5135 = vmatpush.msra.mxu0 %v5134
    %v5136 = vand.u32 %v304, 4294901760
    %5137 = vmatpush.msra.mxu0 %v5136
    %v5138 = vand.u32 %v303, 4294901760
    %5139 = vmatpush.msra.mxu0 %v5138
    %v5140 = vand.u32 %v624, 4294901760
    %v5141 = vsub.f32 %v624, %v5140
    %v5142 = vand.u32 %v5141, 4294901760
    %v5143 = vsub.f32 %v5141, %v5142
    %v5144 = vand.u32 %v5143, 4294901760
    %5145 = vmatmul.f32.gmra.mxu0 %v5144
    %v5146 = vpop.f32.mrf.mxu0
    %v5147 = vadd.f32 %v5106, %v5146
    %5148 = vdwg.mxu0
    %v5149 = vand.u32 %v318, 4294901760
    %v5150 = vsub.f32 %v318, %v5149
    %v5151 = vand.u32 %v5150, 4294901760
    %v5152 = vsub.f32 %v5150, %v5151
    %v5153 = vand.u32 %v5152, 4294901760
    %5154 = vmatpush.msra.mxu0 %v5153
    %v5155 = vand.u32 %v317, 4294901760
    %v5156 = vsub.f32 %v317, %v5155
    %v5157 = vand.u32 %v5156, 4294901760
    %v5158 = vsub.f32 %v5156, %v5157
    %v5159 = vand.u32 %v5158, 4294901760
    %5160 = vmatpush.msra.mxu0 %v5159
    %v5161 = vand.u32 %v316, 4294901760
    %v5162 = vsub.f32 %v316, %v5161
    %v5163 = vand.u32 %v5162, 4294901760
    %v5164 = vsub.f32 %v5162, %v5163
    %v5165 = vand.u32 %v5164, 4294901760
    %5166 = vmatpush.msra.mxu0 %v5165
    %v5167 = vand.u32 %v315, 4294901760
    %v5168 = vsub.f32 %v315, %v5167
    %v5169 = vand.u32 %v5168, 4294901760
    %v5170 = vsub.f32 %v5168, %v5169
    %v5171 = vand.u32 %v5170, 4294901760
    %5172 = vmatpush.msra.mxu0 %v5171
    %v5173 = vand.u32 %v314, 4294901760
    %v5174 = vsub.f32 %v314, %v5173
    %v5175 = vand.u32 %v5174, 4294901760
    %v5176 = vsub.f32 %v5174, %v5175
    %v5177 = vand.u32 %v5176, 4294901760
    %5178 = vmatpush.msra.mxu0 %v5177
    %v5179 = vand.u32 %v313, 4294901760
    %v5180 = vsub.f32 %v313, %v5179
    %v5181 = vand.u32 %v5180, 4294901760
    %v5182 = vsub.f32 %v5180, %v5181
    %v5183 = vand.u32 %v5182, 4294901760
    %5184 = vmatpush.msra.mxu0 %v5183
    %v5185 = vand.u32 %v312, 4294901760
    %v5186 = vsub.f32 %v312, %v5185
    %v5187 = vand.u32 %v5186, 4294901760
    %v5188 = vsub.f32 %v5186, %v5187
    %v5189 = vand.u32 %v5188, 4294901760
    %5190 = vmatpush.msra.mxu0 %v5189
    %v5191 = vand.u32 %v311, 4294901760
    %v5192 = vsub.f32 %v311, %v5191
    %v5193 = vand.u32 %v5192, 4294901760
    %v5194 = vsub.f32 %v5192, %v5193
    %v5195 = vand.u32 %v5194, 4294901760
    %5196 = vmatpush.msra.mxu0 %v5195
    %v5197 = vand.u32 %v310, 4294901760
    %v5198 = vsub.f32 %v310, %v5197
    %v5199 = vand.u32 %v5198, 4294901760
    %v5200 = vsub.f32 %v5198, %v5199
    %v5201 = vand.u32 %v5200, 4294901760
    %5202 = vmatpush.msra.mxu0 %v5201
    %v5203 = vand.u32 %v309, 4294901760
    %v5204 = vsub.f32 %v309, %v5203
    %v5205 = vand.u32 %v5204, 4294901760
    %v5206 = vsub.f32 %v5204, %v5205
    %v5207 = vand.u32 %v5206, 4294901760
    %5208 = vmatpush.msra.mxu0 %v5207
    %v5209 = vand.u32 %v308, 4294901760
    %v5210 = vsub.f32 %v308, %v5209
    %v5211 = vand.u32 %v5210, 4294901760
    %v5212 = vsub.f32 %v5210, %v5211
    %v5213 = vand.u32 %v5212, 4294901760
    %5214 = vmatpush.msra.mxu0 %v5213
    %v5215 = vand.u32 %v307, 4294901760
    %v5216 = vsub.f32 %v307, %v5215
    %v5217 = vand.u32 %v5216, 4294901760
    %v5218 = vsub.f32 %v5216, %v5217
    %v5219 = vand.u32 %v5218, 4294901760
    %5220 = vmatpush.msra.mxu0 %v5219
    %v5221 = vand.u32 %v306, 4294901760
    %v5222 = vsub.f32 %v306, %v5221
    %v5223 = vand.u32 %v5222, 4294901760
    %v5224 = vsub.f32 %v5222, %v5223
    %v5225 = vand.u32 %v5224, 4294901760
    %5226 = vmatpush.msra.mxu0 %v5225
    %v5227 = vand.u32 %v305, 4294901760
    %v5228 = vsub.f32 %v305, %v5227
    %v5229 = vand.u32 %v5228, 4294901760
    %v5230 = vsub.f32 %v5228, %v5229
    %v5231 = vand.u32 %v5230, 4294901760
    %5232 = vmatpush.msra.mxu0 %v5231
    %v5233 = vand.u32 %v304, 4294901760
    %v5234 = vsub.f32 %v304, %v5233
    %v5235 = vand.u32 %v5234, 4294901760
    %v5236 = vsub.f32 %v5234, %v5235
    %v5237 = vand.u32 %v5236, 4294901760
    %5238 = vmatpush.msra.mxu0 %v5237
    %v5239 = vand.u32 %v303, 4294901760
    %v5240 = vsub.f32 %v303, %v5239
    %v5241 = vand.u32 %v5240, 4294901760
    %v5242 = vsub.f32 %v5240, %v5241
    %v5243 = vand.u32 %v5242, 4294901760
    %5244 = vmatpush.msra.mxu0 %v5243
    %v5245 = vand.u32 %v624, 4294901760
    %5246 = vmatmul.f32.gmra.mxu0 %v5245
    %v5247 = vpop.f32.mrf.mxu0
    %v5248 = vadd.f32 %v5147, %v5247
    %5249 = vdwg.mxu0
    %v5250 = vand.u32 %v318, 4294901760
    %v5251 = vsub.f32 %v318, %v5250
    %5252 = vmatpush.msra.mxu0 %v5251
    %v5253 = vand.u32 %v317, 4294901760
    %v5254 = vsub.f32 %v317, %v5253
    %5255 = vmatpush.msra.mxu0 %v5254
    %v5256 = vand.u32 %v316, 4294901760
    %v5257 = vsub.f32 %v316, %v5256
    %5258 = vmatpush.msra.mxu0 %v5257
    %v5259 = vand.u32 %v315, 4294901760
    %v5260 = vsub.f32 %v315, %v5259
    %5261 = vmatpush.msra.mxu0 %v5260
    %v5262 = vand.u32 %v314, 4294901760
    %v5263 = vsub.f32 %v314, %v5262
    %5264 = vmatpush.msra.mxu0 %v5263
    %v5265 = vand.u32 %v313, 4294901760
    %v5266 = vsub.f32 %v313, %v5265
    %5267 = vmatpush.msra.mxu0 %v5266
    %v5268 = vand.u32 %v312, 4294901760
    %v5269 = vsub.f32 %v312, %v5268
    %5270 = vmatpush.msra.mxu0 %v5269
    %v5271 = vand.u32 %v311, 4294901760
    %v5272 = vsub.f32 %v311, %v5271
    %5273 = vmatpush.msra.mxu0 %v5272
    %v5274 = vand.u32 %v310, 4294901760
    %v5275 = vsub.f32 %v310, %v5274
    %5276 = vmatpush.msra.mxu0 %v5275
    %v5277 = vand.u32 %v309, 4294901760
    %v5278 = vsub.f32 %v309, %v5277
    %5279 = vmatpush.msra.mxu0 %v5278
    %v5280 = vand.u32 %v308, 4294901760
    %v5281 = vsub.f32 %v308, %v5280
    %5282 = vmatpush.msra.mxu0 %v5281
    %v5283 = vand.u32 %v307, 4294901760
    %v5284 = vsub.f32 %v307, %v5283
    %5285 = vmatpush.msra.mxu0 %v5284
    %v5286 = vand.u32 %v306, 4294901760
    %v5287 = vsub.f32 %v306, %v5286
    %5288 = vmatpush.msra.mxu0 %v5287
    %v5289 = vand.u32 %v305, 4294901760
    %v5290 = vsub.f32 %v305, %v5289
    %5291 = vmatpush.msra.mxu0 %v5290
    %v5292 = vand.u32 %v304, 4294901760
    %v5293 = vsub.f32 %v304, %v5292
    %5294 = vmatpush.msra.mxu0 %v5293
    %v5295 = vand.u32 %v303, 4294901760
    %v5296 = vsub.f32 %v303, %v5295
    %5297 = vmatpush.msra.mxu0 %v5296
    %v5298 = vand.u32 %v624, 4294901760
    %v5299 = vsub.f32 %v624, %v5298
    %5300 = vmatmul.f32.gmra.mxu0 %v5299
    %v5301 = vpop.f32.mrf.mxu0
    %v5302 = vadd.f32 %v5248, %v5301
    %5303 = vdwg.mxu0
    %v5304 = vand.u32 %v318, 4294901760
    %5305 = vmatpush.msra.mxu0 %v5304
    %v5306 = vand.u32 %v317, 4294901760
    %5307 = vmatpush.msra.mxu0 %v5306
    %v5308 = vand.u32 %v316, 4294901760
    %5309 = vmatpush.msra.mxu0 %v5308
    %v5310 = vand.u32 %v315, 4294901760
    %5311 = vmatpush.msra.mxu0 %v5310
    %v5312 = vand.u32 %v314, 4294901760
    %5313 = vmatpush.msra.mxu0 %v5312
    %v5314 = vand.u32 %v313, 4294901760
    %5315 = vmatpush.msra.mxu0 %v5314
    %v5316 = vand.u32 %v312, 4294901760
    %5317 = vmatpush.msra.mxu0 %v5316
    %v5318 = vand.u32 %v311, 4294901760
    %5319 = vmatpush.msra.mxu0 %v5318
    %v5320 = vand.u32 %v310, 4294901760
    %5321 = vmatpush.msra.mxu0 %v5320
    %v5322 = vand.u32 %v309, 4294901760
    %5323 = vmatpush.msra.mxu0 %v5322
    %v5324 = vand.u32 %v308, 4294901760
    %5325 = vmatpush.msra.mxu0 %v5324
    %v5326 = vand.u32 %v307, 4294901760
    %5327 = vmatpush.msra.mxu0 %v5326
    %v5328 = vand.u32 %v306, 4294901760
    %5329 = vmatpush.msra.mxu0 %v5328
    %v5330 = vand.u32 %v305, 4294901760
    %5331 = vmatpush.msra.mxu0 %v5330
    %v5332 = vand.u32 %v304, 4294901760
    %5333 = vmatpush.msra.mxu0 %v5332
    %v5334 = vand.u32 %v303, 4294901760
    %5335 = vmatpush.msra.mxu0 %v5334
    %v5336 = vand.u32 %v624, 4294901760
    %v5337 = vsub.f32 %v624, %v5336
    %v5338 = vand.u32 %v5337, 4294901760
    %5339 = vmatmul.f32.gmra.mxu0 %v5338
    %v5340 = vpop.f32.mrf.mxu0
    %v5341 = vadd.f32 %v5302, %v5340
    %5342 = vdwg.mxu0
    %v5343 = vand.u32 %v318, 4294901760
    %v5344 = vsub.f32 %v318, %v5343
    %v5345 = vand.u32 %v5344, 4294901760
    %5346 = vmatpush.msra.mxu0 %v5345
    %v5347 = vand.u32 %v317, 4294901760
    %v5348 = vsub.f32 %v317, %v5347
    %v5349 = vand.u32 %v5348, 4294901760
    %5350 = vmatpush.msra.mxu0 %v5349
    %v5351 = vand.u32 %v316, 4294901760
    %v5352 = vsub.f32 %v316, %v5351
    %v5353 = vand.u32 %v5352, 4294901760
    %5354 = vmatpush.msra.mxu0 %v5353
    %v5355 = vand.u32 %v315, 4294901760
    %v5356 = vsub.f32 %v315, %v5355
    %v5357 = vand.u32 %v5356, 4294901760
    %5358 = vmatpush.msra.mxu0 %v5357
    %v5359 = vand.u32 %v314, 4294901760
    %v5360 = vsub.f32 %v314, %v5359
    %v5361 = vand.u32 %v5360, 4294901760
    %5362 = vmatpush.msra.mxu0 %v5361
    %v5363 = vand.u32 %v313, 4294901760
    %v5364 = vsub.f32 %v313, %v5363
    %v5365 = vand.u32 %v5364, 4294901760
    %5366 = vmatpush.msra.mxu0 %v5365
    %v5367 = vand.u32 %v312, 4294901760
    %v5368 = vsub.f32 %v312, %v5367
    %v5369 = vand.u32 %v5368, 4294901760
    %5370 = vmatpush.msra.mxu0 %v5369
    %v5371 = vand.u32 %v311, 4294901760
    %v5372 = vsub.f32 %v311, %v5371
    %v5373 = vand.u32 %v5372, 4294901760
    %5374 = vmatpush.msra.mxu0 %v5373
    %v5375 = vand.u32 %v310, 4294901760
    %v5376 = vsub.f32 %v310, %v5375
    %v5377 = vand.u32 %v5376, 4294901760
    %5378 = vmatpush.msra.mxu0 %v5377
    %v5379 = vand.u32 %v309, 4294901760
    %v5380 = vsub.f32 %v309, %v5379
    %v5381 = vand.u32 %v5380, 4294901760
    %5382 = vmatpush.msra.mxu0 %v5381
    %v5383 = vand.u32 %v308, 4294901760
    %v5384 = vsub.f32 %v308, %v5383
    %v5385 = vand.u32 %v5384, 4294901760
    %5386 = vmatpush.msra.mxu0 %v5385
    %v5387 = vand.u32 %v307, 4294901760
    %v5388 = vsub.f32 %v307, %v5387
    %v5389 = vand.u32 %v5388, 4294901760
    %5390 = vmatpush.msra.mxu0 %v5389
    %v5391 = vand.u32 %v306, 4294901760
    %v5392 = vsub.f32 %v306, %v5391
    %v5393 = vand.u32 %v5392, 4294901760
    %5394 = vmatpush.msra.mxu0 %v5393
    %v5395 = vand.u32 %v305, 4294901760
    %v5396 = vsub.f32 %v305, %v5395
    %v5397 = vand.u32 %v5396, 4294901760
    %5398 = vmatpush.msra.mxu0 %v5397
    %v5399 = vand.u32 %v304, 4294901760
    %v5400 = vsub.f32 %v304, %v5399
    %v5401 = vand.u32 %v5400, 4294901760
    %5402 = vmatpush.msra.mxu0 %v5401
    %v5403 = vand.u32 %v303, 4294901760
    %v5404 = vsub.f32 %v303, %v5403
    %v5405 = vand.u32 %v5404, 4294901760
    %5406 = vmatpush.msra.mxu0 %v5405
    %v5407 = vand.u32 %v624, 4294901760
    %5408 = vmatmul.f32.gmra.mxu0 %v5407
    %v5409 = vpop.f32.mrf.mxu0
    %v5410 = vadd.f32 %v5341, %v5409
    %5411 = vdwg.mxu0
    %v5412 = vand.u32 %v318, 4294901760
    %5413 = vmatpush.msra.mxu0 %v5412
    %v5414 = vand.u32 %v317, 4294901760
    %5415 = vmatpush.msra.mxu0 %v5414
    %v5416 = vand.u32 %v316, 4294901760
    %5417 = vmatpush.msra.mxu0 %v5416
    %v5418 = vand.u32 %v315, 4294901760
    %5419 = vmatpush.msra.mxu0 %v5418
    %v5420 = vand.u32 %v314, 4294901760
    %5421 = vmatpush.msra.mxu0 %v5420
    %v5422 = vand.u32 %v313, 4294901760
    %5423 = vmatpush.msra.mxu0 %v5422
    %v5424 = vand.u32 %v312, 4294901760
    %5425 = vmatpush.msra.mxu0 %v5424
    %v5426 = vand.u32 %v311, 4294901760
    %5427 = vmatpush.msra.mxu0 %v5426
    %v5428 = vand.u32 %v310, 4294901760
    %5429 = vmatpush.msra.mxu0 %v5428
    %v5430 = vand.u32 %v309, 4294901760
    %5431 = vmatpush.msra.mxu0 %v5430
    %v5432 = vand.u32 %v308, 4294901760
    %5433 = vmatpush.msra.mxu0 %v5432
    %v5434 = vand.u32 %v307, 4294901760
    %5435 = vmatpush.msra.mxu0 %v5434
    %v5436 = vand.u32 %v306, 4294901760
    %5437 = vmatpush.msra.mxu0 %v5436
    %v5438 = vand.u32 %v305, 4294901760
    %5439 = vmatpush.msra.mxu0 %v5438
    %v5440 = vand.u32 %v304, 4294901760
    %5441 = vmatpush.msra.mxu0 %v5440
    %v5442 = vand.u32 %v303, 4294901760
    %5443 = vmatpush.msra.mxu0 %v5442
    %v5444 = vand.u32 %v624, 4294901760
    %5445 = vmatmul.f32.gmra.mxu0 %v5444
    %v5446 = vpop.f32.mrf.mxu0
    %v5447 = vadd.f32 %v5410, %v5446
    %5448 = vdwg.mxu0
    %v5449 = vand.u32 %v334, 4294901760
    %5450 = vmatpush.msra.mxu0 %v5449
    %v5451 = vand.u32 %v333, 4294901760
    %5452 = vmatpush.msra.mxu0 %v5451
    %v5453 = vand.u32 %v332, 4294901760
    %5454 = vmatpush.msra.mxu0 %v5453
    %v5455 = vand.u32 %v331, 4294901760
    %5456 = vmatpush.msra.mxu0 %v5455
    %v5457 = vand.u32 %v330, 4294901760
    %5458 = vmatpush.msra.mxu0 %v5457
    %v5459 = vand.u32 %v329, 4294901760
    %5460 = vmatpush.msra.mxu0 %v5459
    %v5461 = vand.u32 %v328, 4294901760
    %5462 = vmatpush.msra.mxu0 %v5461
    %v5463 = vand.u32 %v327, 4294901760
    %5464 = vmatpush.msra.mxu0 %v5463
    %v5465 = vand.u32 %v326, 4294901760
    %5466 = vmatpush.msra.mxu0 %v5465
    %v5467 = vand.u32 %v325, 4294901760
    %5468 = vmatpush.msra.mxu0 %v5467
    %v5469 = vand.u32 %v324, 4294901760
    %5470 = vmatpush.msra.mxu0 %v5469
    %v5471 = vand.u32 %v323, 4294901760
    %5472 = vmatpush.msra.mxu0 %v5471
    %v5473 = vand.u32 %v322, 4294901760
    %5474 = vmatpush.msra.mxu0 %v5473
    %v5475 = vand.u32 %v321, 4294901760
    %5476 = vmatpush.msra.mxu0 %v5475
    %v5477 = vand.u32 %v320, 4294901760
    %5478 = vmatpush.msra.mxu0 %v5477
    %v5479 = vand.u32 %v319, 4294901760
    %5480 = vmatpush.msra.mxu0 %v5479
    %v5481 = vand.u32 %v625, 4294901760
    %v5482 = vsub.f32 %v625, %v5481
    %v5483 = vand.u32 %v5482, 4294901760
    %v5484 = vsub.f32 %v5482, %v5483
    %v5485 = vand.u32 %v5484, 4294901760
    %5486 = vmatmul.f32.gmra.mxu0 %v5485
    %v5487 = vpop.f32.mrf.mxu0
    %v5488 = vadd.f32 %v5447, %v5487
    %5489 = vdwg.mxu0
    %v5490 = vand.u32 %v334, 4294901760
    %v5491 = vsub.f32 %v334, %v5490
    %v5492 = vand.u32 %v5491, 4294901760
    %v5493 = vsub.f32 %v5491, %v5492
    %v5494 = vand.u32 %v5493, 4294901760
    %5495 = vmatpush.msra.mxu0 %v5494
    %v5496 = vand.u32 %v333, 4294901760
    %v5497 = vsub.f32 %v333, %v5496
    %v5498 = vand.u32 %v5497, 4294901760
    %v5499 = vsub.f32 %v5497, %v5498
    %v5500 = vand.u32 %v5499, 4294901760
    %5501 = vmatpush.msra.mxu0 %v5500
    %v5502 = vand.u32 %v332, 4294901760
    %v5503 = vsub.f32 %v332, %v5502
    %v5504 = vand.u32 %v5503, 4294901760
    %v5505 = vsub.f32 %v5503, %v5504
    %v5506 = vand.u32 %v5505, 4294901760
    %5507 = vmatpush.msra.mxu0 %v5506
    %v5508 = vand.u32 %v331, 4294901760
    %v5509 = vsub.f32 %v331, %v5508
    %v5510 = vand.u32 %v5509, 4294901760
    %v5511 = vsub.f32 %v5509, %v5510
    %v5512 = vand.u32 %v5511, 4294901760
    %5513 = vmatpush.msra.mxu0 %v5512
    %v5514 = vand.u32 %v330, 4294901760
    %v5515 = vsub.f32 %v330, %v5514
    %v5516 = vand.u32 %v5515, 4294901760
    %v5517 = vsub.f32 %v5515, %v5516
    %v5518 = vand.u32 %v5517, 4294901760
    %5519 = vmatpush.msra.mxu0 %v5518
    %v5520 = vand.u32 %v329, 4294901760
    %v5521 = vsub.f32 %v329, %v5520
    %v5522 = vand.u32 %v5521, 4294901760
    %v5523 = vsub.f32 %v5521, %v5522
    %v5524 = vand.u32 %v5523, 4294901760
    %5525 = vmatpush.msra.mxu0 %v5524
    %v5526 = vand.u32 %v328, 4294901760
    %v5527 = vsub.f32 %v328, %v5526
    %v5528 = vand.u32 %v5527, 4294901760
    %v5529 = vsub.f32 %v5527, %v5528
    %v5530 = vand.u32 %v5529, 4294901760
    %5531 = vmatpush.msra.mxu0 %v5530
    %v5532 = vand.u32 %v327, 4294901760
    %v5533 = vsub.f32 %v327, %v5532
    %v5534 = vand.u32 %v5533, 4294901760
    %v5535 = vsub.f32 %v5533, %v5534
    %v5536 = vand.u32 %v5535, 4294901760
    %5537 = vmatpush.msra.mxu0 %v5536
    %v5538 = vand.u32 %v326, 4294901760
    %v5539 = vsub.f32 %v326, %v5538
    %v5540 = vand.u32 %v5539, 4294901760
    %v5541 = vsub.f32 %v5539, %v5540
    %v5542 = vand.u32 %v5541, 4294901760
    %5543 = vmatpush.msra.mxu0 %v5542
    %v5544 = vand.u32 %v325, 4294901760
    %v5545 = vsub.f32 %v325, %v5544
    %v5546 = vand.u32 %v5545, 4294901760
    %v5547 = vsub.f32 %v5545, %v5546
    %v5548 = vand.u32 %v5547, 4294901760
    %5549 = vmatpush.msra.mxu0 %v5548
    %v5550 = vand.u32 %v324, 4294901760
    %v5551 = vsub.f32 %v324, %v5550
    %v5552 = vand.u32 %v5551, 4294901760
    %v5553 = vsub.f32 %v5551, %v5552
    %v5554 = vand.u32 %v5553, 4294901760
    %5555 = vmatpush.msra.mxu0 %v5554
    %v5556 = vand.u32 %v323, 4294901760
    %v5557 = vsub.f32 %v323, %v5556
    %v5558 = vand.u32 %v5557, 4294901760
    %v5559 = vsub.f32 %v5557, %v5558
    %v5560 = vand.u32 %v5559, 4294901760
    %5561 = vmatpush.msra.mxu0 %v5560
    %v5562 = vand.u32 %v322, 4294901760
    %v5563 = vsub.f32 %v322, %v5562
    %v5564 = vand.u32 %v5563, 4294901760
    %v5565 = vsub.f32 %v5563, %v5564
    %v5566 = vand.u32 %v5565, 4294901760
    %5567 = vmatpush.msra.mxu0 %v5566
    %v5568 = vand.u32 %v321, 4294901760
    %v5569 = vsub.f32 %v321, %v5568
    %v5570 = vand.u32 %v5569, 4294901760
    %v5571 = vsub.f32 %v5569, %v5570
    %v5572 = vand.u32 %v5571, 4294901760
    %5573 = vmatpush.msra.mxu0 %v5572
    %v5574 = vand.u32 %v320, 4294901760
    %v5575 = vsub.f32 %v320, %v5574
    %v5576 = vand.u32 %v5575, 4294901760
    %v5577 = vsub.f32 %v5575, %v5576
    %v5578 = vand.u32 %v5577, 4294901760
    %5579 = vmatpush.msra.mxu0 %v5578
    %v5580 = vand.u32 %v319, 4294901760
    %v5581 = vsub.f32 %v319, %v5580
    %v5582 = vand.u32 %v5581, 4294901760
    %v5583 = vsub.f32 %v5581, %v5582
    %v5584 = vand.u32 %v5583, 4294901760
    %5585 = vmatpush.msra.mxu0 %v5584
    %v5586 = vand.u32 %v625, 4294901760
    %5587 = vmatmul.f32.gmra.mxu0 %v5586
    %v5588 = vpop.f32.mrf.mxu0
    %v5589 = vadd.f32 %v5488, %v5588
    %5590 = vdwg.mxu0
    %v5591 = vand.u32 %v334, 4294901760
    %v5592 = vsub.f32 %v334, %v5591
    %5593 = vmatpush.msra.mxu0 %v5592
    %v5594 = vand.u32 %v333, 4294901760
    %v5595 = vsub.f32 %v333, %v5594
    %5596 = vmatpush.msra.mxu0 %v5595
    %v5597 = vand.u32 %v332, 4294901760
    %v5598 = vsub.f32 %v332, %v5597
    %5599 = vmatpush.msra.mxu0 %v5598
    %v5600 = vand.u32 %v331, 4294901760
    %v5601 = vsub.f32 %v331, %v5600
    %5602 = vmatpush.msra.mxu0 %v5601
    %v5603 = vand.u32 %v330, 4294901760
    %v5604 = vsub.f32 %v330, %v5603
    %5605 = vmatpush.msra.mxu0 %v5604
    %v5606 = vand.u32 %v329, 4294901760
    %v5607 = vsub.f32 %v329, %v5606
    %5608 = vmatpush.msra.mxu0 %v5607
    %v5609 = vand.u32 %v328, 4294901760
    %v5610 = vsub.f32 %v328, %v5609
    %5611 = vmatpush.msra.mxu0 %v5610
    %v5612 = vand.u32 %v327, 4294901760
    %v5613 = vsub.f32 %v327, %v5612
    %5614 = vmatpush.msra.mxu0 %v5613
    %v5615 = vand.u32 %v326, 4294901760
    %v5616 = vsub.f32 %v326, %v5615
    %5617 = vmatpush.msra.mxu0 %v5616
    %v5618 = vand.u32 %v325, 4294901760
    %v5619 = vsub.f32 %v325, %v5618
    %5620 = vmatpush.msra.mxu0 %v5619
    %v5621 = vand.u32 %v324, 4294901760
    %v5622 = vsub.f32 %v324, %v5621
    %5623 = vmatpush.msra.mxu0 %v5622
    %v5624 = vand.u32 %v323, 4294901760
    %v5625 = vsub.f32 %v323, %v5624
    %5626 = vmatpush.msra.mxu0 %v5625
    %v5627 = vand.u32 %v322, 4294901760
    %v5628 = vsub.f32 %v322, %v5627
    %5629 = vmatpush.msra.mxu0 %v5628
    %v5630 = vand.u32 %v321, 4294901760
    %v5631 = vsub.f32 %v321, %v5630
    %5632 = vmatpush.msra.mxu0 %v5631
    %v5633 = vand.u32 %v320, 4294901760
    %v5634 = vsub.f32 %v320, %v5633
    %5635 = vmatpush.msra.mxu0 %v5634
    %v5636 = vand.u32 %v319, 4294901760
    %v5637 = vsub.f32 %v319, %v5636
    %5638 = vmatpush.msra.mxu0 %v5637
    %v5639 = vand.u32 %v625, 4294901760
    %v5640 = vsub.f32 %v625, %v5639
    %5641 = vmatmul.f32.gmra.mxu0 %v5640
    %v5642 = vpop.f32.mrf.mxu0
    %v5643 = vadd.f32 %v5589, %v5642
    %5644 = vdwg.mxu0
    %v5645 = vand.u32 %v334, 4294901760
    %5646 = vmatpush.msra.mxu0 %v5645
    %v5647 = vand.u32 %v333, 4294901760
    %5648 = vmatpush.msra.mxu0 %v5647
    %v5649 = vand.u32 %v332, 4294901760
    %5650 = vmatpush.msra.mxu0 %v5649
    %v5651 = vand.u32 %v331, 4294901760
    %5652 = vmatpush.msra.mxu0 %v5651
    %v5653 = vand.u32 %v330, 4294901760
    %5654 = vmatpush.msra.mxu0 %v5653
    %v5655 = vand.u32 %v329, 4294901760
    %5656 = vmatpush.msra.mxu0 %v5655
    %v5657 = vand.u32 %v328, 4294901760
    %5658 = vmatpush.msra.mxu0 %v5657
    %v5659 = vand.u32 %v327, 4294901760
    %5660 = vmatpush.msra.mxu0 %v5659
    %v5661 = vand.u32 %v326, 4294901760
    %5662 = vmatpush.msra.mxu0 %v5661
    %v5663 = vand.u32 %v325, 4294901760
    %5664 = vmatpush.msra.mxu0 %v5663
    %v5665 = vand.u32 %v324, 4294901760
    %5666 = vmatpush.msra.mxu0 %v5665
    %v5667 = vand.u32 %v323, 4294901760
    %5668 = vmatpush.msra.mxu0 %v5667
    %v5669 = vand.u32 %v322, 4294901760
    %5670 = vmatpush.msra.mxu0 %v5669
    %v5671 = vand.u32 %v321, 4294901760
    %5672 = vmatpush.msra.mxu0 %v5671
    %v5673 = vand.u32 %v320, 4294901760
    %5674 = vmatpush.msra.mxu0 %v5673
    %v5675 = vand.u32 %v319, 4294901760
    %5676 = vmatpush.msra.mxu0 %v5675
    %v5677 = vand.u32 %v625, 4294901760
    %v5678 = vsub.f32 %v625, %v5677
    %v5679 = vand.u32 %v5678, 4294901760
    %5680 = vmatmul.f32.gmra.mxu0 %v5679
    %v5681 = vpop.f32.mrf.mxu0
    %v5682 = vadd.f32 %v5643, %v5681
    %5683 = vdwg.mxu0
    %v5684 = vand.u32 %v334, 4294901760
    %v5685 = vsub.f32 %v334, %v5684
    %v5686 = vand.u32 %v5685, 4294901760
    %5687 = vmatpush.msra.mxu0 %v5686
    %v5688 = vand.u32 %v333, 4294901760
    %v5689 = vsub.f32 %v333, %v5688
    %v5690 = vand.u32 %v5689, 4294901760
    %5691 = vmatpush.msra.mxu0 %v5690
    %v5692 = vand.u32 %v332, 4294901760
    %v5693 = vsub.f32 %v332, %v5692
    %v5694 = vand.u32 %v5693, 4294901760
    %5695 = vmatpush.msra.mxu0 %v5694
    %v5696 = vand.u32 %v331, 4294901760
    %v5697 = vsub.f32 %v331, %v5696
    %v5698 = vand.u32 %v5697, 4294901760
    %5699 = vmatpush.msra.mxu0 %v5698
    %v5700 = vand.u32 %v330, 4294901760
    %v5701 = vsub.f32 %v330, %v5700
    %v5702 = vand.u32 %v5701, 4294901760
    %5703 = vmatpush.msra.mxu0 %v5702
    %v5704 = vand.u32 %v329, 4294901760
    %v5705 = vsub.f32 %v329, %v5704
    %v5706 = vand.u32 %v5705, 4294901760
    %5707 = vmatpush.msra.mxu0 %v5706
    %v5708 = vand.u32 %v328, 4294901760
    %v5709 = vsub.f32 %v328, %v5708
    %v5710 = vand.u32 %v5709, 4294901760
    %5711 = vmatpush.msra.mxu0 %v5710
    %v5712 = vand.u32 %v327, 4294901760
    %v5713 = vsub.f32 %v327, %v5712
    %v5714 = vand.u32 %v5713, 4294901760
    %5715 = vmatpush.msra.mxu0 %v5714
    %v5716 = vand.u32 %v326, 4294901760
    %v5717 = vsub.f32 %v326, %v5716
    %v5718 = vand.u32 %v5717, 4294901760
    %5719 = vmatpush.msra.mxu0 %v5718
    %v5720 = vand.u32 %v325, 4294901760
    %v5721 = vsub.f32 %v325, %v5720
    %v5722 = vand.u32 %v5721, 4294901760
    %5723 = vmatpush.msra.mxu0 %v5722
    %v5724 = vand.u32 %v324, 4294901760
    %v5725 = vsub.f32 %v324, %v5724
    %v5726 = vand.u32 %v5725, 4294901760
    %5727 = vmatpush.msra.mxu0 %v5726
    %v5728 = vand.u32 %v323, 4294901760
    %v5729 = vsub.f32 %v323, %v5728
    %v5730 = vand.u32 %v5729, 4294901760
    %5731 = vmatpush.msra.mxu0 %v5730
    %v5732 = vand.u32 %v322, 4294901760
    %v5733 = vsub.f32 %v322, %v5732
    %v5734 = vand.u32 %v5733, 4294901760
    %5735 = vmatpush.msra.mxu0 %v5734
    %v5736 = vand.u32 %v321, 4294901760
    %v5737 = vsub.f32 %v321, %v5736
    %v5738 = vand.u32 %v5737, 4294901760
    %5739 = vmatpush.msra.mxu0 %v5738
    %v5740 = vand.u32 %v320, 4294901760
    %v5741 = vsub.f32 %v320, %v5740
    %v5742 = vand.u32 %v5741, 4294901760
    %5743 = vmatpush.msra.mxu0 %v5742
    %v5744 = vand.u32 %v319, 4294901760
    %v5745 = vsub.f32 %v319, %v5744
    %v5746 = vand.u32 %v5745, 4294901760
    %5747 = vmatpush.msra.mxu0 %v5746
    %v5748 = vand.u32 %v625, 4294901760
    %5749 = vmatmul.f32.gmra.mxu0 %v5748
    %v5750 = vpop.f32.mrf.mxu0
    %v5751 = vadd.f32 %v5682, %v5750
    %5752 = vdwg.mxu0
    %v5753 = vand.u32 %v334, 4294901760
    %5754 = vmatpush.msra.mxu0 %v5753
    %v5755 = vand.u32 %v333, 4294901760
    %5756 = vmatpush.msra.mxu0 %v5755
    %v5757 = vand.u32 %v332, 4294901760
    %5758 = vmatpush.msra.mxu0 %v5757
    %v5759 = vand.u32 %v331, 4294901760
    %5760 = vmatpush.msra.mxu0 %v5759
    %v5761 = vand.u32 %v330, 4294901760
    %5762 = vmatpush.msra.mxu0 %v5761
    %v5763 = vand.u32 %v329, 4294901760
    %5764 = vmatpush.msra.mxu0 %v5763
    %v5765 = vand.u32 %v328, 4294901760
    %5766 = vmatpush.msra.mxu0 %v5765
    %v5767 = vand.u32 %v327, 4294901760
    %5768 = vmatpush.msra.mxu0 %v5767
    %v5769 = vand.u32 %v326, 4294901760
    %5770 = vmatpush.msra.mxu0 %v5769
    %v5771 = vand.u32 %v325, 4294901760
    %5772 = vmatpush.msra.mxu0 %v5771
    %v5773 = vand.u32 %v324, 4294901760
    %5774 = vmatpush.msra.mxu0 %v5773
    %v5775 = vand.u32 %v323, 4294901760
    %5776 = vmatpush.msra.mxu0 %v5775
    %v5777 = vand.u32 %v322, 4294901760
    %5778 = vmatpush.msra.mxu0 %v5777
    %v5779 = vand.u32 %v321, 4294901760
    %5780 = vmatpush.msra.mxu0 %v5779
    %v5781 = vand.u32 %v320, 4294901760
    %5782 = vmatpush.msra.mxu0 %v5781
    %v5783 = vand.u32 %v319, 4294901760
    %5784 = vmatpush.msra.mxu0 %v5783
    %v5785 = vand.u32 %v625, 4294901760
    %5786 = vmatmul.f32.gmra.mxu0 %v5785
    %v5787 = vpop.f32.mrf.mxu0
    %v5788 = vadd.f32 %v5751, %v5787
    %5789 = vdwg.mxu0
    %v5790 = vand.u32 %v350, 4294901760
    %5791 = vmatpush.msra.mxu0 %v5790
    %v5792 = vand.u32 %v349, 4294901760
    %5793 = vmatpush.msra.mxu0 %v5792
    %v5794 = vand.u32 %v348, 4294901760
    %5795 = vmatpush.msra.mxu0 %v5794
    %v5796 = vand.u32 %v347, 4294901760
    %5797 = vmatpush.msra.mxu0 %v5796
    %v5798 = vand.u32 %v346, 4294901760
    %5799 = vmatpush.msra.mxu0 %v5798
    %v5800 = vand.u32 %v345, 4294901760
    %5801 = vmatpush.msra.mxu0 %v5800
    %v5802 = vand.u32 %v344, 4294901760
    %5803 = vmatpush.msra.mxu0 %v5802
    %v5804 = vand.u32 %v343, 4294901760
    %5805 = vmatpush.msra.mxu0 %v5804
    %v5806 = vand.u32 %v342, 4294901760
    %5807 = vmatpush.msra.mxu0 %v5806
    %v5808 = vand.u32 %v341, 4294901760
    %5809 = vmatpush.msra.mxu0 %v5808
    %v5810 = vand.u32 %v340, 4294901760
    %5811 = vmatpush.msra.mxu0 %v5810
    %v5812 = vand.u32 %v339, 4294901760
    %5813 = vmatpush.msra.mxu0 %v5812
    %v5814 = vand.u32 %v338, 4294901760
    %5815 = vmatpush.msra.mxu0 %v5814
    %v5816 = vand.u32 %v337, 4294901760
    %5817 = vmatpush.msra.mxu0 %v5816
    %v5818 = vand.u32 %v336, 4294901760
    %5819 = vmatpush.msra.mxu0 %v5818
    %v5820 = vand.u32 %v335, 4294901760
    %5821 = vmatpush.msra.mxu0 %v5820
    %v5822 = vand.u32 %v626, 4294901760
    %v5823 = vsub.f32 %v626, %v5822
    %v5824 = vand.u32 %v5823, 4294901760
    %v5825 = vsub.f32 %v5823, %v5824
    %v5826 = vand.u32 %v5825, 4294901760
    %5827 = vmatmul.f32.gmra.mxu0 %v5826
    %v5828 = vpop.f32.mrf.mxu0
    %v5829 = vadd.f32 %v5788, %v5828
    %5830 = vdwg.mxu0
    %v5831 = vand.u32 %v350, 4294901760
    %v5832 = vsub.f32 %v350, %v5831
    %v5833 = vand.u32 %v5832, 4294901760
    %v5834 = vsub.f32 %v5832, %v5833
    %v5835 = vand.u32 %v5834, 4294901760
    %5836 = vmatpush.msra.mxu0 %v5835
    %v5837 = vand.u32 %v349, 4294901760
    %v5838 = vsub.f32 %v349, %v5837
    %v5839 = vand.u32 %v5838, 4294901760
    %v5840 = vsub.f32 %v5838, %v5839
    %v5841 = vand.u32 %v5840, 4294901760
    %5842 = vmatpush.msra.mxu0 %v5841
    %v5843 = vand.u32 %v348, 4294901760
    %v5844 = vsub.f32 %v348, %v5843
    %v5845 = vand.u32 %v5844, 4294901760
    %v5846 = vsub.f32 %v5844, %v5845
    %v5847 = vand.u32 %v5846, 4294901760
    %5848 = vmatpush.msra.mxu0 %v5847
    %v5849 = vand.u32 %v347, 4294901760
    %v5850 = vsub.f32 %v347, %v5849
    %v5851 = vand.u32 %v5850, 4294901760
    %v5852 = vsub.f32 %v5850, %v5851
    %v5853 = vand.u32 %v5852, 4294901760
    %5854 = vmatpush.msra.mxu0 %v5853
    %v5855 = vand.u32 %v346, 4294901760
    %v5856 = vsub.f32 %v346, %v5855
    %v5857 = vand.u32 %v5856, 4294901760
    %v5858 = vsub.f32 %v5856, %v5857
    %v5859 = vand.u32 %v5858, 4294901760
    %5860 = vmatpush.msra.mxu0 %v5859
    %v5861 = vand.u32 %v345, 4294901760
    %v5862 = vsub.f32 %v345, %v5861
    %v5863 = vand.u32 %v5862, 4294901760
    %v5864 = vsub.f32 %v5862, %v5863
    %v5865 = vand.u32 %v5864, 4294901760
    %5866 = vmatpush.msra.mxu0 %v5865
    %v5867 = vand.u32 %v344, 4294901760
    %v5868 = vsub.f32 %v344, %v5867
    %v5869 = vand.u32 %v5868, 4294901760
    %v5870 = vsub.f32 %v5868, %v5869
    %v5871 = vand.u32 %v5870, 4294901760
    %5872 = vmatpush.msra.mxu0 %v5871
    %v5873 = vand.u32 %v343, 4294901760
    %v5874 = vsub.f32 %v343, %v5873
    %v5875 = vand.u32 %v5874, 4294901760
    %v5876 = vsub.f32 %v5874, %v5875
    %v5877 = vand.u32 %v5876, 4294901760
    %5878 = vmatpush.msra.mxu0 %v5877
    %v5879 = vand.u32 %v342, 4294901760
    %v5880 = vsub.f32 %v342, %v5879
    %v5881 = vand.u32 %v5880, 4294901760
    %v5882 = vsub.f32 %v5880, %v5881
    %v5883 = vand.u32 %v5882, 4294901760
    %5884 = vmatpush.msra.mxu0 %v5883
    %v5885 = vand.u32 %v341, 4294901760
    %v5886 = vsub.f32 %v341, %v5885
    %v5887 = vand.u32 %v5886, 4294901760
    %v5888 = vsub.f32 %v5886, %v5887
    %v5889 = vand.u32 %v5888, 4294901760
    %5890 = vmatpush.msra.mxu0 %v5889
    %v5891 = vand.u32 %v340, 4294901760
    %v5892 = vsub.f32 %v340, %v5891
    %v5893 = vand.u32 %v5892, 4294901760
    %v5894 = vsub.f32 %v5892, %v5893
    %v5895 = vand.u32 %v5894, 4294901760
    %5896 = vmatpush.msra.mxu0 %v5895
    %v5897 = vand.u32 %v339, 4294901760
    %v5898 = vsub.f32 %v339, %v5897
    %v5899 = vand.u32 %v5898, 4294901760
    %v5900 = vsub.f32 %v5898, %v5899
    %v5901 = vand.u32 %v5900, 4294901760
    %5902 = vmatpush.msra.mxu0 %v5901
    %v5903 = vand.u32 %v338, 4294901760
    %v5904 = vsub.f32 %v338, %v5903
    %v5905 = vand.u32 %v5904, 4294901760
    %v5906 = vsub.f32 %v5904, %v5905
    %v5907 = vand.u32 %v5906, 4294901760
    %5908 = vmatpush.msra.mxu0 %v5907
    %v5909 = vand.u32 %v337, 4294901760
    %v5910 = vsub.f32 %v337, %v5909
    %v5911 = vand.u32 %v5910, 4294901760
    %v5912 = vsub.f32 %v5910, %v5911
    %v5913 = vand.u32 %v5912, 4294901760
    %5914 = vmatpush.msra.mxu0 %v5913
    %v5915 = vand.u32 %v336, 4294901760
    %v5916 = vsub.f32 %v336, %v5915
    %v5917 = vand.u32 %v5916, 4294901760
    %v5918 = vsub.f32 %v5916, %v5917
    %v5919 = vand.u32 %v5918, 4294901760
    %5920 = vmatpush.msra.mxu0 %v5919
    %v5921 = vand.u32 %v335, 4294901760
    %v5922 = vsub.f32 %v335, %v5921
    %v5923 = vand.u32 %v5922, 4294901760
    %v5924 = vsub.f32 %v5922, %v5923
    %v5925 = vand.u32 %v5924, 4294901760
    %5926 = vmatpush.msra.mxu0 %v5925
    %v5927 = vand.u32 %v626, 4294901760
    %5928 = vmatmul.f32.gmra.mxu0 %v5927
    %v5929 = vpop.f32.mrf.mxu0
    %v5930 = vadd.f32 %v5829, %v5929
    %5931 = vdwg.mxu0
    %v5932 = vand.u32 %v350, 4294901760
    %v5933 = vsub.f32 %v350, %v5932
    %5934 = vmatpush.msra.mxu0 %v5933
    %v5935 = vand.u32 %v349, 4294901760
    %v5936 = vsub.f32 %v349, %v5935
    %5937 = vmatpush.msra.mxu0 %v5936
    %v5938 = vand.u32 %v348, 4294901760
    %v5939 = vsub.f32 %v348, %v5938
    %5940 = vmatpush.msra.mxu0 %v5939
    %v5941 = vand.u32 %v347, 4294901760
    %v5942 = vsub.f32 %v347, %v5941
    %5943 = vmatpush.msra.mxu0 %v5942
    %v5944 = vand.u32 %v346, 4294901760
    %v5945 = vsub.f32 %v346, %v5944
    %5946 = vmatpush.msra.mxu0 %v5945
    %v5947 = vand.u32 %v345, 4294901760
    %v5948 = vsub.f32 %v345, %v5947
    %5949 = vmatpush.msra.mxu0 %v5948
    %v5950 = vand.u32 %v344, 4294901760
    %v5951 = vsub.f32 %v344, %v5950
    %5952 = vmatpush.msra.mxu0 %v5951
    %v5953 = vand.u32 %v343, 4294901760
    %v5954 = vsub.f32 %v343, %v5953
    %5955 = vmatpush.msra.mxu0 %v5954
    %v5956 = vand.u32 %v342, 4294901760
    %v5957 = vsub.f32 %v342, %v5956
    %5958 = vmatpush.msra.mxu0 %v5957
    %v5959 = vand.u32 %v341, 4294901760
    %v5960 = vsub.f32 %v341, %v5959
    %5961 = vmatpush.msra.mxu0 %v5960
    %v5962 = vand.u32 %v340, 4294901760
    %v5963 = vsub.f32 %v340, %v5962
    %5964 = vmatpush.msra.mxu0 %v5963
    %v5965 = vand.u32 %v339, 4294901760
    %v5966 = vsub.f32 %v339, %v5965
    %5967 = vmatpush.msra.mxu0 %v5966
    %v5968 = vand.u32 %v338, 4294901760
    %v5969 = vsub.f32 %v338, %v5968
    %5970 = vmatpush.msra.mxu0 %v5969
    %v5971 = vand.u32 %v337, 4294901760
    %v5972 = vsub.f32 %v337, %v5971
    %5973 = vmatpush.msra.mxu0 %v5972
    %v5974 = vand.u32 %v336, 4294901760
    %v5975 = vsub.f32 %v336, %v5974
    %5976 = vmatpush.msra.mxu0 %v5975
    %v5977 = vand.u32 %v335, 4294901760
    %v5978 = vsub.f32 %v335, %v5977
    %5979 = vmatpush.msra.mxu0 %v5978
    %v5980 = vand.u32 %v626, 4294901760
    %v5981 = vsub.f32 %v626, %v5980
    %5982 = vmatmul.f32.gmra.mxu0 %v5981
    %v5983 = vpop.f32.mrf.mxu0
    %v5984 = vadd.f32 %v5930, %v5983
    %5985 = vdwg.mxu0
    %v5986 = vand.u32 %v350, 4294901760
    %5987 = vmatpush.msra.mxu0 %v5986
    %v5988 = vand.u32 %v349, 4294901760
    %5989 = vmatpush.msra.mxu0 %v5988
    %v5990 = vand.u32 %v348, 4294901760
    %5991 = vmatpush.msra.mxu0 %v5990
    %v5992 = vand.u32 %v347, 4294901760
    %5993 = vmatpush.msra.mxu0 %v5992
    %v5994 = vand.u32 %v346, 4294901760
    %5995 = vmatpush.msra.mxu0 %v5994
    %v5996 = vand.u32 %v345, 4294901760
    %5997 = vmatpush.msra.mxu0 %v5996
    %v5998 = vand.u32 %v344, 4294901760
    %5999 = vmatpush.msra.mxu0 %v5998
    %v6000 = vand.u32 %v343, 4294901760
    %6001 = vmatpush.msra.mxu0 %v6000
    %v6002 = vand.u32 %v342, 4294901760
    %6003 = vmatpush.msra.mxu0 %v6002
    %v6004 = vand.u32 %v341, 4294901760
    %6005 = vmatpush.msra.mxu0 %v6004
    %v6006 = vand.u32 %v340, 4294901760
    %6007 = vmatpush.msra.mxu0 %v6006
    %v6008 = vand.u32 %v339, 4294901760
    %6009 = vmatpush.msra.mxu0 %v6008
    %v6010 = vand.u32 %v338, 4294901760
    %6011 = vmatpush.msra.mxu0 %v6010
    %v6012 = vand.u32 %v337, 4294901760
    %6013 = vmatpush.msra.mxu0 %v6012
    %v6014 = vand.u32 %v336, 4294901760
    %6015 = vmatpush.msra.mxu0 %v6014
    %v6016 = vand.u32 %v335, 4294901760
    %6017 = vmatpush.msra.mxu0 %v6016
    %v6018 = vand.u32 %v626, 4294901760
    %v6019 = vsub.f32 %v626, %v6018
    %v6020 = vand.u32 %v6019, 4294901760
    %6021 = vmatmul.f32.gmra.mxu0 %v6020
    %v6022 = vpop.f32.mrf.mxu0
    %v6023 = vadd.f32 %v5984, %v6022
    %6024 = vdwg.mxu0
    %v6025 = vand.u32 %v350, 4294901760
    %v6026 = vsub.f32 %v350, %v6025
    %v6027 = vand.u32 %v6026, 4294901760
    %6028 = vmatpush.msra.mxu0 %v6027
    %v6029 = vand.u32 %v349, 4294901760
    %v6030 = vsub.f32 %v349, %v6029
    %v6031 = vand.u32 %v6030, 4294901760
    %6032 = vmatpush.msra.mxu0 %v6031
    %v6033 = vand.u32 %v348, 4294901760
    %v6034 = vsub.f32 %v348, %v6033
    %v6035 = vand.u32 %v6034, 4294901760
    %6036 = vmatpush.msra.mxu0 %v6035
    %v6037 = vand.u32 %v347, 4294901760
    %v6038 = vsub.f32 %v347, %v6037
    %v6039 = vand.u32 %v6038, 4294901760
    %6040 = vmatpush.msra.mxu0 %v6039
    %v6041 = vand.u32 %v346, 4294901760
    %v6042 = vsub.f32 %v346, %v6041
    %v6043 = vand.u32 %v6042, 4294901760
    %6044 = vmatpush.msra.mxu0 %v6043
    %v6045 = vand.u32 %v345, 4294901760
    %v6046 = vsub.f32 %v345, %v6045
    %v6047 = vand.u32 %v6046, 4294901760
    %6048 = vmatpush.msra.mxu0 %v6047
    %v6049 = vand.u32 %v344, 4294901760
    %v6050 = vsub.f32 %v344, %v6049
    %v6051 = vand.u32 %v6050, 4294901760
    %6052 = vmatpush.msra.mxu0 %v6051
    %v6053 = vand.u32 %v343, 4294901760
    %v6054 = vsub.f32 %v343, %v6053
    %v6055 = vand.u32 %v6054, 4294901760
    %6056 = vmatpush.msra.mxu0 %v6055
    %v6057 = vand.u32 %v342, 4294901760
    %v6058 = vsub.f32 %v342, %v6057
    %v6059 = vand.u32 %v6058, 4294901760
    %6060 = vmatpush.msra.mxu0 %v6059
    %v6061 = vand.u32 %v341, 4294901760
    %v6062 = vsub.f32 %v341, %v6061
    %v6063 = vand.u32 %v6062, 4294901760
    %6064 = vmatpush.msra.mxu0 %v6063
    %v6065 = vand.u32 %v340, 4294901760
    %v6066 = vsub.f32 %v340, %v6065
    %v6067 = vand.u32 %v6066, 4294901760
    %6068 = vmatpush.msra.mxu0 %v6067
    %v6069 = vand.u32 %v339, 4294901760
    %v6070 = vsub.f32 %v339, %v6069
    %v6071 = vand.u32 %v6070, 4294901760
    %6072 = vmatpush.msra.mxu0 %v6071
    %v6073 = vand.u32 %v338, 4294901760
    %v6074 = vsub.f32 %v338, %v6073
    %v6075 = vand.u32 %v6074, 4294901760
    %6076 = vmatpush.msra.mxu0 %v6075
    %v6077 = vand.u32 %v337, 4294901760
    %v6078 = vsub.f32 %v337, %v6077
    %v6079 = vand.u32 %v6078, 4294901760
    %6080 = vmatpush.msra.mxu0 %v6079
    %v6081 = vand.u32 %v336, 4294901760
    %v6082 = vsub.f32 %v336, %v6081
    %v6083 = vand.u32 %v6082, 4294901760
    %6084 = vmatpush.msra.mxu0 %v6083
    %v6085 = vand.u32 %v335, 4294901760
    %v6086 = vsub.f32 %v335, %v6085
    %v6087 = vand.u32 %v6086, 4294901760
    %6088 = vmatpush.msra.mxu0 %v6087
    %v6089 = vand.u32 %v626, 4294901760
    %6090 = vmatmul.f32.gmra.mxu0 %v6089
    %v6091 = vpop.f32.mrf.mxu0
    %v6092 = vadd.f32 %v6023, %v6091
    %6093 = vdwg.mxu0
    %v6094 = vand.u32 %v350, 4294901760
    %6095 = vmatpush.msra.mxu0 %v6094
    %v6096 = vand.u32 %v349, 4294901760
    %6097 = vmatpush.msra.mxu0 %v6096
    %v6098 = vand.u32 %v348, 4294901760
    %6099 = vmatpush.msra.mxu0 %v6098
    %v6100 = vand.u32 %v347, 4294901760
    %6101 = vmatpush.msra.mxu0 %v6100
    %v6102 = vand.u32 %v346, 4294901760
    %6103 = vmatpush.msra.mxu0 %v6102
    %v6104 = vand.u32 %v345, 4294901760
    %6105 = vmatpush.msra.mxu0 %v6104
    %v6106 = vand.u32 %v344, 4294901760
    %6107 = vmatpush.msra.mxu0 %v6106
    %v6108 = vand.u32 %v343, 4294901760
    %6109 = vmatpush.msra.mxu0 %v6108
    %v6110 = vand.u32 %v342, 4294901760
    %6111 = vmatpush.msra.mxu0 %v6110
    %v6112 = vand.u32 %v341, 4294901760
    %6113 = vmatpush.msra.mxu0 %v6112
    %v6114 = vand.u32 %v340, 4294901760
    %6115 = vmatpush.msra.mxu0 %v6114
    %v6116 = vand.u32 %v339, 4294901760
    %6117 = vmatpush.msra.mxu0 %v6116
    %v6118 = vand.u32 %v338, 4294901760
    %6119 = vmatpush.msra.mxu0 %v6118
    %v6120 = vand.u32 %v337, 4294901760
    %6121 = vmatpush.msra.mxu0 %v6120
    %v6122 = vand.u32 %v336, 4294901760
    %6123 = vmatpush.msra.mxu0 %v6122
    %v6124 = vand.u32 %v335, 4294901760
    %6125 = vmatpush.msra.mxu0 %v6124
    %v6126 = vand.u32 %v626, 4294901760
    %6127 = vmatmul.f32.gmra.mxu0 %v6126
    %v6128 = vpop.f32.mrf.mxu0
    %v6129 = vadd.f32 %v6092, %v6128
    %6130 = vdwg.mxu0
    %v6131 = vand.u32 %v366, 4294901760
    %6132 = vmatpush.msra.mxu0 %v6131
    %v6133 = vand.u32 %v365, 4294901760
    %6134 = vmatpush.msra.mxu0 %v6133
    %v6135 = vand.u32 %v364, 4294901760
    %6136 = vmatpush.msra.mxu0 %v6135
    %v6137 = vand.u32 %v363, 4294901760
    %6138 = vmatpush.msra.mxu0 %v6137
    %v6139 = vand.u32 %v362, 4294901760
    %6140 = vmatpush.msra.mxu0 %v6139
    %v6141 = vand.u32 %v361, 4294901760
    %6142 = vmatpush.msra.mxu0 %v6141
    %v6143 = vand.u32 %v360, 4294901760
    %6144 = vmatpush.msra.mxu0 %v6143
    %v6145 = vand.u32 %v359, 4294901760
    %6146 = vmatpush.msra.mxu0 %v6145
    %v6147 = vand.u32 %v358, 4294901760
    %6148 = vmatpush.msra.mxu0 %v6147
    %v6149 = vand.u32 %v357, 4294901760
    %6150 = vmatpush.msra.mxu0 %v6149
    %v6151 = vand.u32 %v356, 4294901760
    %6152 = vmatpush.msra.mxu0 %v6151
    %v6153 = vand.u32 %v355, 4294901760
    %6154 = vmatpush.msra.mxu0 %v6153
    %v6155 = vand.u32 %v354, 4294901760
    %6156 = vmatpush.msra.mxu0 %v6155
    %v6157 = vand.u32 %v353, 4294901760
    %6158 = vmatpush.msra.mxu0 %v6157
    %v6159 = vand.u32 %v352, 4294901760
    %6160 = vmatpush.msra.mxu0 %v6159
    %v6161 = vand.u32 %v351, 4294901760
    %6162 = vmatpush.msra.mxu0 %v6161
    %v6163 = vand.u32 %v627, 4294901760
    %v6164 = vsub.f32 %v627, %v6163
    %v6165 = vand.u32 %v6164, 4294901760
    %v6166 = vsub.f32 %v6164, %v6165
    %v6167 = vand.u32 %v6166, 4294901760
    %6168 = vmatmul.f32.gmra.mxu0 %v6167
    %v6169 = vpop.f32.mrf.mxu0
    %v6170 = vadd.f32 %v6129, %v6169
    %6171 = vdwg.mxu0
    %v6172 = vand.u32 %v366, 4294901760
    %v6173 = vsub.f32 %v366, %v6172
    %v6174 = vand.u32 %v6173, 4294901760
    %v6175 = vsub.f32 %v6173, %v6174
    %v6176 = vand.u32 %v6175, 4294901760
    %6177 = vmatpush.msra.mxu0 %v6176
    %v6178 = vand.u32 %v365, 4294901760
    %v6179 = vsub.f32 %v365, %v6178
    %v6180 = vand.u32 %v6179, 4294901760
    %v6181 = vsub.f32 %v6179, %v6180
    %v6182 = vand.u32 %v6181, 4294901760
    %6183 = vmatpush.msra.mxu0 %v6182
    %v6184 = vand.u32 %v364, 4294901760
    %v6185 = vsub.f32 %v364, %v6184
    %v6186 = vand.u32 %v6185, 4294901760
    %v6187 = vsub.f32 %v6185, %v6186
    %v6188 = vand.u32 %v6187, 4294901760
    %6189 = vmatpush.msra.mxu0 %v6188
    %v6190 = vand.u32 %v363, 4294901760
    %v6191 = vsub.f32 %v363, %v6190
    %v6192 = vand.u32 %v6191, 4294901760
    %v6193 = vsub.f32 %v6191, %v6192
    %v6194 = vand.u32 %v6193, 4294901760
    %6195 = vmatpush.msra.mxu0 %v6194
    %v6196 = vand.u32 %v362, 4294901760
    %v6197 = vsub.f32 %v362, %v6196
    %v6198 = vand.u32 %v6197, 4294901760
    %v6199 = vsub.f32 %v6197, %v6198
    %v6200 = vand.u32 %v6199, 4294901760
    %6201 = vmatpush.msra.mxu0 %v6200
    %v6202 = vand.u32 %v361, 4294901760
    %v6203 = vsub.f32 %v361, %v6202
    %v6204 = vand.u32 %v6203, 4294901760
    %v6205 = vsub.f32 %v6203, %v6204
    %v6206 = vand.u32 %v6205, 4294901760
    %6207 = vmatpush.msra.mxu0 %v6206
    %v6208 = vand.u32 %v360, 4294901760
    %v6209 = vsub.f32 %v360, %v6208
    %v6210 = vand.u32 %v6209, 4294901760
    %v6211 = vsub.f32 %v6209, %v6210
    %v6212 = vand.u32 %v6211, 4294901760
    %6213 = vmatpush.msra.mxu0 %v6212
    %v6214 = vand.u32 %v359, 4294901760
    %v6215 = vsub.f32 %v359, %v6214
    %v6216 = vand.u32 %v6215, 4294901760
    %v6217 = vsub.f32 %v6215, %v6216
    %v6218 = vand.u32 %v6217, 4294901760
    %6219 = vmatpush.msra.mxu0 %v6218
    %v6220 = vand.u32 %v358, 4294901760
    %v6221 = vsub.f32 %v358, %v6220
    %v6222 = vand.u32 %v6221, 4294901760
    %v6223 = vsub.f32 %v6221, %v6222
    %v6224 = vand.u32 %v6223, 4294901760
    %6225 = vmatpush.msra.mxu0 %v6224
    %v6226 = vand.u32 %v357, 4294901760
    %v6227 = vsub.f32 %v357, %v6226
    %v6228 = vand.u32 %v6227, 4294901760
    %v6229 = vsub.f32 %v6227, %v6228
    %v6230 = vand.u32 %v6229, 4294901760
    %6231 = vmatpush.msra.mxu0 %v6230
    %v6232 = vand.u32 %v356, 4294901760
    %v6233 = vsub.f32 %v356, %v6232
    %v6234 = vand.u32 %v6233, 4294901760
    %v6235 = vsub.f32 %v6233, %v6234
    %v6236 = vand.u32 %v6235, 4294901760
    %6237 = vmatpush.msra.mxu0 %v6236
    %v6238 = vand.u32 %v355, 4294901760
    %v6239 = vsub.f32 %v355, %v6238
    %v6240 = vand.u32 %v6239, 4294901760
    %v6241 = vsub.f32 %v6239, %v6240
    %v6242 = vand.u32 %v6241, 4294901760
    %6243 = vmatpush.msra.mxu0 %v6242
    %v6244 = vand.u32 %v354, 4294901760
    %v6245 = vsub.f32 %v354, %v6244
    %v6246 = vand.u32 %v6245, 4294901760
    %v6247 = vsub.f32 %v6245, %v6246
    %v6248 = vand.u32 %v6247, 4294901760
    %6249 = vmatpush.msra.mxu0 %v6248
    %v6250 = vand.u32 %v353, 4294901760
    %v6251 = vsub.f32 %v353, %v6250
    %v6252 = vand.u32 %v6251, 4294901760
    %v6253 = vsub.f32 %v6251, %v6252
    %v6254 = vand.u32 %v6253, 4294901760
    %6255 = vmatpush.msra.mxu0 %v6254
    %v6256 = vand.u32 %v352, 4294901760
    %v6257 = vsub.f32 %v352, %v6256
    %v6258 = vand.u32 %v6257, 4294901760
    %v6259 = vsub.f32 %v6257, %v6258
    %v6260 = vand.u32 %v6259, 4294901760
    %6261 = vmatpush.msra.mxu0 %v6260
    %v6262 = vand.u32 %v351, 4294901760
    %v6263 = vsub.f32 %v351, %v6262
    %v6264 = vand.u32 %v6263, 4294901760
    %v6265 = vsub.f32 %v6263, %v6264
    %v6266 = vand.u32 %v6265, 4294901760
    %6267 = vmatpush.msra.mxu0 %v6266
    %v6268 = vand.u32 %v627, 4294901760
    %6269 = vmatmul.f32.gmra.mxu0 %v6268
    %v6270 = vpop.f32.mrf.mxu0
    %v6271 = vadd.f32 %v6170, %v6270
    %6272 = vdwg.mxu0
    %v6273 = vand.u32 %v366, 4294901760
    %v6274 = vsub.f32 %v366, %v6273
    %6275 = vmatpush.msra.mxu0 %v6274
    %v6276 = vand.u32 %v365, 4294901760
    %v6277 = vsub.f32 %v365, %v6276
    %6278 = vmatpush.msra.mxu0 %v6277
    %v6279 = vand.u32 %v364, 4294901760
    %v6280 = vsub.f32 %v364, %v6279
    %6281 = vmatpush.msra.mxu0 %v6280
    %v6282 = vand.u32 %v363, 4294901760
    %v6283 = vsub.f32 %v363, %v6282
    %6284 = vmatpush.msra.mxu0 %v6283
    %v6285 = vand.u32 %v362, 4294901760
    %v6286 = vsub.f32 %v362, %v6285
    %6287 = vmatpush.msra.mxu0 %v6286
    %v6288 = vand.u32 %v361, 4294901760
    %v6289 = vsub.f32 %v361, %v6288
    %6290 = vmatpush.msra.mxu0 %v6289
    %v6291 = vand.u32 %v360, 4294901760
    %v6292 = vsub.f32 %v360, %v6291
    %6293 = vmatpush.msra.mxu0 %v6292
    %v6294 = vand.u32 %v359, 4294901760
    %v6295 = vsub.f32 %v359, %v6294
    %6296 = vmatpush.msra.mxu0 %v6295
    %v6297 = vand.u32 %v358, 4294901760
    %v6298 = vsub.f32 %v358, %v6297
    %6299 = vmatpush.msra.mxu0 %v6298
    %v6300 = vand.u32 %v357, 4294901760
    %v6301 = vsub.f32 %v357, %v6300
    %6302 = vmatpush.msra.mxu0 %v6301
    %v6303 = vand.u32 %v356, 4294901760
    %v6304 = vsub.f32 %v356, %v6303
    %6305 = vmatpush.msra.mxu0 %v6304
    %v6306 = vand.u32 %v355, 4294901760
    %v6307 = vsub.f32 %v355, %v6306
    %6308 = vmatpush.msra.mxu0 %v6307
    %v6309 = vand.u32 %v354, 4294901760
    %v6310 = vsub.f32 %v354, %v6309
    %6311 = vmatpush.msra.mxu0 %v6310
    %v6312 = vand.u32 %v353, 4294901760
    %v6313 = vsub.f32 %v353, %v6312
    %6314 = vmatpush.msra.mxu0 %v6313
    %v6315 = vand.u32 %v352, 4294901760
    %v6316 = vsub.f32 %v352, %v6315
    %6317 = vmatpush.msra.mxu0 %v6316
    %v6318 = vand.u32 %v351, 4294901760
    %v6319 = vsub.f32 %v351, %v6318
    %6320 = vmatpush.msra.mxu0 %v6319
    %v6321 = vand.u32 %v627, 4294901760
    %v6322 = vsub.f32 %v627, %v6321
    %6323 = vmatmul.f32.gmra.mxu0 %v6322
    %v6324 = vpop.f32.mrf.mxu0
    %v6325 = vadd.f32 %v6271, %v6324
    %6326 = vdwg.mxu0
    %v6327 = vand.u32 %v366, 4294901760
    %6328 = vmatpush.msra.mxu0 %v6327
    %v6329 = vand.u32 %v365, 4294901760
    %6330 = vmatpush.msra.mxu0 %v6329
    %v6331 = vand.u32 %v364, 4294901760
    %6332 = vmatpush.msra.mxu0 %v6331
    %v6333 = vand.u32 %v363, 4294901760
    %6334 = vmatpush.msra.mxu0 %v6333
    %v6335 = vand.u32 %v362, 4294901760
    %6336 = vmatpush.msra.mxu0 %v6335
    %v6337 = vand.u32 %v361, 4294901760
    %6338 = vmatpush.msra.mxu0 %v6337
    %v6339 = vand.u32 %v360, 4294901760
    %6340 = vmatpush.msra.mxu0 %v6339
    %v6341 = vand.u32 %v359, 4294901760
    %6342 = vmatpush.msra.mxu0 %v6341
    %v6343 = vand.u32 %v358, 4294901760
    %6344 = vmatpush.msra.mxu0 %v6343
    %v6345 = vand.u32 %v357, 4294901760
    %6346 = vmatpush.msra.mxu0 %v6345
    %v6347 = vand.u32 %v356, 4294901760
    %6348 = vmatpush.msra.mxu0 %v6347
    %v6349 = vand.u32 %v355, 4294901760
    %6350 = vmatpush.msra.mxu0 %v6349
    %v6351 = vand.u32 %v354, 4294901760
    %6352 = vmatpush.msra.mxu0 %v6351
    %v6353 = vand.u32 %v353, 4294901760
    %6354 = vmatpush.msra.mxu0 %v6353
    %v6355 = vand.u32 %v352, 4294901760
    %6356 = vmatpush.msra.mxu0 %v6355
    %v6357 = vand.u32 %v351, 4294901760
    %6358 = vmatpush.msra.mxu0 %v6357
    %v6359 = vand.u32 %v627, 4294901760
    %v6360 = vsub.f32 %v627, %v6359
    %v6361 = vand.u32 %v6360, 4294901760
    %6362 = vmatmul.f32.gmra.mxu0 %v6361
    %v6363 = vpop.f32.mrf.mxu0
    %v6364 = vadd.f32 %v6325, %v6363
    %6365 = vdwg.mxu0
    %v6366 = vand.u32 %v366, 4294901760
    %v6367 = vsub.f32 %v366, %v6366
    %v6368 = vand.u32 %v6367, 4294901760
    %6369 = vmatpush.msra.mxu0 %v6368
    %v6370 = vand.u32 %v365, 4294901760
    %v6371 = vsub.f32 %v365, %v6370
    %v6372 = vand.u32 %v6371, 4294901760
    %6373 = vmatpush.msra.mxu0 %v6372
    %v6374 = vand.u32 %v364, 4294901760
    %v6375 = vsub.f32 %v364, %v6374
    %v6376 = vand.u32 %v6375, 4294901760
    %6377 = vmatpush.msra.mxu0 %v6376
    %v6378 = vand.u32 %v363, 4294901760
    %v6379 = vsub.f32 %v363, %v6378
    %v6380 = vand.u32 %v6379, 4294901760
    %6381 = vmatpush.msra.mxu0 %v6380
    %v6382 = vand.u32 %v362, 4294901760
    %v6383 = vsub.f32 %v362, %v6382
    %v6384 = vand.u32 %v6383, 4294901760
    %6385 = vmatpush.msra.mxu0 %v6384
    %v6386 = vand.u32 %v361, 4294901760
    %v6387 = vsub.f32 %v361, %v6386
    %v6388 = vand.u32 %v6387, 4294901760
    %6389 = vmatpush.msra.mxu0 %v6388
    %v6390 = vand.u32 %v360, 4294901760
    %v6391 = vsub.f32 %v360, %v6390
    %v6392 = vand.u32 %v6391, 4294901760
    %6393 = vmatpush.msra.mxu0 %v6392
    %v6394 = vand.u32 %v359, 4294901760
    %v6395 = vsub.f32 %v359, %v6394
    %v6396 = vand.u32 %v6395, 4294901760
    %6397 = vmatpush.msra.mxu0 %v6396
    %v6398 = vand.u32 %v358, 4294901760
    %v6399 = vsub.f32 %v358, %v6398
    %v6400 = vand.u32 %v6399, 4294901760
    %6401 = vmatpush.msra.mxu0 %v6400
    %v6402 = vand.u32 %v357, 4294901760
    %v6403 = vsub.f32 %v357, %v6402
    %v6404 = vand.u32 %v6403, 4294901760
    %6405 = vmatpush.msra.mxu0 %v6404
    %v6406 = vand.u32 %v356, 4294901760
    %v6407 = vsub.f32 %v356, %v6406
    %v6408 = vand.u32 %v6407, 4294901760
    %6409 = vmatpush.msra.mxu0 %v6408
    %v6410 = vand.u32 %v355, 4294901760
    %v6411 = vsub.f32 %v355, %v6410
    %v6412 = vand.u32 %v6411, 4294901760
    %6413 = vmatpush.msra.mxu0 %v6412
    %v6414 = vand.u32 %v354, 4294901760
    %v6415 = vsub.f32 %v354, %v6414
    %v6416 = vand.u32 %v6415, 4294901760
    %6417 = vmatpush.msra.mxu0 %v6416
    %v6418 = vand.u32 %v353, 4294901760
    %v6419 = vsub.f32 %v353, %v6418
    %v6420 = vand.u32 %v6419, 4294901760
    %6421 = vmatpush.msra.mxu0 %v6420
    %v6422 = vand.u32 %v352, 4294901760
    %v6423 = vsub.f32 %v352, %v6422
    %v6424 = vand.u32 %v6423, 4294901760
    %6425 = vmatpush.msra.mxu0 %v6424
    %v6426 = vand.u32 %v351, 4294901760
    %v6427 = vsub.f32 %v351, %v6426
    %v6428 = vand.u32 %v6427, 4294901760
    %6429 = vmatpush.msra.mxu0 %v6428
    %v6430 = vand.u32 %v627, 4294901760
    %6431 = vmatmul.f32.gmra.mxu0 %v6430
    %v6432 = vpop.f32.mrf.mxu0
    %v6433 = vadd.f32 %v6364, %v6432
    %6434 = vdwg.mxu0
    %v6435 = vand.u32 %v366, 4294901760
    %6436 = vmatpush.msra.mxu0 %v6435
    %v6437 = vand.u32 %v365, 4294901760
    %6438 = vmatpush.msra.mxu0 %v6437
    %v6439 = vand.u32 %v364, 4294901760
    %6440 = vmatpush.msra.mxu0 %v6439
    %v6441 = vand.u32 %v363, 4294901760
    %6442 = vmatpush.msra.mxu0 %v6441
    %v6443 = vand.u32 %v362, 4294901760
    %6444 = vmatpush.msra.mxu0 %v6443
    %v6445 = vand.u32 %v361, 4294901760
    %6446 = vmatpush.msra.mxu0 %v6445
    %v6447 = vand.u32 %v360, 4294901760
    %6448 = vmatpush.msra.mxu0 %v6447
    %v6449 = vand.u32 %v359, 4294901760
    %6450 = vmatpush.msra.mxu0 %v6449
    %v6451 = vand.u32 %v358, 4294901760
    %6452 = vmatpush.msra.mxu0 %v6451
    %v6453 = vand.u32 %v357, 4294901760
    %6454 = vmatpush.msra.mxu0 %v6453
    %v6455 = vand.u32 %v356, 4294901760
    %6456 = vmatpush.msra.mxu0 %v6455
    %v6457 = vand.u32 %v355, 4294901760
    %6458 = vmatpush.msra.mxu0 %v6457
    %v6459 = vand.u32 %v354, 4294901760
    %6460 = vmatpush.msra.mxu0 %v6459
    %v6461 = vand.u32 %v353, 4294901760
    %6462 = vmatpush.msra.mxu0 %v6461
    %v6463 = vand.u32 %v352, 4294901760
    %6464 = vmatpush.msra.mxu0 %v6463
    %v6465 = vand.u32 %v351, 4294901760
    %6466 = vmatpush.msra.mxu0 %v6465
    %v6467 = vand.u32 %v627, 4294901760
    %6468 = vmatmul.f32.gmra.mxu0 %v6467
    %v6469 = vpop.f32.mrf.mxu0
    %v6470 = vadd.f32 %v6433, %v6469
    %6471 = vdwg.mxu0
    %v6472 = vand.u32 %v382, 4294901760
    %6473 = vmatpush.msra.mxu0 %v6472
    %v6474 = vand.u32 %v381, 4294901760
    %6475 = vmatpush.msra.mxu0 %v6474
    %v6476 = vand.u32 %v380, 4294901760
    %6477 = vmatpush.msra.mxu0 %v6476
    %v6478 = vand.u32 %v379, 4294901760
    %6479 = vmatpush.msra.mxu0 %v6478
    %v6480 = vand.u32 %v378, 4294901760
    %6481 = vmatpush.msra.mxu0 %v6480
    %v6482 = vand.u32 %v377, 4294901760
    %6483 = vmatpush.msra.mxu0 %v6482
    %v6484 = vand.u32 %v376, 4294901760
    %6485 = vmatpush.msra.mxu0 %v6484
    %v6486 = vand.u32 %v375, 4294901760
    %6487 = vmatpush.msra.mxu0 %v6486
    %v6488 = vand.u32 %v374, 4294901760
    %6489 = vmatpush.msra.mxu0 %v6488
    %v6490 = vand.u32 %v373, 4294901760
    %6491 = vmatpush.msra.mxu0 %v6490
    %v6492 = vand.u32 %v372, 4294901760
    %6493 = vmatpush.msra.mxu0 %v6492
    %v6494 = vand.u32 %v371, 4294901760
    %6495 = vmatpush.msra.mxu0 %v6494
    %v6496 = vand.u32 %v370, 4294901760
    %6497 = vmatpush.msra.mxu0 %v6496
    %v6498 = vand.u32 %v369, 4294901760
    %6499 = vmatpush.msra.mxu0 %v6498
    %v6500 = vand.u32 %v368, 4294901760
    %6501 = vmatpush.msra.mxu0 %v6500
    %v6502 = vand.u32 %v367, 4294901760
    %6503 = vmatpush.msra.mxu0 %v6502
    %v6504 = vand.u32 %v628, 4294901760
    %v6505 = vsub.f32 %v628, %v6504
    %v6506 = vand.u32 %v6505, 4294901760
    %v6507 = vsub.f32 %v6505, %v6506
    %v6508 = vand.u32 %v6507, 4294901760
    %6509 = vmatmul.f32.gmra.mxu0 %v6508
    %v6510 = vpop.f32.mrf.mxu0
    %v6511 = vadd.f32 %v6470, %v6510
    %6512 = vdwg.mxu0
    %v6513 = vand.u32 %v382, 4294901760
    %v6514 = vsub.f32 %v382, %v6513
    %v6515 = vand.u32 %v6514, 4294901760
    %v6516 = vsub.f32 %v6514, %v6515
    %v6517 = vand.u32 %v6516, 4294901760
    %6518 = vmatpush.msra.mxu0 %v6517
    %v6519 = vand.u32 %v381, 4294901760
    %v6520 = vsub.f32 %v381, %v6519
    %v6521 = vand.u32 %v6520, 4294901760
    %v6522 = vsub.f32 %v6520, %v6521
    %v6523 = vand.u32 %v6522, 4294901760
    %6524 = vmatpush.msra.mxu0 %v6523
    %v6525 = vand.u32 %v380, 4294901760
    %v6526 = vsub.f32 %v380, %v6525
    %v6527 = vand.u32 %v6526, 4294901760
    %v6528 = vsub.f32 %v6526, %v6527
    %v6529 = vand.u32 %v6528, 4294901760
    %6530 = vmatpush.msra.mxu0 %v6529
    %v6531 = vand.u32 %v379, 4294901760
    %v6532 = vsub.f32 %v379, %v6531
    %v6533 = vand.u32 %v6532, 4294901760
    %v6534 = vsub.f32 %v6532, %v6533
    %v6535 = vand.u32 %v6534, 4294901760
    %6536 = vmatpush.msra.mxu0 %v6535
    %v6537 = vand.u32 %v378, 4294901760
    %v6538 = vsub.f32 %v378, %v6537
    %v6539 = vand.u32 %v6538, 4294901760
    %v6540 = vsub.f32 %v6538, %v6539
    %v6541 = vand.u32 %v6540, 4294901760
    %6542 = vmatpush.msra.mxu0 %v6541
    %v6543 = vand.u32 %v377, 4294901760
    %v6544 = vsub.f32 %v377, %v6543
    %v6545 = vand.u32 %v6544, 4294901760
    %v6546 = vsub.f32 %v6544, %v6545
    %v6547 = vand.u32 %v6546, 4294901760
    %6548 = vmatpush.msra.mxu0 %v6547
    %v6549 = vand.u32 %v376, 4294901760
    %v6550 = vsub.f32 %v376, %v6549
    %v6551 = vand.u32 %v6550, 4294901760
    %v6552 = vsub.f32 %v6550, %v6551
    %v6553 = vand.u32 %v6552, 4294901760
    %6554 = vmatpush.msra.mxu0 %v6553
    %v6555 = vand.u32 %v375, 4294901760
    %v6556 = vsub.f32 %v375, %v6555
    %v6557 = vand.u32 %v6556, 4294901760
    %v6558 = vsub.f32 %v6556, %v6557
    %v6559 = vand.u32 %v6558, 4294901760
    %6560 = vmatpush.msra.mxu0 %v6559
    %v6561 = vand.u32 %v374, 4294901760
    %v6562 = vsub.f32 %v374, %v6561
    %v6563 = vand.u32 %v6562, 4294901760
    %v6564 = vsub.f32 %v6562, %v6563
    %v6565 = vand.u32 %v6564, 4294901760
    %6566 = vmatpush.msra.mxu0 %v6565
    %v6567 = vand.u32 %v373, 4294901760
    %v6568 = vsub.f32 %v373, %v6567
    %v6569 = vand.u32 %v6568, 4294901760
    %v6570 = vsub.f32 %v6568, %v6569
    %v6571 = vand.u32 %v6570, 4294901760
    %6572 = vmatpush.msra.mxu0 %v6571
    %v6573 = vand.u32 %v372, 4294901760
    %v6574 = vsub.f32 %v372, %v6573
    %v6575 = vand.u32 %v6574, 4294901760
    %v6576 = vsub.f32 %v6574, %v6575
    %v6577 = vand.u32 %v6576, 4294901760
    %6578 = vmatpush.msra.mxu0 %v6577
    %v6579 = vand.u32 %v371, 4294901760
    %v6580 = vsub.f32 %v371, %v6579
    %v6581 = vand.u32 %v6580, 4294901760
    %v6582 = vsub.f32 %v6580, %v6581
    %v6583 = vand.u32 %v6582, 4294901760
    %6584 = vmatpush.msra.mxu0 %v6583
    %v6585 = vand.u32 %v370, 4294901760
    %v6586 = vsub.f32 %v370, %v6585
    %v6587 = vand.u32 %v6586, 4294901760
    %v6588 = vsub.f32 %v6586, %v6587
    %v6589 = vand.u32 %v6588, 4294901760
    %6590 = vmatpush.msra.mxu0 %v6589
    %v6591 = vand.u32 %v369, 4294901760
    %v6592 = vsub.f32 %v369, %v6591
    %v6593 = vand.u32 %v6592, 4294901760
    %v6594 = vsub.f32 %v6592, %v6593
    %v6595 = vand.u32 %v6594, 4294901760
    %6596 = vmatpush.msra.mxu0 %v6595
    %v6597 = vand.u32 %v368, 4294901760
    %v6598 = vsub.f32 %v368, %v6597
    %v6599 = vand.u32 %v6598, 4294901760
    %v6600 = vsub.f32 %v6598, %v6599
    %v6601 = vand.u32 %v6600, 4294901760
    %6602 = vmatpush.msra.mxu0 %v6601
    %v6603 = vand.u32 %v367, 4294901760
    %v6604 = vsub.f32 %v367, %v6603
    %v6605 = vand.u32 %v6604, 4294901760
    %v6606 = vsub.f32 %v6604, %v6605
    %v6607 = vand.u32 %v6606, 4294901760
    %6608 = vmatpush.msra.mxu0 %v6607
    %v6609 = vand.u32 %v628, 4294901760
    %6610 = vmatmul.f32.gmra.mxu0 %v6609
    %v6611 = vpop.f32.mrf.mxu0
    %v6612 = vadd.f32 %v6511, %v6611
    %6613 = vdwg.mxu0
    %v6614 = vand.u32 %v382, 4294901760
    %v6615 = vsub.f32 %v382, %v6614
    %6616 = vmatpush.msra.mxu0 %v6615
    %v6617 = vand.u32 %v381, 4294901760
    %v6618 = vsub.f32 %v381, %v6617
    %6619 = vmatpush.msra.mxu0 %v6618
    %v6620 = vand.u32 %v380, 4294901760
    %v6621 = vsub.f32 %v380, %v6620
    %6622 = vmatpush.msra.mxu0 %v6621
    %v6623 = vand.u32 %v379, 4294901760
    %v6624 = vsub.f32 %v379, %v6623
    %6625 = vmatpush.msra.mxu0 %v6624
    %v6626 = vand.u32 %v378, 4294901760
    %v6627 = vsub.f32 %v378, %v6626
    %6628 = vmatpush.msra.mxu0 %v6627
    %v6629 = vand.u32 %v377, 4294901760
    %v6630 = vsub.f32 %v377, %v6629
    %6631 = vmatpush.msra.mxu0 %v6630
    %v6632 = vand.u32 %v376, 4294901760
    %v6633 = vsub.f32 %v376, %v6632
    %6634 = vmatpush.msra.mxu0 %v6633
    %v6635 = vand.u32 %v375, 4294901760
    %v6636 = vsub.f32 %v375, %v6635
    %6637 = vmatpush.msra.mxu0 %v6636
    %v6638 = vand.u32 %v374, 4294901760
    %v6639 = vsub.f32 %v374, %v6638
    %6640 = vmatpush.msra.mxu0 %v6639
    %v6641 = vand.u32 %v373, 4294901760
    %v6642 = vsub.f32 %v373, %v6641
    %6643 = vmatpush.msra.mxu0 %v6642
    %v6644 = vand.u32 %v372, 4294901760
    %v6645 = vsub.f32 %v372, %v6644
    %6646 = vmatpush.msra.mxu0 %v6645
    %v6647 = vand.u32 %v371, 4294901760
    %v6648 = vsub.f32 %v371, %v6647
    %6649 = vmatpush.msra.mxu0 %v6648
    %v6650 = vand.u32 %v370, 4294901760
    %v6651 = vsub.f32 %v370, %v6650
    %6652 = vmatpush.msra.mxu0 %v6651
    %v6653 = vand.u32 %v369, 4294901760
    %v6654 = vsub.f32 %v369, %v6653
    %6655 = vmatpush.msra.mxu0 %v6654
    %v6656 = vand.u32 %v368, 4294901760
    %v6657 = vsub.f32 %v368, %v6656
    %6658 = vmatpush.msra.mxu0 %v6657
    %v6659 = vand.u32 %v367, 4294901760
    %v6660 = vsub.f32 %v367, %v6659
    %6661 = vmatpush.msra.mxu0 %v6660
    %v6662 = vand.u32 %v628, 4294901760
    %v6663 = vsub.f32 %v628, %v6662
    %6664 = vmatmul.f32.gmra.mxu0 %v6663
    %v6665 = vpop.f32.mrf.mxu0
    %v6666 = vadd.f32 %v6612, %v6665
    %6667 = vdwg.mxu0
    %v6668 = vand.u32 %v382, 4294901760
    %6669 = vmatpush.msra.mxu0 %v6668
    %v6670 = vand.u32 %v381, 4294901760
    %6671 = vmatpush.msra.mxu0 %v6670
    %v6672 = vand.u32 %v380, 4294901760
    %6673 = vmatpush.msra.mxu0 %v6672
    %v6674 = vand.u32 %v379, 4294901760
    %6675 = vmatpush.msra.mxu0 %v6674
    %v6676 = vand.u32 %v378, 4294901760
    %6677 = vmatpush.msra.mxu0 %v6676
    %v6678 = vand.u32 %v377, 4294901760
    %6679 = vmatpush.msra.mxu0 %v6678
    %v6680 = vand.u32 %v376, 4294901760
    %6681 = vmatpush.msra.mxu0 %v6680
    %v6682 = vand.u32 %v375, 4294901760
    %6683 = vmatpush.msra.mxu0 %v6682
    %v6684 = vand.u32 %v374, 4294901760
    %6685 = vmatpush.msra.mxu0 %v6684
    %v6686 = vand.u32 %v373, 4294901760
    %6687 = vmatpush.msra.mxu0 %v6686
    %v6688 = vand.u32 %v372, 4294901760
    %6689 = vmatpush.msra.mxu0 %v6688
    %v6690 = vand.u32 %v371, 4294901760
    %6691 = vmatpush.msra.mxu0 %v6690
    %v6692 = vand.u32 %v370, 4294901760
    %6693 = vmatpush.msra.mxu0 %v6692
    %v6694 = vand.u32 %v369, 4294901760
    %6695 = vmatpush.msra.mxu0 %v6694
    %v6696 = vand.u32 %v368, 4294901760
    %6697 = vmatpush.msra.mxu0 %v6696
    %v6698 = vand.u32 %v367, 4294901760
    %6699 = vmatpush.msra.mxu0 %v6698
    %v6700 = vand.u32 %v628, 4294901760
    %v6701 = vsub.f32 %v628, %v6700
    %v6702 = vand.u32 %v6701, 4294901760
    %6703 = vmatmul.f32.gmra.mxu0 %v6702
    %v6704 = vpop.f32.mrf.mxu0
    %v6705 = vadd.f32 %v6666, %v6704
    %6706 = vdwg.mxu0
    %v6707 = vand.u32 %v382, 4294901760
    %v6708 = vsub.f32 %v382, %v6707
    %v6709 = vand.u32 %v6708, 4294901760
    %6710 = vmatpush.msra.mxu0 %v6709
    %v6711 = vand.u32 %v381, 4294901760
    %v6712 = vsub.f32 %v381, %v6711
    %v6713 = vand.u32 %v6712, 4294901760
    %6714 = vmatpush.msra.mxu0 %v6713
    %v6715 = vand.u32 %v380, 4294901760
    %v6716 = vsub.f32 %v380, %v6715
    %v6717 = vand.u32 %v6716, 4294901760
    %6718 = vmatpush.msra.mxu0 %v6717
    %v6719 = vand.u32 %v379, 4294901760
    %v6720 = vsub.f32 %v379, %v6719
    %v6721 = vand.u32 %v6720, 4294901760
    %6722 = vmatpush.msra.mxu0 %v6721
    %v6723 = vand.u32 %v378, 4294901760
    %v6724 = vsub.f32 %v378, %v6723
    %v6725 = vand.u32 %v6724, 4294901760
    %6726 = vmatpush.msra.mxu0 %v6725
    %v6727 = vand.u32 %v377, 4294901760
    %v6728 = vsub.f32 %v377, %v6727
    %v6729 = vand.u32 %v6728, 4294901760
    %6730 = vmatpush.msra.mxu0 %v6729
    %v6731 = vand.u32 %v376, 4294901760
    %v6732 = vsub.f32 %v376, %v6731
    %v6733 = vand.u32 %v6732, 4294901760
    %6734 = vmatpush.msra.mxu0 %v6733
    %v6735 = vand.u32 %v375, 4294901760
    %v6736 = vsub.f32 %v375, %v6735
    %v6737 = vand.u32 %v6736, 4294901760
    %6738 = vmatpush.msra.mxu0 %v6737
    %v6739 = vand.u32 %v374, 4294901760
    %v6740 = vsub.f32 %v374, %v6739
    %v6741 = vand.u32 %v6740, 4294901760
    %6742 = vmatpush.msra.mxu0 %v6741
    %v6743 = vand.u32 %v373, 4294901760
    %v6744 = vsub.f32 %v373, %v6743
    %v6745 = vand.u32 %v6744, 4294901760
    %6746 = vmatpush.msra.mxu0 %v6745
    %v6747 = vand.u32 %v372, 4294901760
    %v6748 = vsub.f32 %v372, %v6747
    %v6749 = vand.u32 %v6748, 4294901760
    %6750 = vmatpush.msra.mxu0 %v6749
    %v6751 = vand.u32 %v371, 4294901760
    %v6752 = vsub.f32 %v371, %v6751
    %v6753 = vand.u32 %v6752, 4294901760
    %6754 = vmatpush.msra.mxu0 %v6753
    %v6755 = vand.u32 %v370, 4294901760
    %v6756 = vsub.f32 %v370, %v6755
    %v6757 = vand.u32 %v6756, 4294901760
    %6758 = vmatpush.msra.mxu0 %v6757
    %v6759 = vand.u32 %v369, 4294901760
    %v6760 = vsub.f32 %v369, %v6759
    %v6761 = vand.u32 %v6760, 4294901760
    %6762 = vmatpush.msra.mxu0 %v6761
    %v6763 = vand.u32 %v368, 4294901760
    %v6764 = vsub.f32 %v368, %v6763
    %v6765 = vand.u32 %v6764, 4294901760
    %6766 = vmatpush.msra.mxu0 %v6765
    %v6767 = vand.u32 %v367, 4294901760
    %v6768 = vsub.f32 %v367, %v6767
    %v6769 = vand.u32 %v6768, 4294901760
    %6770 = vmatpush.msra.mxu0 %v6769
    %v6771 = vand.u32 %v628, 4294901760
    %6772 = vmatmul.f32.gmra.mxu0 %v6771
    %v6773 = vpop.f32.mrf.mxu0
    %v6774 = vadd.f32 %v6705, %v6773
    %6775 = vdwg.mxu0
    %v6776 = vand.u32 %v382, 4294901760
    %6777 = vmatpush.msra.mxu0 %v6776
    %v6778 = vand.u32 %v381, 4294901760
    %6779 = vmatpush.msra.mxu0 %v6778
    %v6780 = vand.u32 %v380, 4294901760
    %6781 = vmatpush.msra.mxu0 %v6780
    %v6782 = vand.u32 %v379, 4294901760
    %6783 = vmatpush.msra.mxu0 %v6782
    %v6784 = vand.u32 %v378, 4294901760
    %6785 = vmatpush.msra.mxu0 %v6784
    %v6786 = vand.u32 %v377, 4294901760
    %6787 = vmatpush.msra.mxu0 %v6786
    %v6788 = vand.u32 %v376, 4294901760
    %6789 = vmatpush.msra.mxu0 %v6788
    %v6790 = vand.u32 %v375, 4294901760
    %6791 = vmatpush.msra.mxu0 %v6790
    %v6792 = vand.u32 %v374, 4294901760
    %6793 = vmatpush.msra.mxu0 %v6792
    %v6794 = vand.u32 %v373, 4294901760
    %6795 = vmatpush.msra.mxu0 %v6794
    %v6796 = vand.u32 %v372, 4294901760
    %6797 = vmatpush.msra.mxu0 %v6796
    %v6798 = vand.u32 %v371, 4294901760
    %6799 = vmatpush.msra.mxu0 %v6798
    %v6800 = vand.u32 %v370, 4294901760
    %6801 = vmatpush.msra.mxu0 %v6800
    %v6802 = vand.u32 %v369, 4294901760
    %6803 = vmatpush.msra.mxu0 %v6802
    %v6804 = vand.u32 %v368, 4294901760
    %6805 = vmatpush.msra.mxu0 %v6804
    %v6806 = vand.u32 %v367, 4294901760
    %6807 = vmatpush.msra.mxu0 %v6806
    %v6808 = vand.u32 %v628, 4294901760
    %6809 = vmatmul.f32.gmra.mxu0 %v6808
    %v6810 = vpop.f32.mrf.mxu0
    %v6811 = vadd.f32 %v6774, %v6810
    %6812 = vdwg.mxu0
    %v6813 = vand.u32 %v398, 4294901760
    %6814 = vmatpush.msra.mxu0 %v6813
    %v6815 = vand.u32 %v397, 4294901760
    %6816 = vmatpush.msra.mxu0 %v6815
    %v6817 = vand.u32 %v396, 4294901760
    %6818 = vmatpush.msra.mxu0 %v6817
    %v6819 = vand.u32 %v395, 4294901760
    %6820 = vmatpush.msra.mxu0 %v6819
    %v6821 = vand.u32 %v394, 4294901760
    %6822 = vmatpush.msra.mxu0 %v6821
    %v6823 = vand.u32 %v393, 4294901760
    %6824 = vmatpush.msra.mxu0 %v6823
    %v6825 = vand.u32 %v392, 4294901760
    %6826 = vmatpush.msra.mxu0 %v6825
    %v6827 = vand.u32 %v391, 4294901760
    %6828 = vmatpush.msra.mxu0 %v6827
    %v6829 = vand.u32 %v390, 4294901760
    %6830 = vmatpush.msra.mxu0 %v6829
    %v6831 = vand.u32 %v389, 4294901760
    %6832 = vmatpush.msra.mxu0 %v6831
    %v6833 = vand.u32 %v388, 4294901760
    %6834 = vmatpush.msra.mxu0 %v6833
    %v6835 = vand.u32 %v387, 4294901760
    %6836 = vmatpush.msra.mxu0 %v6835
    %v6837 = vand.u32 %v386, 4294901760
    %6838 = vmatpush.msra.mxu0 %v6837
    %v6839 = vand.u32 %v385, 4294901760
    %6840 = vmatpush.msra.mxu0 %v6839
    %v6841 = vand.u32 %v384, 4294901760
    %6842 = vmatpush.msra.mxu0 %v6841
    %v6843 = vand.u32 %v383, 4294901760
    %6844 = vmatpush.msra.mxu0 %v6843
    %v6845 = vand.u32 %v629, 4294901760
    %v6846 = vsub.f32 %v629, %v6845
    %v6847 = vand.u32 %v6846, 4294901760
    %v6848 = vsub.f32 %v6846, %v6847
    %v6849 = vand.u32 %v6848, 4294901760
    %6850 = vmatmul.f32.gmra.mxu0 %v6849
    %v6851 = vpop.f32.mrf.mxu0
    %v6852 = vadd.f32 %v6811, %v6851
    %6853 = vdwg.mxu0
    %v6854 = vand.u32 %v398, 4294901760
    %v6855 = vsub.f32 %v398, %v6854
    %v6856 = vand.u32 %v6855, 4294901760
    %v6857 = vsub.f32 %v6855, %v6856
    %v6858 = vand.u32 %v6857, 4294901760
    %6859 = vmatpush.msra.mxu0 %v6858
    %v6860 = vand.u32 %v397, 4294901760
    %v6861 = vsub.f32 %v397, %v6860
    %v6862 = vand.u32 %v6861, 4294901760
    %v6863 = vsub.f32 %v6861, %v6862
    %v6864 = vand.u32 %v6863, 4294901760
    %6865 = vmatpush.msra.mxu0 %v6864
    %v6866 = vand.u32 %v396, 4294901760
    %v6867 = vsub.f32 %v396, %v6866
    %v6868 = vand.u32 %v6867, 4294901760
    %v6869 = vsub.f32 %v6867, %v6868
    %v6870 = vand.u32 %v6869, 4294901760
    %6871 = vmatpush.msra.mxu0 %v6870
    %v6872 = vand.u32 %v395, 4294901760
    %v6873 = vsub.f32 %v395, %v6872
    %v6874 = vand.u32 %v6873, 4294901760
    %v6875 = vsub.f32 %v6873, %v6874
    %v6876 = vand.u32 %v6875, 4294901760
    %6877 = vmatpush.msra.mxu0 %v6876
    %v6878 = vand.u32 %v394, 4294901760
    %v6879 = vsub.f32 %v394, %v6878
    %v6880 = vand.u32 %v6879, 4294901760
    %v6881 = vsub.f32 %v6879, %v6880
    %v6882 = vand.u32 %v6881, 4294901760
    %6883 = vmatpush.msra.mxu0 %v6882
    %v6884 = vand.u32 %v393, 4294901760
    %v6885 = vsub.f32 %v393, %v6884
    %v6886 = vand.u32 %v6885, 4294901760
    %v6887 = vsub.f32 %v6885, %v6886
    %v6888 = vand.u32 %v6887, 4294901760
    %6889 = vmatpush.msra.mxu0 %v6888
    %v6890 = vand.u32 %v392, 4294901760
    %v6891 = vsub.f32 %v392, %v6890
    %v6892 = vand.u32 %v6891, 4294901760
    %v6893 = vsub.f32 %v6891, %v6892
    %v6894 = vand.u32 %v6893, 4294901760
    %6895 = vmatpush.msra.mxu0 %v6894
    %v6896 = vand.u32 %v391, 4294901760
    %v6897 = vsub.f32 %v391, %v6896
    %v6898 = vand.u32 %v6897, 4294901760
    %v6899 = vsub.f32 %v6897, %v6898
    %v6900 = vand.u32 %v6899, 4294901760
    %6901 = vmatpush.msra.mxu0 %v6900
    %v6902 = vand.u32 %v390, 4294901760
    %v6903 = vsub.f32 %v390, %v6902
    %v6904 = vand.u32 %v6903, 4294901760
    %v6905 = vsub.f32 %v6903, %v6904
    %v6906 = vand.u32 %v6905, 4294901760
    %6907 = vmatpush.msra.mxu0 %v6906
    %v6908 = vand.u32 %v389, 4294901760
    %v6909 = vsub.f32 %v389, %v6908
    %v6910 = vand.u32 %v6909, 4294901760
    %v6911 = vsub.f32 %v6909, %v6910
    %v6912 = vand.u32 %v6911, 4294901760
    %6913 = vmatpush.msra.mxu0 %v6912
    %v6914 = vand.u32 %v388, 4294901760
    %v6915 = vsub.f32 %v388, %v6914
    %v6916 = vand.u32 %v6915, 4294901760
    %v6917 = vsub.f32 %v6915, %v6916
    %v6918 = vand.u32 %v6917, 4294901760
    %6919 = vmatpush.msra.mxu0 %v6918
    %v6920 = vand.u32 %v387, 4294901760
    %v6921 = vsub.f32 %v387, %v6920
    %v6922 = vand.u32 %v6921, 4294901760
    %v6923 = vsub.f32 %v6921, %v6922
    %v6924 = vand.u32 %v6923, 4294901760
    %6925 = vmatpush.msra.mxu0 %v6924
    %v6926 = vand.u32 %v386, 4294901760
    %v6927 = vsub.f32 %v386, %v6926
    %v6928 = vand.u32 %v6927, 4294901760
    %v6929 = vsub.f32 %v6927, %v6928
    %v6930 = vand.u32 %v6929, 4294901760
    %6931 = vmatpush.msra.mxu0 %v6930
    %v6932 = vand.u32 %v385, 4294901760
    %v6933 = vsub.f32 %v385, %v6932
    %v6934 = vand.u32 %v6933, 4294901760
    %v6935 = vsub.f32 %v6933, %v6934
    %v6936 = vand.u32 %v6935, 4294901760
    %6937 = vmatpush.msra.mxu0 %v6936
    %v6938 = vand.u32 %v384, 4294901760
    %v6939 = vsub.f32 %v384, %v6938
    %v6940 = vand.u32 %v6939, 4294901760
    %v6941 = vsub.f32 %v6939, %v6940
    %v6942 = vand.u32 %v6941, 4294901760
    %6943 = vmatpush.msra.mxu0 %v6942
    %v6944 = vand.u32 %v383, 4294901760
    %v6945 = vsub.f32 %v383, %v6944
    %v6946 = vand.u32 %v6945, 4294901760
    %v6947 = vsub.f32 %v6945, %v6946
    %v6948 = vand.u32 %v6947, 4294901760
    %6949 = vmatpush.msra.mxu0 %v6948
    %v6950 = vand.u32 %v629, 4294901760
    %6951 = vmatmul.f32.gmra.mxu0 %v6950
    %v6952 = vpop.f32.mrf.mxu0
    %v6953 = vadd.f32 %v6852, %v6952
    %6954 = vdwg.mxu0
    %v6955 = vand.u32 %v398, 4294901760
    %v6956 = vsub.f32 %v398, %v6955
    %6957 = vmatpush.msra.mxu0 %v6956
    %v6958 = vand.u32 %v397, 4294901760
    %v6959 = vsub.f32 %v397, %v6958
    %6960 = vmatpush.msra.mxu0 %v6959
    %v6961 = vand.u32 %v396, 4294901760
    %v6962 = vsub.f32 %v396, %v6961
    %6963 = vmatpush.msra.mxu0 %v6962
    %v6964 = vand.u32 %v395, 4294901760
    %v6965 = vsub.f32 %v395, %v6964
    %6966 = vmatpush.msra.mxu0 %v6965
    %v6967 = vand.u32 %v394, 4294901760
    %v6968 = vsub.f32 %v394, %v6967
    %6969 = vmatpush.msra.mxu0 %v6968
    %v6970 = vand.u32 %v393, 4294901760
    %v6971 = vsub.f32 %v393, %v6970
    %6972 = vmatpush.msra.mxu0 %v6971
    %v6973 = vand.u32 %v392, 4294901760
    %v6974 = vsub.f32 %v392, %v6973
    %6975 = vmatpush.msra.mxu0 %v6974
    %v6976 = vand.u32 %v391, 4294901760
    %v6977 = vsub.f32 %v391, %v6976
    %6978 = vmatpush.msra.mxu0 %v6977
    %v6979 = vand.u32 %v390, 4294901760
    %v6980 = vsub.f32 %v390, %v6979
    %6981 = vmatpush.msra.mxu0 %v6980
    %v6982 = vand.u32 %v389, 4294901760
    %v6983 = vsub.f32 %v389, %v6982
    %6984 = vmatpush.msra.mxu0 %v6983
    %v6985 = vand.u32 %v388, 4294901760
    %v6986 = vsub.f32 %v388, %v6985
    %6987 = vmatpush.msra.mxu0 %v6986
    %v6988 = vand.u32 %v387, 4294901760
    %v6989 = vsub.f32 %v387, %v6988
    %6990 = vmatpush.msra.mxu0 %v6989
    %v6991 = vand.u32 %v386, 4294901760
    %v6992 = vsub.f32 %v386, %v6991
    %6993 = vmatpush.msra.mxu0 %v6992
    %v6994 = vand.u32 %v385, 4294901760
    %v6995 = vsub.f32 %v385, %v6994
    %6996 = vmatpush.msra.mxu0 %v6995
    %v6997 = vand.u32 %v384, 4294901760
    %v6998 = vsub.f32 %v384, %v6997
    %6999 = vmatpush.msra.mxu0 %v6998
    %v7000 = vand.u32 %v383, 4294901760
    %v7001 = vsub.f32 %v383, %v7000
    %7002 = vmatpush.msra.mxu0 %v7001
    %v7003 = vand.u32 %v629, 4294901760
    %v7004 = vsub.f32 %v629, %v7003
    %7005 = vmatmul.f32.gmra.mxu0 %v7004
    %v7006 = vpop.f32.mrf.mxu0
    %v7007 = vadd.f32 %v6953, %v7006
    %7008 = vdwg.mxu0
    %v7009 = vand.u32 %v398, 4294901760
    %7010 = vmatpush.msra.mxu0 %v7009
    %v7011 = vand.u32 %v397, 4294901760
    %7012 = vmatpush.msra.mxu0 %v7011
    %v7013 = vand.u32 %v396, 4294901760
    %7014 = vmatpush.msra.mxu0 %v7013
    %v7015 = vand.u32 %v395, 4294901760
    %7016 = vmatpush.msra.mxu0 %v7015
    %v7017 = vand.u32 %v394, 4294901760
    %7018 = vmatpush.msra.mxu0 %v7017
    %v7019 = vand.u32 %v393, 4294901760
    %7020 = vmatpush.msra.mxu0 %v7019
    %v7021 = vand.u32 %v392, 4294901760
    %7022 = vmatpush.msra.mxu0 %v7021
    %v7023 = vand.u32 %v391, 4294901760
    %7024 = vmatpush.msra.mxu0 %v7023
    %v7025 = vand.u32 %v390, 4294901760
    %7026 = vmatpush.msra.mxu0 %v7025
    %v7027 = vand.u32 %v389, 4294901760
    %7028 = vmatpush.msra.mxu0 %v7027
    %v7029 = vand.u32 %v388, 4294901760
    %7030 = vmatpush.msra.mxu0 %v7029
    %v7031 = vand.u32 %v387, 4294901760
    %7032 = vmatpush.msra.mxu0 %v7031
    %v7033 = vand.u32 %v386, 4294901760
    %7034 = vmatpush.msra.mxu0 %v7033
    %v7035 = vand.u32 %v385, 4294901760
    %7036 = vmatpush.msra.mxu0 %v7035
    %v7037 = vand.u32 %v384, 4294901760
    %7038 = vmatpush.msra.mxu0 %v7037
    %v7039 = vand.u32 %v383, 4294901760
    %7040 = vmatpush.msra.mxu0 %v7039
    %v7041 = vand.u32 %v629, 4294901760
    %v7042 = vsub.f32 %v629, %v7041
    %v7043 = vand.u32 %v7042, 4294901760
    %7044 = vmatmul.f32.gmra.mxu0 %v7043
    %v7045 = vpop.f32.mrf.mxu0
    %v7046 = vadd.f32 %v7007, %v7045
    %7047 = vdwg.mxu0
    %v7048 = vand.u32 %v398, 4294901760
    %v7049 = vsub.f32 %v398, %v7048
    %v7050 = vand.u32 %v7049, 4294901760
    %7051 = vmatpush.msra.mxu0 %v7050
    %v7052 = vand.u32 %v397, 4294901760
    %v7053 = vsub.f32 %v397, %v7052
    %v7054 = vand.u32 %v7053, 4294901760
    %7055 = vmatpush.msra.mxu0 %v7054
    %v7056 = vand.u32 %v396, 4294901760
    %v7057 = vsub.f32 %v396, %v7056
    %v7058 = vand.u32 %v7057, 4294901760
    %7059 = vmatpush.msra.mxu0 %v7058
    %v7060 = vand.u32 %v395, 4294901760
    %v7061 = vsub.f32 %v395, %v7060
    %v7062 = vand.u32 %v7061, 4294901760
    %7063 = vmatpush.msra.mxu0 %v7062
    %v7064 = vand.u32 %v394, 4294901760
    %v7065 = vsub.f32 %v394, %v7064
    %v7066 = vand.u32 %v7065, 4294901760
    %7067 = vmatpush.msra.mxu0 %v7066
    %v7068 = vand.u32 %v393, 4294901760
    %v7069 = vsub.f32 %v393, %v7068
    %v7070 = vand.u32 %v7069, 4294901760
    %7071 = vmatpush.msra.mxu0 %v7070
    %v7072 = vand.u32 %v392, 4294901760
    %v7073 = vsub.f32 %v392, %v7072
    %v7074 = vand.u32 %v7073, 4294901760
    %7075 = vmatpush.msra.mxu0 %v7074
    %v7076 = vand.u32 %v391, 4294901760
    %v7077 = vsub.f32 %v391, %v7076
    %v7078 = vand.u32 %v7077, 4294901760
    %7079 = vmatpush.msra.mxu0 %v7078
    %v7080 = vand.u32 %v390, 4294901760
    %v7081 = vsub.f32 %v390, %v7080
    %v7082 = vand.u32 %v7081, 4294901760
    %7083 = vmatpush.msra.mxu0 %v7082
    %v7084 = vand.u32 %v389, 4294901760
    %v7085 = vsub.f32 %v389, %v7084
    %v7086 = vand.u32 %v7085, 4294901760
    %7087 = vmatpush.msra.mxu0 %v7086
    %v7088 = vand.u32 %v388, 4294901760
    %v7089 = vsub.f32 %v388, %v7088
    %v7090 = vand.u32 %v7089, 4294901760
    %7091 = vmatpush.msra.mxu0 %v7090
    %v7092 = vand.u32 %v387, 4294901760
    %v7093 = vsub.f32 %v387, %v7092
    %v7094 = vand.u32 %v7093, 4294901760
    %7095 = vmatpush.msra.mxu0 %v7094
    %v7096 = vand.u32 %v386, 4294901760
    %v7097 = vsub.f32 %v386, %v7096
    %v7098 = vand.u32 %v7097, 4294901760
    %7099 = vmatpush.msra.mxu0 %v7098
    %v7100 = vand.u32 %v385, 4294901760
    %v7101 = vsub.f32 %v385, %v7100
    %v7102 = vand.u32 %v7101, 4294901760
    %7103 = vmatpush.msra.mxu0 %v7102
    %v7104 = vand.u32 %v384, 4294901760
    %v7105 = vsub.f32 %v384, %v7104
    %v7106 = vand.u32 %v7105, 4294901760
    %7107 = vmatpush.msra.mxu0 %v7106
    %v7108 = vand.u32 %v383, 4294901760
    %v7109 = vsub.f32 %v383, %v7108
    %v7110 = vand.u32 %v7109, 4294901760
    %7111 = vmatpush.msra.mxu0 %v7110
    %v7112 = vand.u32 %v629, 4294901760
    %7113 = vmatmul.f32.gmra.mxu0 %v7112
    %v7114 = vpop.f32.mrf.mxu0
    %v7115 = vadd.f32 %v7046, %v7114
    %7116 = vdwg.mxu0
    %v7117 = vand.u32 %v398, 4294901760
    %7118 = vmatpush.msra.mxu0 %v7117
    %v7119 = vand.u32 %v397, 4294901760
    %7120 = vmatpush.msra.mxu0 %v7119
    %v7121 = vand.u32 %v396, 4294901760
    %7122 = vmatpush.msra.mxu0 %v7121
    %v7123 = vand.u32 %v395, 4294901760
    %7124 = vmatpush.msra.mxu0 %v7123
    %v7125 = vand.u32 %v394, 4294901760
    %7126 = vmatpush.msra.mxu0 %v7125
    %v7127 = vand.u32 %v393, 4294901760
    %7128 = vmatpush.msra.mxu0 %v7127
    %v7129 = vand.u32 %v392, 4294901760
    %7130 = vmatpush.msra.mxu0 %v7129
    %v7131 = vand.u32 %v391, 4294901760
    %7132 = vmatpush.msra.mxu0 %v7131
    %v7133 = vand.u32 %v390, 4294901760
    %7134 = vmatpush.msra.mxu0 %v7133
    %v7135 = vand.u32 %v389, 4294901760
    %7136 = vmatpush.msra.mxu0 %v7135
    %v7137 = vand.u32 %v388, 4294901760
    %7138 = vmatpush.msra.mxu0 %v7137
    %v7139 = vand.u32 %v387, 4294901760
    %7140 = vmatpush.msra.mxu0 %v7139
    %v7141 = vand.u32 %v386, 4294901760
    %7142 = vmatpush.msra.mxu0 %v7141
    %v7143 = vand.u32 %v385, 4294901760
    %7144 = vmatpush.msra.mxu0 %v7143
    %v7145 = vand.u32 %v384, 4294901760
    %7146 = vmatpush.msra.mxu0 %v7145
    %v7147 = vand.u32 %v383, 4294901760
    %7148 = vmatpush.msra.mxu0 %v7147
    %v7149 = vand.u32 %v629, 4294901760
    %7150 = vmatmul.f32.gmra.mxu0 %v7149
    %v7151 = vpop.f32.mrf.mxu0
    %v7152 = vadd.f32 %v7115, %v7151
    %7153 = vdwg.mxu0
    %v7154 = vand.u32 %v414, 4294901760
    %7155 = vmatpush.msra.mxu0 %v7154
    %v7156 = vand.u32 %v413, 4294901760
    %7157 = vmatpush.msra.mxu0 %v7156
    %v7158 = vand.u32 %v412, 4294901760
    %7159 = vmatpush.msra.mxu0 %v7158
    %v7160 = vand.u32 %v411, 4294901760
    %7161 = vmatpush.msra.mxu0 %v7160
    %v7162 = vand.u32 %v410, 4294901760
    %7163 = vmatpush.msra.mxu0 %v7162
    %v7164 = vand.u32 %v409, 4294901760
    %7165 = vmatpush.msra.mxu0 %v7164
    %v7166 = vand.u32 %v408, 4294901760
    %7167 = vmatpush.msra.mxu0 %v7166
    %v7168 = vand.u32 %v407, 4294901760
    %7169 = vmatpush.msra.mxu0 %v7168
    %v7170 = vand.u32 %v406, 4294901760
    %7171 = vmatpush.msra.mxu0 %v7170
    %v7172 = vand.u32 %v405, 4294901760
    %7173 = vmatpush.msra.mxu0 %v7172
    %v7174 = vand.u32 %v404, 4294901760
    %7175 = vmatpush.msra.mxu0 %v7174
    %v7176 = vand.u32 %v403, 4294901760
    %7177 = vmatpush.msra.mxu0 %v7176
    %v7178 = vand.u32 %v402, 4294901760
    %7179 = vmatpush.msra.mxu0 %v7178
    %v7180 = vand.u32 %v401, 4294901760
    %7181 = vmatpush.msra.mxu0 %v7180
    %v7182 = vand.u32 %v400, 4294901760
    %7183 = vmatpush.msra.mxu0 %v7182
    %v7184 = vand.u32 %v399, 4294901760
    %7185 = vmatpush.msra.mxu0 %v7184
    %v7186 = vand.u32 %v630, 4294901760
    %v7187 = vsub.f32 %v630, %v7186
    %v7188 = vand.u32 %v7187, 4294901760
    %v7189 = vsub.f32 %v7187, %v7188
    %v7190 = vand.u32 %v7189, 4294901760
    %7191 = vmatmul.f32.gmra.mxu0 %v7190
    %v7192 = vpop.f32.mrf.mxu0
    %v7193 = vadd.f32 %v7152, %v7192
    %7194 = vdwg.mxu0
    %v7195 = vand.u32 %v414, 4294901760
    %v7196 = vsub.f32 %v414, %v7195
    %v7197 = vand.u32 %v7196, 4294901760
    %v7198 = vsub.f32 %v7196, %v7197
    %v7199 = vand.u32 %v7198, 4294901760
    %7200 = vmatpush.msra.mxu0 %v7199
    %v7201 = vand.u32 %v413, 4294901760
    %v7202 = vsub.f32 %v413, %v7201
    %v7203 = vand.u32 %v7202, 4294901760
    %v7204 = vsub.f32 %v7202, %v7203
    %v7205 = vand.u32 %v7204, 4294901760
    %7206 = vmatpush.msra.mxu0 %v7205
    %v7207 = vand.u32 %v412, 4294901760
    %v7208 = vsub.f32 %v412, %v7207
    %v7209 = vand.u32 %v7208, 4294901760
    %v7210 = vsub.f32 %v7208, %v7209
    %v7211 = vand.u32 %v7210, 4294901760
    %7212 = vmatpush.msra.mxu0 %v7211
    %v7213 = vand.u32 %v411, 4294901760
    %v7214 = vsub.f32 %v411, %v7213
    %v7215 = vand.u32 %v7214, 4294901760
    %v7216 = vsub.f32 %v7214, %v7215
    %v7217 = vand.u32 %v7216, 4294901760
    %7218 = vmatpush.msra.mxu0 %v7217
    %v7219 = vand.u32 %v410, 4294901760
    %v7220 = vsub.f32 %v410, %v7219
    %v7221 = vand.u32 %v7220, 4294901760
    %v7222 = vsub.f32 %v7220, %v7221
    %v7223 = vand.u32 %v7222, 4294901760
    %7224 = vmatpush.msra.mxu0 %v7223
    %v7225 = vand.u32 %v409, 4294901760
    %v7226 = vsub.f32 %v409, %v7225
    %v7227 = vand.u32 %v7226, 4294901760
    %v7228 = vsub.f32 %v7226, %v7227
    %v7229 = vand.u32 %v7228, 4294901760
    %7230 = vmatpush.msra.mxu0 %v7229
    %v7231 = vand.u32 %v408, 4294901760
    %v7232 = vsub.f32 %v408, %v7231
    %v7233 = vand.u32 %v7232, 4294901760
    %v7234 = vsub.f32 %v7232, %v7233
    %v7235 = vand.u32 %v7234, 4294901760
    %7236 = vmatpush.msra.mxu0 %v7235
    %v7237 = vand.u32 %v407, 4294901760
    %v7238 = vsub.f32 %v407, %v7237
    %v7239 = vand.u32 %v7238, 4294901760
    %v7240 = vsub.f32 %v7238, %v7239
    %v7241 = vand.u32 %v7240, 4294901760
    %7242 = vmatpush.msra.mxu0 %v7241
    %v7243 = vand.u32 %v406, 4294901760
    %v7244 = vsub.f32 %v406, %v7243
    %v7245 = vand.u32 %v7244, 4294901760
    %v7246 = vsub.f32 %v7244, %v7245
    %v7247 = vand.u32 %v7246, 4294901760
    %7248 = vmatpush.msra.mxu0 %v7247
    %v7249 = vand.u32 %v405, 4294901760
    %v7250 = vsub.f32 %v405, %v7249
    %v7251 = vand.u32 %v7250, 4294901760
    %v7252 = vsub.f32 %v7250, %v7251
    %v7253 = vand.u32 %v7252, 4294901760
    %7254 = vmatpush.msra.mxu0 %v7253
    %v7255 = vand.u32 %v404, 4294901760
    %v7256 = vsub.f32 %v404, %v7255
    %v7257 = vand.u32 %v7256, 4294901760
    %v7258 = vsub.f32 %v7256, %v7257
    %v7259 = vand.u32 %v7258, 4294901760
    %7260 = vmatpush.msra.mxu0 %v7259
    %v7261 = vand.u32 %v403, 4294901760
    %v7262 = vsub.f32 %v403, %v7261
    %v7263 = vand.u32 %v7262, 4294901760
    %v7264 = vsub.f32 %v7262, %v7263
    %v7265 = vand.u32 %v7264, 4294901760
    %7266 = vmatpush.msra.mxu0 %v7265
    %v7267 = vand.u32 %v402, 4294901760
    %v7268 = vsub.f32 %v402, %v7267
    %v7269 = vand.u32 %v7268, 4294901760
    %v7270 = vsub.f32 %v7268, %v7269
    %v7271 = vand.u32 %v7270, 4294901760
    %7272 = vmatpush.msra.mxu0 %v7271
    %v7273 = vand.u32 %v401, 4294901760
    %v7274 = vsub.f32 %v401, %v7273
    %v7275 = vand.u32 %v7274, 4294901760
    %v7276 = vsub.f32 %v7274, %v7275
    %v7277 = vand.u32 %v7276, 4294901760
    %7278 = vmatpush.msra.mxu0 %v7277
    %v7279 = vand.u32 %v400, 4294901760
    %v7280 = vsub.f32 %v400, %v7279
    %v7281 = vand.u32 %v7280, 4294901760
    %v7282 = vsub.f32 %v7280, %v7281
    %v7283 = vand.u32 %v7282, 4294901760
    %7284 = vmatpush.msra.mxu0 %v7283
    %v7285 = vand.u32 %v399, 4294901760
    %v7286 = vsub.f32 %v399, %v7285
    %v7287 = vand.u32 %v7286, 4294901760
    %v7288 = vsub.f32 %v7286, %v7287
    %v7289 = vand.u32 %v7288, 4294901760
    %7290 = vmatpush.msra.mxu0 %v7289
    %v7291 = vand.u32 %v630, 4294901760
    %7292 = vmatmul.f32.gmra.mxu0 %v7291
    %v7293 = vpop.f32.mrf.mxu0
    %v7294 = vadd.f32 %v7193, %v7293
    %7295 = vdwg.mxu0
    %v7296 = vand.u32 %v414, 4294901760
    %v7297 = vsub.f32 %v414, %v7296
    %7298 = vmatpush.msra.mxu0 %v7297
    %v7299 = vand.u32 %v413, 4294901760
    %v7300 = vsub.f32 %v413, %v7299
    %7301 = vmatpush.msra.mxu0 %v7300
    %v7302 = vand.u32 %v412, 4294901760
    %v7303 = vsub.f32 %v412, %v7302
    %7304 = vmatpush.msra.mxu0 %v7303
    %v7305 = vand.u32 %v411, 4294901760
    %v7306 = vsub.f32 %v411, %v7305
    %7307 = vmatpush.msra.mxu0 %v7306
    %v7308 = vand.u32 %v410, 4294901760
    %v7309 = vsub.f32 %v410, %v7308
    %7310 = vmatpush.msra.mxu0 %v7309
    %v7311 = vand.u32 %v409, 4294901760
    %v7312 = vsub.f32 %v409, %v7311
    %7313 = vmatpush.msra.mxu0 %v7312
    %v7314 = vand.u32 %v408, 4294901760
    %v7315 = vsub.f32 %v408, %v7314
    %7316 = vmatpush.msra.mxu0 %v7315
    %v7317 = vand.u32 %v407, 4294901760
    %v7318 = vsub.f32 %v407, %v7317
    %7319 = vmatpush.msra.mxu0 %v7318
    %v7320 = vand.u32 %v406, 4294901760
    %v7321 = vsub.f32 %v406, %v7320
    %7322 = vmatpush.msra.mxu0 %v7321
    %v7323 = vand.u32 %v405, 4294901760
    %v7324 = vsub.f32 %v405, %v7323
    %7325 = vmatpush.msra.mxu0 %v7324
    %v7326 = vand.u32 %v404, 4294901760
    %v7327 = vsub.f32 %v404, %v7326
    %7328 = vmatpush.msra.mxu0 %v7327
    %v7329 = vand.u32 %v403, 4294901760
    %v7330 = vsub.f32 %v403, %v7329
    %7331 = vmatpush.msra.mxu0 %v7330
    %v7332 = vand.u32 %v402, 4294901760
    %v7333 = vsub.f32 %v402, %v7332
    %7334 = vmatpush.msra.mxu0 %v7333
    %v7335 = vand.u32 %v401, 4294901760
    %v7336 = vsub.f32 %v401, %v7335
    %7337 = vmatpush.msra.mxu0 %v7336
    %v7338 = vand.u32 %v400, 4294901760
    %v7339 = vsub.f32 %v400, %v7338
    %7340 = vmatpush.msra.mxu0 %v7339
    %v7341 = vand.u32 %v399, 4294901760
    %v7342 = vsub.f32 %v399, %v7341
    %7343 = vmatpush.msra.mxu0 %v7342
    %v7344 = vand.u32 %v630, 4294901760
    %v7345 = vsub.f32 %v630, %v7344
    %7346 = vmatmul.f32.gmra.mxu0 %v7345
    %v7347 = vpop.f32.mrf.mxu0
    %v7348 = vadd.f32 %v7294, %v7347
    %7349 = vdwg.mxu0
    %v7350 = vand.u32 %v414, 4294901760
    %7351 = vmatpush.msra.mxu0 %v7350
    %v7352 = vand.u32 %v413, 4294901760
    %7353 = vmatpush.msra.mxu0 %v7352
    %v7354 = vand.u32 %v412, 4294901760
    %7355 = vmatpush.msra.mxu0 %v7354
    %v7356 = vand.u32 %v411, 4294901760
    %7357 = vmatpush.msra.mxu0 %v7356
    %v7358 = vand.u32 %v410, 4294901760
    %7359 = vmatpush.msra.mxu0 %v7358
    %v7360 = vand.u32 %v409, 4294901760
    %7361 = vmatpush.msra.mxu0 %v7360
    %v7362 = vand.u32 %v408, 4294901760
    %7363 = vmatpush.msra.mxu0 %v7362
    %v7364 = vand.u32 %v407, 4294901760
    %7365 = vmatpush.msra.mxu0 %v7364
    %v7366 = vand.u32 %v406, 4294901760
    %7367 = vmatpush.msra.mxu0 %v7366
    %v7368 = vand.u32 %v405, 4294901760
    %7369 = vmatpush.msra.mxu0 %v7368
    %v7370 = vand.u32 %v404, 4294901760
    %7371 = vmatpush.msra.mxu0 %v7370
    %v7372 = vand.u32 %v403, 4294901760
    %7373 = vmatpush.msra.mxu0 %v7372
    %v7374 = vand.u32 %v402, 4294901760
    %7375 = vmatpush.msra.mxu0 %v7374
    %v7376 = vand.u32 %v401, 4294901760
    %7377 = vmatpush.msra.mxu0 %v7376
    %v7378 = vand.u32 %v400, 4294901760
    %7379 = vmatpush.msra.mxu0 %v7378
    %v7380 = vand.u32 %v399, 4294901760
    %7381 = vmatpush.msra.mxu0 %v7380
    %v7382 = vand.u32 %v630, 4294901760
    %v7383 = vsub.f32 %v630, %v7382
    %v7384 = vand.u32 %v7383, 4294901760
    %7385 = vmatmul.f32.gmra.mxu0 %v7384
    %v7386 = vpop.f32.mrf.mxu0
    %v7387 = vadd.f32 %v7348, %v7386
    %7388 = vdwg.mxu0
    %v7389 = vand.u32 %v414, 4294901760
    %v7390 = vsub.f32 %v414, %v7389
    %v7391 = vand.u32 %v7390, 4294901760
    %7392 = vmatpush.msra.mxu0 %v7391
    %v7393 = vand.u32 %v413, 4294901760
    %v7394 = vsub.f32 %v413, %v7393
    %v7395 = vand.u32 %v7394, 4294901760
    %7396 = vmatpush.msra.mxu0 %v7395
    %v7397 = vand.u32 %v412, 4294901760
    %v7398 = vsub.f32 %v412, %v7397
    %v7399 = vand.u32 %v7398, 4294901760
    %7400 = vmatpush.msra.mxu0 %v7399
    %v7401 = vand.u32 %v411, 4294901760
    %v7402 = vsub.f32 %v411, %v7401
    %v7403 = vand.u32 %v7402, 4294901760
    %7404 = vmatpush.msra.mxu0 %v7403
    %v7405 = vand.u32 %v410, 4294901760
    %v7406 = vsub.f32 %v410, %v7405
    %v7407 = vand.u32 %v7406, 4294901760
    %7408 = vmatpush.msra.mxu0 %v7407
    %v7409 = vand.u32 %v409, 4294901760
    %v7410 = vsub.f32 %v409, %v7409
    %v7411 = vand.u32 %v7410, 4294901760
    %7412 = vmatpush.msra.mxu0 %v7411
    %v7413 = vand.u32 %v408, 4294901760
    %v7414 = vsub.f32 %v408, %v7413
    %v7415 = vand.u32 %v7414, 4294901760
    %7416 = vmatpush.msra.mxu0 %v7415
    %v7417 = vand.u32 %v407, 4294901760
    %v7418 = vsub.f32 %v407, %v7417
    %v7419 = vand.u32 %v7418, 4294901760
    %7420 = vmatpush.msra.mxu0 %v7419
    %v7421 = vand.u32 %v406, 4294901760
    %v7422 = vsub.f32 %v406, %v7421
    %v7423 = vand.u32 %v7422, 4294901760
    %7424 = vmatpush.msra.mxu0 %v7423
    %v7425 = vand.u32 %v405, 4294901760
    %v7426 = vsub.f32 %v405, %v7425
    %v7427 = vand.u32 %v7426, 4294901760
    %7428 = vmatpush.msra.mxu0 %v7427
    %v7429 = vand.u32 %v404, 4294901760
    %v7430 = vsub.f32 %v404, %v7429
    %v7431 = vand.u32 %v7430, 4294901760
    %7432 = vmatpush.msra.mxu0 %v7431
    %v7433 = vand.u32 %v403, 4294901760
    %v7434 = vsub.f32 %v403, %v7433
    %v7435 = vand.u32 %v7434, 4294901760
    %7436 = vmatpush.msra.mxu0 %v7435
    %v7437 = vand.u32 %v402, 4294901760
    %v7438 = vsub.f32 %v402, %v7437
    %v7439 = vand.u32 %v7438, 4294901760
    %7440 = vmatpush.msra.mxu0 %v7439
    %v7441 = vand.u32 %v401, 4294901760
    %v7442 = vsub.f32 %v401, %v7441
    %v7443 = vand.u32 %v7442, 4294901760
    %7444 = vmatpush.msra.mxu0 %v7443
    %v7445 = vand.u32 %v400, 4294901760
    %v7446 = vsub.f32 %v400, %v7445
    %v7447 = vand.u32 %v7446, 4294901760
    %7448 = vmatpush.msra.mxu0 %v7447
    %v7449 = vand.u32 %v399, 4294901760
    %v7450 = vsub.f32 %v399, %v7449
    %v7451 = vand.u32 %v7450, 4294901760
    %7452 = vmatpush.msra.mxu0 %v7451
    %v7453 = vand.u32 %v630, 4294901760
    %7454 = vmatmul.f32.gmra.mxu0 %v7453
    %v7455 = vpop.f32.mrf.mxu0
    %v7456 = vadd.f32 %v7387, %v7455
    %7457 = vdwg.mxu0
    %v7458 = vand.u32 %v414, 4294901760
    %7459 = vmatpush.msra.mxu0 %v7458
    %v7460 = vand.u32 %v413, 4294901760
    %7461 = vmatpush.msra.mxu0 %v7460
    %v7462 = vand.u32 %v412, 4294901760
    %7463 = vmatpush.msra.mxu0 %v7462
    %v7464 = vand.u32 %v411, 4294901760
    %7465 = vmatpush.msra.mxu0 %v7464
    %v7466 = vand.u32 %v410, 4294901760
    %7467 = vmatpush.msra.mxu0 %v7466
    %v7468 = vand.u32 %v409, 4294901760
    %7469 = vmatpush.msra.mxu0 %v7468
    %v7470 = vand.u32 %v408, 4294901760
    %7471 = vmatpush.msra.mxu0 %v7470
    %v7472 = vand.u32 %v407, 4294901760
    %7473 = vmatpush.msra.mxu0 %v7472
    %v7474 = vand.u32 %v406, 4294901760
    %7475 = vmatpush.msra.mxu0 %v7474
    %v7476 = vand.u32 %v405, 4294901760
    %7477 = vmatpush.msra.mxu0 %v7476
    %v7478 = vand.u32 %v404, 4294901760
    %7479 = vmatpush.msra.mxu0 %v7478
    %v7480 = vand.u32 %v403, 4294901760
    %7481 = vmatpush.msra.mxu0 %v7480
    %v7482 = vand.u32 %v402, 4294901760
    %7483 = vmatpush.msra.mxu0 %v7482
    %v7484 = vand.u32 %v401, 4294901760
    %7485 = vmatpush.msra.mxu0 %v7484
    %v7486 = vand.u32 %v400, 4294901760
    %7487 = vmatpush.msra.mxu0 %v7486
    %v7488 = vand.u32 %v399, 4294901760
    %7489 = vmatpush.msra.mxu0 %v7488
    %v7490 = vand.u32 %v630, 4294901760
    %7491 = vmatmul.f32.gmra.mxu0 %v7490
    %v7492 = vpop.f32.mrf.mxu0
    %v7493 = vadd.f32 %v7456, %v7492
    %7494 = vdwg.mxu0
    %v7495 = vand.u32 %v430, 4294901760
    %7496 = vmatpush.msra.mxu0 %v7495
    %v7497 = vand.u32 %v429, 4294901760
    %7498 = vmatpush.msra.mxu0 %v7497
    %v7499 = vand.u32 %v428, 4294901760
    %7500 = vmatpush.msra.mxu0 %v7499
    %v7501 = vand.u32 %v427, 4294901760
    %7502 = vmatpush.msra.mxu0 %v7501
    %v7503 = vand.u32 %v426, 4294901760
    %7504 = vmatpush.msra.mxu0 %v7503
    %v7505 = vand.u32 %v425, 4294901760
    %7506 = vmatpush.msra.mxu0 %v7505
    %v7507 = vand.u32 %v424, 4294901760
    %7508 = vmatpush.msra.mxu0 %v7507
    %v7509 = vand.u32 %v423, 4294901760
    %7510 = vmatpush.msra.mxu0 %v7509
    %v7511 = vand.u32 %v422, 4294901760
    %7512 = vmatpush.msra.mxu0 %v7511
    %v7513 = vand.u32 %v421, 4294901760
    %7514 = vmatpush.msra.mxu0 %v7513
    %v7515 = vand.u32 %v420, 4294901760
    %7516 = vmatpush.msra.mxu0 %v7515
    %v7517 = vand.u32 %v419, 4294901760
    %7518 = vmatpush.msra.mxu0 %v7517
    %v7519 = vand.u32 %v418, 4294901760
    %7520 = vmatpush.msra.mxu0 %v7519
    %v7521 = vand.u32 %v417, 4294901760
    %7522 = vmatpush.msra.mxu0 %v7521
    %v7523 = vand.u32 %v416, 4294901760
    %7524 = vmatpush.msra.mxu0 %v7523
    %v7525 = vand.u32 %v415, 4294901760
    %7526 = vmatpush.msra.mxu0 %v7525
    %v7527 = vand.u32 %v631, 4294901760
    %v7528 = vsub.f32 %v631, %v7527
    %v7529 = vand.u32 %v7528, 4294901760
    %v7530 = vsub.f32 %v7528, %v7529
    %v7531 = vand.u32 %v7530, 4294901760
    %7532 = vmatmul.f32.gmra.mxu0 %v7531
    %v7533 = vpop.f32.mrf.mxu0
    %v7534 = vadd.f32 %v7493, %v7533
    %7535 = vdwg.mxu0
    %v7536 = vand.u32 %v430, 4294901760
    %v7537 = vsub.f32 %v430, %v7536
    %v7538 = vand.u32 %v7537, 4294901760
    %v7539 = vsub.f32 %v7537, %v7538
    %v7540 = vand.u32 %v7539, 4294901760
    %7541 = vmatpush.msra.mxu0 %v7540
    %v7542 = vand.u32 %v429, 4294901760
    %v7543 = vsub.f32 %v429, %v7542
    %v7544 = vand.u32 %v7543, 4294901760
    %v7545 = vsub.f32 %v7543, %v7544
    %v7546 = vand.u32 %v7545, 4294901760
    %7547 = vmatpush.msra.mxu0 %v7546
    %v7548 = vand.u32 %v428, 4294901760
    %v7549 = vsub.f32 %v428, %v7548
    %v7550 = vand.u32 %v7549, 4294901760
    %v7551 = vsub.f32 %v7549, %v7550
    %v7552 = vand.u32 %v7551, 4294901760
    %7553 = vmatpush.msra.mxu0 %v7552
    %v7554 = vand.u32 %v427, 4294901760
    %v7555 = vsub.f32 %v427, %v7554
    %v7556 = vand.u32 %v7555, 4294901760
    %v7557 = vsub.f32 %v7555, %v7556
    %v7558 = vand.u32 %v7557, 4294901760
    %7559 = vmatpush.msra.mxu0 %v7558
    %v7560 = vand.u32 %v426, 4294901760
    %v7561 = vsub.f32 %v426, %v7560
    %v7562 = vand.u32 %v7561, 4294901760
    %v7563 = vsub.f32 %v7561, %v7562
    %v7564 = vand.u32 %v7563, 4294901760
    %7565 = vmatpush.msra.mxu0 %v7564
    %v7566 = vand.u32 %v425, 4294901760
    %v7567 = vsub.f32 %v425, %v7566
    %v7568 = vand.u32 %v7567, 4294901760
    %v7569 = vsub.f32 %v7567, %v7568
    %v7570 = vand.u32 %v7569, 4294901760
    %7571 = vmatpush.msra.mxu0 %v7570
    %v7572 = vand.u32 %v424, 4294901760
    %v7573 = vsub.f32 %v424, %v7572
    %v7574 = vand.u32 %v7573, 4294901760
    %v7575 = vsub.f32 %v7573, %v7574
    %v7576 = vand.u32 %v7575, 4294901760
    %7577 = vmatpush.msra.mxu0 %v7576
    %v7578 = vand.u32 %v423, 4294901760
    %v7579 = vsub.f32 %v423, %v7578
    %v7580 = vand.u32 %v7579, 4294901760
    %v7581 = vsub.f32 %v7579, %v7580
    %v7582 = vand.u32 %v7581, 4294901760
    %7583 = vmatpush.msra.mxu0 %v7582
    %v7584 = vand.u32 %v422, 4294901760
    %v7585 = vsub.f32 %v422, %v7584
    %v7586 = vand.u32 %v7585, 4294901760
    %v7587 = vsub.f32 %v7585, %v7586
    %v7588 = vand.u32 %v7587, 4294901760
    %7589 = vmatpush.msra.mxu0 %v7588
    %v7590 = vand.u32 %v421, 4294901760
    %v7591 = vsub.f32 %v421, %v7590
    %v7592 = vand.u32 %v7591, 4294901760
    %v7593 = vsub.f32 %v7591, %v7592
    %v7594 = vand.u32 %v7593, 4294901760
    %7595 = vmatpush.msra.mxu0 %v7594
    %v7596 = vand.u32 %v420, 4294901760
    %v7597 = vsub.f32 %v420, %v7596
    %v7598 = vand.u32 %v7597, 4294901760
    %v7599 = vsub.f32 %v7597, %v7598
    %v7600 = vand.u32 %v7599, 4294901760
    %7601 = vmatpush.msra.mxu0 %v7600
    %v7602 = vand.u32 %v419, 4294901760
    %v7603 = vsub.f32 %v419, %v7602
    %v7604 = vand.u32 %v7603, 4294901760
    %v7605 = vsub.f32 %v7603, %v7604
    %v7606 = vand.u32 %v7605, 4294901760
    %7607 = vmatpush.msra.mxu0 %v7606
    %v7608 = vand.u32 %v418, 4294901760
    %v7609 = vsub.f32 %v418, %v7608
    %v7610 = vand.u32 %v7609, 4294901760
    %v7611 = vsub.f32 %v7609, %v7610
    %v7612 = vand.u32 %v7611, 4294901760
    %7613 = vmatpush.msra.mxu0 %v7612
    %v7614 = vand.u32 %v417, 4294901760
    %v7615 = vsub.f32 %v417, %v7614
    %v7616 = vand.u32 %v7615, 4294901760
    %v7617 = vsub.f32 %v7615, %v7616
    %v7618 = vand.u32 %v7617, 4294901760
    %7619 = vmatpush.msra.mxu0 %v7618
    %v7620 = vand.u32 %v416, 4294901760
    %v7621 = vsub.f32 %v416, %v7620
    %v7622 = vand.u32 %v7621, 4294901760
    %v7623 = vsub.f32 %v7621, %v7622
    %v7624 = vand.u32 %v7623, 4294901760
    %7625 = vmatpush.msra.mxu0 %v7624
    %v7626 = vand.u32 %v415, 4294901760
    %v7627 = vsub.f32 %v415, %v7626
    %v7628 = vand.u32 %v7627, 4294901760
    %v7629 = vsub.f32 %v7627, %v7628
    %v7630 = vand.u32 %v7629, 4294901760
    %7631 = vmatpush.msra.mxu0 %v7630
    %v7632 = vand.u32 %v631, 4294901760
    %7633 = vmatmul.f32.gmra.mxu0 %v7632
    %v7634 = vpop.f32.mrf.mxu0
    %v7635 = vadd.f32 %v7534, %v7634
    %7636 = vdwg.mxu0
    %v7637 = vand.u32 %v430, 4294901760
    %v7638 = vsub.f32 %v430, %v7637
    %7639 = vmatpush.msra.mxu0 %v7638
    %v7640 = vand.u32 %v429, 4294901760
    %v7641 = vsub.f32 %v429, %v7640
    %7642 = vmatpush.msra.mxu0 %v7641
    %v7643 = vand.u32 %v428, 4294901760
    %v7644 = vsub.f32 %v428, %v7643
    %7645 = vmatpush.msra.mxu0 %v7644
    %v7646 = vand.u32 %v427, 4294901760
    %v7647 = vsub.f32 %v427, %v7646
    %7648 = vmatpush.msra.mxu0 %v7647
    %v7649 = vand.u32 %v426, 4294901760
    %v7650 = vsub.f32 %v426, %v7649
    %7651 = vmatpush.msra.mxu0 %v7650
    %v7652 = vand.u32 %v425, 4294901760
    %v7653 = vsub.f32 %v425, %v7652
    %7654 = vmatpush.msra.mxu0 %v7653
    %v7655 = vand.u32 %v424, 4294901760
    %v7656 = vsub.f32 %v424, %v7655
    %7657 = vmatpush.msra.mxu0 %v7656
    %v7658 = vand.u32 %v423, 4294901760
    %v7659 = vsub.f32 %v423, %v7658
    %7660 = vmatpush.msra.mxu0 %v7659
    %v7661 = vand.u32 %v422, 4294901760
    %v7662 = vsub.f32 %v422, %v7661
    %7663 = vmatpush.msra.mxu0 %v7662
    %v7664 = vand.u32 %v421, 4294901760
    %v7665 = vsub.f32 %v421, %v7664
    %7666 = vmatpush.msra.mxu0 %v7665
    %v7667 = vand.u32 %v420, 4294901760
    %v7668 = vsub.f32 %v420, %v7667
    %7669 = vmatpush.msra.mxu0 %v7668
    %v7670 = vand.u32 %v419, 4294901760
    %v7671 = vsub.f32 %v419, %v7670
    %7672 = vmatpush.msra.mxu0 %v7671
    %v7673 = vand.u32 %v418, 4294901760
    %v7674 = vsub.f32 %v418, %v7673
    %7675 = vmatpush.msra.mxu0 %v7674
    %v7676 = vand.u32 %v417, 4294901760
    %v7677 = vsub.f32 %v417, %v7676
    %7678 = vmatpush.msra.mxu0 %v7677
    %v7679 = vand.u32 %v416, 4294901760
    %v7680 = vsub.f32 %v416, %v7679
    %7681 = vmatpush.msra.mxu0 %v7680
    %v7682 = vand.u32 %v415, 4294901760
    %v7683 = vsub.f32 %v415, %v7682
    %7684 = vmatpush.msra.mxu0 %v7683
    %v7685 = vand.u32 %v631, 4294901760
    %v7686 = vsub.f32 %v631, %v7685
    %7687 = vmatmul.f32.gmra.mxu0 %v7686
    %v7688 = vpop.f32.mrf.mxu0
    %v7689 = vadd.f32 %v7635, %v7688
    %7690 = vdwg.mxu0
    %v7691 = vand.u32 %v430, 4294901760
    %7692 = vmatpush.msra.mxu0 %v7691
    %v7693 = vand.u32 %v429, 4294901760
    %7694 = vmatpush.msra.mxu0 %v7693
    %v7695 = vand.u32 %v428, 4294901760
    %7696 = vmatpush.msra.mxu0 %v7695
    %v7697 = vand.u32 %v427, 4294901760
    %7698 = vmatpush.msra.mxu0 %v7697
    %v7699 = vand.u32 %v426, 4294901760
    %7700 = vmatpush.msra.mxu0 %v7699
    %v7701 = vand.u32 %v425, 4294901760
    %7702 = vmatpush.msra.mxu0 %v7701
    %v7703 = vand.u32 %v424, 4294901760
    %7704 = vmatpush.msra.mxu0 %v7703
    %v7705 = vand.u32 %v423, 4294901760
    %7706 = vmatpush.msra.mxu0 %v7705
    %v7707 = vand.u32 %v422, 4294901760
    %7708 = vmatpush.msra.mxu0 %v7707
    %v7709 = vand.u32 %v421, 4294901760
    %7710 = vmatpush.msra.mxu0 %v7709
    %v7711 = vand.u32 %v420, 4294901760
    %7712 = vmatpush.msra.mxu0 %v7711
    %v7713 = vand.u32 %v419, 4294901760
    %7714 = vmatpush.msra.mxu0 %v7713
    %v7715 = vand.u32 %v418, 4294901760
    %7716 = vmatpush.msra.mxu0 %v7715
    %v7717 = vand.u32 %v417, 4294901760
    %7718 = vmatpush.msra.mxu0 %v7717
    %v7719 = vand.u32 %v416, 4294901760
    %7720 = vmatpush.msra.mxu0 %v7719
    %v7721 = vand.u32 %v415, 4294901760
    %7722 = vmatpush.msra.mxu0 %v7721
    %v7723 = vand.u32 %v631, 4294901760
    %v7724 = vsub.f32 %v631, %v7723
    %v7725 = vand.u32 %v7724, 4294901760
    %7726 = vmatmul.f32.gmra.mxu0 %v7725
    %v7727 = vpop.f32.mrf.mxu0
    %v7728 = vadd.f32 %v7689, %v7727
    %7729 = vdwg.mxu0
    %v7730 = vand.u32 %v430, 4294901760
    %v7731 = vsub.f32 %v430, %v7730
    %v7732 = vand.u32 %v7731, 4294901760
    %7733 = vmatpush.msra.mxu0 %v7732
    %v7734 = vand.u32 %v429, 4294901760
    %v7735 = vsub.f32 %v429, %v7734
    %v7736 = vand.u32 %v7735, 4294901760
    %7737 = vmatpush.msra.mxu0 %v7736
    %v7738 = vand.u32 %v428, 4294901760
    %v7739 = vsub.f32 %v428, %v7738
    %v7740 = vand.u32 %v7739, 4294901760
    %7741 = vmatpush.msra.mxu0 %v7740
    %v7742 = vand.u32 %v427, 4294901760
    %v7743 = vsub.f32 %v427, %v7742
    %v7744 = vand.u32 %v7743, 4294901760
    %7745 = vmatpush.msra.mxu0 %v7744
    %v7746 = vand.u32 %v426, 4294901760
    %v7747 = vsub.f32 %v426, %v7746
    %v7748 = vand.u32 %v7747, 4294901760
    %7749 = vmatpush.msra.mxu0 %v7748
    %v7750 = vand.u32 %v425, 4294901760
    %v7751 = vsub.f32 %v425, %v7750
    %v7752 = vand.u32 %v7751, 4294901760
    %7753 = vmatpush.msra.mxu0 %v7752
    %v7754 = vand.u32 %v424, 4294901760
    %v7755 = vsub.f32 %v424, %v7754
    %v7756 = vand.u32 %v7755, 4294901760
    %7757 = vmatpush.msra.mxu0 %v7756
    %v7758 = vand.u32 %v423, 4294901760
    %v7759 = vsub.f32 %v423, %v7758
    %v7760 = vand.u32 %v7759, 4294901760
    %7761 = vmatpush.msra.mxu0 %v7760
    %v7762 = vand.u32 %v422, 4294901760
    %v7763 = vsub.f32 %v422, %v7762
    %v7764 = vand.u32 %v7763, 4294901760
    %7765 = vmatpush.msra.mxu0 %v7764
    %v7766 = vand.u32 %v421, 4294901760
    %v7767 = vsub.f32 %v421, %v7766
    %v7768 = vand.u32 %v7767, 4294901760
    %7769 = vmatpush.msra.mxu0 %v7768
    %v7770 = vand.u32 %v420, 4294901760
    %v7771 = vsub.f32 %v420, %v7770
    %v7772 = vand.u32 %v7771, 4294901760
    %7773 = vmatpush.msra.mxu0 %v7772
    %v7774 = vand.u32 %v419, 4294901760
    %v7775 = vsub.f32 %v419, %v7774
    %v7776 = vand.u32 %v7775, 4294901760
    %7777 = vmatpush.msra.mxu0 %v7776
    %v7778 = vand.u32 %v418, 4294901760
    %v7779 = vsub.f32 %v418, %v7778
    %v7780 = vand.u32 %v7779, 4294901760
    %7781 = vmatpush.msra.mxu0 %v7780
    %v7782 = vand.u32 %v417, 4294901760
    %v7783 = vsub.f32 %v417, %v7782
    %v7784 = vand.u32 %v7783, 4294901760
    %7785 = vmatpush.msra.mxu0 %v7784
    %v7786 = vand.u32 %v416, 4294901760
    %v7787 = vsub.f32 %v416, %v7786
    %v7788 = vand.u32 %v7787, 4294901760
    %7789 = vmatpush.msra.mxu0 %v7788
    %v7790 = vand.u32 %v415, 4294901760
    %v7791 = vsub.f32 %v415, %v7790
    %v7792 = vand.u32 %v7791, 4294901760
    %7793 = vmatpush.msra.mxu0 %v7792
    %v7794 = vand.u32 %v631, 4294901760
    %7795 = vmatmul.f32.gmra.mxu0 %v7794
    %v7796 = vpop.f32.mrf.mxu0
    %v7797 = vadd.f32 %v7728, %v7796
    %7798 = vdwg.mxu0
    %v7799 = vand.u32 %v430, 4294901760
    %7800 = vmatpush.msra.mxu0 %v7799
    %v7801 = vand.u32 %v429, 4294901760
    %7802 = vmatpush.msra.mxu0 %v7801
    %v7803 = vand.u32 %v428, 4294901760
    %7804 = vmatpush.msra.mxu0 %v7803
    %v7805 = vand.u32 %v427, 4294901760
    %7806 = vmatpush.msra.mxu0 %v7805
    %v7807 = vand.u32 %v426, 4294901760
    %7808 = vmatpush.msra.mxu0 %v7807
    %v7809 = vand.u32 %v425, 4294901760
    %7810 = vmatpush.msra.mxu0 %v7809
    %v7811 = vand.u32 %v424, 4294901760
    %7812 = vmatpush.msra.mxu0 %v7811
    %v7813 = vand.u32 %v423, 4294901760
    %7814 = vmatpush.msra.mxu0 %v7813
    %v7815 = vand.u32 %v422, 4294901760
    %7816 = vmatpush.msra.mxu0 %v7815
    %v7817 = vand.u32 %v421, 4294901760
    %7818 = vmatpush.msra.mxu0 %v7817
    %v7819 = vand.u32 %v420, 4294901760
    %7820 = vmatpush.msra.mxu0 %v7819
    %v7821 = vand.u32 %v419, 4294901760
    %7822 = vmatpush.msra.mxu0 %v7821
    %v7823 = vand.u32 %v418, 4294901760
    %7824 = vmatpush.msra.mxu0 %v7823
    %v7825 = vand.u32 %v417, 4294901760
    %7826 = vmatpush.msra.mxu0 %v7825
    %v7827 = vand.u32 %v416, 4294901760
    %7828 = vmatpush.msra.mxu0 %v7827
    %v7829 = vand.u32 %v415, 4294901760
    %7830 = vmatpush.msra.mxu0 %v7829
    %v7831 = vand.u32 %v631, 4294901760
    %7832 = vmatmul.f32.gmra.mxu0 %v7831
    %v7833 = vpop.f32.mrf.mxu0
    %v7834 = vadd.f32 %v7797, %v7833
    %7835 = vdwg.mxu0
    %v7836 = vand.u32 %v446, 4294901760
    %7837 = vmatpush.msra.mxu0 %v7836
    %v7838 = vand.u32 %v445, 4294901760
    %7839 = vmatpush.msra.mxu0 %v7838
    %v7840 = vand.u32 %v444, 4294901760
    %7841 = vmatpush.msra.mxu0 %v7840
    %v7842 = vand.u32 %v443, 4294901760
    %7843 = vmatpush.msra.mxu0 %v7842
    %v7844 = vand.u32 %v442, 4294901760
    %7845 = vmatpush.msra.mxu0 %v7844
    %v7846 = vand.u32 %v441, 4294901760
    %7847 = vmatpush.msra.mxu0 %v7846
    %v7848 = vand.u32 %v440, 4294901760
    %7849 = vmatpush.msra.mxu0 %v7848
    %v7850 = vand.u32 %v439, 4294901760
    %7851 = vmatpush.msra.mxu0 %v7850
    %v7852 = vand.u32 %v438, 4294901760
    %7853 = vmatpush.msra.mxu0 %v7852
    %v7854 = vand.u32 %v437, 4294901760
    %7855 = vmatpush.msra.mxu0 %v7854
    %v7856 = vand.u32 %v436, 4294901760
    %7857 = vmatpush.msra.mxu0 %v7856
    %v7858 = vand.u32 %v435, 4294901760
    %7859 = vmatpush.msra.mxu0 %v7858
    %v7860 = vand.u32 %v434, 4294901760
    %7861 = vmatpush.msra.mxu0 %v7860
    %v7862 = vand.u32 %v433, 4294901760
    %7863 = vmatpush.msra.mxu0 %v7862
    %v7864 = vand.u32 %v432, 4294901760
    %7865 = vmatpush.msra.mxu0 %v7864
    %v7866 = vand.u32 %v431, 4294901760
    %7867 = vmatpush.msra.mxu0 %v7866
    %v7868 = vand.u32 %v632, 4294901760
    %v7869 = vsub.f32 %v632, %v7868
    %v7870 = vand.u32 %v7869, 4294901760
    %v7871 = vsub.f32 %v7869, %v7870
    %v7872 = vand.u32 %v7871, 4294901760
    %7873 = vmatmul.f32.gmra.mxu0 %v7872
    %v7874 = vpop.f32.mrf.mxu0
    %v7875 = vadd.f32 %v7834, %v7874
    %7876 = vdwg.mxu0
    %v7877 = vand.u32 %v446, 4294901760
    %v7878 = vsub.f32 %v446, %v7877
    %v7879 = vand.u32 %v7878, 4294901760
    %v7880 = vsub.f32 %v7878, %v7879
    %v7881 = vand.u32 %v7880, 4294901760
    %7882 = vmatpush.msra.mxu0 %v7881
    %v7883 = vand.u32 %v445, 4294901760
    %v7884 = vsub.f32 %v445, %v7883
    %v7885 = vand.u32 %v7884, 4294901760
    %v7886 = vsub.f32 %v7884, %v7885
    %v7887 = vand.u32 %v7886, 4294901760
    %7888 = vmatpush.msra.mxu0 %v7887
    %v7889 = vand.u32 %v444, 4294901760
    %v7890 = vsub.f32 %v444, %v7889
    %v7891 = vand.u32 %v7890, 4294901760
    %v7892 = vsub.f32 %v7890, %v7891
    %v7893 = vand.u32 %v7892, 4294901760
    %7894 = vmatpush.msra.mxu0 %v7893
    %v7895 = vand.u32 %v443, 4294901760
    %v7896 = vsub.f32 %v443, %v7895
    %v7897 = vand.u32 %v7896, 4294901760
    %v7898 = vsub.f32 %v7896, %v7897
    %v7899 = vand.u32 %v7898, 4294901760
    %7900 = vmatpush.msra.mxu0 %v7899
    %v7901 = vand.u32 %v442, 4294901760
    %v7902 = vsub.f32 %v442, %v7901
    %v7903 = vand.u32 %v7902, 4294901760
    %v7904 = vsub.f32 %v7902, %v7903
    %v7905 = vand.u32 %v7904, 4294901760
    %7906 = vmatpush.msra.mxu0 %v7905
    %v7907 = vand.u32 %v441, 4294901760
    %v7908 = vsub.f32 %v441, %v7907
    %v7909 = vand.u32 %v7908, 4294901760
    %v7910 = vsub.f32 %v7908, %v7909
    %v7911 = vand.u32 %v7910, 4294901760
    %7912 = vmatpush.msra.mxu0 %v7911
    %v7913 = vand.u32 %v440, 4294901760
    %v7914 = vsub.f32 %v440, %v7913
    %v7915 = vand.u32 %v7914, 4294901760
    %v7916 = vsub.f32 %v7914, %v7915
    %v7917 = vand.u32 %v7916, 4294901760
    %7918 = vmatpush.msra.mxu0 %v7917
    %v7919 = vand.u32 %v439, 4294901760
    %v7920 = vsub.f32 %v439, %v7919
    %v7921 = vand.u32 %v7920, 4294901760
    %v7922 = vsub.f32 %v7920, %v7921
    %v7923 = vand.u32 %v7922, 4294901760
    %7924 = vmatpush.msra.mxu0 %v7923
    %v7925 = vand.u32 %v438, 4294901760
    %v7926 = vsub.f32 %v438, %v7925
    %v7927 = vand.u32 %v7926, 4294901760
    %v7928 = vsub.f32 %v7926, %v7927
    %v7929 = vand.u32 %v7928, 4294901760
    %7930 = vmatpush.msra.mxu0 %v7929
    %v7931 = vand.u32 %v437, 4294901760
    %v7932 = vsub.f32 %v437, %v7931
    %v7933 = vand.u32 %v7932, 4294901760
    %v7934 = vsub.f32 %v7932, %v7933
    %v7935 = vand.u32 %v7934, 4294901760
    %7936 = vmatpush.msra.mxu0 %v7935
    %v7937 = vand.u32 %v436, 4294901760
    %v7938 = vsub.f32 %v436, %v7937
    %v7939 = vand.u32 %v7938, 4294901760
    %v7940 = vsub.f32 %v7938, %v7939
    %v7941 = vand.u32 %v7940, 4294901760
    %7942 = vmatpush.msra.mxu0 %v7941
    %v7943 = vand.u32 %v435, 4294901760
    %v7944 = vsub.f32 %v435, %v7943
    %v7945 = vand.u32 %v7944, 4294901760
    %v7946 = vsub.f32 %v7944, %v7945
    %v7947 = vand.u32 %v7946, 4294901760
    %7948 = vmatpush.msra.mxu0 %v7947
    %v7949 = vand.u32 %v434, 4294901760
    %v7950 = vsub.f32 %v434, %v7949
    %v7951 = vand.u32 %v7950, 4294901760
    %v7952 = vsub.f32 %v7950, %v7951
    %v7953 = vand.u32 %v7952, 4294901760
    %7954 = vmatpush.msra.mxu0 %v7953
    %v7955 = vand.u32 %v433, 4294901760
    %v7956 = vsub.f32 %v433, %v7955
    %v7957 = vand.u32 %v7956, 4294901760
    %v7958 = vsub.f32 %v7956, %v7957
    %v7959 = vand.u32 %v7958, 4294901760
    %7960 = vmatpush.msra.mxu0 %v7959
    %v7961 = vand.u32 %v432, 4294901760
    %v7962 = vsub.f32 %v432, %v7961
    %v7963 = vand.u32 %v7962, 4294901760
    %v7964 = vsub.f32 %v7962, %v7963
    %v7965 = vand.u32 %v7964, 4294901760
    %7966 = vmatpush.msra.mxu0 %v7965
    %v7967 = vand.u32 %v431, 4294901760
    %v7968 = vsub.f32 %v431, %v7967
    %v7969 = vand.u32 %v7968, 4294901760
    %v7970 = vsub.f32 %v7968, %v7969
    %v7971 = vand.u32 %v7970, 4294901760
    %7972 = vmatpush.msra.mxu0 %v7971
    %v7973 = vand.u32 %v632, 4294901760
    %7974 = vmatmul.f32.gmra.mxu0 %v7973
    %v7975 = vpop.f32.mrf.mxu0
    %v7976 = vadd.f32 %v7875, %v7975
    %7977 = vdwg.mxu0
    %v7978 = vand.u32 %v446, 4294901760
    %v7979 = vsub.f32 %v446, %v7978
    %7980 = vmatpush.msra.mxu0 %v7979
    %v7981 = vand.u32 %v445, 4294901760
    %v7982 = vsub.f32 %v445, %v7981
    %7983 = vmatpush.msra.mxu0 %v7982
    %v7984 = vand.u32 %v444, 4294901760
    %v7985 = vsub.f32 %v444, %v7984
    %7986 = vmatpush.msra.mxu0 %v7985
    %v7987 = vand.u32 %v443, 4294901760
    %v7988 = vsub.f32 %v443, %v7987
    %7989 = vmatpush.msra.mxu0 %v7988
    %v7990 = vand.u32 %v442, 4294901760
    %v7991 = vsub.f32 %v442, %v7990
    %7992 = vmatpush.msra.mxu0 %v7991
    %v7993 = vand.u32 %v441, 4294901760
    %v7994 = vsub.f32 %v441, %v7993
    %7995 = vmatpush.msra.mxu0 %v7994
    %v7996 = vand.u32 %v440, 4294901760
    %v7997 = vsub.f32 %v440, %v7996
    %7998 = vmatpush.msra.mxu0 %v7997
    %v7999 = vand.u32 %v439, 4294901760
    %v8000 = vsub.f32 %v439, %v7999
    %8001 = vmatpush.msra.mxu0 %v8000
    %v8002 = vand.u32 %v438, 4294901760
    %v8003 = vsub.f32 %v438, %v8002
    %8004 = vmatpush.msra.mxu0 %v8003
    %v8005 = vand.u32 %v437, 4294901760
    %v8006 = vsub.f32 %v437, %v8005
    %8007 = vmatpush.msra.mxu0 %v8006
    %v8008 = vand.u32 %v436, 4294901760
    %v8009 = vsub.f32 %v436, %v8008
    %8010 = vmatpush.msra.mxu0 %v8009
    %v8011 = vand.u32 %v435, 4294901760
    %v8012 = vsub.f32 %v435, %v8011
    %8013 = vmatpush.msra.mxu0 %v8012
    %v8014 = vand.u32 %v434, 4294901760
    %v8015 = vsub.f32 %v434, %v8014
    %8016 = vmatpush.msra.mxu0 %v8015
    %v8017 = vand.u32 %v433, 4294901760
    %v8018 = vsub.f32 %v433, %v8017
    %8019 = vmatpush.msra.mxu0 %v8018
    %v8020 = vand.u32 %v432, 4294901760
    %v8021 = vsub.f32 %v432, %v8020
    %8022 = vmatpush.msra.mxu0 %v8021
    %v8023 = vand.u32 %v431, 4294901760
    %v8024 = vsub.f32 %v431, %v8023
    %8025 = vmatpush.msra.mxu0 %v8024
    %v8026 = vand.u32 %v632, 4294901760
    %v8027 = vsub.f32 %v632, %v8026
    %8028 = vmatmul.f32.gmra.mxu0 %v8027
    %v8029 = vpop.f32.mrf.mxu0
    %v8030 = vadd.f32 %v7976, %v8029
    %8031 = vdwg.mxu0
    %v8032 = vand.u32 %v446, 4294901760
    %8033 = vmatpush.msra.mxu0 %v8032
    %v8034 = vand.u32 %v445, 4294901760
    %8035 = vmatpush.msra.mxu0 %v8034
    %v8036 = vand.u32 %v444, 4294901760
    %8037 = vmatpush.msra.mxu0 %v8036
    %v8038 = vand.u32 %v443, 4294901760
    %8039 = vmatpush.msra.mxu0 %v8038
    %v8040 = vand.u32 %v442, 4294901760
    %8041 = vmatpush.msra.mxu0 %v8040
    %v8042 = vand.u32 %v441, 4294901760
    %8043 = vmatpush.msra.mxu0 %v8042
    %v8044 = vand.u32 %v440, 4294901760
    %8045 = vmatpush.msra.mxu0 %v8044
    %v8046 = vand.u32 %v439, 4294901760
    %8047 = vmatpush.msra.mxu0 %v8046
    %v8048 = vand.u32 %v438, 4294901760
    %8049 = vmatpush.msra.mxu0 %v8048
    %v8050 = vand.u32 %v437, 4294901760
    %8051 = vmatpush.msra.mxu0 %v8050
    %v8052 = vand.u32 %v436, 4294901760
    %8053 = vmatpush.msra.mxu0 %v8052
    %v8054 = vand.u32 %v435, 4294901760
    %8055 = vmatpush.msra.mxu0 %v8054
    %v8056 = vand.u32 %v434, 4294901760
    %8057 = vmatpush.msra.mxu0 %v8056
    %v8058 = vand.u32 %v433, 4294901760
    %8059 = vmatpush.msra.mxu0 %v8058
    %v8060 = vand.u32 %v432, 4294901760
    %8061 = vmatpush.msra.mxu0 %v8060
    %v8062 = vand.u32 %v431, 4294901760
    %8063 = vmatpush.msra.mxu0 %v8062
    %v8064 = vand.u32 %v632, 4294901760
    %v8065 = vsub.f32 %v632, %v8064
    %v8066 = vand.u32 %v8065, 4294901760
    %8067 = vmatmul.f32.gmra.mxu0 %v8066
    %v8068 = vpop.f32.mrf.mxu0
    %v8069 = vadd.f32 %v8030, %v8068
    %8070 = vdwg.mxu0
    %v8071 = vand.u32 %v446, 4294901760
    %v8072 = vsub.f32 %v446, %v8071
    %v8073 = vand.u32 %v8072, 4294901760
    %8074 = vmatpush.msra.mxu0 %v8073
    %v8075 = vand.u32 %v445, 4294901760
    %v8076 = vsub.f32 %v445, %v8075
    %v8077 = vand.u32 %v8076, 4294901760
    %8078 = vmatpush.msra.mxu0 %v8077
    %v8079 = vand.u32 %v444, 4294901760
    %v8080 = vsub.f32 %v444, %v8079
    %v8081 = vand.u32 %v8080, 4294901760
    %8082 = vmatpush.msra.mxu0 %v8081
    %v8083 = vand.u32 %v443, 4294901760
    %v8084 = vsub.f32 %v443, %v8083
    %v8085 = vand.u32 %v8084, 4294901760
    %8086 = vmatpush.msra.mxu0 %v8085
    %v8087 = vand.u32 %v442, 4294901760
    %v8088 = vsub.f32 %v442, %v8087
    %v8089 = vand.u32 %v8088, 4294901760
    %8090 = vmatpush.msra.mxu0 %v8089
    %v8091 = vand.u32 %v441, 4294901760
    %v8092 = vsub.f32 %v441, %v8091
    %v8093 = vand.u32 %v8092, 4294901760
    %8094 = vmatpush.msra.mxu0 %v8093
    %v8095 = vand.u32 %v440, 4294901760
    %v8096 = vsub.f32 %v440, %v8095
    %v8097 = vand.u32 %v8096, 4294901760
    %8098 = vmatpush.msra.mxu0 %v8097
    %v8099 = vand.u32 %v439, 4294901760
    %v8100 = vsub.f32 %v439, %v8099
    %v8101 = vand.u32 %v8100, 4294901760
    %8102 = vmatpush.msra.mxu0 %v8101
    %v8103 = vand.u32 %v438, 4294901760
    %v8104 = vsub.f32 %v438, %v8103
    %v8105 = vand.u32 %v8104, 4294901760
    %8106 = vmatpush.msra.mxu0 %v8105
    %v8107 = vand.u32 %v437, 4294901760
    %v8108 = vsub.f32 %v437, %v8107
    %v8109 = vand.u32 %v8108, 4294901760
    %8110 = vmatpush.msra.mxu0 %v8109
    %v8111 = vand.u32 %v436, 4294901760
    %v8112 = vsub.f32 %v436, %v8111
    %v8113 = vand.u32 %v8112, 4294901760
    %8114 = vmatpush.msra.mxu0 %v8113
    %v8115 = vand.u32 %v435, 4294901760
    %v8116 = vsub.f32 %v435, %v8115
    %v8117 = vand.u32 %v8116, 4294901760
    %8118 = vmatpush.msra.mxu0 %v8117
    %v8119 = vand.u32 %v434, 4294901760
    %v8120 = vsub.f32 %v434, %v8119
    %v8121 = vand.u32 %v8120, 4294901760
    %8122 = vmatpush.msra.mxu0 %v8121
    %v8123 = vand.u32 %v433, 4294901760
    %v8124 = vsub.f32 %v433, %v8123
    %v8125 = vand.u32 %v8124, 4294901760
    %8126 = vmatpush.msra.mxu0 %v8125
    %v8127 = vand.u32 %v432, 4294901760
    %v8128 = vsub.f32 %v432, %v8127
    %v8129 = vand.u32 %v8128, 4294901760
    %8130 = vmatpush.msra.mxu0 %v8129
    %v8131 = vand.u32 %v431, 4294901760
    %v8132 = vsub.f32 %v431, %v8131
    %v8133 = vand.u32 %v8132, 4294901760
    %8134 = vmatpush.msra.mxu0 %v8133
    %v8135 = vand.u32 %v632, 4294901760
    %8136 = vmatmul.f32.gmra.mxu0 %v8135
    %v8137 = vpop.f32.mrf.mxu0
    %v8138 = vadd.f32 %v8069, %v8137
    %8139 = vdwg.mxu0
    %v8140 = vand.u32 %v446, 4294901760
    %8141 = vmatpush.msra.mxu0 %v8140
    %v8142 = vand.u32 %v445, 4294901760
    %8143 = vmatpush.msra.mxu0 %v8142
    %v8144 = vand.u32 %v444, 4294901760
    %8145 = vmatpush.msra.mxu0 %v8144
    %v8146 = vand.u32 %v443, 4294901760
    %8147 = vmatpush.msra.mxu0 %v8146
    %v8148 = vand.u32 %v442, 4294901760
    %8149 = vmatpush.msra.mxu0 %v8148
    %v8150 = vand.u32 %v441, 4294901760
    %8151 = vmatpush.msra.mxu0 %v8150
    %v8152 = vand.u32 %v440, 4294901760
    %8153 = vmatpush.msra.mxu0 %v8152
    %v8154 = vand.u32 %v439, 4294901760
    %8155 = vmatpush.msra.mxu0 %v8154
    %v8156 = vand.u32 %v438, 4294901760
    %8157 = vmatpush.msra.mxu0 %v8156
    %v8158 = vand.u32 %v437, 4294901760
    %8159 = vmatpush.msra.mxu0 %v8158
    %v8160 = vand.u32 %v436, 4294901760
    %8161 = vmatpush.msra.mxu0 %v8160
    %v8162 = vand.u32 %v435, 4294901760
    %8163 = vmatpush.msra.mxu0 %v8162
    %v8164 = vand.u32 %v434, 4294901760
    %8165 = vmatpush.msra.mxu0 %v8164
    %v8166 = vand.u32 %v433, 4294901760
    %8167 = vmatpush.msra.mxu0 %v8166
    %v8168 = vand.u32 %v432, 4294901760
    %8169 = vmatpush.msra.mxu0 %v8168
    %v8170 = vand.u32 %v431, 4294901760
    %8171 = vmatpush.msra.mxu0 %v8170
    %v8172 = vand.u32 %v632, 4294901760
    %8173 = vmatmul.f32.gmra.mxu0 %v8172
    %v8174 = vpop.f32.mrf.mxu0
    %v8175 = vadd.f32 %v8138, %v8174
    %8176 = vdwg.mxu0
    %v8177 = vand.u32 %v462, 4294901760
    %8178 = vmatpush.msra.mxu0 %v8177
    %v8179 = vand.u32 %v461, 4294901760
    %8180 = vmatpush.msra.mxu0 %v8179
    %v8181 = vand.u32 %v460, 4294901760
    %8182 = vmatpush.msra.mxu0 %v8181
    %v8183 = vand.u32 %v459, 4294901760
    %8184 = vmatpush.msra.mxu0 %v8183
    %v8185 = vand.u32 %v458, 4294901760
    %8186 = vmatpush.msra.mxu0 %v8185
    %v8187 = vand.u32 %v457, 4294901760
    %8188 = vmatpush.msra.mxu0 %v8187
    %v8189 = vand.u32 %v456, 4294901760
    %8190 = vmatpush.msra.mxu0 %v8189
    %v8191 = vand.u32 %v455, 4294901760
    %8192 = vmatpush.msra.mxu0 %v8191
    %v8193 = vand.u32 %v454, 4294901760
    %8194 = vmatpush.msra.mxu0 %v8193
    %v8195 = vand.u32 %v453, 4294901760
    %8196 = vmatpush.msra.mxu0 %v8195
    %v8197 = vand.u32 %v452, 4294901760
    %8198 = vmatpush.msra.mxu0 %v8197
    %v8199 = vand.u32 %v451, 4294901760
    %8200 = vmatpush.msra.mxu0 %v8199
    %v8201 = vand.u32 %v450, 4294901760
    %8202 = vmatpush.msra.mxu0 %v8201
    %v8203 = vand.u32 %v449, 4294901760
    %8204 = vmatpush.msra.mxu0 %v8203
    %v8205 = vand.u32 %v448, 4294901760
    %8206 = vmatpush.msra.mxu0 %v8205
    %v8207 = vand.u32 %v447, 4294901760
    %8208 = vmatpush.msra.mxu0 %v8207
    %v8209 = vand.u32 %v633, 4294901760
    %v8210 = vsub.f32 %v633, %v8209
    %v8211 = vand.u32 %v8210, 4294901760
    %v8212 = vsub.f32 %v8210, %v8211
    %v8213 = vand.u32 %v8212, 4294901760
    %8214 = vmatmul.f32.gmra.mxu0 %v8213
    %v8215 = vpop.f32.mrf.mxu0
    %v8216 = vadd.f32 %v8175, %v8215
    %8217 = vdwg.mxu0
    %v8218 = vand.u32 %v462, 4294901760
    %v8219 = vsub.f32 %v462, %v8218
    %v8220 = vand.u32 %v8219, 4294901760
    %v8221 = vsub.f32 %v8219, %v8220
    %v8222 = vand.u32 %v8221, 4294901760
    %8223 = vmatpush.msra.mxu0 %v8222
    %v8224 = vand.u32 %v461, 4294901760
    %v8225 = vsub.f32 %v461, %v8224
    %v8226 = vand.u32 %v8225, 4294901760
    %v8227 = vsub.f32 %v8225, %v8226
    %v8228 = vand.u32 %v8227, 4294901760
    %8229 = vmatpush.msra.mxu0 %v8228
    %v8230 = vand.u32 %v460, 4294901760
    %v8231 = vsub.f32 %v460, %v8230
    %v8232 = vand.u32 %v8231, 4294901760
    %v8233 = vsub.f32 %v8231, %v8232
    %v8234 = vand.u32 %v8233, 4294901760
    %8235 = vmatpush.msra.mxu0 %v8234
    %v8236 = vand.u32 %v459, 4294901760
    %v8237 = vsub.f32 %v459, %v8236
    %v8238 = vand.u32 %v8237, 4294901760
    %v8239 = vsub.f32 %v8237, %v8238
    %v8240 = vand.u32 %v8239, 4294901760
    %8241 = vmatpush.msra.mxu0 %v8240
    %v8242 = vand.u32 %v458, 4294901760
    %v8243 = vsub.f32 %v458, %v8242
    %v8244 = vand.u32 %v8243, 4294901760
    %v8245 = vsub.f32 %v8243, %v8244
    %v8246 = vand.u32 %v8245, 4294901760
    %8247 = vmatpush.msra.mxu0 %v8246
    %v8248 = vand.u32 %v457, 4294901760
    %v8249 = vsub.f32 %v457, %v8248
    %v8250 = vand.u32 %v8249, 4294901760
    %v8251 = vsub.f32 %v8249, %v8250
    %v8252 = vand.u32 %v8251, 4294901760
    %8253 = vmatpush.msra.mxu0 %v8252
    %v8254 = vand.u32 %v456, 4294901760
    %v8255 = vsub.f32 %v456, %v8254
    %v8256 = vand.u32 %v8255, 4294901760
    %v8257 = vsub.f32 %v8255, %v8256
    %v8258 = vand.u32 %v8257, 4294901760
    %8259 = vmatpush.msra.mxu0 %v8258
    %v8260 = vand.u32 %v455, 4294901760
    %v8261 = vsub.f32 %v455, %v8260
    %v8262 = vand.u32 %v8261, 4294901760
    %v8263 = vsub.f32 %v8261, %v8262
    %v8264 = vand.u32 %v8263, 4294901760
    %8265 = vmatpush.msra.mxu0 %v8264
    %v8266 = vand.u32 %v454, 4294901760
    %v8267 = vsub.f32 %v454, %v8266
    %v8268 = vand.u32 %v8267, 4294901760
    %v8269 = vsub.f32 %v8267, %v8268
    %v8270 = vand.u32 %v8269, 4294901760
    %8271 = vmatpush.msra.mxu0 %v8270
    %v8272 = vand.u32 %v453, 4294901760
    %v8273 = vsub.f32 %v453, %v8272
    %v8274 = vand.u32 %v8273, 4294901760
    %v8275 = vsub.f32 %v8273, %v8274
    %v8276 = vand.u32 %v8275, 4294901760
    %8277 = vmatpush.msra.mxu0 %v8276
    %v8278 = vand.u32 %v452, 4294901760
    %v8279 = vsub.f32 %v452, %v8278
    %v8280 = vand.u32 %v8279, 4294901760
    %v8281 = vsub.f32 %v8279, %v8280
    %v8282 = vand.u32 %v8281, 4294901760
    %8283 = vmatpush.msra.mxu0 %v8282
    %v8284 = vand.u32 %v451, 4294901760
    %v8285 = vsub.f32 %v451, %v8284
    %v8286 = vand.u32 %v8285, 4294901760
    %v8287 = vsub.f32 %v8285, %v8286
    %v8288 = vand.u32 %v8287, 4294901760
    %8289 = vmatpush.msra.mxu0 %v8288
    %v8290 = vand.u32 %v450, 4294901760
    %v8291 = vsub.f32 %v450, %v8290
    %v8292 = vand.u32 %v8291, 4294901760
    %v8293 = vsub.f32 %v8291, %v8292
    %v8294 = vand.u32 %v8293, 4294901760
    %8295 = vmatpush.msra.mxu0 %v8294
    %v8296 = vand.u32 %v449, 4294901760
    %v8297 = vsub.f32 %v449, %v8296
    %v8298 = vand.u32 %v8297, 4294901760
    %v8299 = vsub.f32 %v8297, %v8298
    %v8300 = vand.u32 %v8299, 4294901760
    %8301 = vmatpush.msra.mxu0 %v8300
    %v8302 = vand.u32 %v448, 4294901760
    %v8303 = vsub.f32 %v448, %v8302
    %v8304 = vand.u32 %v8303, 4294901760
    %v8305 = vsub.f32 %v8303, %v8304
    %v8306 = vand.u32 %v8305, 4294901760
    %8307 = vmatpush.msra.mxu0 %v8306
    %v8308 = vand.u32 %v447, 4294901760
    %v8309 = vsub.f32 %v447, %v8308
    %v8310 = vand.u32 %v8309, 4294901760
    %v8311 = vsub.f32 %v8309, %v8310
    %v8312 = vand.u32 %v8311, 4294901760
    %8313 = vmatpush.msra.mxu0 %v8312
    %v8314 = vand.u32 %v633, 4294901760
    %8315 = vmatmul.f32.gmra.mxu0 %v8314
    %v8316 = vpop.f32.mrf.mxu0
    %v8317 = vadd.f32 %v8216, %v8316
    %8318 = vdwg.mxu0
    %v8319 = vand.u32 %v462, 4294901760
    %v8320 = vsub.f32 %v462, %v8319
    %8321 = vmatpush.msra.mxu0 %v8320
    %v8322 = vand.u32 %v461, 4294901760
    %v8323 = vsub.f32 %v461, %v8322
    %8324 = vmatpush.msra.mxu0 %v8323
    %v8325 = vand.u32 %v460, 4294901760
    %v8326 = vsub.f32 %v460, %v8325
    %8327 = vmatpush.msra.mxu0 %v8326
    %v8328 = vand.u32 %v459, 4294901760
    %v8329 = vsub.f32 %v459, %v8328
    %8330 = vmatpush.msra.mxu0 %v8329
    %v8331 = vand.u32 %v458, 4294901760
    %v8332 = vsub.f32 %v458, %v8331
    %8333 = vmatpush.msra.mxu0 %v8332
    %v8334 = vand.u32 %v457, 4294901760
    %v8335 = vsub.f32 %v457, %v8334
    %8336 = vmatpush.msra.mxu0 %v8335
    %v8337 = vand.u32 %v456, 4294901760
    %v8338 = vsub.f32 %v456, %v8337
    %8339 = vmatpush.msra.mxu0 %v8338
    %v8340 = vand.u32 %v455, 4294901760
    %v8341 = vsub.f32 %v455, %v8340
    %8342 = vmatpush.msra.mxu0 %v8341
    %v8343 = vand.u32 %v454, 4294901760
    %v8344 = vsub.f32 %v454, %v8343
    %8345 = vmatpush.msra.mxu0 %v8344
    %v8346 = vand.u32 %v453, 4294901760
    %v8347 = vsub.f32 %v453, %v8346
    %8348 = vmatpush.msra.mxu0 %v8347
    %v8349 = vand.u32 %v452, 4294901760
    %v8350 = vsub.f32 %v452, %v8349
    %8351 = vmatpush.msra.mxu0 %v8350
    %v8352 = vand.u32 %v451, 4294901760
    %v8353 = vsub.f32 %v451, %v8352
    %8354 = vmatpush.msra.mxu0 %v8353
    %v8355 = vand.u32 %v450, 4294901760
    %v8356 = vsub.f32 %v450, %v8355
    %8357 = vmatpush.msra.mxu0 %v8356
    %v8358 = vand.u32 %v449, 4294901760
    %v8359 = vsub.f32 %v449, %v8358
    %8360 = vmatpush.msra.mxu0 %v8359
    %v8361 = vand.u32 %v448, 4294901760
    %v8362 = vsub.f32 %v448, %v8361
    %8363 = vmatpush.msra.mxu0 %v8362
    %v8364 = vand.u32 %v447, 4294901760
    %v8365 = vsub.f32 %v447, %v8364
    %8366 = vmatpush.msra.mxu0 %v8365
    %v8367 = vand.u32 %v633, 4294901760
    %v8368 = vsub.f32 %v633, %v8367
    %8369 = vmatmul.f32.gmra.mxu0 %v8368
    %v8370 = vpop.f32.mrf.mxu0
    %v8371 = vadd.f32 %v8317, %v8370
    %8372 = vdwg.mxu0
    %v8373 = vand.u32 %v462, 4294901760
    %8374 = vmatpush.msra.mxu0 %v8373
    %v8375 = vand.u32 %v461, 4294901760
    %8376 = vmatpush.msra.mxu0 %v8375
    %v8377 = vand.u32 %v460, 4294901760
    %8378 = vmatpush.msra.mxu0 %v8377
    %v8379 = vand.u32 %v459, 4294901760
    %8380 = vmatpush.msra.mxu0 %v8379
    %v8381 = vand.u32 %v458, 4294901760
    %8382 = vmatpush.msra.mxu0 %v8381
    %v8383 = vand.u32 %v457, 4294901760
    %8384 = vmatpush.msra.mxu0 %v8383
    %v8385 = vand.u32 %v456, 4294901760
    %8386 = vmatpush.msra.mxu0 %v8385
    %v8387 = vand.u32 %v455, 4294901760
    %8388 = vmatpush.msra.mxu0 %v8387
    %v8389 = vand.u32 %v454, 4294901760
    %8390 = vmatpush.msra.mxu0 %v8389
    %v8391 = vand.u32 %v453, 4294901760
    %8392 = vmatpush.msra.mxu0 %v8391
    %v8393 = vand.u32 %v452, 4294901760
    %8394 = vmatpush.msra.mxu0 %v8393
    %v8395 = vand.u32 %v451, 4294901760
    %8396 = vmatpush.msra.mxu0 %v8395
    %v8397 = vand.u32 %v450, 4294901760
    %8398 = vmatpush.msra.mxu0 %v8397
    %v8399 = vand.u32 %v449, 4294901760
    %8400 = vmatpush.msra.mxu0 %v8399
    %v8401 = vand.u32 %v448, 4294901760
    %8402 = vmatpush.msra.mxu0 %v8401
    %v8403 = vand.u32 %v447, 4294901760
    %8404 = vmatpush.msra.mxu0 %v8403
    %v8405 = vand.u32 %v633, 4294901760
    %v8406 = vsub.f32 %v633, %v8405
    %v8407 = vand.u32 %v8406, 4294901760
    %8408 = vmatmul.f32.gmra.mxu0 %v8407
    %v8409 = vpop.f32.mrf.mxu0
    %v8410 = vadd.f32 %v8371, %v8409
    %8411 = vdwg.mxu0
    %v8412 = vand.u32 %v462, 4294901760
    %v8413 = vsub.f32 %v462, %v8412
    %v8414 = vand.u32 %v8413, 4294901760
    %8415 = vmatpush.msra.mxu0 %v8414
    %v8416 = vand.u32 %v461, 4294901760
    %v8417 = vsub.f32 %v461, %v8416
    %v8418 = vand.u32 %v8417, 4294901760
    %8419 = vmatpush.msra.mxu0 %v8418
    %v8420 = vand.u32 %v460, 4294901760
    %v8421 = vsub.f32 %v460, %v8420
    %v8422 = vand.u32 %v8421, 4294901760
    %8423 = vmatpush.msra.mxu0 %v8422
    %v8424 = vand.u32 %v459, 4294901760
    %v8425 = vsub.f32 %v459, %v8424
    %v8426 = vand.u32 %v8425, 4294901760
    %8427 = vmatpush.msra.mxu0 %v8426
    %v8428 = vand.u32 %v458, 4294901760
    %v8429 = vsub.f32 %v458, %v8428
    %v8430 = vand.u32 %v8429, 4294901760
    %8431 = vmatpush.msra.mxu0 %v8430
    %v8432 = vand.u32 %v457, 4294901760
    %v8433 = vsub.f32 %v457, %v8432
    %v8434 = vand.u32 %v8433, 4294901760
    %8435 = vmatpush.msra.mxu0 %v8434
    %v8436 = vand.u32 %v456, 4294901760
    %v8437 = vsub.f32 %v456, %v8436
    %v8438 = vand.u32 %v8437, 4294901760
    %8439 = vmatpush.msra.mxu0 %v8438
    %v8440 = vand.u32 %v455, 4294901760
    %v8441 = vsub.f32 %v455, %v8440
    %v8442 = vand.u32 %v8441, 4294901760
    %8443 = vmatpush.msra.mxu0 %v8442
    %v8444 = vand.u32 %v454, 4294901760
    %v8445 = vsub.f32 %v454, %v8444
    %v8446 = vand.u32 %v8445, 4294901760
    %8447 = vmatpush.msra.mxu0 %v8446
    %v8448 = vand.u32 %v453, 4294901760
    %v8449 = vsub.f32 %v453, %v8448
    %v8450 = vand.u32 %v8449, 4294901760
    %8451 = vmatpush.msra.mxu0 %v8450
    %v8452 = vand.u32 %v452, 4294901760
    %v8453 = vsub.f32 %v452, %v8452
    %v8454 = vand.u32 %v8453, 4294901760
    %8455 = vmatpush.msra.mxu0 %v8454
    %v8456 = vand.u32 %v451, 4294901760
    %v8457 = vsub.f32 %v451, %v8456
    %v8458 = vand.u32 %v8457, 4294901760
    %8459 = vmatpush.msra.mxu0 %v8458
    %v8460 = vand.u32 %v450, 4294901760
    %v8461 = vsub.f32 %v450, %v8460
    %v8462 = vand.u32 %v8461, 4294901760
    %8463 = vmatpush.msra.mxu0 %v8462
    %v8464 = vand.u32 %v449, 4294901760
    %v8465 = vsub.f32 %v449, %v8464
    %v8466 = vand.u32 %v8465, 4294901760
    %8467 = vmatpush.msra.mxu0 %v8466
    %v8468 = vand.u32 %v448, 4294901760
    %v8469 = vsub.f32 %v448, %v8468
    %v8470 = vand.u32 %v8469, 4294901760
    %8471 = vmatpush.msra.mxu0 %v8470
    %v8472 = vand.u32 %v447, 4294901760
    %v8473 = vsub.f32 %v447, %v8472
    %v8474 = vand.u32 %v8473, 4294901760
    %8475 = vmatpush.msra.mxu0 %v8474
    %v8476 = vand.u32 %v633, 4294901760
    %8477 = vmatmul.f32.gmra.mxu0 %v8476
    %v8478 = vpop.f32.mrf.mxu0
    %v8479 = vadd.f32 %v8410, %v8478
    %8480 = vdwg.mxu0
    %v8481 = vand.u32 %v462, 4294901760
    %8482 = vmatpush.msra.mxu0 %v8481
    %v8483 = vand.u32 %v461, 4294901760
    %8484 = vmatpush.msra.mxu0 %v8483
    %v8485 = vand.u32 %v460, 4294901760
    %8486 = vmatpush.msra.mxu0 %v8485
    %v8487 = vand.u32 %v459, 4294901760
    %8488 = vmatpush.msra.mxu0 %v8487
    %v8489 = vand.u32 %v458, 4294901760
    %8490 = vmatpush.msra.mxu0 %v8489
    %v8491 = vand.u32 %v457, 4294901760
    %8492 = vmatpush.msra.mxu0 %v8491
    %v8493 = vand.u32 %v456, 4294901760
    %8494 = vmatpush.msra.mxu0 %v8493
    %v8495 = vand.u32 %v455, 4294901760
    %8496 = vmatpush.msra.mxu0 %v8495
    %v8497 = vand.u32 %v454, 4294901760
    %8498 = vmatpush.msra.mxu0 %v8497
    %v8499 = vand.u32 %v453, 4294901760
    %8500 = vmatpush.msra.mxu0 %v8499
    %v8501 = vand.u32 %v452, 4294901760
    %8502 = vmatpush.msra.mxu0 %v8501
    %v8503 = vand.u32 %v451, 4294901760
    %8504 = vmatpush.msra.mxu0 %v8503
    %v8505 = vand.u32 %v450, 4294901760
    %8506 = vmatpush.msra.mxu0 %v8505
    %v8507 = vand.u32 %v449, 4294901760
    %8508 = vmatpush.msra.mxu0 %v8507
    %v8509 = vand.u32 %v448, 4294901760
    %8510 = vmatpush.msra.mxu0 %v8509
    %v8511 = vand.u32 %v447, 4294901760
    %8512 = vmatpush.msra.mxu0 %v8511
    %v8513 = vand.u32 %v633, 4294901760
    %8514 = vmatmul.f32.gmra.mxu0 %v8513
    %v8515 = vpop.f32.mrf.mxu0
    %v8516 = vadd.f32 %v8479, %v8515
    %8517 = vdwg.mxu0
    %v8518 = vand.u32 %v478, 4294901760
    %8519 = vmatpush.msra.mxu0 %v8518
    %v8520 = vand.u32 %v477, 4294901760
    %8521 = vmatpush.msra.mxu0 %v8520
    %v8522 = vand.u32 %v476, 4294901760
    %8523 = vmatpush.msra.mxu0 %v8522
    %v8524 = vand.u32 %v475, 4294901760
    %8525 = vmatpush.msra.mxu0 %v8524
    %v8526 = vand.u32 %v474, 4294901760
    %8527 = vmatpush.msra.mxu0 %v8526
    %v8528 = vand.u32 %v473, 4294901760
    %8529 = vmatpush.msra.mxu0 %v8528
    %v8530 = vand.u32 %v472, 4294901760
    %8531 = vmatpush.msra.mxu0 %v8530
    %v8532 = vand.u32 %v471, 4294901760
    %8533 = vmatpush.msra.mxu0 %v8532
    %v8534 = vand.u32 %v470, 4294901760
    %8535 = vmatpush.msra.mxu0 %v8534
    %v8536 = vand.u32 %v469, 4294901760
    %8537 = vmatpush.msra.mxu0 %v8536
    %v8538 = vand.u32 %v468, 4294901760
    %8539 = vmatpush.msra.mxu0 %v8538
    %v8540 = vand.u32 %v467, 4294901760
    %8541 = vmatpush.msra.mxu0 %v8540
    %v8542 = vand.u32 %v466, 4294901760
    %8543 = vmatpush.msra.mxu0 %v8542
    %v8544 = vand.u32 %v465, 4294901760
    %8545 = vmatpush.msra.mxu0 %v8544
    %v8546 = vand.u32 %v464, 4294901760
    %8547 = vmatpush.msra.mxu0 %v8546
    %v8548 = vand.u32 %v463, 4294901760
    %8549 = vmatpush.msra.mxu0 %v8548
    %v8550 = vand.u32 %v634, 4294901760
    %v8551 = vsub.f32 %v634, %v8550
    %v8552 = vand.u32 %v8551, 4294901760
    %v8553 = vsub.f32 %v8551, %v8552
    %v8554 = vand.u32 %v8553, 4294901760
    %8555 = vmatmul.f32.gmra.mxu0 %v8554
    %v8556 = vpop.f32.mrf.mxu0
    %v8557 = vadd.f32 %v8516, %v8556
    %8558 = vdwg.mxu0
    %v8559 = vand.u32 %v478, 4294901760
    %v8560 = vsub.f32 %v478, %v8559
    %v8561 = vand.u32 %v8560, 4294901760
    %v8562 = vsub.f32 %v8560, %v8561
    %v8563 = vand.u32 %v8562, 4294901760
    %8564 = vmatpush.msra.mxu0 %v8563
    %v8565 = vand.u32 %v477, 4294901760
    %v8566 = vsub.f32 %v477, %v8565
    %v8567 = vand.u32 %v8566, 4294901760
    %v8568 = vsub.f32 %v8566, %v8567
    %v8569 = vand.u32 %v8568, 4294901760
    %8570 = vmatpush.msra.mxu0 %v8569
    %v8571 = vand.u32 %v476, 4294901760
    %v8572 = vsub.f32 %v476, %v8571
    %v8573 = vand.u32 %v8572, 4294901760
    %v8574 = vsub.f32 %v8572, %v8573
    %v8575 = vand.u32 %v8574, 4294901760
    %8576 = vmatpush.msra.mxu0 %v8575
    %v8577 = vand.u32 %v475, 4294901760
    %v8578 = vsub.f32 %v475, %v8577
    %v8579 = vand.u32 %v8578, 4294901760
    %v8580 = vsub.f32 %v8578, %v8579
    %v8581 = vand.u32 %v8580, 4294901760
    %8582 = vmatpush.msra.mxu0 %v8581
    %v8583 = vand.u32 %v474, 4294901760
    %v8584 = vsub.f32 %v474, %v8583
    %v8585 = vand.u32 %v8584, 4294901760
    %v8586 = vsub.f32 %v8584, %v8585
    %v8587 = vand.u32 %v8586, 4294901760
    %8588 = vmatpush.msra.mxu0 %v8587
    %v8589 = vand.u32 %v473, 4294901760
    %v8590 = vsub.f32 %v473, %v8589
    %v8591 = vand.u32 %v8590, 4294901760
    %v8592 = vsub.f32 %v8590, %v8591
    %v8593 = vand.u32 %v8592, 4294901760
    %8594 = vmatpush.msra.mxu0 %v8593
    %v8595 = vand.u32 %v472, 4294901760
    %v8596 = vsub.f32 %v472, %v8595
    %v8597 = vand.u32 %v8596, 4294901760
    %v8598 = vsub.f32 %v8596, %v8597
    %v8599 = vand.u32 %v8598, 4294901760
    %8600 = vmatpush.msra.mxu0 %v8599
    %v8601 = vand.u32 %v471, 4294901760
    %v8602 = vsub.f32 %v471, %v8601
    %v8603 = vand.u32 %v8602, 4294901760
    %v8604 = vsub.f32 %v8602, %v8603
    %v8605 = vand.u32 %v8604, 4294901760
    %8606 = vmatpush.msra.mxu0 %v8605
    %v8607 = vand.u32 %v470, 4294901760
    %v8608 = vsub.f32 %v470, %v8607
    %v8609 = vand.u32 %v8608, 4294901760
    %v8610 = vsub.f32 %v8608, %v8609
    %v8611 = vand.u32 %v8610, 4294901760
    %8612 = vmatpush.msra.mxu0 %v8611
    %v8613 = vand.u32 %v469, 4294901760
    %v8614 = vsub.f32 %v469, %v8613
    %v8615 = vand.u32 %v8614, 4294901760
    %v8616 = vsub.f32 %v8614, %v8615
    %v8617 = vand.u32 %v8616, 4294901760
    %8618 = vmatpush.msra.mxu0 %v8617
    %v8619 = vand.u32 %v468, 4294901760
    %v8620 = vsub.f32 %v468, %v8619
    %v8621 = vand.u32 %v8620, 4294901760
    %v8622 = vsub.f32 %v8620, %v8621
    %v8623 = vand.u32 %v8622, 4294901760
    %8624 = vmatpush.msra.mxu0 %v8623
    %v8625 = vand.u32 %v467, 4294901760
    %v8626 = vsub.f32 %v467, %v8625
    %v8627 = vand.u32 %v8626, 4294901760
    %v8628 = vsub.f32 %v8626, %v8627
    %v8629 = vand.u32 %v8628, 4294901760
    %8630 = vmatpush.msra.mxu0 %v8629
    %v8631 = vand.u32 %v466, 4294901760
    %v8632 = vsub.f32 %v466, %v8631
    %v8633 = vand.u32 %v8632, 4294901760
    %v8634 = vsub.f32 %v8632, %v8633
    %v8635 = vand.u32 %v8634, 4294901760
    %8636 = vmatpush.msra.mxu0 %v8635
    %v8637 = vand.u32 %v465, 4294901760
    %v8638 = vsub.f32 %v465, %v8637
    %v8639 = vand.u32 %v8638, 4294901760
    %v8640 = vsub.f32 %v8638, %v8639
    %v8641 = vand.u32 %v8640, 4294901760
    %8642 = vmatpush.msra.mxu0 %v8641
    %v8643 = vand.u32 %v464, 4294901760
    %v8644 = vsub.f32 %v464, %v8643
    %v8645 = vand.u32 %v8644, 4294901760
    %v8646 = vsub.f32 %v8644, %v8645
    %v8647 = vand.u32 %v8646, 4294901760
    %8648 = vmatpush.msra.mxu0 %v8647
    %v8649 = vand.u32 %v463, 4294901760
    %v8650 = vsub.f32 %v463, %v8649
    %v8651 = vand.u32 %v8650, 4294901760
    %v8652 = vsub.f32 %v8650, %v8651
    %v8653 = vand.u32 %v8652, 4294901760
    %8654 = vmatpush.msra.mxu0 %v8653
    %v8655 = vand.u32 %v634, 4294901760
    %8656 = vmatmul.f32.gmra.mxu0 %v8655
    %v8657 = vpop.f32.mrf.mxu0
    %v8658 = vadd.f32 %v8557, %v8657
    %8659 = vdwg.mxu0
    %v8660 = vand.u32 %v478, 4294901760
    %v8661 = vsub.f32 %v478, %v8660
    %8662 = vmatpush.msra.mxu0 %v8661
    %v8663 = vand.u32 %v477, 4294901760
    %v8664 = vsub.f32 %v477, %v8663
    %8665 = vmatpush.msra.mxu0 %v8664
    %v8666 = vand.u32 %v476, 4294901760
    %v8667 = vsub.f32 %v476, %v8666
    %8668 = vmatpush.msra.mxu0 %v8667
    %v8669 = vand.u32 %v475, 4294901760
    %v8670 = vsub.f32 %v475, %v8669
    %8671 = vmatpush.msra.mxu0 %v8670
    %v8672 = vand.u32 %v474, 4294901760
    %v8673 = vsub.f32 %v474, %v8672
    %8674 = vmatpush.msra.mxu0 %v8673
    %v8675 = vand.u32 %v473, 4294901760
    %v8676 = vsub.f32 %v473, %v8675
    %8677 = vmatpush.msra.mxu0 %v8676
    %v8678 = vand.u32 %v472, 4294901760
    %v8679 = vsub.f32 %v472, %v8678
    %8680 = vmatpush.msra.mxu0 %v8679
    %v8681 = vand.u32 %v471, 4294901760
    %v8682 = vsub.f32 %v471, %v8681
    %8683 = vmatpush.msra.mxu0 %v8682
    %v8684 = vand.u32 %v470, 4294901760
    %v8685 = vsub.f32 %v470, %v8684
    %8686 = vmatpush.msra.mxu0 %v8685
    %v8687 = vand.u32 %v469, 4294901760
    %v8688 = vsub.f32 %v469, %v8687
    %8689 = vmatpush.msra.mxu0 %v8688
    %v8690 = vand.u32 %v468, 4294901760
    %v8691 = vsub.f32 %v468, %v8690
    %8692 = vmatpush.msra.mxu0 %v8691
    %v8693 = vand.u32 %v467, 4294901760
    %v8694 = vsub.f32 %v467, %v8693
    %8695 = vmatpush.msra.mxu0 %v8694
    %v8696 = vand.u32 %v466, 4294901760
    %v8697 = vsub.f32 %v466, %v8696
    %8698 = vmatpush.msra.mxu0 %v8697
    %v8699 = vand.u32 %v465, 4294901760
    %v8700 = vsub.f32 %v465, %v8699
    %8701 = vmatpush.msra.mxu0 %v8700
    %v8702 = vand.u32 %v464, 4294901760
    %v8703 = vsub.f32 %v464, %v8702
    %8704 = vmatpush.msra.mxu0 %v8703
    %v8705 = vand.u32 %v463, 4294901760
    %v8706 = vsub.f32 %v463, %v8705
    %8707 = vmatpush.msra.mxu0 %v8706
    %v8708 = vand.u32 %v634, 4294901760
    %v8709 = vsub.f32 %v634, %v8708
    %8710 = vmatmul.f32.gmra.mxu0 %v8709
    %v8711 = vpop.f32.mrf.mxu0
    %v8712 = vadd.f32 %v8658, %v8711
    %8713 = vdwg.mxu0
    %v8714 = vand.u32 %v478, 4294901760
    %8715 = vmatpush.msra.mxu0 %v8714
    %v8716 = vand.u32 %v477, 4294901760
    %8717 = vmatpush.msra.mxu0 %v8716
    %v8718 = vand.u32 %v476, 4294901760
    %8719 = vmatpush.msra.mxu0 %v8718
    %v8720 = vand.u32 %v475, 4294901760
    %8721 = vmatpush.msra.mxu0 %v8720
    %v8722 = vand.u32 %v474, 4294901760
    %8723 = vmatpush.msra.mxu0 %v8722
    %v8724 = vand.u32 %v473, 4294901760
    %8725 = vmatpush.msra.mxu0 %v8724
    %v8726 = vand.u32 %v472, 4294901760
    %8727 = vmatpush.msra.mxu0 %v8726
    %v8728 = vand.u32 %v471, 4294901760
    %8729 = vmatpush.msra.mxu0 %v8728
    %v8730 = vand.u32 %v470, 4294901760
    %8731 = vmatpush.msra.mxu0 %v8730
    %v8732 = vand.u32 %v469, 4294901760
    %8733 = vmatpush.msra.mxu0 %v8732
    %v8734 = vand.u32 %v468, 4294901760
    %8735 = vmatpush.msra.mxu0 %v8734
    %v8736 = vand.u32 %v467, 4294901760
    %8737 = vmatpush.msra.mxu0 %v8736
    %v8738 = vand.u32 %v466, 4294901760
    %8739 = vmatpush.msra.mxu0 %v8738
    %v8740 = vand.u32 %v465, 4294901760
    %8741 = vmatpush.msra.mxu0 %v8740
    %v8742 = vand.u32 %v464, 4294901760
    %8743 = vmatpush.msra.mxu0 %v8742
    %v8744 = vand.u32 %v463, 4294901760
    %8745 = vmatpush.msra.mxu0 %v8744
    %v8746 = vand.u32 %v634, 4294901760
    %v8747 = vsub.f32 %v634, %v8746
    %v8748 = vand.u32 %v8747, 4294901760
    %8749 = vmatmul.f32.gmra.mxu0 %v8748
    %v8750 = vpop.f32.mrf.mxu0
    %v8751 = vadd.f32 %v8712, %v8750
    %8752 = vdwg.mxu0
    %v8753 = vand.u32 %v478, 4294901760
    %v8754 = vsub.f32 %v478, %v8753
    %v8755 = vand.u32 %v8754, 4294901760
    %8756 = vmatpush.msra.mxu0 %v8755
    %v8757 = vand.u32 %v477, 4294901760
    %v8758 = vsub.f32 %v477, %v8757
    %v8759 = vand.u32 %v8758, 4294901760
    %8760 = vmatpush.msra.mxu0 %v8759
    %v8761 = vand.u32 %v476, 4294901760
    %v8762 = vsub.f32 %v476, %v8761
    %v8763 = vand.u32 %v8762, 4294901760
    %8764 = vmatpush.msra.mxu0 %v8763
    %v8765 = vand.u32 %v475, 4294901760
    %v8766 = vsub.f32 %v475, %v8765
    %v8767 = vand.u32 %v8766, 4294901760
    %8768 = vmatpush.msra.mxu0 %v8767
    %v8769 = vand.u32 %v474, 4294901760
    %v8770 = vsub.f32 %v474, %v8769
    %v8771 = vand.u32 %v8770, 4294901760
    %8772 = vmatpush.msra.mxu0 %v8771
    %v8773 = vand.u32 %v473, 4294901760
    %v8774 = vsub.f32 %v473, %v8773
    %v8775 = vand.u32 %v8774, 4294901760
    %8776 = vmatpush.msra.mxu0 %v8775
    %v8777 = vand.u32 %v472, 4294901760
    %v8778 = vsub.f32 %v472, %v8777
    %v8779 = vand.u32 %v8778, 4294901760
    %8780 = vmatpush.msra.mxu0 %v8779
    %v8781 = vand.u32 %v471, 4294901760
    %v8782 = vsub.f32 %v471, %v8781
    %v8783 = vand.u32 %v8782, 4294901760
    %8784 = vmatpush.msra.mxu0 %v8783
    %v8785 = vand.u32 %v470, 4294901760
    %v8786 = vsub.f32 %v470, %v8785
    %v8787 = vand.u32 %v8786, 4294901760
    %8788 = vmatpush.msra.mxu0 %v8787
    %v8789 = vand.u32 %v469, 4294901760
    %v8790 = vsub.f32 %v469, %v8789
    %v8791 = vand.u32 %v8790, 4294901760
    %8792 = vmatpush.msra.mxu0 %v8791
    %v8793 = vand.u32 %v468, 4294901760
    %v8794 = vsub.f32 %v468, %v8793
    %v8795 = vand.u32 %v8794, 4294901760
    %8796 = vmatpush.msra.mxu0 %v8795
    %v8797 = vand.u32 %v467, 4294901760
    %v8798 = vsub.f32 %v467, %v8797
    %v8799 = vand.u32 %v8798, 4294901760
    %8800 = vmatpush.msra.mxu0 %v8799
    %v8801 = vand.u32 %v466, 4294901760
    %v8802 = vsub.f32 %v466, %v8801
    %v8803 = vand.u32 %v8802, 4294901760
    %8804 = vmatpush.msra.mxu0 %v8803
    %v8805 = vand.u32 %v465, 4294901760
    %v8806 = vsub.f32 %v465, %v8805
    %v8807 = vand.u32 %v8806, 4294901760
    %8808 = vmatpush.msra.mxu0 %v8807
    %v8809 = vand.u32 %v464, 4294901760
    %v8810 = vsub.f32 %v464, %v8809
    %v8811 = vand.u32 %v8810, 4294901760
    %8812 = vmatpush.msra.mxu0 %v8811
    %v8813 = vand.u32 %v463, 4294901760
    %v8814 = vsub.f32 %v463, %v8813
    %v8815 = vand.u32 %v8814, 4294901760
    %8816 = vmatpush.msra.mxu0 %v8815
    %v8817 = vand.u32 %v634, 4294901760
    %8818 = vmatmul.f32.gmra.mxu0 %v8817
    %v8819 = vpop.f32.mrf.mxu0
    %v8820 = vadd.f32 %v8751, %v8819
    %8821 = vdwg.mxu0
    %v8822 = vand.u32 %v478, 4294901760
    %8823 = vmatpush.msra.mxu0 %v8822
    %v8824 = vand.u32 %v477, 4294901760
    %8825 = vmatpush.msra.mxu0 %v8824
    %v8826 = vand.u32 %v476, 4294901760
    %8827 = vmatpush.msra.mxu0 %v8826
    %v8828 = vand.u32 %v475, 4294901760
    %8829 = vmatpush.msra.mxu0 %v8828
    %v8830 = vand.u32 %v474, 4294901760
    %8831 = vmatpush.msra.mxu0 %v8830
    %v8832 = vand.u32 %v473, 4294901760
    %8833 = vmatpush.msra.mxu0 %v8832
    %v8834 = vand.u32 %v472, 4294901760
    %8835 = vmatpush.msra.mxu0 %v8834
    %v8836 = vand.u32 %v471, 4294901760
    %8837 = vmatpush.msra.mxu0 %v8836
    %v8838 = vand.u32 %v470, 4294901760
    %8839 = vmatpush.msra.mxu0 %v8838
    %v8840 = vand.u32 %v469, 4294901760
    %8841 = vmatpush.msra.mxu0 %v8840
    %v8842 = vand.u32 %v468, 4294901760
    %8843 = vmatpush.msra.mxu0 %v8842
    %v8844 = vand.u32 %v467, 4294901760
    %8845 = vmatpush.msra.mxu0 %v8844
    %v8846 = vand.u32 %v466, 4294901760
    %8847 = vmatpush.msra.mxu0 %v8846
    %v8848 = vand.u32 %v465, 4294901760
    %8849 = vmatpush.msra.mxu0 %v8848
    %v8850 = vand.u32 %v464, 4294901760
    %8851 = vmatpush.msra.mxu0 %v8850
    %v8852 = vand.u32 %v463, 4294901760
    %8853 = vmatpush.msra.mxu0 %v8852
    %v8854 = vand.u32 %v634, 4294901760
    %8855 = vmatmul.f32.gmra.mxu0 %v8854
    %v8856 = vpop.f32.mrf.mxu0
    %v8857 = vadd.f32 %v8820, %v8856
    %8858 = vdwg.mxu0
    %v8859 = vand.u32 %v494, 4294901760
    %8860 = vmatpush.msra.mxu0 %v8859
    %v8861 = vand.u32 %v493, 4294901760
    %8862 = vmatpush.msra.mxu0 %v8861
    %v8863 = vand.u32 %v492, 4294901760
    %8864 = vmatpush.msra.mxu0 %v8863
    %v8865 = vand.u32 %v491, 4294901760
    %8866 = vmatpush.msra.mxu0 %v8865
    %v8867 = vand.u32 %v490, 4294901760
    %8868 = vmatpush.msra.mxu0 %v8867
    %v8869 = vand.u32 %v489, 4294901760
    %8870 = vmatpush.msra.mxu0 %v8869
    %v8871 = vand.u32 %v488, 4294901760
    %8872 = vmatpush.msra.mxu0 %v8871
    %v8873 = vand.u32 %v487, 4294901760
    %8874 = vmatpush.msra.mxu0 %v8873
    %v8875 = vand.u32 %v486, 4294901760
    %8876 = vmatpush.msra.mxu0 %v8875
    %v8877 = vand.u32 %v485, 4294901760
    %8878 = vmatpush.msra.mxu0 %v8877
    %v8879 = vand.u32 %v484, 4294901760
    %8880 = vmatpush.msra.mxu0 %v8879
    %v8881 = vand.u32 %v483, 4294901760
    %8882 = vmatpush.msra.mxu0 %v8881
    %v8883 = vand.u32 %v482, 4294901760
    %8884 = vmatpush.msra.mxu0 %v8883
    %v8885 = vand.u32 %v481, 4294901760
    %8886 = vmatpush.msra.mxu0 %v8885
    %v8887 = vand.u32 %v480, 4294901760
    %8888 = vmatpush.msra.mxu0 %v8887
    %v8889 = vand.u32 %v479, 4294901760
    %8890 = vmatpush.msra.mxu0 %v8889
    %v8891 = vand.u32 %v635, 4294901760
    %v8892 = vsub.f32 %v635, %v8891
    %v8893 = vand.u32 %v8892, 4294901760
    %v8894 = vsub.f32 %v8892, %v8893
    %v8895 = vand.u32 %v8894, 4294901760
    %8896 = vmatmul.f32.gmra.mxu0 %v8895
    %v8897 = vpop.f32.mrf.mxu0
    %v8898 = vadd.f32 %v8857, %v8897
    %8899 = vdwg.mxu0
    %v8900 = vand.u32 %v494, 4294901760
    %v8901 = vsub.f32 %v494, %v8900
    %v8902 = vand.u32 %v8901, 4294901760
    %v8903 = vsub.f32 %v8901, %v8902
    %v8904 = vand.u32 %v8903, 4294901760
    %8905 = vmatpush.msra.mxu0 %v8904
    %v8906 = vand.u32 %v493, 4294901760
    %v8907 = vsub.f32 %v493, %v8906
    %v8908 = vand.u32 %v8907, 4294901760
    %v8909 = vsub.f32 %v8907, %v8908
    %v8910 = vand.u32 %v8909, 4294901760
    %8911 = vmatpush.msra.mxu0 %v8910
    %v8912 = vand.u32 %v492, 4294901760
    %v8913 = vsub.f32 %v492, %v8912
    %v8914 = vand.u32 %v8913, 4294901760
    %v8915 = vsub.f32 %v8913, %v8914
    %v8916 = vand.u32 %v8915, 4294901760
    %8917 = vmatpush.msra.mxu0 %v8916
    %v8918 = vand.u32 %v491, 4294901760
    %v8919 = vsub.f32 %v491, %v8918
    %v8920 = vand.u32 %v8919, 4294901760
    %v8921 = vsub.f32 %v8919, %v8920
    %v8922 = vand.u32 %v8921, 4294901760
    %8923 = vmatpush.msra.mxu0 %v8922
    %v8924 = vand.u32 %v490, 4294901760
    %v8925 = vsub.f32 %v490, %v8924
    %v8926 = vand.u32 %v8925, 4294901760
    %v8927 = vsub.f32 %v8925, %v8926
    %v8928 = vand.u32 %v8927, 4294901760
    %8929 = vmatpush.msra.mxu0 %v8928
    %v8930 = vand.u32 %v489, 4294901760
    %v8931 = vsub.f32 %v489, %v8930
    %v8932 = vand.u32 %v8931, 4294901760
    %v8933 = vsub.f32 %v8931, %v8932
    %v8934 = vand.u32 %v8933, 4294901760
    %8935 = vmatpush.msra.mxu0 %v8934
    %v8936 = vand.u32 %v488, 4294901760
    %v8937 = vsub.f32 %v488, %v8936
    %v8938 = vand.u32 %v8937, 4294901760
    %v8939 = vsub.f32 %v8937, %v8938
    %v8940 = vand.u32 %v8939, 4294901760
    %8941 = vmatpush.msra.mxu0 %v8940
    %v8942 = vand.u32 %v487, 4294901760
    %v8943 = vsub.f32 %v487, %v8942
    %v8944 = vand.u32 %v8943, 4294901760
    %v8945 = vsub.f32 %v8943, %v8944
    %v8946 = vand.u32 %v8945, 4294901760
    %8947 = vmatpush.msra.mxu0 %v8946
    %v8948 = vand.u32 %v486, 4294901760
    %v8949 = vsub.f32 %v486, %v8948
    %v8950 = vand.u32 %v8949, 4294901760
    %v8951 = vsub.f32 %v8949, %v8950
    %v8952 = vand.u32 %v8951, 4294901760
    %8953 = vmatpush.msra.mxu0 %v8952
    %v8954 = vand.u32 %v485, 4294901760
    %v8955 = vsub.f32 %v485, %v8954
    %v8956 = vand.u32 %v8955, 4294901760
    %v8957 = vsub.f32 %v8955, %v8956
    %v8958 = vand.u32 %v8957, 4294901760
    %8959 = vmatpush.msra.mxu0 %v8958
    %v8960 = vand.u32 %v484, 4294901760
    %v8961 = vsub.f32 %v484, %v8960
    %v8962 = vand.u32 %v8961, 4294901760
    %v8963 = vsub.f32 %v8961, %v8962
    %v8964 = vand.u32 %v8963, 4294901760
    %8965 = vmatpush.msra.mxu0 %v8964
    %v8966 = vand.u32 %v483, 4294901760
    %v8967 = vsub.f32 %v483, %v8966
    %v8968 = vand.u32 %v8967, 4294901760
    %v8969 = vsub.f32 %v8967, %v8968
    %v8970 = vand.u32 %v8969, 4294901760
    %8971 = vmatpush.msra.mxu0 %v8970
    %v8972 = vand.u32 %v482, 4294901760
    %v8973 = vsub.f32 %v482, %v8972
    %v8974 = vand.u32 %v8973, 4294901760
    %v8975 = vsub.f32 %v8973, %v8974
    %v8976 = vand.u32 %v8975, 4294901760
    %8977 = vmatpush.msra.mxu0 %v8976
    %v8978 = vand.u32 %v481, 4294901760
    %v8979 = vsub.f32 %v481, %v8978
    %v8980 = vand.u32 %v8979, 4294901760
    %v8981 = vsub.f32 %v8979, %v8980
    %v8982 = vand.u32 %v8981, 4294901760
    %8983 = vmatpush.msra.mxu0 %v8982
    %v8984 = vand.u32 %v480, 4294901760
    %v8985 = vsub.f32 %v480, %v8984
    %v8986 = vand.u32 %v8985, 4294901760
    %v8987 = vsub.f32 %v8985, %v8986
    %v8988 = vand.u32 %v8987, 4294901760
    %8989 = vmatpush.msra.mxu0 %v8988
    %v8990 = vand.u32 %v479, 4294901760
    %v8991 = vsub.f32 %v479, %v8990
    %v8992 = vand.u32 %v8991, 4294901760
    %v8993 = vsub.f32 %v8991, %v8992
    %v8994 = vand.u32 %v8993, 4294901760
    %8995 = vmatpush.msra.mxu0 %v8994
    %v8996 = vand.u32 %v635, 4294901760
    %8997 = vmatmul.f32.gmra.mxu0 %v8996
    %v8998 = vpop.f32.mrf.mxu0
    %v8999 = vadd.f32 %v8898, %v8998
    %9000 = vdwg.mxu0
    %v9001 = vand.u32 %v494, 4294901760
    %v9002 = vsub.f32 %v494, %v9001
    %9003 = vmatpush.msra.mxu0 %v9002
    %v9004 = vand.u32 %v493, 4294901760
    %v9005 = vsub.f32 %v493, %v9004
    %9006 = vmatpush.msra.mxu0 %v9005
    %v9007 = vand.u32 %v492, 4294901760
    %v9008 = vsub.f32 %v492, %v9007
    %9009 = vmatpush.msra.mxu0 %v9008
    %v9010 = vand.u32 %v491, 4294901760
    %v9011 = vsub.f32 %v491, %v9010
    %9012 = vmatpush.msra.mxu0 %v9011
    %v9013 = vand.u32 %v490, 4294901760
    %v9014 = vsub.f32 %v490, %v9013
    %9015 = vmatpush.msra.mxu0 %v9014
    %v9016 = vand.u32 %v489, 4294901760
    %v9017 = vsub.f32 %v489, %v9016
    %9018 = vmatpush.msra.mxu0 %v9017
    %v9019 = vand.u32 %v488, 4294901760
    %v9020 = vsub.f32 %v488, %v9019
    %9021 = vmatpush.msra.mxu0 %v9020
    %v9022 = vand.u32 %v487, 4294901760
    %v9023 = vsub.f32 %v487, %v9022
    %9024 = vmatpush.msra.mxu0 %v9023
    %v9025 = vand.u32 %v486, 4294901760
    %v9026 = vsub.f32 %v486, %v9025
    %9027 = vmatpush.msra.mxu0 %v9026
    %v9028 = vand.u32 %v485, 4294901760
    %v9029 = vsub.f32 %v485, %v9028
    %9030 = vmatpush.msra.mxu0 %v9029
    %v9031 = vand.u32 %v484, 4294901760
    %v9032 = vsub.f32 %v484, %v9031
    %9033 = vmatpush.msra.mxu0 %v9032
    %v9034 = vand.u32 %v483, 4294901760
    %v9035 = vsub.f32 %v483, %v9034
    %9036 = vmatpush.msra.mxu0 %v9035
    %v9037 = vand.u32 %v482, 4294901760
    %v9038 = vsub.f32 %v482, %v9037
    %9039 = vmatpush.msra.mxu0 %v9038
    %v9040 = vand.u32 %v481, 4294901760
    %v9041 = vsub.f32 %v481, %v9040
    %9042 = vmatpush.msra.mxu0 %v9041
    %v9043 = vand.u32 %v480, 4294901760
    %v9044 = vsub.f32 %v480, %v9043
    %9045 = vmatpush.msra.mxu0 %v9044
    %v9046 = vand.u32 %v479, 4294901760
    %v9047 = vsub.f32 %v479, %v9046
    %9048 = vmatpush.msra.mxu0 %v9047
    %v9049 = vand.u32 %v635, 4294901760
    %v9050 = vsub.f32 %v635, %v9049
    %9051 = vmatmul.f32.gmra.mxu0 %v9050
    %v9052 = vpop.f32.mrf.mxu0
    %v9053 = vadd.f32 %v8999, %v9052
    %9054 = vdwg.mxu0
    %v9055 = vand.u32 %v494, 4294901760
    %9056 = vmatpush.msra.mxu0 %v9055
    %v9057 = vand.u32 %v493, 4294901760
    %9058 = vmatpush.msra.mxu0 %v9057
    %v9059 = vand.u32 %v492, 4294901760
    %9060 = vmatpush.msra.mxu0 %v9059
    %v9061 = vand.u32 %v491, 4294901760
    %9062 = vmatpush.msra.mxu0 %v9061
    %v9063 = vand.u32 %v490, 4294901760
    %9064 = vmatpush.msra.mxu0 %v9063
    %v9065 = vand.u32 %v489, 4294901760
    %9066 = vmatpush.msra.mxu0 %v9065
    %v9067 = vand.u32 %v488, 4294901760
    %9068 = vmatpush.msra.mxu0 %v9067
    %v9069 = vand.u32 %v487, 4294901760
    %9070 = vmatpush.msra.mxu0 %v9069
    %v9071 = vand.u32 %v486, 4294901760
    %9072 = vmatpush.msra.mxu0 %v9071
    %v9073 = vand.u32 %v485, 4294901760
    %9074 = vmatpush.msra.mxu0 %v9073
    %v9075 = vand.u32 %v484, 4294901760
    %9076 = vmatpush.msra.mxu0 %v9075
    %v9077 = vand.u32 %v483, 4294901760
    %9078 = vmatpush.msra.mxu0 %v9077
    %v9079 = vand.u32 %v482, 4294901760
    %9080 = vmatpush.msra.mxu0 %v9079
    %v9081 = vand.u32 %v481, 4294901760
    %9082 = vmatpush.msra.mxu0 %v9081
    %v9083 = vand.u32 %v480, 4294901760
    %9084 = vmatpush.msra.mxu0 %v9083
    %v9085 = vand.u32 %v479, 4294901760
    %9086 = vmatpush.msra.mxu0 %v9085
    %v9087 = vand.u32 %v635, 4294901760
    %v9088 = vsub.f32 %v635, %v9087
    %v9089 = vand.u32 %v9088, 4294901760
    %9090 = vmatmul.f32.gmra.mxu0 %v9089
    %v9091 = vpop.f32.mrf.mxu0
    %v9092 = vadd.f32 %v9053, %v9091
    %9093 = vdwg.mxu0
    %v9094 = vand.u32 %v494, 4294901760
    %v9095 = vsub.f32 %v494, %v9094
    %v9096 = vand.u32 %v9095, 4294901760
    %9097 = vmatpush.msra.mxu0 %v9096
    %v9098 = vand.u32 %v493, 4294901760
    %v9099 = vsub.f32 %v493, %v9098
    %v9100 = vand.u32 %v9099, 4294901760
    %9101 = vmatpush.msra.mxu0 %v9100
    %v9102 = vand.u32 %v492, 4294901760
    %v9103 = vsub.f32 %v492, %v9102
    %v9104 = vand.u32 %v9103, 4294901760
    %9105 = vmatpush.msra.mxu0 %v9104
    %v9106 = vand.u32 %v491, 4294901760
    %v9107 = vsub.f32 %v491, %v9106
    %v9108 = vand.u32 %v9107, 4294901760
    %9109 = vmatpush.msra.mxu0 %v9108
    %v9110 = vand.u32 %v490, 4294901760
    %v9111 = vsub.f32 %v490, %v9110
    %v9112 = vand.u32 %v9111, 4294901760
    %9113 = vmatpush.msra.mxu0 %v9112
    %v9114 = vand.u32 %v489, 4294901760
    %v9115 = vsub.f32 %v489, %v9114
    %v9116 = vand.u32 %v9115, 4294901760
    %9117 = vmatpush.msra.mxu0 %v9116
    %v9118 = vand.u32 %v488, 4294901760
    %v9119 = vsub.f32 %v488, %v9118
    %v9120 = vand.u32 %v9119, 4294901760
    %9121 = vmatpush.msra.mxu0 %v9120
    %v9122 = vand.u32 %v487, 4294901760
    %v9123 = vsub.f32 %v487, %v9122
    %v9124 = vand.u32 %v9123, 4294901760
    %9125 = vmatpush.msra.mxu0 %v9124
    %v9126 = vand.u32 %v486, 4294901760
    %v9127 = vsub.f32 %v486, %v9126
    %v9128 = vand.u32 %v9127, 4294901760
    %9129 = vmatpush.msra.mxu0 %v9128
    %v9130 = vand.u32 %v485, 4294901760
    %v9131 = vsub.f32 %v485, %v9130
    %v9132 = vand.u32 %v9131, 4294901760
    %9133 = vmatpush.msra.mxu0 %v9132
    %v9134 = vand.u32 %v484, 4294901760
    %v9135 = vsub.f32 %v484, %v9134
    %v9136 = vand.u32 %v9135, 4294901760
    %9137 = vmatpush.msra.mxu0 %v9136
    %v9138 = vand.u32 %v483, 4294901760
    %v9139 = vsub.f32 %v483, %v9138
    %v9140 = vand.u32 %v9139, 4294901760
    %9141 = vmatpush.msra.mxu0 %v9140
    %v9142 = vand.u32 %v482, 4294901760
    %v9143 = vsub.f32 %v482, %v9142
    %v9144 = vand.u32 %v9143, 4294901760
    %9145 = vmatpush.msra.mxu0 %v9144
    %v9146 = vand.u32 %v481, 4294901760
    %v9147 = vsub.f32 %v481, %v9146
    %v9148 = vand.u32 %v9147, 4294901760
    %9149 = vmatpush.msra.mxu0 %v9148
    %v9150 = vand.u32 %v480, 4294901760
    %v9151 = vsub.f32 %v480, %v9150
    %v9152 = vand.u32 %v9151, 4294901760
    %9153 = vmatpush.msra.mxu0 %v9152
    %v9154 = vand.u32 %v479, 4294901760
    %v9155 = vsub.f32 %v479, %v9154
    %v9156 = vand.u32 %v9155, 4294901760
    %9157 = vmatpush.msra.mxu0 %v9156
    %v9158 = vand.u32 %v635, 4294901760
    %9159 = vmatmul.f32.gmra.mxu0 %v9158
    %v9160 = vpop.f32.mrf.mxu0
    %v9161 = vadd.f32 %v9092, %v9160
    %9162 = vdwg.mxu0
    %v9163 = vand.u32 %v494, 4294901760
    %9164 = vmatpush.msra.mxu0 %v9163
    %v9165 = vand.u32 %v493, 4294901760
    %9166 = vmatpush.msra.mxu0 %v9165
    %v9167 = vand.u32 %v492, 4294901760
    %9168 = vmatpush.msra.mxu0 %v9167
    %v9169 = vand.u32 %v491, 4294901760
    %9170 = vmatpush.msra.mxu0 %v9169
    %v9171 = vand.u32 %v490, 4294901760
    %9172 = vmatpush.msra.mxu0 %v9171
    %v9173 = vand.u32 %v489, 4294901760
    %9174 = vmatpush.msra.mxu0 %v9173
    %v9175 = vand.u32 %v488, 4294901760
    %9176 = vmatpush.msra.mxu0 %v9175
    %v9177 = vand.u32 %v487, 4294901760
    %9178 = vmatpush.msra.mxu0 %v9177
    %v9179 = vand.u32 %v486, 4294901760
    %9180 = vmatpush.msra.mxu0 %v9179
    %v9181 = vand.u32 %v485, 4294901760
    %9182 = vmatpush.msra.mxu0 %v9181
    %v9183 = vand.u32 %v484, 4294901760
    %9184 = vmatpush.msra.mxu0 %v9183
    %v9185 = vand.u32 %v483, 4294901760
    %9186 = vmatpush.msra.mxu0 %v9185
    %v9187 = vand.u32 %v482, 4294901760
    %9188 = vmatpush.msra.mxu0 %v9187
    %v9189 = vand.u32 %v481, 4294901760
    %9190 = vmatpush.msra.mxu0 %v9189
    %v9191 = vand.u32 %v480, 4294901760
    %9192 = vmatpush.msra.mxu0 %v9191
    %v9193 = vand.u32 %v479, 4294901760
    %9194 = vmatpush.msra.mxu0 %v9193
    %v9195 = vand.u32 %v635, 4294901760
    %9196 = vmatmul.f32.gmra.mxu0 %v9195
    %v9197 = vpop.f32.mrf.mxu0
    %v9198 = vadd.f32 %v9161, %v9197
    %9199 = vdwg.mxu0
    %v9200 = vand.u32 %v510, 4294901760
    %9201 = vmatpush.msra.mxu0 %v9200
    %v9202 = vand.u32 %v509, 4294901760
    %9203 = vmatpush.msra.mxu0 %v9202
    %v9204 = vand.u32 %v508, 4294901760
    %9205 = vmatpush.msra.mxu0 %v9204
    %v9206 = vand.u32 %v507, 4294901760
    %9207 = vmatpush.msra.mxu0 %v9206
    %v9208 = vand.u32 %v506, 4294901760
    %9209 = vmatpush.msra.mxu0 %v9208
    %v9210 = vand.u32 %v505, 4294901760
    %9211 = vmatpush.msra.mxu0 %v9210
    %v9212 = vand.u32 %v504, 4294901760
    %9213 = vmatpush.msra.mxu0 %v9212
    %v9214 = vand.u32 %v503, 4294901760
    %9215 = vmatpush.msra.mxu0 %v9214
    %v9216 = vand.u32 %v502, 4294901760
    %9217 = vmatpush.msra.mxu0 %v9216
    %v9218 = vand.u32 %v501, 4294901760
    %9219 = vmatpush.msra.mxu0 %v9218
    %v9220 = vand.u32 %v500, 4294901760
    %9221 = vmatpush.msra.mxu0 %v9220
    %v9222 = vand.u32 %v499, 4294901760
    %9223 = vmatpush.msra.mxu0 %v9222
    %v9224 = vand.u32 %v498, 4294901760
    %9225 = vmatpush.msra.mxu0 %v9224
    %v9226 = vand.u32 %v497, 4294901760
    %9227 = vmatpush.msra.mxu0 %v9226
    %v9228 = vand.u32 %v496, 4294901760
    %9229 = vmatpush.msra.mxu0 %v9228
    %v9230 = vand.u32 %v495, 4294901760
    %9231 = vmatpush.msra.mxu0 %v9230
    %v9232 = vand.u32 %v636, 4294901760
    %v9233 = vsub.f32 %v636, %v9232
    %v9234 = vand.u32 %v9233, 4294901760
    %v9235 = vsub.f32 %v9233, %v9234
    %v9236 = vand.u32 %v9235, 4294901760
    %9237 = vmatmul.f32.gmra.mxu0 %v9236
    %v9238 = vpop.f32.mrf.mxu0
    %v9239 = vadd.f32 %v9198, %v9238
    %9240 = vdwg.mxu0
    %v9241 = vand.u32 %v510, 4294901760
    %v9242 = vsub.f32 %v510, %v9241
    %v9243 = vand.u32 %v9242, 4294901760
    %v9244 = vsub.f32 %v9242, %v9243
    %v9245 = vand.u32 %v9244, 4294901760
    %9246 = vmatpush.msra.mxu0 %v9245
    %v9247 = vand.u32 %v509, 4294901760
    %v9248 = vsub.f32 %v509, %v9247
    %v9249 = vand.u32 %v9248, 4294901760
    %v9250 = vsub.f32 %v9248, %v9249
    %v9251 = vand.u32 %v9250, 4294901760
    %9252 = vmatpush.msra.mxu0 %v9251
    %v9253 = vand.u32 %v508, 4294901760
    %v9254 = vsub.f32 %v508, %v9253
    %v9255 = vand.u32 %v9254, 4294901760
    %v9256 = vsub.f32 %v9254, %v9255
    %v9257 = vand.u32 %v9256, 4294901760
    %9258 = vmatpush.msra.mxu0 %v9257
    %v9259 = vand.u32 %v507, 4294901760
    %v9260 = vsub.f32 %v507, %v9259
    %v9261 = vand.u32 %v9260, 4294901760
    %v9262 = vsub.f32 %v9260, %v9261
    %v9263 = vand.u32 %v9262, 4294901760
    %9264 = vmatpush.msra.mxu0 %v9263
    %v9265 = vand.u32 %v506, 4294901760
    %v9266 = vsub.f32 %v506, %v9265
    %v9267 = vand.u32 %v9266, 4294901760
    %v9268 = vsub.f32 %v9266, %v9267
    %v9269 = vand.u32 %v9268, 4294901760
    %9270 = vmatpush.msra.mxu0 %v9269
    %v9271 = vand.u32 %v505, 4294901760
    %v9272 = vsub.f32 %v505, %v9271
    %v9273 = vand.u32 %v9272, 4294901760
    %v9274 = vsub.f32 %v9272, %v9273
    %v9275 = vand.u32 %v9274, 4294901760
    %9276 = vmatpush.msra.mxu0 %v9275
    %v9277 = vand.u32 %v504, 4294901760
    %v9278 = vsub.f32 %v504, %v9277
    %v9279 = vand.u32 %v9278, 4294901760
    %v9280 = vsub.f32 %v9278, %v9279
    %v9281 = vand.u32 %v9280, 4294901760
    %9282 = vmatpush.msra.mxu0 %v9281
    %v9283 = vand.u32 %v503, 4294901760
    %v9284 = vsub.f32 %v503, %v9283
    %v9285 = vand.u32 %v9284, 4294901760
    %v9286 = vsub.f32 %v9284, %v9285
    %v9287 = vand.u32 %v9286, 4294901760
    %9288 = vmatpush.msra.mxu0 %v9287
    %v9289 = vand.u32 %v502, 4294901760
    %v9290 = vsub.f32 %v502, %v9289
    %v9291 = vand.u32 %v9290, 4294901760
    %v9292 = vsub.f32 %v9290, %v9291
    %v9293 = vand.u32 %v9292, 4294901760
    %9294 = vmatpush.msra.mxu0 %v9293
    %v9295 = vand.u32 %v501, 4294901760
    %v9296 = vsub.f32 %v501, %v9295
    %v9297 = vand.u32 %v9296, 4294901760
    %v9298 = vsub.f32 %v9296, %v9297
    %v9299 = vand.u32 %v9298, 4294901760
    %9300 = vmatpush.msra.mxu0 %v9299
    %v9301 = vand.u32 %v500, 4294901760
    %v9302 = vsub.f32 %v500, %v9301
    %v9303 = vand.u32 %v9302, 4294901760
    %v9304 = vsub.f32 %v9302, %v9303
    %v9305 = vand.u32 %v9304, 4294901760
    %9306 = vmatpush.msra.mxu0 %v9305
    %v9307 = vand.u32 %v499, 4294901760
    %v9308 = vsub.f32 %v499, %v9307
    %v9309 = vand.u32 %v9308, 4294901760
    %v9310 = vsub.f32 %v9308, %v9309
    %v9311 = vand.u32 %v9310, 4294901760
    %9312 = vmatpush.msra.mxu0 %v9311
    %v9313 = vand.u32 %v498, 4294901760
    %v9314 = vsub.f32 %v498, %v9313
    %v9315 = vand.u32 %v9314, 4294901760
    %v9316 = vsub.f32 %v9314, %v9315
    %v9317 = vand.u32 %v9316, 4294901760
    %9318 = vmatpush.msra.mxu0 %v9317
    %v9319 = vand.u32 %v497, 4294901760
    %v9320 = vsub.f32 %v497, %v9319
    %v9321 = vand.u32 %v9320, 4294901760
    %v9322 = vsub.f32 %v9320, %v9321
    %v9323 = vand.u32 %v9322, 4294901760
    %9324 = vmatpush.msra.mxu0 %v9323
    %v9325 = vand.u32 %v496, 4294901760
    %v9326 = vsub.f32 %v496, %v9325
    %v9327 = vand.u32 %v9326, 4294901760
    %v9328 = vsub.f32 %v9326, %v9327
    %v9329 = vand.u32 %v9328, 4294901760
    %9330 = vmatpush.msra.mxu0 %v9329
    %v9331 = vand.u32 %v495, 4294901760
    %v9332 = vsub.f32 %v495, %v9331
    %v9333 = vand.u32 %v9332, 4294901760
    %v9334 = vsub.f32 %v9332, %v9333
    %v9335 = vand.u32 %v9334, 4294901760
    %9336 = vmatpush.msra.mxu0 %v9335
    %v9337 = vand.u32 %v636, 4294901760
    %9338 = vmatmul.f32.gmra.mxu0 %v9337
    %v9339 = vpop.f32.mrf.mxu0
    %v9340 = vadd.f32 %v9239, %v9339
    %9341 = vdwg.mxu0
    %v9342 = vand.u32 %v510, 4294901760
    %v9343 = vsub.f32 %v510, %v9342
    %9344 = vmatpush.msra.mxu0 %v9343
    %v9345 = vand.u32 %v509, 4294901760
    %v9346 = vsub.f32 %v509, %v9345
    %9347 = vmatpush.msra.mxu0 %v9346
    %v9348 = vand.u32 %v508, 4294901760
    %v9349 = vsub.f32 %v508, %v9348
    %9350 = vmatpush.msra.mxu0 %v9349
    %v9351 = vand.u32 %v507, 4294901760
    %v9352 = vsub.f32 %v507, %v9351
    %9353 = vmatpush.msra.mxu0 %v9352
    %v9354 = vand.u32 %v506, 4294901760
    %v9355 = vsub.f32 %v506, %v9354
    %9356 = vmatpush.msra.mxu0 %v9355
    %v9357 = vand.u32 %v505, 4294901760
    %v9358 = vsub.f32 %v505, %v9357
    %9359 = vmatpush.msra.mxu0 %v9358
    %v9360 = vand.u32 %v504, 4294901760
    %v9361 = vsub.f32 %v504, %v9360
    %9362 = vmatpush.msra.mxu0 %v9361
    %v9363 = vand.u32 %v503, 4294901760
    %v9364 = vsub.f32 %v503, %v9363
    %9365 = vmatpush.msra.mxu0 %v9364
    %v9366 = vand.u32 %v502, 4294901760
    %v9367 = vsub.f32 %v502, %v9366
    %9368 = vmatpush.msra.mxu0 %v9367
    %v9369 = vand.u32 %v501, 4294901760
    %v9370 = vsub.f32 %v501, %v9369
    %9371 = vmatpush.msra.mxu0 %v9370
    %v9372 = vand.u32 %v500, 4294901760
    %v9373 = vsub.f32 %v500, %v9372
    %9374 = vmatpush.msra.mxu0 %v9373
    %v9375 = vand.u32 %v499, 4294901760
    %v9376 = vsub.f32 %v499, %v9375
    %9377 = vmatpush.msra.mxu0 %v9376
    %v9378 = vand.u32 %v498, 4294901760
    %v9379 = vsub.f32 %v498, %v9378
    %9380 = vmatpush.msra.mxu0 %v9379
    %v9381 = vand.u32 %v497, 4294901760
    %v9382 = vsub.f32 %v497, %v9381
    %9383 = vmatpush.msra.mxu0 %v9382
    %v9384 = vand.u32 %v496, 4294901760
    %v9385 = vsub.f32 %v496, %v9384
    %9386 = vmatpush.msra.mxu0 %v9385
    %v9387 = vand.u32 %v495, 4294901760
    %v9388 = vsub.f32 %v495, %v9387
    %9389 = vmatpush.msra.mxu0 %v9388
    %v9390 = vand.u32 %v636, 4294901760
    %v9391 = vsub.f32 %v636, %v9390
    %9392 = vmatmul.f32.gmra.mxu0 %v9391
    %v9393 = vpop.f32.mrf.mxu0
    %v9394 = vadd.f32 %v9340, %v9393
    %9395 = vdwg.mxu0
    %v9396 = vand.u32 %v510, 4294901760
    %9397 = vmatpush.msra.mxu0 %v9396
    %v9398 = vand.u32 %v509, 4294901760
    %9399 = vmatpush.msra.mxu0 %v9398
    %v9400 = vand.u32 %v508, 4294901760
    %9401 = vmatpush.msra.mxu0 %v9400
    %v9402 = vand.u32 %v507, 4294901760
    %9403 = vmatpush.msra.mxu0 %v9402
    %v9404 = vand.u32 %v506, 4294901760
    %9405 = vmatpush.msra.mxu0 %v9404
    %v9406 = vand.u32 %v505, 4294901760
    %9407 = vmatpush.msra.mxu0 %v9406
    %v9408 = vand.u32 %v504, 4294901760
    %9409 = vmatpush.msra.mxu0 %v9408
    %v9410 = vand.u32 %v503, 4294901760
    %9411 = vmatpush.msra.mxu0 %v9410
    %v9412 = vand.u32 %v502, 4294901760
    %9413 = vmatpush.msra.mxu0 %v9412
    %v9414 = vand.u32 %v501, 4294901760
    %9415 = vmatpush.msra.mxu0 %v9414
    %v9416 = vand.u32 %v500, 4294901760
    %9417 = vmatpush.msra.mxu0 %v9416
    %v9418 = vand.u32 %v499, 4294901760
    %9419 = vmatpush.msra.mxu0 %v9418
    %v9420 = vand.u32 %v498, 4294901760
    %9421 = vmatpush.msra.mxu0 %v9420
    %v9422 = vand.u32 %v497, 4294901760
    %9423 = vmatpush.msra.mxu0 %v9422
    %v9424 = vand.u32 %v496, 4294901760
    %9425 = vmatpush.msra.mxu0 %v9424
    %v9426 = vand.u32 %v495, 4294901760
    %9427 = vmatpush.msra.mxu0 %v9426
    %v9428 = vand.u32 %v636, 4294901760
    %v9429 = vsub.f32 %v636, %v9428
    %v9430 = vand.u32 %v9429, 4294901760
    %9431 = vmatmul.f32.gmra.mxu0 %v9430
    %v9432 = vpop.f32.mrf.mxu0
    %v9433 = vadd.f32 %v9394, %v9432
    %9434 = vdwg.mxu0
    %v9435 = vand.u32 %v510, 4294901760
    %v9436 = vsub.f32 %v510, %v9435
    %v9437 = vand.u32 %v9436, 4294901760
    %9438 = vmatpush.msra.mxu0 %v9437
    %v9439 = vand.u32 %v509, 4294901760
    %v9440 = vsub.f32 %v509, %v9439
    %v9441 = vand.u32 %v9440, 4294901760
    %9442 = vmatpush.msra.mxu0 %v9441
    %v9443 = vand.u32 %v508, 4294901760
    %v9444 = vsub.f32 %v508, %v9443
    %v9445 = vand.u32 %v9444, 4294901760
    %9446 = vmatpush.msra.mxu0 %v9445
    %v9447 = vand.u32 %v507, 4294901760
    %v9448 = vsub.f32 %v507, %v9447
    %v9449 = vand.u32 %v9448, 4294901760
    %9450 = vmatpush.msra.mxu0 %v9449
    %v9451 = vand.u32 %v506, 4294901760
    %v9452 = vsub.f32 %v506, %v9451
    %v9453 = vand.u32 %v9452, 4294901760
    %9454 = vmatpush.msra.mxu0 %v9453
    %v9455 = vand.u32 %v505, 4294901760
    %v9456 = vsub.f32 %v505, %v9455
    %v9457 = vand.u32 %v9456, 4294901760
    %9458 = vmatpush.msra.mxu0 %v9457
    %v9459 = vand.u32 %v504, 4294901760
    %v9460 = vsub.f32 %v504, %v9459
    %v9461 = vand.u32 %v9460, 4294901760
    %9462 = vmatpush.msra.mxu0 %v9461
    %v9463 = vand.u32 %v503, 4294901760
    %v9464 = vsub.f32 %v503, %v9463
    %v9465 = vand.u32 %v9464, 4294901760
    %9466 = vmatpush.msra.mxu0 %v9465
    %v9467 = vand.u32 %v502, 4294901760
    %v9468 = vsub.f32 %v502, %v9467
    %v9469 = vand.u32 %v9468, 4294901760
    %9470 = vmatpush.msra.mxu0 %v9469
    %v9471 = vand.u32 %v501, 4294901760
    %v9472 = vsub.f32 %v501, %v9471
    %v9473 = vand.u32 %v9472, 4294901760
    %9474 = vmatpush.msra.mxu0 %v9473
    %v9475 = vand.u32 %v500, 4294901760
    %v9476 = vsub.f32 %v500, %v9475
    %v9477 = vand.u32 %v9476, 4294901760
    %9478 = vmatpush.msra.mxu0 %v9477
    %v9479 = vand.u32 %v499, 4294901760
    %v9480 = vsub.f32 %v499, %v9479
    %v9481 = vand.u32 %v9480, 4294901760
    %9482 = vmatpush.msra.mxu0 %v9481
    %v9483 = vand.u32 %v498, 4294901760
    %v9484 = vsub.f32 %v498, %v9483
    %v9485 = vand.u32 %v9484, 4294901760
    %9486 = vmatpush.msra.mxu0 %v9485
    %v9487 = vand.u32 %v497, 4294901760
    %v9488 = vsub.f32 %v497, %v9487
    %v9489 = vand.u32 %v9488, 4294901760
    %9490 = vmatpush.msra.mxu0 %v9489
    %v9491 = vand.u32 %v496, 4294901760
    %v9492 = vsub.f32 %v496, %v9491
    %v9493 = vand.u32 %v9492, 4294901760
    %9494 = vmatpush.msra.mxu0 %v9493
    %v9495 = vand.u32 %v495, 4294901760
    %v9496 = vsub.f32 %v495, %v9495
    %v9497 = vand.u32 %v9496, 4294901760
    %9498 = vmatpush.msra.mxu0 %v9497
    %v9499 = vand.u32 %v636, 4294901760
    %9500 = vmatmul.f32.gmra.mxu0 %v9499
    %v9501 = vpop.f32.mrf.mxu0
    %v9502 = vadd.f32 %v9433, %v9501
    %9503 = vdwg.mxu0
    %v9504 = vand.u32 %v510, 4294901760
    %9505 = vmatpush.msra.mxu0 %v9504
    %v9506 = vand.u32 %v509, 4294901760
    %9507 = vmatpush.msra.mxu0 %v9506
    %v9508 = vand.u32 %v508, 4294901760
    %9509 = vmatpush.msra.mxu0 %v9508
    %v9510 = vand.u32 %v507, 4294901760
    %9511 = vmatpush.msra.mxu0 %v9510
    %v9512 = vand.u32 %v506, 4294901760
    %9513 = vmatpush.msra.mxu0 %v9512
    %v9514 = vand.u32 %v505, 4294901760
    %9515 = vmatpush.msra.mxu0 %v9514
    %v9516 = vand.u32 %v504, 4294901760
    %9517 = vmatpush.msra.mxu0 %v9516
    %v9518 = vand.u32 %v503, 4294901760
    %9519 = vmatpush.msra.mxu0 %v9518
    %v9520 = vand.u32 %v502, 4294901760
    %9521 = vmatpush.msra.mxu0 %v9520
    %v9522 = vand.u32 %v501, 4294901760
    %9523 = vmatpush.msra.mxu0 %v9522
    %v9524 = vand.u32 %v500, 4294901760
    %9525 = vmatpush.msra.mxu0 %v9524
    %v9526 = vand.u32 %v499, 4294901760
    %9527 = vmatpush.msra.mxu0 %v9526
    %v9528 = vand.u32 %v498, 4294901760
    %9529 = vmatpush.msra.mxu0 %v9528
    %v9530 = vand.u32 %v497, 4294901760
    %9531 = vmatpush.msra.mxu0 %v9530
    %v9532 = vand.u32 %v496, 4294901760
    %9533 = vmatpush.msra.mxu0 %v9532
    %v9534 = vand.u32 %v495, 4294901760
    %9535 = vmatpush.msra.mxu0 %v9534
    %v9536 = vand.u32 %v636, 4294901760
    %9537 = vmatmul.f32.gmra.mxu0 %v9536
    %v9538 = vpop.f32.mrf.mxu0
    %v9539 = vadd.f32 %v9502, %v9538
    %9540 = vdwg.mxu0
    %v9541 = vand.u32 %v526, 4294901760
    %9542 = vmatpush.msra.mxu0 %v9541
    %v9543 = vand.u32 %v525, 4294901760
    %9544 = vmatpush.msra.mxu0 %v9543
    %v9545 = vand.u32 %v524, 4294901760
    %9546 = vmatpush.msra.mxu0 %v9545
    %v9547 = vand.u32 %v523, 4294901760
    %9548 = vmatpush.msra.mxu0 %v9547
    %v9549 = vand.u32 %v522, 4294901760
    %9550 = vmatpush.msra.mxu0 %v9549
    %v9551 = vand.u32 %v521, 4294901760
    %9552 = vmatpush.msra.mxu0 %v9551
    %v9553 = vand.u32 %v520, 4294901760
    %9554 = vmatpush.msra.mxu0 %v9553
    %v9555 = vand.u32 %v519, 4294901760
    %9556 = vmatpush.msra.mxu0 %v9555
    %v9557 = vand.u32 %v518, 4294901760
    %9558 = vmatpush.msra.mxu0 %v9557
    %v9559 = vand.u32 %v517, 4294901760
    %9560 = vmatpush.msra.mxu0 %v9559
    %v9561 = vand.u32 %v516, 4294901760
    %9562 = vmatpush.msra.mxu0 %v9561
    %v9563 = vand.u32 %v515, 4294901760
    %9564 = vmatpush.msra.mxu0 %v9563
    %v9565 = vand.u32 %v514, 4294901760
    %9566 = vmatpush.msra.mxu0 %v9565
    %v9567 = vand.u32 %v513, 4294901760
    %9568 = vmatpush.msra.mxu0 %v9567
    %v9569 = vand.u32 %v512, 4294901760
    %9570 = vmatpush.msra.mxu0 %v9569
    %v9571 = vand.u32 %v511, 4294901760
    %9572 = vmatpush.msra.mxu0 %v9571
    %v9573 = vand.u32 %v637, 4294901760
    %v9574 = vsub.f32 %v637, %v9573
    %v9575 = vand.u32 %v9574, 4294901760
    %v9576 = vsub.f32 %v9574, %v9575
    %v9577 = vand.u32 %v9576, 4294901760
    %9578 = vmatmul.f32.gmra.mxu0 %v9577
    %v9579 = vpop.f32.mrf.mxu0
    %v9580 = vadd.f32 %v9539, %v9579
    %9581 = vdwg.mxu0
    %v9582 = vand.u32 %v526, 4294901760
    %v9583 = vsub.f32 %v526, %v9582
    %v9584 = vand.u32 %v9583, 4294901760
    %v9585 = vsub.f32 %v9583, %v9584
    %v9586 = vand.u32 %v9585, 4294901760
    %9587 = vmatpush.msra.mxu0 %v9586
    %v9588 = vand.u32 %v525, 4294901760
    %v9589 = vsub.f32 %v525, %v9588
    %v9590 = vand.u32 %v9589, 4294901760
    %v9591 = vsub.f32 %v9589, %v9590
    %v9592 = vand.u32 %v9591, 4294901760
    %9593 = vmatpush.msra.mxu0 %v9592
    %v9594 = vand.u32 %v524, 4294901760
    %v9595 = vsub.f32 %v524, %v9594
    %v9596 = vand.u32 %v9595, 4294901760
    %v9597 = vsub.f32 %v9595, %v9596
    %v9598 = vand.u32 %v9597, 4294901760
    %9599 = vmatpush.msra.mxu0 %v9598
    %v9600 = vand.u32 %v523, 4294901760
    %v9601 = vsub.f32 %v523, %v9600
    %v9602 = vand.u32 %v9601, 4294901760
    %v9603 = vsub.f32 %v9601, %v9602
    %v9604 = vand.u32 %v9603, 4294901760
    %9605 = vmatpush.msra.mxu0 %v9604
    %v9606 = vand.u32 %v522, 4294901760
    %v9607 = vsub.f32 %v522, %v9606
    %v9608 = vand.u32 %v9607, 4294901760
    %v9609 = vsub.f32 %v9607, %v9608
    %v9610 = vand.u32 %v9609, 4294901760
    %9611 = vmatpush.msra.mxu0 %v9610
    %v9612 = vand.u32 %v521, 4294901760
    %v9613 = vsub.f32 %v521, %v9612
    %v9614 = vand.u32 %v9613, 4294901760
    %v9615 = vsub.f32 %v9613, %v9614
    %v9616 = vand.u32 %v9615, 4294901760
    %9617 = vmatpush.msra.mxu0 %v9616
    %v9618 = vand.u32 %v520, 4294901760
    %v9619 = vsub.f32 %v520, %v9618
    %v9620 = vand.u32 %v9619, 4294901760
    %v9621 = vsub.f32 %v9619, %v9620
    %v9622 = vand.u32 %v9621, 4294901760
    %9623 = vmatpush.msra.mxu0 %v9622
    %v9624 = vand.u32 %v519, 4294901760
    %v9625 = vsub.f32 %v519, %v9624
    %v9626 = vand.u32 %v9625, 4294901760
    %v9627 = vsub.f32 %v9625, %v9626
    %v9628 = vand.u32 %v9627, 4294901760
    %9629 = vmatpush.msra.mxu0 %v9628
    %v9630 = vand.u32 %v518, 4294901760
    %v9631 = vsub.f32 %v518, %v9630
    %v9632 = vand.u32 %v9631, 4294901760
    %v9633 = vsub.f32 %v9631, %v9632
    %v9634 = vand.u32 %v9633, 4294901760
    %9635 = vmatpush.msra.mxu0 %v9634
    %v9636 = vand.u32 %v517, 4294901760
    %v9637 = vsub.f32 %v517, %v9636
    %v9638 = vand.u32 %v9637, 4294901760
    %v9639 = vsub.f32 %v9637, %v9638
    %v9640 = vand.u32 %v9639, 4294901760
    %9641 = vmatpush.msra.mxu0 %v9640
    %v9642 = vand.u32 %v516, 4294901760
    %v9643 = vsub.f32 %v516, %v9642
    %v9644 = vand.u32 %v9643, 4294901760
    %v9645 = vsub.f32 %v9643, %v9644
    %v9646 = vand.u32 %v9645, 4294901760
    %9647 = vmatpush.msra.mxu0 %v9646
    %v9648 = vand.u32 %v515, 4294901760
    %v9649 = vsub.f32 %v515, %v9648
    %v9650 = vand.u32 %v9649, 4294901760
    %v9651 = vsub.f32 %v9649, %v9650
    %v9652 = vand.u32 %v9651, 4294901760
    %9653 = vmatpush.msra.mxu0 %v9652
    %v9654 = vand.u32 %v514, 4294901760
    %v9655 = vsub.f32 %v514, %v9654
    %v9656 = vand.u32 %v9655, 4294901760
    %v9657 = vsub.f32 %v9655, %v9656
    %v9658 = vand.u32 %v9657, 4294901760
    %9659 = vmatpush.msra.mxu0 %v9658
    %v9660 = vand.u32 %v513, 4294901760
    %v9661 = vsub.f32 %v513, %v9660
    %v9662 = vand.u32 %v9661, 4294901760
    %v9663 = vsub.f32 %v9661, %v9662
    %v9664 = vand.u32 %v9663, 4294901760
    %9665 = vmatpush.msra.mxu0 %v9664
    %v9666 = vand.u32 %v512, 4294901760
    %v9667 = vsub.f32 %v512, %v9666
    %v9668 = vand.u32 %v9667, 4294901760
    %v9669 = vsub.f32 %v9667, %v9668
    %v9670 = vand.u32 %v9669, 4294901760
    %9671 = vmatpush.msra.mxu0 %v9670
    %v9672 = vand.u32 %v511, 4294901760
    %v9673 = vsub.f32 %v511, %v9672
    %v9674 = vand.u32 %v9673, 4294901760
    %v9675 = vsub.f32 %v9673, %v9674
    %v9676 = vand.u32 %v9675, 4294901760
    %9677 = vmatpush.msra.mxu0 %v9676
    %v9678 = vand.u32 %v637, 4294901760
    %9679 = vmatmul.f32.gmra.mxu0 %v9678
    %v9680 = vpop.f32.mrf.mxu0
    %v9681 = vadd.f32 %v9580, %v9680
    %9682 = vdwg.mxu0
    %v9683 = vand.u32 %v526, 4294901760
    %v9684 = vsub.f32 %v526, %v9683
    %9685 = vmatpush.msra.mxu0 %v9684
    %v9686 = vand.u32 %v525, 4294901760
    %v9687 = vsub.f32 %v525, %v9686
    %9688 = vmatpush.msra.mxu0 %v9687
    %v9689 = vand.u32 %v524, 4294901760
    %v9690 = vsub.f32 %v524, %v9689
    %9691 = vmatpush.msra.mxu0 %v9690
    %v9692 = vand.u32 %v523, 4294901760
    %v9693 = vsub.f32 %v523, %v9692
    %9694 = vmatpush.msra.mxu0 %v9693
    %v9695 = vand.u32 %v522, 4294901760
    %v9696 = vsub.f32 %v522, %v9695
    %9697 = vmatpush.msra.mxu0 %v9696
    %v9698 = vand.u32 %v521, 4294901760
    %v9699 = vsub.f32 %v521, %v9698
    %9700 = vmatpush.msra.mxu0 %v9699
    %v9701 = vand.u32 %v520, 4294901760
    %v9702 = vsub.f32 %v520, %v9701
    %9703 = vmatpush.msra.mxu0 %v9702
    %v9704 = vand.u32 %v519, 4294901760
    %v9705 = vsub.f32 %v519, %v9704
    %9706 = vmatpush.msra.mxu0 %v9705
    %v9707 = vand.u32 %v518, 4294901760
    %v9708 = vsub.f32 %v518, %v9707
    %9709 = vmatpush.msra.mxu0 %v9708
    %v9710 = vand.u32 %v517, 4294901760
    %v9711 = vsub.f32 %v517, %v9710
    %9712 = vmatpush.msra.mxu0 %v9711
    %v9713 = vand.u32 %v516, 4294901760
    %v9714 = vsub.f32 %v516, %v9713
    %9715 = vmatpush.msra.mxu0 %v9714
    %v9716 = vand.u32 %v515, 4294901760
    %v9717 = vsub.f32 %v515, %v9716
    %9718 = vmatpush.msra.mxu0 %v9717
    %v9719 = vand.u32 %v514, 4294901760
    %v9720 = vsub.f32 %v514, %v9719
    %9721 = vmatpush.msra.mxu0 %v9720
    %v9722 = vand.u32 %v513, 4294901760
    %v9723 = vsub.f32 %v513, %v9722
    %9724 = vmatpush.msra.mxu0 %v9723
    %v9725 = vand.u32 %v512, 4294901760
    %v9726 = vsub.f32 %v512, %v9725
    %9727 = vmatpush.msra.mxu0 %v9726
    %v9728 = vand.u32 %v511, 4294901760
    %v9729 = vsub.f32 %v511, %v9728
    %9730 = vmatpush.msra.mxu0 %v9729
    %v9731 = vand.u32 %v637, 4294901760
    %v9732 = vsub.f32 %v637, %v9731
    %9733 = vmatmul.f32.gmra.mxu0 %v9732
    %v9734 = vpop.f32.mrf.mxu0
    %v9735 = vadd.f32 %v9681, %v9734
    %9736 = vdwg.mxu0
    %v9737 = vand.u32 %v526, 4294901760
    %9738 = vmatpush.msra.mxu0 %v9737
    %v9739 = vand.u32 %v525, 4294901760
    %9740 = vmatpush.msra.mxu0 %v9739
    %v9741 = vand.u32 %v524, 4294901760
    %9742 = vmatpush.msra.mxu0 %v9741
    %v9743 = vand.u32 %v523, 4294901760
    %9744 = vmatpush.msra.mxu0 %v9743
    %v9745 = vand.u32 %v522, 4294901760
    %9746 = vmatpush.msra.mxu0 %v9745
    %v9747 = vand.u32 %v521, 4294901760
    %9748 = vmatpush.msra.mxu0 %v9747
    %v9749 = vand.u32 %v520, 4294901760
    %9750 = vmatpush.msra.mxu0 %v9749
    %v9751 = vand.u32 %v519, 4294901760
    %9752 = vmatpush.msra.mxu0 %v9751
    %v9753 = vand.u32 %v518, 4294901760
    %9754 = vmatpush.msra.mxu0 %v9753
    %v9755 = vand.u32 %v517, 4294901760
    %9756 = vmatpush.msra.mxu0 %v9755
    %v9757 = vand.u32 %v516, 4294901760
    %9758 = vmatpush.msra.mxu0 %v9757
    %v9759 = vand.u32 %v515, 4294901760
    %9760 = vmatpush.msra.mxu0 %v9759
    %v9761 = vand.u32 %v514, 4294901760
    %9762 = vmatpush.msra.mxu0 %v9761
    %v9763 = vand.u32 %v513, 4294901760
    %9764 = vmatpush.msra.mxu0 %v9763
    %v9765 = vand.u32 %v512, 4294901760
    %9766 = vmatpush.msra.mxu0 %v9765
    %v9767 = vand.u32 %v511, 4294901760
    %9768 = vmatpush.msra.mxu0 %v9767
    %v9769 = vand.u32 %v637, 4294901760
    %v9770 = vsub.f32 %v637, %v9769
    %v9771 = vand.u32 %v9770, 4294901760
    %9772 = vmatmul.f32.gmra.mxu0 %v9771
    %v9773 = vpop.f32.mrf.mxu0
    %v9774 = vadd.f32 %v9735, %v9773
    %9775 = vdwg.mxu0
    %v9776 = vand.u32 %v526, 4294901760
    %v9777 = vsub.f32 %v526, %v9776
    %v9778 = vand.u32 %v9777, 4294901760
    %9779 = vmatpush.msra.mxu0 %v9778
    %v9780 = vand.u32 %v525, 4294901760
    %v9781 = vsub.f32 %v525, %v9780
    %v9782 = vand.u32 %v9781, 4294901760
    %9783 = vmatpush.msra.mxu0 %v9782
    %v9784 = vand.u32 %v524, 4294901760
    %v9785 = vsub.f32 %v524, %v9784
    %v9786 = vand.u32 %v9785, 4294901760
    %9787 = vmatpush.msra.mxu0 %v9786
    %v9788 = vand.u32 %v523, 4294901760
    %v9789 = vsub.f32 %v523, %v9788
    %v9790 = vand.u32 %v9789, 4294901760
    %9791 = vmatpush.msra.mxu0 %v9790
    %v9792 = vand.u32 %v522, 4294901760
    %v9793 = vsub.f32 %v522, %v9792
    %v9794 = vand.u32 %v9793, 4294901760
    %9795 = vmatpush.msra.mxu0 %v9794
    %v9796 = vand.u32 %v521, 4294901760
    %v9797 = vsub.f32 %v521, %v9796
    %v9798 = vand.u32 %v9797, 4294901760
    %9799 = vmatpush.msra.mxu0 %v9798
    %v9800 = vand.u32 %v520, 4294901760
    %v9801 = vsub.f32 %v520, %v9800
    %v9802 = vand.u32 %v9801, 4294901760
    %9803 = vmatpush.msra.mxu0 %v9802
    %v9804 = vand.u32 %v519, 4294901760
    %v9805 = vsub.f32 %v519, %v9804
    %v9806 = vand.u32 %v9805, 4294901760
    %9807 = vmatpush.msra.mxu0 %v9806
    %v9808 = vand.u32 %v518, 4294901760
    %v9809 = vsub.f32 %v518, %v9808
    %v9810 = vand.u32 %v9809, 4294901760
    %9811 = vmatpush.msra.mxu0 %v9810
    %v9812 = vand.u32 %v517, 4294901760
    %v9813 = vsub.f32 %v517, %v9812
    %v9814 = vand.u32 %v9813, 4294901760
    %9815 = vmatpush.msra.mxu0 %v9814
    %v9816 = vand.u32 %v516, 4294901760
    %v9817 = vsub.f32 %v516, %v9816
    %v9818 = vand.u32 %v9817, 4294901760
    %9819 = vmatpush.msra.mxu0 %v9818
    %v9820 = vand.u32 %v515, 4294901760
    %v9821 = vsub.f32 %v515, %v9820
    %v9822 = vand.u32 %v9821, 4294901760
    %9823 = vmatpush.msra.mxu0 %v9822
    %v9824 = vand.u32 %v514, 4294901760
    %v9825 = vsub.f32 %v514, %v9824
    %v9826 = vand.u32 %v9825, 4294901760
    %9827 = vmatpush.msra.mxu0 %v9826
    %v9828 = vand.u32 %v513, 4294901760
    %v9829 = vsub.f32 %v513, %v9828
    %v9830 = vand.u32 %v9829, 4294901760
    %9831 = vmatpush.msra.mxu0 %v9830
    %v9832 = vand.u32 %v512, 4294901760
    %v9833 = vsub.f32 %v512, %v9832
    %v9834 = vand.u32 %v9833, 4294901760
    %9835 = vmatpush.msra.mxu0 %v9834
    %v9836 = vand.u32 %v511, 4294901760
    %v9837 = vsub.f32 %v511, %v9836
    %v9838 = vand.u32 %v9837, 4294901760
    %9839 = vmatpush.msra.mxu0 %v9838
    %v9840 = vand.u32 %v637, 4294901760
    %9841 = vmatmul.f32.gmra.mxu0 %v9840
    %v9842 = vpop.f32.mrf.mxu0
    %v9843 = vadd.f32 %v9774, %v9842
    %9844 = vdwg.mxu0
    %v9845 = vand.u32 %v526, 4294901760
    %9846 = vmatpush.msra.mxu0 %v9845
    %v9847 = vand.u32 %v525, 4294901760
    %9848 = vmatpush.msra.mxu0 %v9847
    %v9849 = vand.u32 %v524, 4294901760
    %9850 = vmatpush.msra.mxu0 %v9849
    %v9851 = vand.u32 %v523, 4294901760
    %9852 = vmatpush.msra.mxu0 %v9851
    %v9853 = vand.u32 %v522, 4294901760
    %9854 = vmatpush.msra.mxu0 %v9853
    %v9855 = vand.u32 %v521, 4294901760
    %9856 = vmatpush.msra.mxu0 %v9855
    %v9857 = vand.u32 %v520, 4294901760
    %9858 = vmatpush.msra.mxu0 %v9857
    %v9859 = vand.u32 %v519, 4294901760
    %9860 = vmatpush.msra.mxu0 %v9859
    %v9861 = vand.u32 %v518, 4294901760
    %9862 = vmatpush.msra.mxu0 %v9861
    %v9863 = vand.u32 %v517, 4294901760
    %9864 = vmatpush.msra.mxu0 %v9863
    %v9865 = vand.u32 %v516, 4294901760
    %9866 = vmatpush.msra.mxu0 %v9865
    %v9867 = vand.u32 %v515, 4294901760
    %9868 = vmatpush.msra.mxu0 %v9867
    %v9869 = vand.u32 %v514, 4294901760
    %9870 = vmatpush.msra.mxu0 %v9869
    %v9871 = vand.u32 %v513, 4294901760
    %9872 = vmatpush.msra.mxu0 %v9871
    %v9873 = vand.u32 %v512, 4294901760
    %9874 = vmatpush.msra.mxu0 %v9873
    %v9875 = vand.u32 %v511, 4294901760
    %9876 = vmatpush.msra.mxu0 %v9875
    %v9877 = vand.u32 %v637, 4294901760
    %9878 = vmatmul.f32.gmra.mxu0 %v9877
    %v9879 = vpop.f32.mrf.mxu0
    %v9880 = vadd.f32 %v9843, %v9879
    %9881 = vdwg.mxu0
    %v9882 = vand.u32 %v542, 4294901760
    %9883 = vmatpush.msra.mxu0 %v9882
    %v9884 = vand.u32 %v541, 4294901760
    %9885 = vmatpush.msra.mxu0 %v9884
    %v9886 = vand.u32 %v540, 4294901760
    %9887 = vmatpush.msra.mxu0 %v9886
    %v9888 = vand.u32 %v539, 4294901760
    %9889 = vmatpush.msra.mxu0 %v9888
    %v9890 = vand.u32 %v538, 4294901760
    %9891 = vmatpush.msra.mxu0 %v9890
    %v9892 = vand.u32 %v537, 4294901760
    %9893 = vmatpush.msra.mxu0 %v9892
    %v9894 = vand.u32 %v536, 4294901760
    %9895 = vmatpush.msra.mxu0 %v9894
    %v9896 = vand.u32 %v535, 4294901760
    %9897 = vmatpush.msra.mxu0 %v9896
    %v9898 = vand.u32 %v534, 4294901760
    %9899 = vmatpush.msra.mxu0 %v9898
    %v9900 = vand.u32 %v533, 4294901760
    %9901 = vmatpush.msra.mxu0 %v9900
    %v9902 = vand.u32 %v532, 4294901760
    %9903 = vmatpush.msra.mxu0 %v9902
    %v9904 = vand.u32 %v531, 4294901760
    %9905 = vmatpush.msra.mxu0 %v9904
    %v9906 = vand.u32 %v530, 4294901760
    %9907 = vmatpush.msra.mxu0 %v9906
    %v9908 = vand.u32 %v529, 4294901760
    %9909 = vmatpush.msra.mxu0 %v9908
    %v9910 = vand.u32 %v528, 4294901760
    %9911 = vmatpush.msra.mxu0 %v9910
    %v9912 = vand.u32 %v527, 4294901760
    %9913 = vmatpush.msra.mxu0 %v9912
    %v9914 = vand.u32 %v638, 4294901760
    %v9915 = vsub.f32 %v638, %v9914
    %v9916 = vand.u32 %v9915, 4294901760
    %v9917 = vsub.f32 %v9915, %v9916
    %v9918 = vand.u32 %v9917, 4294901760
    %9919 = vmatmul.f32.gmra.mxu0 %v9918
    %v9920 = vpop.f32.mrf.mxu0
    %v9921 = vadd.f32 %v9880, %v9920
    %9922 = vdwg.mxu0
    %v9923 = vand.u32 %v542, 4294901760
    %v9924 = vsub.f32 %v542, %v9923
    %v9925 = vand.u32 %v9924, 4294901760
    %v9926 = vsub.f32 %v9924, %v9925
    %v9927 = vand.u32 %v9926, 4294901760
    %9928 = vmatpush.msra.mxu0 %v9927
    %v9929 = vand.u32 %v541, 4294901760
    %v9930 = vsub.f32 %v541, %v9929
    %v9931 = vand.u32 %v9930, 4294901760
    %v9932 = vsub.f32 %v9930, %v9931
    %v9933 = vand.u32 %v9932, 4294901760
    %9934 = vmatpush.msra.mxu0 %v9933
    %v9935 = vand.u32 %v540, 4294901760
    %v9936 = vsub.f32 %v540, %v9935
    %v9937 = vand.u32 %v9936, 4294901760
    %v9938 = vsub.f32 %v9936, %v9937
    %v9939 = vand.u32 %v9938, 4294901760
    %9940 = vmatpush.msra.mxu0 %v9939
    %v9941 = vand.u32 %v539, 4294901760
    %v9942 = vsub.f32 %v539, %v9941
    %v9943 = vand.u32 %v9942, 4294901760
    %v9944 = vsub.f32 %v9942, %v9943
    %v9945 = vand.u32 %v9944, 4294901760
    %9946 = vmatpush.msra.mxu0 %v9945
    %v9947 = vand.u32 %v538, 4294901760
    %v9948 = vsub.f32 %v538, %v9947
    %v9949 = vand.u32 %v9948, 4294901760
    %v9950 = vsub.f32 %v9948, %v9949
    %v9951 = vand.u32 %v9950, 4294901760
    %9952 = vmatpush.msra.mxu0 %v9951
    %v9953 = vand.u32 %v537, 4294901760
    %v9954 = vsub.f32 %v537, %v9953
    %v9955 = vand.u32 %v9954, 4294901760
    %v9956 = vsub.f32 %v9954, %v9955
    %v9957 = vand.u32 %v9956, 4294901760
    %9958 = vmatpush.msra.mxu0 %v9957
    %v9959 = vand.u32 %v536, 4294901760
    %v9960 = vsub.f32 %v536, %v9959
    %v9961 = vand.u32 %v9960, 4294901760
    %v9962 = vsub.f32 %v9960, %v9961
    %v9963 = vand.u32 %v9962, 4294901760
    %9964 = vmatpush.msra.mxu0 %v9963
    %v9965 = vand.u32 %v535, 4294901760
    %v9966 = vsub.f32 %v535, %v9965
    %v9967 = vand.u32 %v9966, 4294901760
    %v9968 = vsub.f32 %v9966, %v9967
    %v9969 = vand.u32 %v9968, 4294901760
    %9970 = vmatpush.msra.mxu0 %v9969
    %v9971 = vand.u32 %v534, 4294901760
    %v9972 = vsub.f32 %v534, %v9971
    %v9973 = vand.u32 %v9972, 4294901760
    %v9974 = vsub.f32 %v9972, %v9973
    %v9975 = vand.u32 %v9974, 4294901760
    %9976 = vmatpush.msra.mxu0 %v9975
    %v9977 = vand.u32 %v533, 4294901760
    %v9978 = vsub.f32 %v533, %v9977
    %v9979 = vand.u32 %v9978, 4294901760
    %v9980 = vsub.f32 %v9978, %v9979
    %v9981 = vand.u32 %v9980, 4294901760
    %9982 = vmatpush.msra.mxu0 %v9981
    %v9983 = vand.u32 %v532, 4294901760
    %v9984 = vsub.f32 %v532, %v9983
    %v9985 = vand.u32 %v9984, 4294901760
    %v9986 = vsub.f32 %v9984, %v9985
    %v9987 = vand.u32 %v9986, 4294901760
    %9988 = vmatpush.msra.mxu0 %v9987
    %v9989 = vand.u32 %v531, 4294901760
    %v9990 = vsub.f32 %v531, %v9989
    %v9991 = vand.u32 %v9990, 4294901760
    %v9992 = vsub.f32 %v9990, %v9991
    %v9993 = vand.u32 %v9992, 4294901760
    %9994 = vmatpush.msra.mxu0 %v9993
    %v9995 = vand.u32 %v530, 4294901760
    %v9996 = vsub.f32 %v530, %v9995
    %v9997 = vand.u32 %v9996, 4294901760
    %v9998 = vsub.f32 %v9996, %v9997
    %v9999 = vand.u32 %v9998, 4294901760
    %10000 = vmatpush.msra.mxu0 %v9999
    %v10001 = vand.u32 %v529, 4294901760
    %v10002 = vsub.f32 %v529, %v10001
    %v10003 = vand.u32 %v10002, 4294901760
    %v10004 = vsub.f32 %v10002, %v10003
    %v10005 = vand.u32 %v10004, 4294901760
    %10006 = vmatpush.msra.mxu0 %v10005
    %v10007 = vand.u32 %v528, 4294901760
    %v10008 = vsub.f32 %v528, %v10007
    %v10009 = vand.u32 %v10008, 4294901760
    %v10010 = vsub.f32 %v10008, %v10009
    %v10011 = vand.u32 %v10010, 4294901760
    %10012 = vmatpush.msra.mxu0 %v10011
    %v10013 = vand.u32 %v527, 4294901760
    %v10014 = vsub.f32 %v527, %v10013
    %v10015 = vand.u32 %v10014, 4294901760
    %v10016 = vsub.f32 %v10014, %v10015
    %v10017 = vand.u32 %v10016, 4294901760
    %10018 = vmatpush.msra.mxu0 %v10017
    %v10019 = vand.u32 %v638, 4294901760
    %10020 = vmatmul.f32.gmra.mxu0 %v10019
    %v10021 = vpop.f32.mrf.mxu0
    %v10022 = vadd.f32 %v9921, %v10021
    %10023 = vdwg.mxu0
    %v10024 = vand.u32 %v542, 4294901760
    %v10025 = vsub.f32 %v542, %v10024
    %10026 = vmatpush.msra.mxu0 %v10025
    %v10027 = vand.u32 %v541, 4294901760
    %v10028 = vsub.f32 %v541, %v10027
    %10029 = vmatpush.msra.mxu0 %v10028
    %v10030 = vand.u32 %v540, 4294901760
    %v10031 = vsub.f32 %v540, %v10030
    %10032 = vmatpush.msra.mxu0 %v10031
    %v10033 = vand.u32 %v539, 4294901760
    %v10034 = vsub.f32 %v539, %v10033
    %10035 = vmatpush.msra.mxu0 %v10034
    %v10036 = vand.u32 %v538, 4294901760
    %v10037 = vsub.f32 %v538, %v10036
    %10038 = vmatpush.msra.mxu0 %v10037
    %v10039 = vand.u32 %v537, 4294901760
    %v10040 = vsub.f32 %v537, %v10039
    %10041 = vmatpush.msra.mxu0 %v10040
    %v10042 = vand.u32 %v536, 4294901760
    %v10043 = vsub.f32 %v536, %v10042
    %10044 = vmatpush.msra.mxu0 %v10043
    %v10045 = vand.u32 %v535, 4294901760
    %v10046 = vsub.f32 %v535, %v10045
    %10047 = vmatpush.msra.mxu0 %v10046
    %v10048 = vand.u32 %v534, 4294901760
    %v10049 = vsub.f32 %v534, %v10048
    %10050 = vmatpush.msra.mxu0 %v10049
    %v10051 = vand.u32 %v533, 4294901760
    %v10052 = vsub.f32 %v533, %v10051
    %10053 = vmatpush.msra.mxu0 %v10052
    %v10054 = vand.u32 %v532, 4294901760
    %v10055 = vsub.f32 %v532, %v10054
    %10056 = vmatpush.msra.mxu0 %v10055
    %v10057 = vand.u32 %v531, 4294901760
    %v10058 = vsub.f32 %v531, %v10057
    %10059 = vmatpush.msra.mxu0 %v10058
    %v10060 = vand.u32 %v530, 4294901760
    %v10061 = vsub.f32 %v530, %v10060
    %10062 = vmatpush.msra.mxu0 %v10061
    %v10063 = vand.u32 %v529, 4294901760
    %v10064 = vsub.f32 %v529, %v10063
    %10065 = vmatpush.msra.mxu0 %v10064
    %v10066 = vand.u32 %v528, 4294901760
    %v10067 = vsub.f32 %v528, %v10066
    %10068 = vmatpush.msra.mxu0 %v10067
    %v10069 = vand.u32 %v527, 4294901760
    %v10070 = vsub.f32 %v527, %v10069
    %10071 = vmatpush.msra.mxu0 %v10070
    %v10072 = vand.u32 %v638, 4294901760
    %v10073 = vsub.f32 %v638, %v10072
    %10074 = vmatmul.f32.gmra.mxu0 %v10073
    %v10075 = vpop.f32.mrf.mxu0
    %v10076 = vadd.f32 %v10022, %v10075
    %10077 = vdwg.mxu0
    %v10078 = vand.u32 %v542, 4294901760
    %10079 = vmatpush.msra.mxu0 %v10078
    %v10080 = vand.u32 %v541, 4294901760
    %10081 = vmatpush.msra.mxu0 %v10080
    %v10082 = vand.u32 %v540, 4294901760
    %10083 = vmatpush.msra.mxu0 %v10082
    %v10084 = vand.u32 %v539, 4294901760
    %10085 = vmatpush.msra.mxu0 %v10084
    %v10086 = vand.u32 %v538, 4294901760
    %10087 = vmatpush.msra.mxu0 %v10086
    %v10088 = vand.u32 %v537, 4294901760
    %10089 = vmatpush.msra.mxu0 %v10088
    %v10090 = vand.u32 %v536, 4294901760
    %10091 = vmatpush.msra.mxu0 %v10090
    %v10092 = vand.u32 %v535, 4294901760
    %10093 = vmatpush.msra.mxu0 %v10092
    %v10094 = vand.u32 %v534, 4294901760
    %10095 = vmatpush.msra.mxu0 %v10094
    %v10096 = vand.u32 %v533, 4294901760
    %10097 = vmatpush.msra.mxu0 %v10096
    %v10098 = vand.u32 %v532, 4294901760
    %10099 = vmatpush.msra.mxu0 %v10098
    %v10100 = vand.u32 %v531, 4294901760
    %10101 = vmatpush.msra.mxu0 %v10100
    %v10102 = vand.u32 %v530, 4294901760
    %10103 = vmatpush.msra.mxu0 %v10102
    %v10104 = vand.u32 %v529, 4294901760
    %10105 = vmatpush.msra.mxu0 %v10104
    %v10106 = vand.u32 %v528, 4294901760
    %10107 = vmatpush.msra.mxu0 %v10106
    %v10108 = vand.u32 %v527, 4294901760
    %10109 = vmatpush.msra.mxu0 %v10108
    %v10110 = vand.u32 %v638, 4294901760
    %v10111 = vsub.f32 %v638, %v10110
    %v10112 = vand.u32 %v10111, 4294901760
    %10113 = vmatmul.f32.gmra.mxu0 %v10112
    %v10114 = vpop.f32.mrf.mxu0
    %v10115 = vadd.f32 %v10076, %v10114
    %10116 = vdwg.mxu0
    %v10117 = vand.u32 %v542, 4294901760
    %v10118 = vsub.f32 %v542, %v10117
    %v10119 = vand.u32 %v10118, 4294901760
    %10120 = vmatpush.msra.mxu0 %v10119
    %v10121 = vand.u32 %v541, 4294901760
    %v10122 = vsub.f32 %v541, %v10121
    %v10123 = vand.u32 %v10122, 4294901760
    %10124 = vmatpush.msra.mxu0 %v10123
    %v10125 = vand.u32 %v540, 4294901760
    %v10126 = vsub.f32 %v540, %v10125
    %v10127 = vand.u32 %v10126, 4294901760
    %10128 = vmatpush.msra.mxu0 %v10127
    %v10129 = vand.u32 %v539, 4294901760
    %v10130 = vsub.f32 %v539, %v10129
    %v10131 = vand.u32 %v10130, 4294901760
    %10132 = vmatpush.msra.mxu0 %v10131
    %v10133 = vand.u32 %v538, 4294901760
    %v10134 = vsub.f32 %v538, %v10133
    %v10135 = vand.u32 %v10134, 4294901760
    %10136 = vmatpush.msra.mxu0 %v10135
    %v10137 = vand.u32 %v537, 4294901760
    %v10138 = vsub.f32 %v537, %v10137
    %v10139 = vand.u32 %v10138, 4294901760
    %10140 = vmatpush.msra.mxu0 %v10139
    %v10141 = vand.u32 %v536, 4294901760
    %v10142 = vsub.f32 %v536, %v10141
    %v10143 = vand.u32 %v10142, 4294901760
    %10144 = vmatpush.msra.mxu0 %v10143
    %v10145 = vand.u32 %v535, 4294901760
    %v10146 = vsub.f32 %v535, %v10145
    %v10147 = vand.u32 %v10146, 4294901760
    %10148 = vmatpush.msra.mxu0 %v10147
    %v10149 = vand.u32 %v534, 4294901760
    %v10150 = vsub.f32 %v534, %v10149
    %v10151 = vand.u32 %v10150, 4294901760
    %10152 = vmatpush.msra.mxu0 %v10151
    %v10153 = vand.u32 %v533, 4294901760
    %v10154 = vsub.f32 %v533, %v10153
    %v10155 = vand.u32 %v10154, 4294901760
    %10156 = vmatpush.msra.mxu0 %v10155
    %v10157 = vand.u32 %v532, 4294901760
    %v10158 = vsub.f32 %v532, %v10157
    %v10159 = vand.u32 %v10158, 4294901760
    %10160 = vmatpush.msra.mxu0 %v10159
    %v10161 = vand.u32 %v531, 4294901760
    %v10162 = vsub.f32 %v531, %v10161
    %v10163 = vand.u32 %v10162, 4294901760
    %10164 = vmatpush.msra.mxu0 %v10163
    %v10165 = vand.u32 %v530, 4294901760
    %v10166 = vsub.f32 %v530, %v10165
    %v10167 = vand.u32 %v10166, 4294901760
    %10168 = vmatpush.msra.mxu0 %v10167
    %v10169 = vand.u32 %v529, 4294901760
    %v10170 = vsub.f32 %v529, %v10169
    %v10171 = vand.u32 %v10170, 4294901760
    %10172 = vmatpush.msra.mxu0 %v10171
    %v10173 = vand.u32 %v528, 4294901760
    %v10174 = vsub.f32 %v528, %v10173
    %v10175 = vand.u32 %v10174, 4294901760
    %10176 = vmatpush.msra.mxu0 %v10175
    %v10177 = vand.u32 %v527, 4294901760
    %v10178 = vsub.f32 %v527, %v10177
    %v10179 = vand.u32 %v10178, 4294901760
    %10180 = vmatpush.msra.mxu0 %v10179
    %v10181 = vand.u32 %v638, 4294901760
    %10182 = vmatmul.f32.gmra.mxu0 %v10181
    %v10183 = vpop.f32.mrf.mxu0
    %v10184 = vadd.f32 %v10115, %v10183
    %10185 = vdwg.mxu0
    %v10186 = vand.u32 %v542, 4294901760
    %10187 = vmatpush.msra.mxu0 %v10186
    %v10188 = vand.u32 %v541, 4294901760
    %10189 = vmatpush.msra.mxu0 %v10188
    %v10190 = vand.u32 %v540, 4294901760
    %10191 = vmatpush.msra.mxu0 %v10190
    %v10192 = vand.u32 %v539, 4294901760
    %10193 = vmatpush.msra.mxu0 %v10192
    %v10194 = vand.u32 %v538, 4294901760
    %10195 = vmatpush.msra.mxu0 %v10194
    %v10196 = vand.u32 %v537, 4294901760
    %10197 = vmatpush.msra.mxu0 %v10196
    %v10198 = vand.u32 %v536, 4294901760
    %10199 = vmatpush.msra.mxu0 %v10198
    %v10200 = vand.u32 %v535, 4294901760
    %10201 = vmatpush.msra.mxu0 %v10200
    %v10202 = vand.u32 %v534, 4294901760
    %10203 = vmatpush.msra.mxu0 %v10202
    %v10204 = vand.u32 %v533, 4294901760
    %10205 = vmatpush.msra.mxu0 %v10204
    %v10206 = vand.u32 %v532, 4294901760
    %10207 = vmatpush.msra.mxu0 %v10206
    %v10208 = vand.u32 %v531, 4294901760
    %10209 = vmatpush.msra.mxu0 %v10208
    %v10210 = vand.u32 %v530, 4294901760
    %10211 = vmatpush.msra.mxu0 %v10210
    %v10212 = vand.u32 %v529, 4294901760
    %10213 = vmatpush.msra.mxu0 %v10212
    %v10214 = vand.u32 %v528, 4294901760
    %10215 = vmatpush.msra.mxu0 %v10214
    %v10216 = vand.u32 %v527, 4294901760
    %10217 = vmatpush.msra.mxu0 %v10216
    %v10218 = vand.u32 %v638, 4294901760
    %10219 = vmatmul.f32.gmra.mxu0 %v10218
    %v10220 = vpop.f32.mrf.mxu0
    %v10221 = vadd.f32 %v10184, %v10220
    %10222 = vdwg.mxu0
    %v10223 = vand.u32 %v558, 4294901760
    %10224 = vmatpush.msra.mxu0 %v10223
    %v10225 = vand.u32 %v557, 4294901760
    %10226 = vmatpush.msra.mxu0 %v10225
    %v10227 = vand.u32 %v556, 4294901760
    %10228 = vmatpush.msra.mxu0 %v10227
    %v10229 = vand.u32 %v555, 4294901760
    %10230 = vmatpush.msra.mxu0 %v10229
    %v10231 = vand.u32 %v554, 4294901760
    %10232 = vmatpush.msra.mxu0 %v10231
    %v10233 = vand.u32 %v553, 4294901760
    %10234 = vmatpush.msra.mxu0 %v10233
    %v10235 = vand.u32 %v552, 4294901760
    %10236 = vmatpush.msra.mxu0 %v10235
    %v10237 = vand.u32 %v551, 4294901760
    %10238 = vmatpush.msra.mxu0 %v10237
    %v10239 = vand.u32 %v550, 4294901760
    %10240 = vmatpush.msra.mxu0 %v10239
    %v10241 = vand.u32 %v549, 4294901760
    %10242 = vmatpush.msra.mxu0 %v10241
    %v10243 = vand.u32 %v548, 4294901760
    %10244 = vmatpush.msra.mxu0 %v10243
    %v10245 = vand.u32 %v547, 4294901760
    %10246 = vmatpush.msra.mxu0 %v10245
    %v10247 = vand.u32 %v546, 4294901760
    %10248 = vmatpush.msra.mxu0 %v10247
    %v10249 = vand.u32 %v545, 4294901760
    %10250 = vmatpush.msra.mxu0 %v10249
    %v10251 = vand.u32 %v544, 4294901760
    %10252 = vmatpush.msra.mxu0 %v10251
    %v10253 = vand.u32 %v543, 4294901760
    %10254 = vmatpush.msra.mxu0 %v10253
    %v10255 = vand.u32 %v639, 4294901760
    %v10256 = vsub.f32 %v639, %v10255
    %v10257 = vand.u32 %v10256, 4294901760
    %v10258 = vsub.f32 %v10256, %v10257
    %v10259 = vand.u32 %v10258, 4294901760
    %10260 = vmatmul.f32.gmra.mxu0 %v10259
    %v10261 = vpop.f32.mrf.mxu0
    %v10262 = vadd.f32 %v10221, %v10261
    %10263 = vdwg.mxu0
    %v10264 = vand.u32 %v558, 4294901760
    %v10265 = vsub.f32 %v558, %v10264
    %v10266 = vand.u32 %v10265, 4294901760
    %v10267 = vsub.f32 %v10265, %v10266
    %v10268 = vand.u32 %v10267, 4294901760
    %10269 = vmatpush.msra.mxu0 %v10268
    %v10270 = vand.u32 %v557, 4294901760
    %v10271 = vsub.f32 %v557, %v10270
    %v10272 = vand.u32 %v10271, 4294901760
    %v10273 = vsub.f32 %v10271, %v10272
    %v10274 = vand.u32 %v10273, 4294901760
    %10275 = vmatpush.msra.mxu0 %v10274
    %v10276 = vand.u32 %v556, 4294901760
    %v10277 = vsub.f32 %v556, %v10276
    %v10278 = vand.u32 %v10277, 4294901760
    %v10279 = vsub.f32 %v10277, %v10278
    %v10280 = vand.u32 %v10279, 4294901760
    %10281 = vmatpush.msra.mxu0 %v10280
    %v10282 = vand.u32 %v555, 4294901760
    %v10283 = vsub.f32 %v555, %v10282
    %v10284 = vand.u32 %v10283, 4294901760
    %v10285 = vsub.f32 %v10283, %v10284
    %v10286 = vand.u32 %v10285, 4294901760
    %10287 = vmatpush.msra.mxu0 %v10286
    %v10288 = vand.u32 %v554, 4294901760
    %v10289 = vsub.f32 %v554, %v10288
    %v10290 = vand.u32 %v10289, 4294901760
    %v10291 = vsub.f32 %v10289, %v10290
    %v10292 = vand.u32 %v10291, 4294901760
    %10293 = vmatpush.msra.mxu0 %v10292
    %v10294 = vand.u32 %v553, 4294901760
    %v10295 = vsub.f32 %v553, %v10294
    %v10296 = vand.u32 %v10295, 4294901760
    %v10297 = vsub.f32 %v10295, %v10296
    %v10298 = vand.u32 %v10297, 4294901760
    %10299 = vmatpush.msra.mxu0 %v10298
    %v10300 = vand.u32 %v552, 4294901760
    %v10301 = vsub.f32 %v552, %v10300
    %v10302 = vand.u32 %v10301, 4294901760
    %v10303 = vsub.f32 %v10301, %v10302
    %v10304 = vand.u32 %v10303, 4294901760
    %10305 = vmatpush.msra.mxu0 %v10304
    %v10306 = vand.u32 %v551, 4294901760
    %v10307 = vsub.f32 %v551, %v10306
    %v10308 = vand.u32 %v10307, 4294901760
    %v10309 = vsub.f32 %v10307, %v10308
    %v10310 = vand.u32 %v10309, 4294901760
    %10311 = vmatpush.msra.mxu0 %v10310
    %v10312 = vand.u32 %v550, 4294901760
    %v10313 = vsub.f32 %v550, %v10312
    %v10314 = vand.u32 %v10313, 4294901760
    %v10315 = vsub.f32 %v10313, %v10314
    %v10316 = vand.u32 %v10315, 4294901760
    %10317 = vmatpush.msra.mxu0 %v10316
    %v10318 = vand.u32 %v549, 4294901760
    %v10319 = vsub.f32 %v549, %v10318
    %v10320 = vand.u32 %v10319, 4294901760
    %v10321 = vsub.f32 %v10319, %v10320
    %v10322 = vand.u32 %v10321, 4294901760
    %10323 = vmatpush.msra.mxu0 %v10322
    %v10324 = vand.u32 %v548, 4294901760
    %v10325 = vsub.f32 %v548, %v10324
    %v10326 = vand.u32 %v10325, 4294901760
    %v10327 = vsub.f32 %v10325, %v10326
    %v10328 = vand.u32 %v10327, 4294901760
    %10329 = vmatpush.msra.mxu0 %v10328
    %v10330 = vand.u32 %v547, 4294901760
    %v10331 = vsub.f32 %v547, %v10330
    %v10332 = vand.u32 %v10331, 4294901760
    %v10333 = vsub.f32 %v10331, %v10332
    %v10334 = vand.u32 %v10333, 4294901760
    %10335 = vmatpush.msra.mxu0 %v10334
    %v10336 = vand.u32 %v546, 4294901760
    %v10337 = vsub.f32 %v546, %v10336
    %v10338 = vand.u32 %v10337, 4294901760
    %v10339 = vsub.f32 %v10337, %v10338
    %v10340 = vand.u32 %v10339, 4294901760
    %10341 = vmatpush.msra.mxu0 %v10340
    %v10342 = vand.u32 %v545, 4294901760
    %v10343 = vsub.f32 %v545, %v10342
    %v10344 = vand.u32 %v10343, 4294901760
    %v10345 = vsub.f32 %v10343, %v10344
    %v10346 = vand.u32 %v10345, 4294901760
    %10347 = vmatpush.msra.mxu0 %v10346
    %v10348 = vand.u32 %v544, 4294901760
    %v10349 = vsub.f32 %v544, %v10348
    %v10350 = vand.u32 %v10349, 4294901760
    %v10351 = vsub.f32 %v10349, %v10350
    %v10352 = vand.u32 %v10351, 4294901760
    %10353 = vmatpush.msra.mxu0 %v10352
    %v10354 = vand.u32 %v543, 4294901760
    %v10355 = vsub.f32 %v543, %v10354
    %v10356 = vand.u32 %v10355, 4294901760
    %v10357 = vsub.f32 %v10355, %v10356
    %v10358 = vand.u32 %v10357, 4294901760
    %10359 = vmatpush.msra.mxu0 %v10358
    %v10360 = vand.u32 %v639, 4294901760
    %10361 = vmatmul.f32.gmra.mxu0 %v10360
    %v10362 = vpop.f32.mrf.mxu0
    %v10363 = vadd.f32 %v10262, %v10362
    %10364 = vdwg.mxu0
    %v10365 = vand.u32 %v558, 4294901760
    %v10366 = vsub.f32 %v558, %v10365
    %10367 = vmatpush.msra.mxu0 %v10366
    %v10368 = vand.u32 %v557, 4294901760
    %v10369 = vsub.f32 %v557, %v10368
    %10370 = vmatpush.msra.mxu0 %v10369
    %v10371 = vand.u32 %v556, 4294901760
    %v10372 = vsub.f32 %v556, %v10371
    %10373 = vmatpush.msra.mxu0 %v10372
    %v10374 = vand.u32 %v555, 4294901760
    %v10375 = vsub.f32 %v555, %v10374
    %10376 = vmatpush.msra.mxu0 %v10375
    %v10377 = vand.u32 %v554, 4294901760
    %v10378 = vsub.f32 %v554, %v10377
    %10379 = vmatpush.msra.mxu0 %v10378
    %v10380 = vand.u32 %v553, 4294901760
    %v10381 = vsub.f32 %v553, %v10380
    %10382 = vmatpush.msra.mxu0 %v10381
    %v10383 = vand.u32 %v552, 4294901760
    %v10384 = vsub.f32 %v552, %v10383
    %10385 = vmatpush.msra.mxu0 %v10384
    %v10386 = vand.u32 %v551, 4294901760
    %v10387 = vsub.f32 %v551, %v10386
    %10388 = vmatpush.msra.mxu0 %v10387
    %v10389 = vand.u32 %v550, 4294901760
    %v10390 = vsub.f32 %v550, %v10389
    %10391 = vmatpush.msra.mxu0 %v10390
    %v10392 = vand.u32 %v549, 4294901760
    %v10393 = vsub.f32 %v549, %v10392
    %10394 = vmatpush.msra.mxu0 %v10393
    %v10395 = vand.u32 %v548, 4294901760
    %v10396 = vsub.f32 %v548, %v10395
    %10397 = vmatpush.msra.mxu0 %v10396
    %v10398 = vand.u32 %v547, 4294901760
    %v10399 = vsub.f32 %v547, %v10398
    %10400 = vmatpush.msra.mxu0 %v10399
    %v10401 = vand.u32 %v546, 4294901760
    %v10402 = vsub.f32 %v546, %v10401
    %10403 = vmatpush.msra.mxu0 %v10402
    %v10404 = vand.u32 %v545, 4294901760
    %v10405 = vsub.f32 %v545, %v10404
    %10406 = vmatpush.msra.mxu0 %v10405
    %v10407 = vand.u32 %v544, 4294901760
    %v10408 = vsub.f32 %v544, %v10407
    %10409 = vmatpush.msra.mxu0 %v10408
    %v10410 = vand.u32 %v543, 4294901760
    %v10411 = vsub.f32 %v543, %v10410
    %10412 = vmatpush.msra.mxu0 %v10411
    %v10413 = vand.u32 %v639, 4294901760
    %v10414 = vsub.f32 %v639, %v10413
    %10415 = vmatmul.f32.gmra.mxu0 %v10414
    %v10416 = vpop.f32.mrf.mxu0
    %v10417 = vadd.f32 %v10363, %v10416
    %10418 = vdwg.mxu0
    %v10419 = vand.u32 %v558, 4294901760
    %10420 = vmatpush.msra.mxu0 %v10419
    %v10421 = vand.u32 %v557, 4294901760
    %10422 = vmatpush.msra.mxu0 %v10421
    %v10423 = vand.u32 %v556, 4294901760
    %10424 = vmatpush.msra.mxu0 %v10423
    %v10425 = vand.u32 %v555, 4294901760
    %10426 = vmatpush.msra.mxu0 %v10425
    %v10427 = vand.u32 %v554, 4294901760
    %10428 = vmatpush.msra.mxu0 %v10427
    %v10429 = vand.u32 %v553, 4294901760
    %10430 = vmatpush.msra.mxu0 %v10429
    %v10431 = vand.u32 %v552, 4294901760
    %10432 = vmatpush.msra.mxu0 %v10431
    %v10433 = vand.u32 %v551, 4294901760
    %10434 = vmatpush.msra.mxu0 %v10433
    %v10435 = vand.u32 %v550, 4294901760
    %10436 = vmatpush.msra.mxu0 %v10435
    %v10437 = vand.u32 %v549, 4294901760
    %10438 = vmatpush.msra.mxu0 %v10437
    %v10439 = vand.u32 %v548, 4294901760
    %10440 = vmatpush.msra.mxu0 %v10439
    %v10441 = vand.u32 %v547, 4294901760
    %10442 = vmatpush.msra.mxu0 %v10441
    %v10443 = vand.u32 %v546, 4294901760
    %10444 = vmatpush.msra.mxu0 %v10443
    %v10445 = vand.u32 %v545, 4294901760
    %10446 = vmatpush.msra.mxu0 %v10445
    %v10447 = vand.u32 %v544, 4294901760
    %10448 = vmatpush.msra.mxu0 %v10447
    %v10449 = vand.u32 %v543, 4294901760
    %10450 = vmatpush.msra.mxu0 %v10449
    %v10451 = vand.u32 %v639, 4294901760
    %v10452 = vsub.f32 %v639, %v10451
    %v10453 = vand.u32 %v10452, 4294901760
    %10454 = vmatmul.f32.gmra.mxu0 %v10453
    %v10455 = vpop.f32.mrf.mxu0
    %v10456 = vadd.f32 %v10417, %v10455
    %10457 = vdwg.mxu0
    %v10458 = vand.u32 %v558, 4294901760
    %v10459 = vsub.f32 %v558, %v10458
    %v10460 = vand.u32 %v10459, 4294901760
    %10461 = vmatpush.msra.mxu0 %v10460
    %v10462 = vand.u32 %v557, 4294901760
    %v10463 = vsub.f32 %v557, %v10462
    %v10464 = vand.u32 %v10463, 4294901760
    %10465 = vmatpush.msra.mxu0 %v10464
    %v10466 = vand.u32 %v556, 4294901760
    %v10467 = vsub.f32 %v556, %v10466
    %v10468 = vand.u32 %v10467, 4294901760
    %10469 = vmatpush.msra.mxu0 %v10468
    %v10470 = vand.u32 %v555, 4294901760
    %v10471 = vsub.f32 %v555, %v10470
    %v10472 = vand.u32 %v10471, 4294901760
    %10473 = vmatpush.msra.mxu0 %v10472
    %v10474 = vand.u32 %v554, 4294901760
    %v10475 = vsub.f32 %v554, %v10474
    %v10476 = vand.u32 %v10475, 4294901760
    %10477 = vmatpush.msra.mxu0 %v10476
    %v10478 = vand.u32 %v553, 4294901760
    %v10479 = vsub.f32 %v553, %v10478
    %v10480 = vand.u32 %v10479, 4294901760
    %10481 = vmatpush.msra.mxu0 %v10480
    %v10482 = vand.u32 %v552, 4294901760
    %v10483 = vsub.f32 %v552, %v10482
    %v10484 = vand.u32 %v10483, 4294901760
    %10485 = vmatpush.msra.mxu0 %v10484
    %v10486 = vand.u32 %v551, 4294901760
    %v10487 = vsub.f32 %v551, %v10486
    %v10488 = vand.u32 %v10487, 4294901760
    %10489 = vmatpush.msra.mxu0 %v10488
    %v10490 = vand.u32 %v550, 4294901760
    %v10491 = vsub.f32 %v550, %v10490
    %v10492 = vand.u32 %v10491, 4294901760
    %10493 = vmatpush.msra.mxu0 %v10492
    %v10494 = vand.u32 %v549, 4294901760
    %v10495 = vsub.f32 %v549, %v10494
    %v10496 = vand.u32 %v10495, 4294901760
    %10497 = vmatpush.msra.mxu0 %v10496
    %v10498 = vand.u32 %v548, 4294901760
    %v10499 = vsub.f32 %v548, %v10498
    %v10500 = vand.u32 %v10499, 4294901760
    %10501 = vmatpush.msra.mxu0 %v10500
    %v10502 = vand.u32 %v547, 4294901760
    %v10503 = vsub.f32 %v547, %v10502
    %v10504 = vand.u32 %v10503, 4294901760
    %10505 = vmatpush.msra.mxu0 %v10504
    %v10506 = vand.u32 %v546, 4294901760
    %v10507 = vsub.f32 %v546, %v10506
    %v10508 = vand.u32 %v10507, 4294901760
    %10509 = vmatpush.msra.mxu0 %v10508
    %v10510 = vand.u32 %v545, 4294901760
    %v10511 = vsub.f32 %v545, %v10510
    %v10512 = vand.u32 %v10511, 4294901760
    %10513 = vmatpush.msra.mxu0 %v10512
    %v10514 = vand.u32 %v544, 4294901760
    %v10515 = vsub.f32 %v544, %v10514
    %v10516 = vand.u32 %v10515, 4294901760
    %10517 = vmatpush.msra.mxu0 %v10516
    %v10518 = vand.u32 %v543, 4294901760
    %v10519 = vsub.f32 %v543, %v10518
    %v10520 = vand.u32 %v10519, 4294901760
    %10521 = vmatpush.msra.mxu0 %v10520
    %v10522 = vand.u32 %v639, 4294901760
    %10523 = vmatmul.f32.gmra.mxu0 %v10522
    %v10524 = vpop.f32.mrf.mxu0
    %v10525 = vadd.f32 %v10456, %v10524
    %10526 = vdwg.mxu0
    %v10527 = vand.u32 %v558, 4294901760
    %10528 = vmatpush.msra.mxu0 %v10527
    %v10529 = vand.u32 %v557, 4294901760
    %10530 = vmatpush.msra.mxu0 %v10529
    %v10531 = vand.u32 %v556, 4294901760
    %10532 = vmatpush.msra.mxu0 %v10531
    %v10533 = vand.u32 %v555, 4294901760
    %10534 = vmatpush.msra.mxu0 %v10533
    %v10535 = vand.u32 %v554, 4294901760
    %10536 = vmatpush.msra.mxu0 %v10535
    %v10537 = vand.u32 %v553, 4294901760
    %10538 = vmatpush.msra.mxu0 %v10537
    %v10539 = vand.u32 %v552, 4294901760
    %10540 = vmatpush.msra.mxu0 %v10539
    %v10541 = vand.u32 %v551, 4294901760
    %10542 = vmatpush.msra.mxu0 %v10541
    %v10543 = vand.u32 %v550, 4294901760
    %10544 = vmatpush.msra.mxu0 %v10543
    %v10545 = vand.u32 %v549, 4294901760
    %10546 = vmatpush.msra.mxu0 %v10545
    %v10547 = vand.u32 %v548, 4294901760
    %10548 = vmatpush.msra.mxu0 %v10547
    %v10549 = vand.u32 %v547, 4294901760
    %10550 = vmatpush.msra.mxu0 %v10549
    %v10551 = vand.u32 %v546, 4294901760
    %10552 = vmatpush.msra.mxu0 %v10551
    %v10553 = vand.u32 %v545, 4294901760
    %10554 = vmatpush.msra.mxu0 %v10553
    %v10555 = vand.u32 %v544, 4294901760
    %10556 = vmatpush.msra.mxu0 %v10555
    %v10557 = vand.u32 %v543, 4294901760
    %10558 = vmatpush.msra.mxu0 %v10557
    %v10559 = vand.u32 %v639, 4294901760
    %10560 = vmatmul.f32.gmra.mxu0 %v10559
    %v10561 = vpop.f32.mrf.mxu0
    %v10562 = vadd.f32 %v10525, %v10561
    %10563 = vdwg.mxu0
    %v10564 = vand.u32 %v574, 4294901760
    %10565 = vmatpush.msra.mxu0 %v10564
    %v10566 = vand.u32 %v573, 4294901760
    %10567 = vmatpush.msra.mxu0 %v10566
    %v10568 = vand.u32 %v572, 4294901760
    %10569 = vmatpush.msra.mxu0 %v10568
    %v10570 = vand.u32 %v571, 4294901760
    %10571 = vmatpush.msra.mxu0 %v10570
    %v10572 = vand.u32 %v570, 4294901760
    %10573 = vmatpush.msra.mxu0 %v10572
    %v10574 = vand.u32 %v569, 4294901760
    %10575 = vmatpush.msra.mxu0 %v10574
    %v10576 = vand.u32 %v568, 4294901760
    %10577 = vmatpush.msra.mxu0 %v10576
    %v10578 = vand.u32 %v567, 4294901760
    %10579 = vmatpush.msra.mxu0 %v10578
    %v10580 = vand.u32 %v566, 4294901760
    %10581 = vmatpush.msra.mxu0 %v10580
    %v10582 = vand.u32 %v565, 4294901760
    %10583 = vmatpush.msra.mxu0 %v10582
    %v10584 = vand.u32 %v564, 4294901760
    %10585 = vmatpush.msra.mxu0 %v10584
    %v10586 = vand.u32 %v563, 4294901760
    %10587 = vmatpush.msra.mxu0 %v10586
    %v10588 = vand.u32 %v562, 4294901760
    %10589 = vmatpush.msra.mxu0 %v10588
    %v10590 = vand.u32 %v561, 4294901760
    %10591 = vmatpush.msra.mxu0 %v10590
    %v10592 = vand.u32 %v560, 4294901760
    %10593 = vmatpush.msra.mxu0 %v10592
    %v10594 = vand.u32 %v559, 4294901760
    %10595 = vmatpush.msra.mxu0 %v10594
    %v10596 = vand.u32 %v640, 4294901760
    %v10597 = vsub.f32 %v640, %v10596
    %v10598 = vand.u32 %v10597, 4294901760
    %v10599 = vsub.f32 %v10597, %v10598
    %v10600 = vand.u32 %v10599, 4294901760
    %10601 = vmatmul.f32.gmra.mxu0 %v10600
    %v10602 = vpop.f32.mrf.mxu0
    %v10603 = vadd.f32 %v10562, %v10602
    %10604 = vdwg.mxu0
    %v10605 = vand.u32 %v574, 4294901760
    %v10606 = vsub.f32 %v574, %v10605
    %v10607 = vand.u32 %v10606, 4294901760
    %v10608 = vsub.f32 %v10606, %v10607
    %v10609 = vand.u32 %v10608, 4294901760
    %10610 = vmatpush.msra.mxu0 %v10609
    %v10611 = vand.u32 %v573, 4294901760
    %v10612 = vsub.f32 %v573, %v10611
    %v10613 = vand.u32 %v10612, 4294901760
    %v10614 = vsub.f32 %v10612, %v10613
    %v10615 = vand.u32 %v10614, 4294901760
    %10616 = vmatpush.msra.mxu0 %v10615
    %v10617 = vand.u32 %v572, 4294901760
    %v10618 = vsub.f32 %v572, %v10617
    %v10619 = vand.u32 %v10618, 4294901760
    %v10620 = vsub.f32 %v10618, %v10619
    %v10621 = vand.u32 %v10620, 4294901760
    %10622 = vmatpush.msra.mxu0 %v10621
    %v10623 = vand.u32 %v571, 4294901760
    %v10624 = vsub.f32 %v571, %v10623
    %v10625 = vand.u32 %v10624, 4294901760
    %v10626 = vsub.f32 %v10624, %v10625
    %v10627 = vand.u32 %v10626, 4294901760
    %10628 = vmatpush.msra.mxu0 %v10627
    %v10629 = vand.u32 %v570, 4294901760
    %v10630 = vsub.f32 %v570, %v10629
    %v10631 = vand.u32 %v10630, 4294901760
    %v10632 = vsub.f32 %v10630, %v10631
    %v10633 = vand.u32 %v10632, 4294901760
    %10634 = vmatpush.msra.mxu0 %v10633
    %v10635 = vand.u32 %v569, 4294901760
    %v10636 = vsub.f32 %v569, %v10635
    %v10637 = vand.u32 %v10636, 4294901760
    %v10638 = vsub.f32 %v10636, %v10637
    %v10639 = vand.u32 %v10638, 4294901760
    %10640 = vmatpush.msra.mxu0 %v10639
    %v10641 = vand.u32 %v568, 4294901760
    %v10642 = vsub.f32 %v568, %v10641
    %v10643 = vand.u32 %v10642, 4294901760
    %v10644 = vsub.f32 %v10642, %v10643
    %v10645 = vand.u32 %v10644, 4294901760
    %10646 = vmatpush.msra.mxu0 %v10645
    %v10647 = vand.u32 %v567, 4294901760
    %v10648 = vsub.f32 %v567, %v10647
    %v10649 = vand.u32 %v10648, 4294901760
    %v10650 = vsub.f32 %v10648, %v10649
    %v10651 = vand.u32 %v10650, 4294901760
    %10652 = vmatpush.msra.mxu0 %v10651
    %v10653 = vand.u32 %v566, 4294901760
    %v10654 = vsub.f32 %v566, %v10653
    %v10655 = vand.u32 %v10654, 4294901760
    %v10656 = vsub.f32 %v10654, %v10655
    %v10657 = vand.u32 %v10656, 4294901760
    %10658 = vmatpush.msra.mxu0 %v10657
    %v10659 = vand.u32 %v565, 4294901760
    %v10660 = vsub.f32 %v565, %v10659
    %v10661 = vand.u32 %v10660, 4294901760
    %v10662 = vsub.f32 %v10660, %v10661
    %v10663 = vand.u32 %v10662, 4294901760
    %10664 = vmatpush.msra.mxu0 %v10663
    %v10665 = vand.u32 %v564, 4294901760
    %v10666 = vsub.f32 %v564, %v10665
    %v10667 = vand.u32 %v10666, 4294901760
    %v10668 = vsub.f32 %v10666, %v10667
    %v10669 = vand.u32 %v10668, 4294901760
    %10670 = vmatpush.msra.mxu0 %v10669
    %v10671 = vand.u32 %v563, 4294901760
    %v10672 = vsub.f32 %v563, %v10671
    %v10673 = vand.u32 %v10672, 4294901760
    %v10674 = vsub.f32 %v10672, %v10673
    %v10675 = vand.u32 %v10674, 4294901760
    %10676 = vmatpush.msra.mxu0 %v10675
    %v10677 = vand.u32 %v562, 4294901760
    %v10678 = vsub.f32 %v562, %v10677
    %v10679 = vand.u32 %v10678, 4294901760
    %v10680 = vsub.f32 %v10678, %v10679
    %v10681 = vand.u32 %v10680, 4294901760
    %10682 = vmatpush.msra.mxu0 %v10681
    %v10683 = vand.u32 %v561, 4294901760
    %v10684 = vsub.f32 %v561, %v10683
    %v10685 = vand.u32 %v10684, 4294901760
    %v10686 = vsub.f32 %v10684, %v10685
    %v10687 = vand.u32 %v10686, 4294901760
    %10688 = vmatpush.msra.mxu0 %v10687
    %v10689 = vand.u32 %v560, 4294901760
    %v10690 = vsub.f32 %v560, %v10689
    %v10691 = vand.u32 %v10690, 4294901760
    %v10692 = vsub.f32 %v10690, %v10691
    %v10693 = vand.u32 %v10692, 4294901760
    %10694 = vmatpush.msra.mxu0 %v10693
    %v10695 = vand.u32 %v559, 4294901760
    %v10696 = vsub.f32 %v559, %v10695
    %v10697 = vand.u32 %v10696, 4294901760
    %v10698 = vsub.f32 %v10696, %v10697
    %v10699 = vand.u32 %v10698, 4294901760
    %10700 = vmatpush.msra.mxu0 %v10699
    %v10701 = vand.u32 %v640, 4294901760
    %10702 = vmatmul.f32.gmra.mxu0 %v10701
    %v10703 = vpop.f32.mrf.mxu0
    %v10704 = vadd.f32 %v10603, %v10703
    %10705 = vdwg.mxu0
    %v10706 = vand.u32 %v574, 4294901760
    %v10707 = vsub.f32 %v574, %v10706
    %10708 = vmatpush.msra.mxu0 %v10707
    %v10709 = vand.u32 %v573, 4294901760
    %v10710 = vsub.f32 %v573, %v10709
    %10711 = vmatpush.msra.mxu0 %v10710
    %v10712 = vand.u32 %v572, 4294901760
    %v10713 = vsub.f32 %v572, %v10712
    %10714 = vmatpush.msra.mxu0 %v10713
    %v10715 = vand.u32 %v571, 4294901760
    %v10716 = vsub.f32 %v571, %v10715
    %10717 = vmatpush.msra.mxu0 %v10716
    %v10718 = vand.u32 %v570, 4294901760
    %v10719 = vsub.f32 %v570, %v10718
    %10720 = vmatpush.msra.mxu0 %v10719
    %v10721 = vand.u32 %v569, 4294901760
    %v10722 = vsub.f32 %v569, %v10721
    %10723 = vmatpush.msra.mxu0 %v10722
    %v10724 = vand.u32 %v568, 4294901760
    %v10725 = vsub.f32 %v568, %v10724
    %10726 = vmatpush.msra.mxu0 %v10725
    %v10727 = vand.u32 %v567, 4294901760
    %v10728 = vsub.f32 %v567, %v10727
    %10729 = vmatpush.msra.mxu0 %v10728
    %v10730 = vand.u32 %v566, 4294901760
    %v10731 = vsub.f32 %v566, %v10730
    %10732 = vmatpush.msra.mxu0 %v10731
    %v10733 = vand.u32 %v565, 4294901760
    %v10734 = vsub.f32 %v565, %v10733
    %10735 = vmatpush.msra.mxu0 %v10734
    %v10736 = vand.u32 %v564, 4294901760
    %v10737 = vsub.f32 %v564, %v10736
    %10738 = vmatpush.msra.mxu0 %v10737
    %v10739 = vand.u32 %v563, 4294901760
    %v10740 = vsub.f32 %v563, %v10739
    %10741 = vmatpush.msra.mxu0 %v10740
    %v10742 = vand.u32 %v562, 4294901760
    %v10743 = vsub.f32 %v562, %v10742
    %10744 = vmatpush.msra.mxu0 %v10743
    %v10745 = vand.u32 %v561, 4294901760
    %v10746 = vsub.f32 %v561, %v10745
    %10747 = vmatpush.msra.mxu0 %v10746
    %v10748 = vand.u32 %v560, 4294901760
    %v10749 = vsub.f32 %v560, %v10748
    %10750 = vmatpush.msra.mxu0 %v10749
    %v10751 = vand.u32 %v559, 4294901760
    %v10752 = vsub.f32 %v559, %v10751
    %10753 = vmatpush.msra.mxu0 %v10752
    %v10754 = vand.u32 %v640, 4294901760
    %v10755 = vsub.f32 %v640, %v10754
    %10756 = vmatmul.f32.gmra.mxu0 %v10755
    %v10757 = vpop.f32.mrf.mxu0
    %v10758 = vadd.f32 %v10704, %v10757
    %10759 = vdwg.mxu0
    %v10760 = vand.u32 %v574, 4294901760
    %10761 = vmatpush.msra.mxu0 %v10760
    %v10762 = vand.u32 %v573, 4294901760
    %10763 = vmatpush.msra.mxu0 %v10762
    %v10764 = vand.u32 %v572, 4294901760
    %10765 = vmatpush.msra.mxu0 %v10764
    %v10766 = vand.u32 %v571, 4294901760
    %10767 = vmatpush.msra.mxu0 %v10766
    %v10768 = vand.u32 %v570, 4294901760
    %10769 = vmatpush.msra.mxu0 %v10768
    %v10770 = vand.u32 %v569, 4294901760
    %10771 = vmatpush.msra.mxu0 %v10770
    %v10772 = vand.u32 %v568, 4294901760
    %10773 = vmatpush.msra.mxu0 %v10772
    %v10774 = vand.u32 %v567, 4294901760
    %10775 = vmatpush.msra.mxu0 %v10774
    %v10776 = vand.u32 %v566, 4294901760
    %10777 = vmatpush.msra.mxu0 %v10776
    %v10778 = vand.u32 %v565, 4294901760
    %10779 = vmatpush.msra.mxu0 %v10778
    %v10780 = vand.u32 %v564, 4294901760
    %10781 = vmatpush.msra.mxu0 %v10780
    %v10782 = vand.u32 %v563, 4294901760
    %10783 = vmatpush.msra.mxu0 %v10782
    %v10784 = vand.u32 %v562, 4294901760
    %10785 = vmatpush.msra.mxu0 %v10784
    %v10786 = vand.u32 %v561, 4294901760
    %10787 = vmatpush.msra.mxu0 %v10786
    %v10788 = vand.u32 %v560, 4294901760
    %10789 = vmatpush.msra.mxu0 %v10788
    %v10790 = vand.u32 %v559, 4294901760
    %10791 = vmatpush.msra.mxu0 %v10790
    %v10792 = vand.u32 %v640, 4294901760
    %v10793 = vsub.f32 %v640, %v10792
    %v10794 = vand.u32 %v10793, 4294901760
    %10795 = vmatmul.f32.gmra.mxu0 %v10794
    %v10796 = vpop.f32.mrf.mxu0
    %v10797 = vadd.f32 %v10758, %v10796
    %10798 = vdwg.mxu0
    %v10799 = vand.u32 %v574, 4294901760
    %v10800 = vsub.f32 %v574, %v10799
    %v10801 = vand.u32 %v10800, 4294901760
    %10802 = vmatpush.msra.mxu0 %v10801
    %v10803 = vand.u32 %v573, 4294901760
    %v10804 = vsub.f32 %v573, %v10803
    %v10805 = vand.u32 %v10804, 4294901760
    %10806 = vmatpush.msra.mxu0 %v10805
    %v10807 = vand.u32 %v572, 4294901760
    %v10808 = vsub.f32 %v572, %v10807
    %v10809 = vand.u32 %v10808, 4294901760
    %10810 = vmatpush.msra.mxu0 %v10809
    %v10811 = vand.u32 %v571, 4294901760
    %v10812 = vsub.f32 %v571, %v10811
    %v10813 = vand.u32 %v10812, 4294901760
    %10814 = vmatpush.msra.mxu0 %v10813
    %v10815 = vand.u32 %v570, 4294901760
    %v10816 = vsub.f32 %v570, %v10815
    %v10817 = vand.u32 %v10816, 4294901760
    %10818 = vmatpush.msra.mxu0 %v10817
    %v10819 = vand.u32 %v569, 4294901760
    %v10820 = vsub.f32 %v569, %v10819
    %v10821 = vand.u32 %v10820, 4294901760
    %10822 = vmatpush.msra.mxu0 %v10821
    %v10823 = vand.u32 %v568, 4294901760
    %v10824 = vsub.f32 %v568, %v10823
    %v10825 = vand.u32 %v10824, 4294901760
    %10826 = vmatpush.msra.mxu0 %v10825
    %v10827 = vand.u32 %v567, 4294901760
    %v10828 = vsub.f32 %v567, %v10827
    %v10829 = vand.u32 %v10828, 4294901760
    %10830 = vmatpush.msra.mxu0 %v10829
    %v10831 = vand.u32 %v566, 4294901760
    %v10832 = vsub.f32 %v566, %v10831
    %v10833 = vand.u32 %v10832, 4294901760
    %10834 = vmatpush.msra.mxu0 %v10833
    %v10835 = vand.u32 %v565, 4294901760
    %v10836 = vsub.f32 %v565, %v10835
    %v10837 = vand.u32 %v10836, 4294901760
    %10838 = vmatpush.msra.mxu0 %v10837
    %v10839 = vand.u32 %v564, 4294901760
    %v10840 = vsub.f32 %v564, %v10839
    %v10841 = vand.u32 %v10840, 4294901760
    %10842 = vmatpush.msra.mxu0 %v10841
    %v10843 = vand.u32 %v563, 4294901760
    %v10844 = vsub.f32 %v563, %v10843
    %v10845 = vand.u32 %v10844, 4294901760
    %10846 = vmatpush.msra.mxu0 %v10845
    %v10847 = vand.u32 %v562, 4294901760
    %v10848 = vsub.f32 %v562, %v10847
    %v10849 = vand.u32 %v10848, 4294901760
    %10850 = vmatpush.msra.mxu0 %v10849
    %v10851 = vand.u32 %v561, 4294901760
    %v10852 = vsub.f32 %v561, %v10851
    %v10853 = vand.u32 %v10852, 4294901760
    %10854 = vmatpush.msra.mxu0 %v10853
    %v10855 = vand.u32 %v560, 4294901760
    %v10856 = vsub.f32 %v560, %v10855
    %v10857 = vand.u32 %v10856, 4294901760
    %10858 = vmatpush.msra.mxu0 %v10857
    %v10859 = vand.u32 %v559, 4294901760
    %v10860 = vsub.f32 %v559, %v10859
    %v10861 = vand.u32 %v10860, 4294901760
    %10862 = vmatpush.msra.mxu0 %v10861
    %v10863 = vand.u32 %v640, 4294901760
    %10864 = vmatmul.f32.gmra.mxu0 %v10863
    %v10865 = vpop.f32.mrf.mxu0
    %v10866 = vadd.f32 %v10797, %v10865
    %10867 = vdwg.mxu0
    %v10868 = vand.u32 %v574, 4294901760
    %10869 = vmatpush.msra.mxu0 %v10868
    %v10870 = vand.u32 %v573, 4294901760
    %10871 = vmatpush.msra.mxu0 %v10870
    %v10872 = vand.u32 %v572, 4294901760
    %10873 = vmatpush.msra.mxu0 %v10872
    %v10874 = vand.u32 %v571, 4294901760
    %10875 = vmatpush.msra.mxu0 %v10874
    %v10876 = vand.u32 %v570, 4294901760
    %10877 = vmatpush.msra.mxu0 %v10876
    %v10878 = vand.u32 %v569, 4294901760
    %10879 = vmatpush.msra.mxu0 %v10878
    %v10880 = vand.u32 %v568, 4294901760
    %10881 = vmatpush.msra.mxu0 %v10880
    %v10882 = vand.u32 %v567, 4294901760
    %10883 = vmatpush.msra.mxu0 %v10882
    %v10884 = vand.u32 %v566, 4294901760
    %10885 = vmatpush.msra.mxu0 %v10884
    %v10886 = vand.u32 %v565, 4294901760
    %10887 = vmatpush.msra.mxu0 %v10886
    %v10888 = vand.u32 %v564, 4294901760
    %10889 = vmatpush.msra.mxu0 %v10888
    %v10890 = vand.u32 %v563, 4294901760
    %10891 = vmatpush.msra.mxu0 %v10890
    %v10892 = vand.u32 %v562, 4294901760
    %10893 = vmatpush.msra.mxu0 %v10892
    %v10894 = vand.u32 %v561, 4294901760
    %10895 = vmatpush.msra.mxu0 %v10894
    %v10896 = vand.u32 %v560, 4294901760
    %10897 = vmatpush.msra.mxu0 %v10896
    %v10898 = vand.u32 %v559, 4294901760
    %10899 = vmatpush.msra.mxu0 %v10898
    %v10900 = vand.u32 %v640, 4294901760
    %10901 = vmatmul.f32.gmra.mxu0 %v10900
    %v10902 = vpop.f32.mrf.mxu0
    %v10903 = vadd.f32 %v10866, %v10902
    %10904 = vdwg.mxu0
    %v10905 = vand.u32 %v590, 4294901760
    %10906 = vmatpush.msra.mxu0 %v10905
    %v10907 = vand.u32 %v589, 4294901760
    %10908 = vmatpush.msra.mxu0 %v10907
    %v10909 = vand.u32 %v588, 4294901760
    %10910 = vmatpush.msra.mxu0 %v10909
    %v10911 = vand.u32 %v587, 4294901760
    %10912 = vmatpush.msra.mxu0 %v10911
    %v10913 = vand.u32 %v586, 4294901760
    %10914 = vmatpush.msra.mxu0 %v10913
    %v10915 = vand.u32 %v585, 4294901760
    %10916 = vmatpush.msra.mxu0 %v10915
    %v10917 = vand.u32 %v584, 4294901760
    %10918 = vmatpush.msra.mxu0 %v10917
    %v10919 = vand.u32 %v583, 4294901760
    %10920 = vmatpush.msra.mxu0 %v10919
    %v10921 = vand.u32 %v582, 4294901760
    %10922 = vmatpush.msra.mxu0 %v10921
    %v10923 = vand.u32 %v581, 4294901760
    %10924 = vmatpush.msra.mxu0 %v10923
    %v10925 = vand.u32 %v580, 4294901760
    %10926 = vmatpush.msra.mxu0 %v10925
    %v10927 = vand.u32 %v579, 4294901760
    %10928 = vmatpush.msra.mxu0 %v10927
    %v10929 = vand.u32 %v578, 4294901760
    %10930 = vmatpush.msra.mxu0 %v10929
    %v10931 = vand.u32 %v577, 4294901760
    %10932 = vmatpush.msra.mxu0 %v10931
    %v10933 = vand.u32 %v576, 4294901760
    %10934 = vmatpush.msra.mxu0 %v10933
    %v10935 = vand.u32 %v575, 4294901760
    %10936 = vmatpush.msra.mxu0 %v10935
    %v10937 = vand.u32 %v641, 4294901760
    %v10938 = vsub.f32 %v641, %v10937
    %v10939 = vand.u32 %v10938, 4294901760
    %v10940 = vsub.f32 %v10938, %v10939
    %v10941 = vand.u32 %v10940, 4294901760
    %10942 = vmatmul.f32.gmra.mxu0 %v10941
    %v10943 = vpop.f32.mrf.mxu0
    %v10944 = vadd.f32 %v10903, %v10943
    %10945 = vdwg.mxu0
    %v10946 = vand.u32 %v590, 4294901760
    %v10947 = vsub.f32 %v590, %v10946
    %v10948 = vand.u32 %v10947, 4294901760
    %v10949 = vsub.f32 %v10947, %v10948
    %v10950 = vand.u32 %v10949, 4294901760
    %10951 = vmatpush.msra.mxu0 %v10950
    %v10952 = vand.u32 %v589, 4294901760
    %v10953 = vsub.f32 %v589, %v10952
    %v10954 = vand.u32 %v10953, 4294901760
    %v10955 = vsub.f32 %v10953, %v10954
    %v10956 = vand.u32 %v10955, 4294901760
    %10957 = vmatpush.msra.mxu0 %v10956
    %v10958 = vand.u32 %v588, 4294901760
    %v10959 = vsub.f32 %v588, %v10958
    %v10960 = vand.u32 %v10959, 4294901760
    %v10961 = vsub.f32 %v10959, %v10960
    %v10962 = vand.u32 %v10961, 4294901760
    %10963 = vmatpush.msra.mxu0 %v10962
    %v10964 = vand.u32 %v587, 4294901760
    %v10965 = vsub.f32 %v587, %v10964
    %v10966 = vand.u32 %v10965, 4294901760
    %v10967 = vsub.f32 %v10965, %v10966
    %v10968 = vand.u32 %v10967, 4294901760
    %10969 = vmatpush.msra.mxu0 %v10968
    %v10970 = vand.u32 %v586, 4294901760
    %v10971 = vsub.f32 %v586, %v10970
    %v10972 = vand.u32 %v10971, 4294901760
    %v10973 = vsub.f32 %v10971, %v10972
    %v10974 = vand.u32 %v10973, 4294901760
    %10975 = vmatpush.msra.mxu0 %v10974
    %v10976 = vand.u32 %v585, 4294901760
    %v10977 = vsub.f32 %v585, %v10976
    %v10978 = vand.u32 %v10977, 4294901760
    %v10979 = vsub.f32 %v10977, %v10978
    %v10980 = vand.u32 %v10979, 4294901760
    %10981 = vmatpush.msra.mxu0 %v10980
    %v10982 = vand.u32 %v584, 4294901760
    %v10983 = vsub.f32 %v584, %v10982
    %v10984 = vand.u32 %v10983, 4294901760
    %v10985 = vsub.f32 %v10983, %v10984
    %v10986 = vand.u32 %v10985, 4294901760
    %10987 = vmatpush.msra.mxu0 %v10986
    %v10988 = vand.u32 %v583, 4294901760
    %v10989 = vsub.f32 %v583, %v10988
    %v10990 = vand.u32 %v10989, 4294901760
    %v10991 = vsub.f32 %v10989, %v10990
    %v10992 = vand.u32 %v10991, 4294901760
    %10993 = vmatpush.msra.mxu0 %v10992
    %v10994 = vand.u32 %v582, 4294901760
    %v10995 = vsub.f32 %v582, %v10994
    %v10996 = vand.u32 %v10995, 4294901760
    %v10997 = vsub.f32 %v10995, %v10996
    %v10998 = vand.u32 %v10997, 4294901760
    %10999 = vmatpush.msra.mxu0 %v10998
    %v11000 = vand.u32 %v581, 4294901760
    %v11001 = vsub.f32 %v581, %v11000
    %v11002 = vand.u32 %v11001, 4294901760
    %v11003 = vsub.f32 %v11001, %v11002
    %v11004 = vand.u32 %v11003, 4294901760
    %11005 = vmatpush.msra.mxu0 %v11004
    %v11006 = vand.u32 %v580, 4294901760
    %v11007 = vsub.f32 %v580, %v11006
    %v11008 = vand.u32 %v11007, 4294901760
    %v11009 = vsub.f32 %v11007, %v11008
    %v11010 = vand.u32 %v11009, 4294901760
    %11011 = vmatpush.msra.mxu0 %v11010
    %v11012 = vand.u32 %v579, 4294901760
    %v11013 = vsub.f32 %v579, %v11012
    %v11014 = vand.u32 %v11013, 4294901760
    %v11015 = vsub.f32 %v11013, %v11014
    %v11016 = vand.u32 %v11015, 4294901760
    %11017 = vmatpush.msra.mxu0 %v11016
    %v11018 = vand.u32 %v578, 4294901760
    %v11019 = vsub.f32 %v578, %v11018
    %v11020 = vand.u32 %v11019, 4294901760
    %v11021 = vsub.f32 %v11019, %v11020
    %v11022 = vand.u32 %v11021, 4294901760
    %11023 = vmatpush.msra.mxu0 %v11022
    %v11024 = vand.u32 %v577, 4294901760
    %v11025 = vsub.f32 %v577, %v11024
    %v11026 = vand.u32 %v11025, 4294901760
    %v11027 = vsub.f32 %v11025, %v11026
    %v11028 = vand.u32 %v11027, 4294901760
    %11029 = vmatpush.msra.mxu0 %v11028
    %v11030 = vand.u32 %v576, 4294901760
    %v11031 = vsub.f32 %v576, %v11030
    %v11032 = vand.u32 %v11031, 4294901760
    %v11033 = vsub.f32 %v11031, %v11032
    %v11034 = vand.u32 %v11033, 4294901760
    %11035 = vmatpush.msra.mxu0 %v11034
    %v11036 = vand.u32 %v575, 4294901760
    %v11037 = vsub.f32 %v575, %v11036
    %v11038 = vand.u32 %v11037, 4294901760
    %v11039 = vsub.f32 %v11037, %v11038
    %v11040 = vand.u32 %v11039, 4294901760
    %11041 = vmatpush.msra.mxu0 %v11040
    %v11042 = vand.u32 %v641, 4294901760
    %11043 = vmatmul.f32.gmra.mxu0 %v11042
    %v11044 = vpop.f32.mrf.mxu0
    %v11045 = vadd.f32 %v10944, %v11044
    %11046 = vdwg.mxu0
    %v11047 = vand.u32 %v590, 4294901760
    %v11048 = vsub.f32 %v590, %v11047
    %11049 = vmatpush.msra.mxu0 %v11048
    %v11050 = vand.u32 %v589, 4294901760
    %v11051 = vsub.f32 %v589, %v11050
    %11052 = vmatpush.msra.mxu0 %v11051
    %v11053 = vand.u32 %v588, 4294901760
    %v11054 = vsub.f32 %v588, %v11053
    %11055 = vmatpush.msra.mxu0 %v11054
    %v11056 = vand.u32 %v587, 4294901760
    %v11057 = vsub.f32 %v587, %v11056
    %11058 = vmatpush.msra.mxu0 %v11057
    %v11059 = vand.u32 %v586, 4294901760
    %v11060 = vsub.f32 %v586, %v11059
    %11061 = vmatpush.msra.mxu0 %v11060
    %v11062 = vand.u32 %v585, 4294901760
    %v11063 = vsub.f32 %v585, %v11062
    %11064 = vmatpush.msra.mxu0 %v11063
    %v11065 = vand.u32 %v584, 4294901760
    %v11066 = vsub.f32 %v584, %v11065
    %11067 = vmatpush.msra.mxu0 %v11066
    %v11068 = vand.u32 %v583, 4294901760
    %v11069 = vsub.f32 %v583, %v11068
    %11070 = vmatpush.msra.mxu0 %v11069
    %v11071 = vand.u32 %v582, 4294901760
    %v11072 = vsub.f32 %v582, %v11071
    %11073 = vmatpush.msra.mxu0 %v11072
    %v11074 = vand.u32 %v581, 4294901760
    %v11075 = vsub.f32 %v581, %v11074
    %11076 = vmatpush.msra.mxu0 %v11075
    %v11077 = vand.u32 %v580, 4294901760
    %v11078 = vsub.f32 %v580, %v11077
    %11079 = vmatpush.msra.mxu0 %v11078
    %v11080 = vand.u32 %v579, 4294901760
    %v11081 = vsub.f32 %v579, %v11080
    %11082 = vmatpush.msra.mxu0 %v11081
    %v11083 = vand.u32 %v578, 4294901760
    %v11084 = vsub.f32 %v578, %v11083
    %11085 = vmatpush.msra.mxu0 %v11084
    %v11086 = vand.u32 %v577, 4294901760
    %v11087 = vsub.f32 %v577, %v11086
    %11088 = vmatpush.msra.mxu0 %v11087
    %v11089 = vand.u32 %v576, 4294901760
    %v11090 = vsub.f32 %v576, %v11089
    %11091 = vmatpush.msra.mxu0 %v11090
    %v11092 = vand.u32 %v575, 4294901760
    %v11093 = vsub.f32 %v575, %v11092
    %11094 = vmatpush.msra.mxu0 %v11093
    %v11095 = vand.u32 %v641, 4294901760
    %v11096 = vsub.f32 %v641, %v11095
    %11097 = vmatmul.f32.gmra.mxu0 %v11096
    %v11098 = vpop.f32.mrf.mxu0
    %v11099 = vadd.f32 %v11045, %v11098
    %11100 = vdwg.mxu0
    %v11101 = vand.u32 %v590, 4294901760
    %11102 = vmatpush.msra.mxu0 %v11101
    %v11103 = vand.u32 %v589, 4294901760
    %11104 = vmatpush.msra.mxu0 %v11103
    %v11105 = vand.u32 %v588, 4294901760
    %11106 = vmatpush.msra.mxu0 %v11105
    %v11107 = vand.u32 %v587, 4294901760
    %11108 = vmatpush.msra.mxu0 %v11107
    %v11109 = vand.u32 %v586, 4294901760
    %11110 = vmatpush.msra.mxu0 %v11109
    %v11111 = vand.u32 %v585, 4294901760
    %11112 = vmatpush.msra.mxu0 %v11111
    %v11113 = vand.u32 %v584, 4294901760
    %11114 = vmatpush.msra.mxu0 %v11113
    %v11115 = vand.u32 %v583, 4294901760
    %11116 = vmatpush.msra.mxu0 %v11115
    %v11117 = vand.u32 %v582, 4294901760
    %11118 = vmatpush.msra.mxu0 %v11117
    %v11119 = vand.u32 %v581, 4294901760
    %11120 = vmatpush.msra.mxu0 %v11119
    %v11121 = vand.u32 %v580, 4294901760
    %11122 = vmatpush.msra.mxu0 %v11121
    %v11123 = vand.u32 %v579, 4294901760
    %11124 = vmatpush.msra.mxu0 %v11123
    %v11125 = vand.u32 %v578, 4294901760
    %11126 = vmatpush.msra.mxu0 %v11125
    %v11127 = vand.u32 %v577, 4294901760
    %11128 = vmatpush.msra.mxu0 %v11127
    %v11129 = vand.u32 %v576, 4294901760
    %11130 = vmatpush.msra.mxu0 %v11129
    %v11131 = vand.u32 %v575, 4294901760
    %11132 = vmatpush.msra.mxu0 %v11131
    %v11133 = vand.u32 %v641, 4294901760
    %v11134 = vsub.f32 %v641, %v11133
    %v11135 = vand.u32 %v11134, 4294901760
    %11136 = vmatmul.f32.gmra.mxu0 %v11135
    %v11137 = vpop.f32.mrf.mxu0
    %v11138 = vadd.f32 %v11099, %v11137
    %11139 = vdwg.mxu0
    %v11140 = vand.u32 %v590, 4294901760
    %v11141 = vsub.f32 %v590, %v11140
    %v11142 = vand.u32 %v11141, 4294901760
    %11143 = vmatpush.msra.mxu0 %v11142
    %v11144 = vand.u32 %v589, 4294901760
    %v11145 = vsub.f32 %v589, %v11144
    %v11146 = vand.u32 %v11145, 4294901760
    %11147 = vmatpush.msra.mxu0 %v11146
    %v11148 = vand.u32 %v588, 4294901760
    %v11149 = vsub.f32 %v588, %v11148
    %v11150 = vand.u32 %v11149, 4294901760
    %11151 = vmatpush.msra.mxu0 %v11150
    %v11152 = vand.u32 %v587, 4294901760
    %v11153 = vsub.f32 %v587, %v11152
    %v11154 = vand.u32 %v11153, 4294901760
    %11155 = vmatpush.msra.mxu0 %v11154
    %v11156 = vand.u32 %v586, 4294901760
    %v11157 = vsub.f32 %v586, %v11156
    %v11158 = vand.u32 %v11157, 4294901760
    %11159 = vmatpush.msra.mxu0 %v11158
    %v11160 = vand.u32 %v585, 4294901760
    %v11161 = vsub.f32 %v585, %v11160
    %v11162 = vand.u32 %v11161, 4294901760
    %11163 = vmatpush.msra.mxu0 %v11162
    %v11164 = vand.u32 %v584, 4294901760
    %v11165 = vsub.f32 %v584, %v11164
    %v11166 = vand.u32 %v11165, 4294901760
    %11167 = vmatpush.msra.mxu0 %v11166
    %v11168 = vand.u32 %v583, 4294901760
    %v11169 = vsub.f32 %v583, %v11168
    %v11170 = vand.u32 %v11169, 4294901760
    %11171 = vmatpush.msra.mxu0 %v11170
    %v11172 = vand.u32 %v582, 4294901760
    %v11173 = vsub.f32 %v582, %v11172
    %v11174 = vand.u32 %v11173, 4294901760
    %11175 = vmatpush.msra.mxu0 %v11174
    %v11176 = vand.u32 %v581, 4294901760
    %v11177 = vsub.f32 %v581, %v11176
    %v11178 = vand.u32 %v11177, 4294901760
    %11179 = vmatpush.msra.mxu0 %v11178
    %v11180 = vand.u32 %v580, 4294901760
    %v11181 = vsub.f32 %v580, %v11180
    %v11182 = vand.u32 %v11181, 4294901760
    %11183 = vmatpush.msra.mxu0 %v11182
    %v11184 = vand.u32 %v579, 4294901760
    %v11185 = vsub.f32 %v579, %v11184
    %v11186 = vand.u32 %v11185, 4294901760
    %11187 = vmatpush.msra.mxu0 %v11186
    %v11188 = vand.u32 %v578, 4294901760
    %v11189 = vsub.f32 %v578, %v11188
    %v11190 = vand.u32 %v11189, 4294901760
    %11191 = vmatpush.msra.mxu0 %v11190
    %v11192 = vand.u32 %v577, 4294901760
    %v11193 = vsub.f32 %v577, %v11192
    %v11194 = vand.u32 %v11193, 4294901760
    %11195 = vmatpush.msra.mxu0 %v11194
    %v11196 = vand.u32 %v576, 4294901760
    %v11197 = vsub.f32 %v576, %v11196
    %v11198 = vand.u32 %v11197, 4294901760
    %11199 = vmatpush.msra.mxu0 %v11198
    %v11200 = vand.u32 %v575, 4294901760
    %v11201 = vsub.f32 %v575, %v11200
    %v11202 = vand.u32 %v11201, 4294901760
    %11203 = vmatpush.msra.mxu0 %v11202
    %v11204 = vand.u32 %v641, 4294901760
    %11205 = vmatmul.f32.gmra.mxu0 %v11204
    %v11206 = vpop.f32.mrf.mxu0
    %v11207 = vadd.f32 %v11138, %v11206
    %11208 = vdwg.mxu0
    %v11209 = vand.u32 %v590, 4294901760
    %11210 = vmatpush.msra.mxu0 %v11209
    %v11211 = vand.u32 %v589, 4294901760
    %11212 = vmatpush.msra.mxu0 %v11211
    %v11213 = vand.u32 %v588, 4294901760
    %11214 = vmatpush.msra.mxu0 %v11213
    %v11215 = vand.u32 %v587, 4294901760
    %11216 = vmatpush.msra.mxu0 %v11215
    %v11217 = vand.u32 %v586, 4294901760
    %11218 = vmatpush.msra.mxu0 %v11217
    %v11219 = vand.u32 %v585, 4294901760
    %11220 = vmatpush.msra.mxu0 %v11219
    %v11221 = vand.u32 %v584, 4294901760
    %11222 = vmatpush.msra.mxu0 %v11221
    %v11223 = vand.u32 %v583, 4294901760
    %11224 = vmatpush.msra.mxu0 %v11223
    %v11225 = vand.u32 %v582, 4294901760
    %11226 = vmatpush.msra.mxu0 %v11225
    %v11227 = vand.u32 %v581, 4294901760
    %11228 = vmatpush.msra.mxu0 %v11227
    %v11229 = vand.u32 %v580, 4294901760
    %11230 = vmatpush.msra.mxu0 %v11229
    %v11231 = vand.u32 %v579, 4294901760
    %11232 = vmatpush.msra.mxu0 %v11231
    %v11233 = vand.u32 %v578, 4294901760
    %11234 = vmatpush.msra.mxu0 %v11233
    %v11235 = vand.u32 %v577, 4294901760
    %11236 = vmatpush.msra.mxu0 %v11235
    %v11237 = vand.u32 %v576, 4294901760
    %11238 = vmatpush.msra.mxu0 %v11237
    %v11239 = vand.u32 %v575, 4294901760
    %11240 = vmatpush.msra.mxu0 %v11239
    %v11241 = vand.u32 %v641, 4294901760
    %11242 = vmatmul.f32.gmra.mxu0 %v11241
    %v11243 = vpop.f32.mrf.mxu0
    %v11244 = vadd.f32 %v11207, %v11243
    %11245 = vdwg.mxu0
    %v11246 = vand.u32 %v606, 4294901760
    %11247 = vmatpush.msra.mxu0 %v11246
    %v11248 = vand.u32 %v605, 4294901760
    %11249 = vmatpush.msra.mxu0 %v11248
    %v11250 = vand.u32 %v604, 4294901760
    %11251 = vmatpush.msra.mxu0 %v11250
    %v11252 = vand.u32 %v603, 4294901760
    %11253 = vmatpush.msra.mxu0 %v11252
    %v11254 = vand.u32 %v602, 4294901760
    %11255 = vmatpush.msra.mxu0 %v11254
    %v11256 = vand.u32 %v601, 4294901760
    %11257 = vmatpush.msra.mxu0 %v11256
    %v11258 = vand.u32 %v600, 4294901760
    %11259 = vmatpush.msra.mxu0 %v11258
    %v11260 = vand.u32 %v599, 4294901760
    %11261 = vmatpush.msra.mxu0 %v11260
    %v11262 = vand.u32 %v598, 4294901760
    %11263 = vmatpush.msra.mxu0 %v11262
    %v11264 = vand.u32 %v597, 4294901760
    %11265 = vmatpush.msra.mxu0 %v11264
    %v11266 = vand.u32 %v596, 4294901760
    %11267 = vmatpush.msra.mxu0 %v11266
    %v11268 = vand.u32 %v595, 4294901760
    %11269 = vmatpush.msra.mxu0 %v11268
    %v11270 = vand.u32 %v594, 4294901760
    %11271 = vmatpush.msra.mxu0 %v11270
    %v11272 = vand.u32 %v593, 4294901760
    %11273 = vmatpush.msra.mxu0 %v11272
    %v11274 = vand.u32 %v592, 4294901760
    %11275 = vmatpush.msra.mxu0 %v11274
    %v11276 = vand.u32 %v591, 4294901760
    %11277 = vmatpush.msra.mxu0 %v11276
    %v11278 = vand.u32 %v642, 4294901760
    %v11279 = vsub.f32 %v642, %v11278
    %v11280 = vand.u32 %v11279, 4294901760
    %v11281 = vsub.f32 %v11279, %v11280
    %v11282 = vand.u32 %v11281, 4294901760
    %11283 = vmatmul.f32.gmra.mxu0 %v11282
    %v11284 = vpop.f32.mrf.mxu0
    %v11285 = vadd.f32 %v11244, %v11284
    %11286 = vdwg.mxu0
    %v11287 = vand.u32 %v606, 4294901760
    %v11288 = vsub.f32 %v606, %v11287
    %v11289 = vand.u32 %v11288, 4294901760
    %v11290 = vsub.f32 %v11288, %v11289
    %v11291 = vand.u32 %v11290, 4294901760
    %11292 = vmatpush.msra.mxu0 %v11291
    %v11293 = vand.u32 %v605, 4294901760
    %v11294 = vsub.f32 %v605, %v11293
    %v11295 = vand.u32 %v11294, 4294901760
    %v11296 = vsub.f32 %v11294, %v11295
    %v11297 = vand.u32 %v11296, 4294901760
    %11298 = vmatpush.msra.mxu0 %v11297
    %v11299 = vand.u32 %v604, 4294901760
    %v11300 = vsub.f32 %v604, %v11299
    %v11301 = vand.u32 %v11300, 4294901760
    %v11302 = vsub.f32 %v11300, %v11301
    %v11303 = vand.u32 %v11302, 4294901760
    %11304 = vmatpush.msra.mxu0 %v11303
    %v11305 = vand.u32 %v603, 4294901760
    %v11306 = vsub.f32 %v603, %v11305
    %v11307 = vand.u32 %v11306, 4294901760
    %v11308 = vsub.f32 %v11306, %v11307
    %v11309 = vand.u32 %v11308, 4294901760
    %11310 = vmatpush.msra.mxu0 %v11309
    %v11311 = vand.u32 %v602, 4294901760
    %v11312 = vsub.f32 %v602, %v11311
    %v11313 = vand.u32 %v11312, 4294901760
    %v11314 = vsub.f32 %v11312, %v11313
    %v11315 = vand.u32 %v11314, 4294901760
    %11316 = vmatpush.msra.mxu0 %v11315
    %v11317 = vand.u32 %v601, 4294901760
    %v11318 = vsub.f32 %v601, %v11317
    %v11319 = vand.u32 %v11318, 4294901760
    %v11320 = vsub.f32 %v11318, %v11319
    %v11321 = vand.u32 %v11320, 4294901760
    %11322 = vmatpush.msra.mxu0 %v11321
    %v11323 = vand.u32 %v600, 4294901760
    %v11324 = vsub.f32 %v600, %v11323
    %v11325 = vand.u32 %v11324, 4294901760
    %v11326 = vsub.f32 %v11324, %v11325
    %v11327 = vand.u32 %v11326, 4294901760
    %11328 = vmatpush.msra.mxu0 %v11327
    %v11329 = vand.u32 %v599, 4294901760
    %v11330 = vsub.f32 %v599, %v11329
    %v11331 = vand.u32 %v11330, 4294901760
    %v11332 = vsub.f32 %v11330, %v11331
    %v11333 = vand.u32 %v11332, 4294901760
    %11334 = vmatpush.msra.mxu0 %v11333
    %v11335 = vand.u32 %v598, 4294901760
    %v11336 = vsub.f32 %v598, %v11335
    %v11337 = vand.u32 %v11336, 4294901760
    %v11338 = vsub.f32 %v11336, %v11337
    %v11339 = vand.u32 %v11338, 4294901760
    %11340 = vmatpush.msra.mxu0 %v11339
    %v11341 = vand.u32 %v597, 4294901760
    %v11342 = vsub.f32 %v597, %v11341
    %v11343 = vand.u32 %v11342, 4294901760
    %v11344 = vsub.f32 %v11342, %v11343
    %v11345 = vand.u32 %v11344, 4294901760
    %11346 = vmatpush.msra.mxu0 %v11345
    %v11347 = vand.u32 %v596, 4294901760
    %v11348 = vsub.f32 %v596, %v11347
    %v11349 = vand.u32 %v11348, 4294901760
    %v11350 = vsub.f32 %v11348, %v11349
    %v11351 = vand.u32 %v11350, 4294901760
    %11352 = vmatpush.msra.mxu0 %v11351
    %v11353 = vand.u32 %v595, 4294901760
    %v11354 = vsub.f32 %v595, %v11353
    %v11355 = vand.u32 %v11354, 4294901760
    %v11356 = vsub.f32 %v11354, %v11355
    %v11357 = vand.u32 %v11356, 4294901760
    %11358 = vmatpush.msra.mxu0 %v11357
    %v11359 = vand.u32 %v594, 4294901760
    %v11360 = vsub.f32 %v594, %v11359
    %v11361 = vand.u32 %v11360, 4294901760
    %v11362 = vsub.f32 %v11360, %v11361
    %v11363 = vand.u32 %v11362, 4294901760
    %11364 = vmatpush.msra.mxu0 %v11363
    %v11365 = vand.u32 %v593, 4294901760
    %v11366 = vsub.f32 %v593, %v11365
    %v11367 = vand.u32 %v11366, 4294901760
    %v11368 = vsub.f32 %v11366, %v11367
    %v11369 = vand.u32 %v11368, 4294901760
    %11370 = vmatpush.msra.mxu0 %v11369
    %v11371 = vand.u32 %v592, 4294901760
    %v11372 = vsub.f32 %v592, %v11371
    %v11373 = vand.u32 %v11372, 4294901760
    %v11374 = vsub.f32 %v11372, %v11373
    %v11375 = vand.u32 %v11374, 4294901760
    %11376 = vmatpush.msra.mxu0 %v11375
    %v11377 = vand.u32 %v591, 4294901760
    %v11378 = vsub.f32 %v591, %v11377
    %v11379 = vand.u32 %v11378, 4294901760
    %v11380 = vsub.f32 %v11378, %v11379
    %v11381 = vand.u32 %v11380, 4294901760
    %11382 = vmatpush.msra.mxu0 %v11381
    %v11383 = vand.u32 %v642, 4294901760
    %11384 = vmatmul.f32.gmra.mxu0 %v11383
    %v11385 = vpop.f32.mrf.mxu0
    %v11386 = vadd.f32 %v11285, %v11385
    %11387 = vdwg.mxu0
    %v11388 = vand.u32 %v606, 4294901760
    %v11389 = vsub.f32 %v606, %v11388
    %11390 = vmatpush.msra.mxu0 %v11389
    %v11391 = vand.u32 %v605, 4294901760
    %v11392 = vsub.f32 %v605, %v11391
    %11393 = vmatpush.msra.mxu0 %v11392
    %v11394 = vand.u32 %v604, 4294901760
    %v11395 = vsub.f32 %v604, %v11394
    %11396 = vmatpush.msra.mxu0 %v11395
    %v11397 = vand.u32 %v603, 4294901760
    %v11398 = vsub.f32 %v603, %v11397
    %11399 = vmatpush.msra.mxu0 %v11398
    %v11400 = vand.u32 %v602, 4294901760
    %v11401 = vsub.f32 %v602, %v11400
    %11402 = vmatpush.msra.mxu0 %v11401
    %v11403 = vand.u32 %v601, 4294901760
    %v11404 = vsub.f32 %v601, %v11403
    %11405 = vmatpush.msra.mxu0 %v11404
    %v11406 = vand.u32 %v600, 4294901760
    %v11407 = vsub.f32 %v600, %v11406
    %11408 = vmatpush.msra.mxu0 %v11407
    %v11409 = vand.u32 %v599, 4294901760
    %v11410 = vsub.f32 %v599, %v11409
    %11411 = vmatpush.msra.mxu0 %v11410
    %v11412 = vand.u32 %v598, 4294901760
    %v11413 = vsub.f32 %v598, %v11412
    %11414 = vmatpush.msra.mxu0 %v11413
    %v11415 = vand.u32 %v597, 4294901760
    %v11416 = vsub.f32 %v597, %v11415
    %11417 = vmatpush.msra.mxu0 %v11416
    %v11418 = vand.u32 %v596, 4294901760
    %v11419 = vsub.f32 %v596, %v11418
    %11420 = vmatpush.msra.mxu0 %v11419
    %v11421 = vand.u32 %v595, 4294901760
    %v11422 = vsub.f32 %v595, %v11421
    %11423 = vmatpush.msra.mxu0 %v11422
    %v11424 = vand.u32 %v594, 4294901760
    %v11425 = vsub.f32 %v594, %v11424
    %11426 = vmatpush.msra.mxu0 %v11425
    %v11427 = vand.u32 %v593, 4294901760
    %v11428 = vsub.f32 %v593, %v11427
    %11429 = vmatpush.msra.mxu0 %v11428
    %v11430 = vand.u32 %v592, 4294901760
    %v11431 = vsub.f32 %v592, %v11430
    %11432 = vmatpush.msra.mxu0 %v11431
    %v11433 = vand.u32 %v591, 4294901760
    %v11434 = vsub.f32 %v591, %v11433
    %11435 = vmatpush.msra.mxu0 %v11434
    %v11436 = vand.u32 %v642, 4294901760
    %v11437 = vsub.f32 %v642, %v11436
    %11438 = vmatmul.f32.gmra.mxu0 %v11437
    %v11439 = vpop.f32.mrf.mxu0
    %v11440 = vadd.f32 %v11386, %v11439
    %11441 = vdwg.mxu0
    %v11442 = vand.u32 %v606, 4294901760
    %11443 = vmatpush.msra.mxu0 %v11442
    %v11444 = vand.u32 %v605, 4294901760
    %11445 = vmatpush.msra.mxu0 %v11444
    %v11446 = vand.u32 %v604, 4294901760
    %11447 = vmatpush.msra.mxu0 %v11446
    %v11448 = vand.u32 %v603, 4294901760
    %11449 = vmatpush.msra.mxu0 %v11448
    %v11450 = vand.u32 %v602, 4294901760
    %11451 = vmatpush.msra.mxu0 %v11450
    %v11452 = vand.u32 %v601, 4294901760
    %11453 = vmatpush.msra.mxu0 %v11452
    %v11454 = vand.u32 %v600, 4294901760
    %11455 = vmatpush.msra.mxu0 %v11454
    %v11456 = vand.u32 %v599, 4294901760
    %11457 = vmatpush.msra.mxu0 %v11456
    %v11458 = vand.u32 %v598, 4294901760
    %11459 = vmatpush.msra.mxu0 %v11458
    %v11460 = vand.u32 %v597, 4294901760
    %11461 = vmatpush.msra.mxu0 %v11460
    %v11462 = vand.u32 %v596, 4294901760
    %11463 = vmatpush.msra.mxu0 %v11462
    %v11464 = vand.u32 %v595, 4294901760
    %11465 = vmatpush.msra.mxu0 %v11464
    %v11466 = vand.u32 %v594, 4294901760
    %11467 = vmatpush.msra.mxu0 %v11466
    %v11468 = vand.u32 %v593, 4294901760
    %11469 = vmatpush.msra.mxu0 %v11468
    %v11470 = vand.u32 %v592, 4294901760
    %11471 = vmatpush.msra.mxu0 %v11470
    %v11472 = vand.u32 %v591, 4294901760
    %11473 = vmatpush.msra.mxu0 %v11472
    %v11474 = vand.u32 %v642, 4294901760
    %v11475 = vsub.f32 %v642, %v11474
    %v11476 = vand.u32 %v11475, 4294901760
    %11477 = vmatmul.f32.gmra.mxu0 %v11476
    %v11478 = vpop.f32.mrf.mxu0
    %v11479 = vadd.f32 %v11440, %v11478
    %11480 = vdwg.mxu0
    %v11481 = vand.u32 %v606, 4294901760
    %v11482 = vsub.f32 %v606, %v11481
    %v11483 = vand.u32 %v11482, 4294901760
    %11484 = vmatpush.msra.mxu0 %v11483
    %v11485 = vand.u32 %v605, 4294901760
    %v11486 = vsub.f32 %v605, %v11485
    %v11487 = vand.u32 %v11486, 4294901760
    %11488 = vmatpush.msra.mxu0 %v11487
    %v11489 = vand.u32 %v604, 4294901760
    %v11490 = vsub.f32 %v604, %v11489
    %v11491 = vand.u32 %v11490, 4294901760
    %11492 = vmatpush.msra.mxu0 %v11491
    %v11493 = vand.u32 %v603, 4294901760
    %v11494 = vsub.f32 %v603, %v11493
    %v11495 = vand.u32 %v11494, 4294901760
    %11496 = vmatpush.msra.mxu0 %v11495
    %v11497 = vand.u32 %v602, 4294901760
    %v11498 = vsub.f32 %v602, %v11497
    %v11499 = vand.u32 %v11498, 4294901760
    %11500 = vmatpush.msra.mxu0 %v11499
    %v11501 = vand.u32 %v601, 4294901760
    %v11502 = vsub.f32 %v601, %v11501
    %v11503 = vand.u32 %v11502, 4294901760
    %11504 = vmatpush.msra.mxu0 %v11503
    %v11505 = vand.u32 %v600, 4294901760
    %v11506 = vsub.f32 %v600, %v11505
    %v11507 = vand.u32 %v11506, 4294901760
    %11508 = vmatpush.msra.mxu0 %v11507
    %v11509 = vand.u32 %v599, 4294901760
    %v11510 = vsub.f32 %v599, %v11509
    %v11511 = vand.u32 %v11510, 4294901760
    %11512 = vmatpush.msra.mxu0 %v11511
    %v11513 = vand.u32 %v598, 4294901760
    %v11514 = vsub.f32 %v598, %v11513
    %v11515 = vand.u32 %v11514, 4294901760
    %11516 = vmatpush.msra.mxu0 %v11515
    %v11517 = vand.u32 %v597, 4294901760
    %v11518 = vsub.f32 %v597, %v11517
    %v11519 = vand.u32 %v11518, 4294901760
    %11520 = vmatpush.msra.mxu0 %v11519
    %v11521 = vand.u32 %v596, 4294901760
    %v11522 = vsub.f32 %v596, %v11521
    %v11523 = vand.u32 %v11522, 4294901760
    %11524 = vmatpush.msra.mxu0 %v11523
    %v11525 = vand.u32 %v595, 4294901760
    %v11526 = vsub.f32 %v595, %v11525
    %v11527 = vand.u32 %v11526, 4294901760
    %11528 = vmatpush.msra.mxu0 %v11527
    %v11529 = vand.u32 %v594, 4294901760
    %v11530 = vsub.f32 %v594, %v11529
    %v11531 = vand.u32 %v11530, 4294901760
    %11532 = vmatpush.msra.mxu0 %v11531
    %v11533 = vand.u32 %v593, 4294901760
    %v11534 = vsub.f32 %v593, %v11533
    %v11535 = vand.u32 %v11534, 4294901760
    %11536 = vmatpush.msra.mxu0 %v11535
    %v11537 = vand.u32 %v592, 4294901760
    %v11538 = vsub.f32 %v592, %v11537
    %v11539 = vand.u32 %v11538, 4294901760
    %11540 = vmatpush.msra.mxu0 %v11539
    %v11541 = vand.u32 %v591, 4294901760
    %v11542 = vsub.f32 %v591, %v11541
    %v11543 = vand.u32 %v11542, 4294901760
    %11544 = vmatpush.msra.mxu0 %v11543
    %v11545 = vand.u32 %v642, 4294901760
    %11546 = vmatmul.f32.gmra.mxu0 %v11545
    %v11547 = vpop.f32.mrf.mxu0
    %v11548 = vadd.f32 %v11479, %v11547
    %11549 = vdwg.mxu0
    %v11550 = vand.u32 %v606, 4294901760
    %11551 = vmatpush.msra.mxu0 %v11550
    %v11552 = vand.u32 %v605, 4294901760
    %11553 = vmatpush.msra.mxu0 %v11552
    %v11554 = vand.u32 %v604, 4294901760
    %11555 = vmatpush.msra.mxu0 %v11554
    %v11556 = vand.u32 %v603, 4294901760
    %11557 = vmatpush.msra.mxu0 %v11556
    %v11558 = vand.u32 %v602, 4294901760
    %11559 = vmatpush.msra.mxu0 %v11558
    %v11560 = vand.u32 %v601, 4294901760
    %11561 = vmatpush.msra.mxu0 %v11560
    %v11562 = vand.u32 %v600, 4294901760
    %11563 = vmatpush.msra.mxu0 %v11562
    %v11564 = vand.u32 %v599, 4294901760
    %11565 = vmatpush.msra.mxu0 %v11564
    %v11566 = vand.u32 %v598, 4294901760
    %11567 = vmatpush.msra.mxu0 %v11566
    %v11568 = vand.u32 %v597, 4294901760
    %11569 = vmatpush.msra.mxu0 %v11568
    %v11570 = vand.u32 %v596, 4294901760
    %11571 = vmatpush.msra.mxu0 %v11570
    %v11572 = vand.u32 %v595, 4294901760
    %11573 = vmatpush.msra.mxu0 %v11572
    %v11574 = vand.u32 %v594, 4294901760
    %11575 = vmatpush.msra.mxu0 %v11574
    %v11576 = vand.u32 %v593, 4294901760
    %11577 = vmatpush.msra.mxu0 %v11576
    %v11578 = vand.u32 %v592, 4294901760
    %11579 = vmatpush.msra.mxu0 %v11578
    %v11580 = vand.u32 %v591, 4294901760
    %11581 = vmatpush.msra.mxu0 %v11580
    %v11582 = vand.u32 %v642, 4294901760
    %11583 = vmatmul.f32.gmra.mxu0 %v11582
    %v11584 = vpop.f32.mrf.mxu0
    %v11585 = vadd.f32 %v11548, %v11584
    %11586 = vdwg.mxu0
    %v11587 = vmax.f32 %v11585, 0.0
    %v11588 = vand.u32 2147483647, %v11585
    %v11589 = vsub.f32 0.0, %v11588
    %v11590 = vmul.f32 %v11589, 1.442695
    %v11591 = vpow.pop %v11590
    %v11592 = vadd.f32 %v11591, 1.0
    %v11593 = vlog2.pop %v11592
    %v11594 = vmul.f32 %v11593, 0.6931472
    %v11595 = vmul.f32 -0.5, %v11591
    %v11596 = vadd.f32 %v11595, 1.0
    %v11597 = vmul.f32 %v11596, %v11591
    %v11598 = vand.u32 2147483647, %v11591
    %vm11599 = vcmp.lt.f32.partialorder %v11598, 0.0004427343
    %v11600 = vsel %vm11599, %v11597, %v11594
    %v11601 = vadd.f32 %v11587, %v11600
    %11602 = vst [vmem:[#allocation10] sm:$0x1] %v11601
    // Predicated region
    $region34: #{tpu_custom_call.1} parent=1 // pred_check
      _
    $region35: #{tpu_custom_call.1} parent=1 // pred_check_branch
      %11604 = sbr.rel (0) target = $region37
    $region36: #{tpu_custom_call.1} parent=1 // pred_region
      %11606 = vsyncadd [#allocation4], 0
      %s11608 = sshll.u32 [#allocation10], 4
      %s11609 = int_to_ptr.vmem [resolvable:$true] %s11608
      %s11610 = sshll.u32 %s4, 4
      %s11611 = int_to_ptr.hbm [resolvable:$true] %s11610
      %11613 = dma.vmem_to_hbm [thread:$0]  %s11609, 16, %s11611, [#allocation4]
    $region37: #{tpu_custom_call.1} parent=1 // pred_fallthru
      _
    // Predicated region
    $region38: #{tpu_custom_call.1} parent=1 // pred_check
      _
    $region39: #{tpu_custom_call.1} parent=1 // pred_check_branch
      %11615 = sbr.rel (0) target = $region41
    $region40: #{tpu_custom_call.1} parent=1 // pred_region
      %11617 = dma.done [#allocation4], 16
    $region41: #{tpu_custom_call.1} parent=1 // pred_fallthru
      _
    %11618 = vsyncpa [#allocation3], 1
    %11619 = vsyncpa [#allocation6], 1
    %11620 = vsyncpa [#allocation9], 1
    %11621 = vsyncpa [#allocation4], 1

</llo_original>
